<compile_context>
chip_gen: v7x
topology: tpu7x:2x2x1
jax: 0.10.0
libtpu: 0.0.40
codegen_flags: <defaults>
</compile_context>

<pallas_src>
import math

import jax
import jax.numpy as jnp
from jax.experimental import pallas as pl
from jax.experimental.pallas import tpu as pltpu  # noqa: F401  (not needed: gridless, VMEM-default call)


# ----------------------------------------------------------------------------
# Parameter construction (PyTorch-default-style uniform init, deterministic)
# ----------------------------------------------------------------------------
def _uniform(key, shape, k):
    return jax.random.uniform(key, shape, jnp.float32, minval=-k, maxval=k)


def init_linear(key, fan_in, fan_out):
    k = 1.0 / math.sqrt(fan_in)
    kw, kb = jax.random.split(key)
    return {"w": _uniform(kw, (fan_in, fan_out), k),
            "b": _uniform(kb, (1, fan_out), k)}


def init_lstm(key, in_size, hidden):
    k = 1.0 / math.sqrt(hidden)
    k1, k2, k3, k4 = jax.random.split(key, 4)
    return {"wih": _uniform(k1, (in_size, 4 * hidden), k),
            "whh": _uniform(k2, (hidden, 4 * hidden), k),
            "b": _uniform(k3, (1, 4 * hidden), k)
                 + _uniform(k4, (1, 4 * hidden), k)}   # b_ih + b_hh folded


def init_params(key, cfg):
    ks = jax.random.split(key, 10)
    Fn, Fe = cfg["node_feature_size"], cfg["edge_feature_size"]
    Hn = cfg["node_hidden_size"]
    Hs = cfg["edge_hidden_size_spatial"]
    Ht = cfg["edge_hidden_size_temporal"]
    No = cfg["node_output_size"]
    return {
        "temporal": {"enc": init_linear(ks[0], Fe, Ht),
                     "lstm": init_lstm(ks[1], Ht, Ht)},
        "spatial": {"enc": init_linear(ks[2], Fe, Hs),
                    "lstm": init_lstm(ks[3], Hs, Hs)},
        "node": {"enc": init_linear(ks[4], Fn, Hn),
                 "edge_embed": init_linear(ks[5], Ht + Hs, Hn),
                 "lstm": init_lstm(ks[6], 2 * Hn, Hn),
                 "out": init_linear(ks[7], Hn, No)},
        "att": init_linear(ks[8], Fe, Fe),
        "bn": {"gamma": jnp.ones((1, No), jnp.float32),
               "beta": jnp.zeros((1, No), jnp.float32)},
        "classifier": init_linear(ks[9], No, cfg["output_size"]),
    }


# ----------------------------------------------------------------------------
# Single fused kernel: batched pre-pass over all frames + unrolled recurrence
# ----------------------------------------------------------------------------
def _build_kernel(N, B, C, Tm1, NBp, Ht, Hs, Hn, attention, use_bn):
    eps = 1e-5

    def dot(a, b):
        return jnp.dot(a, b, preferred_element_type=jnp.float32)

    def relu(x):
        return jnp.maximum(x, 0.0)

    def lstm_gates(g, c_prev, H):
        # PyTorch LSTMCell gate order (i, f, g, o); 4H = 128 -> one lane vreg.
        i = jax.nn.sigmoid(g[:, 0 * H:1 * H])
        f = jax.nn.sigmoid(g[:, 1 * H:2 * H])
        gg = jnp.tanh(g[:, 2 * H:3 * H])
        o = jax.nn.sigmoid(g[:, 3 * H:4 * H])
        c_new = f * c_prev + i * gg
        return o * jnp.tanh(c_new), c_new

    def kernel(tfeat_ref, sfeat_ref, nfeat_ref,
               Wte, bte, Wtih, Wthh, bt,
               Wse, bse, Wsih, Wshh, bs,
               Wne, bne, Weet, Wees, bee,
               Wniha, Wnihb, Wnhh, bnl,
               Wout, bout,
               Wa, ba, gamma, beta, Wc, bc,
               out_ref):
        # ------------------------------------------------------------------
        # Pre-pass: everything that does not depend on the recurrent state,
        # computed for ALL (T-1) frames in a few batched MXU passes.
        # ------------------------------------------------------------------
        tfeat = tfeat_ref[...]                       # ((T-1)*NBp, Fe)
        nfeat = nfeat_ref[...]                       # ((T-1)*NBp, Fn)

        enc_t = relu(dot(tfeat, Wte[...]) + bte[...])        # (R, Ht)
        gt_in = dot(enc_t, Wtih[...]) + bt[...]              # (R, 4Ht)

        enc_n = relu(dot(nfeat, Wne[...]) + bne[...])        # (R, Hn)
        gn_in = dot(enc_n, Wniha[...]) + bnl[...]            # (R, 4Hn)

        if attention:
            # Reference ATTLayer: raw dot-product weights, normalised by the
            # (possibly signed) sum via exact division, exactly as torch.div.
            m_i = dot(tfeat, Wa[...]) + ba[...]              # (R, Fe)
            e = []
            for c in range(C):
                m_j = dot(sfeat_ref[c], Wa[...]) + ba[...]   # (R, Fe)
                e.append(jnp.sum(m_i * m_j, axis=-1, keepdims=True))
            e_sum = e[0]
            for c in range(1, C):
                e_sum = e_sum + e[c]
            inv = 1.0 / e_sum
            edge_all = (e[0] * inv) * sfeat_ref[0]
            for c in range(1, C):
                edge_all = edge_all + (e[c] * inv) * sfeat_ref[c]
        else:
            edge_all = sfeat_ref[0]
            for c in range(1, C):
                edge_all = edge_all + sfeat_ref[c]

        enc_s = relu(dot(edge_all, Wse[...]) + bse[...])     # (R, Hs)
        gs_in = dot(enc_s, Wsih[...]) + bs[...]              # (R, 4Hs)

        # ------------------------------------------------------------------
        # Recurrent loop over frames (statically unrolled; states in vregs).
        # Only the state-dependent matmuls remain on the serial chain.
        # ------------------------------------------------------------------
        h_t = jnp.zeros((NBp, Ht), jnp.float32)
        c_t = jnp.zeros((NBp, Ht), jnp.float32)
        h_s = jnp.zeros((NBp, Hs), jnp.float32)
        c_s = jnp.zeros((NBp, Hs), jnp.float32)
        h_n = jnp.zeros((NBp, Hn), jnp.float32)
        c_n = jnp.zeros((NBp, Hn), jnp.float32)

        for t in range(Tm1):
            r0 = t * NBp                                      # sublane-aligned
            # TemporalEdgeRNN
            g_t = gt_in[r0:r0 + NBp, :] + dot(h_t, Wthh[...])
            h_t, c_t = lstm_gates(g_t, c_t, Ht)
            # SpatialEdgeRNN
            g_s = gs_in[r0:r0 + NBp, :] + dot(h_s, Wshh[...])
            h_s, c_s = lstm_gates(g_s, c_s, Hs)
            # SegmentNodeRNN: edge embedding of [h_t|h_s] (split-weight sum)
            edges = relu(dot(h_t, Weet[...]) + dot(h_s, Wees[...]) + bee[...])
            g_n = (gn_in[r0:r0 + NBp, :] + dot(edges, Wnihb[...])
                   + dot(h_n, Wnhh[...]))
            h_n, c_n = lstm_gates(g_n, c_n, Hn)

        # ------------------------------------------------------------------
        # Head: node output linear -> sum over nodes -> BN -> classifier ->
        # softmax (runs once).
        # ------------------------------------------------------------------
        node_out = dot(h_n, Wout[...]) + bout[...]            # (NBp, No)
        acc = node_out[0:B, :]
        for ni in range(1, N):                                # pad rows ignored
            acc = acc + node_out[ni * B:(ni + 1) * B, :]
        x = acc                                               # (B, No)
        if use_bn:
            # BatchNorm1d training-mode batch statistics (reference path taken
            # when true_batch_size > 1 with the module in training mode).
            mean = jnp.mean(x, axis=0, keepdims=True)
            var = jnp.mean(jnp.square(x - mean), axis=0, keepdims=True)
            x = (x - mean) * jax.lax.rsqrt(var + eps) * gamma[...] + beta[...]
        logits = dot(x, Wc[...]) + bc[...]
        mx = jnp.max(logits, axis=-1, keepdims=True)
        ex = jnp.exp(logits - mx)
        out_ref[...] = ex / jnp.sum(ex, axis=-1, keepdims=True)

    return kernel


# ----------------------------------------------------------------------------
# Forward pass: host relayout + one gridless pallas_call
# ----------------------------------------------------------------------------
def srnn_forward(params, cfg, node_features, spatial_edge_features,
                 temporal_edge_features):
    N = cfg["node_num"]
    B, T = node_features.shape[0], node_features.shape[1]
    assert T >= 2, "SRNN forward needs at least 2 frames (frame 0 is skipped)"
    C = N - 1
    Fn = cfg["node_feature_size"]
    Fe = cfg["edge_feature_size"]
    Ht = cfg["edge_hidden_size_temporal"]
    Hs = cfg["edge_hidden_size_spatial"]
    Hn = cfg["node_hidden_size"]
    Out = cfg["output_size"]
    Tm1 = T - 1
    NB = N * B
    NBp = ((NB + 7) // 8) * 8            # pad rows so every frame slab is tile-aligned
    attention = bool(cfg["attention"])
    use_bn = B > 1                       # mirrors `if true_batch_size > 1: BatchNorm_1(...)`

    # ---- host-side layout: row = node-major/batch-minor, padded to NBp ------
    def to_rows(x, frame_lo, frame_hi):
        # x: (B, T, N, F) -> (Tm1*NBp, F)
        x = jnp.transpose(x, (1, 2, 0, 3))[frame_lo:frame_hi]     # (Tm1, N, B, F)
        F = x.shape[-1]
        x = x.reshape(Tm1, NB, F)
        x = jnp.pad(x, ((0, 0), (0, NBp - NB), (0, 0)))
        return x.reshape(Tm1 * NBp, F)

    tfeat = to_rows(temporal_edge_features, 0, Tm1)   # frame-1 temporal edges
    nfeat = to_rows(node_features, 1, T)              # current-frame node feats

    # spatial edges: (C, Tm1*NBp, Fe); same row layout, neighbour index leading
    gather_idx = jnp.array([ni * (N - 1) + nj
                            for ni in range(N) for nj in range(N) if nj != ni],
                           dtype=jnp.int32)                       # (N*C,)
    s = spatial_edge_features[:, 1:, :, :][:, :, gather_idx, :]   # (B, Tm1, N*C, Fe)
    s = s.reshape(B, Tm1, N, C, Fe)
    s = jnp.transpose(s, (3, 1, 2, 0, 4)).reshape(C, Tm1, NB, Fe)
    s = jnp.pad(s, ((0, 0), (0, 0), (0, NBp - NB), (0, 0)))
    sfeat = s.reshape(C, Tm1 * NBp, Fe)

    # ---- weights: split the two concatenation matrices on the host ----------
    pt, ps, pn = params["temporal"], params["spatial"], params["node"]
    wee = pn["edge_embed"]["w"]        # (Ht+Hs, Hn)
    wih_n = pn["lstm"]["wih"]          # (2*Hn, 4*Hn)
    weights = [
        pt["enc"]["w"], pt["enc"]["b"],
        pt["lstm"]["wih"], pt["lstm"]["whh"], pt["lstm"]["b"],
        ps["enc"]["w"], ps["enc"]["b"],
        ps["lstm"]["wih"], ps["lstm"]["whh"], ps["lstm"]["b"],
        pn["enc"]["w"], pn["enc"]["b"],
        wee[:Ht, :], wee[Ht:, :], pn["edge_embed"]["b"],
        wih_n[:Hn, :], wih_n[Hn:, :], pn["lstm"]["whh"], pn["lstm"]["b"],
        pn["out"]["w"], pn["out"]["b"],
        params["att"]["w"], params["att"]["b"],
        params["bn"]["gamma"], params["bn"]["beta"],
        params["classifier"]["w"], params["classifier"]["b"],
    ]

    kernel = _build_kernel(N, B, C, Tm1, NBp, Ht, Hs, Hn, attention, use_bn)

    # Gridless call: every operand lives whole in VMEM for the single invocation.
    return pl.pallas_call(
        kernel,
        out_shape=jax.ShapeDtypeStruct((B, Out), jnp.float32),
    )(tfeat, sfeat, nfeat, *weights)


# ----------------------------------------------------------------------------
if __name__ == "__main__":
    cfg = dict(batch_size=2, attention=True, node_num=3,
               node_feature_size=8, edge_feature_size=8,
               node_hidden_size=32, edge_hidden_size_spatial=32,
               edge_hidden_size_temporal=32,
               node_output_size=16, output_size=4)
    B, T, N = cfg["batch_size"], 8, cfg["node_num"]

    key = jax.random.PRNGKey(0)
    kp, k1, k2, k3 = jax.random.split(key, 4)
    params = init_params(kp, cfg)

    node_features = jax.random.normal(
        k1, (B, T, N, cfg["node_feature_size"]), jnp.float32)
    spatial_edge_features = jax.random.normal(
        k2, (B, T, N * (N - 1), cfg["edge_feature_size"]), jnp.float32)
    temporal_edge_features = jax.random.normal(
        k3, (B, T, N, cfg["edge_feature_size"]), jnp.float32)

    fwd = jax.jit(lambda nf, sf, tf: srnn_forward(params, cfg, nf, sf, tf))
    out = fwd(node_features, spatial_edge_features, temporal_edge_features)
    out = jax.block_until_ready(out)

    assert out.shape == (B, cfg["output_size"])
    assert bool(jnp.all(jnp.isfinite(out)))
    # softmax rows sum to 1
    assert bool(jnp.all(jnp.abs(jnp.sum(out, axis=-1) - 1.0) < 1e-4))
    print("KERNEL_OK")
</pallas_src>

<mosaic_0001>
module attributes {stable_mosaic.version = 11 : i64} {
  func.func @kernel(%arg0: memref<56x8xf32, #tpu.memory_space<vmem>>, %arg1: memref<2x56x8xf32, #tpu.memory_space<vmem>>, %arg2: memref<56x8xf32, #tpu.memory_space<vmem>>, %arg3: memref<8x32xf32, #tpu.memory_space<vmem>>, %arg4: memref<1x32xf32, #tpu.memory_space<vmem>>, %arg5: memref<32x128xf32, #tpu.memory_space<vmem>>, %arg6: memref<32x128xf32, #tpu.memory_space<vmem>>, %arg7: memref<1x128xf32, #tpu.memory_space<vmem>>, %arg8: memref<8x32xf32, #tpu.memory_space<vmem>>, %arg9: memref<1x32xf32, #tpu.memory_space<vmem>>, %arg10: memref<32x128xf32, #tpu.memory_space<vmem>>, %arg11: memref<32x128xf32, #tpu.memory_space<vmem>>, %arg12: memref<1x128xf32, #tpu.memory_space<vmem>>, %arg13: memref<8x32xf32, #tpu.memory_space<vmem>>, %arg14: memref<1x32xf32, #tpu.memory_space<vmem>>, %arg15: memref<32x32xf32, #tpu.memory_space<vmem>>, %arg16: memref<32x32xf32, #tpu.memory_space<vmem>>, %arg17: memref<1x32xf32, #tpu.memory_space<vmem>>, %arg18: memref<32x128xf32, #tpu.memory_space<vmem>>, %arg19: memref<32x128xf32, #tpu.memory_space<vmem>>, %arg20: memref<32x128xf32, #tpu.memory_space<vmem>>, %arg21: memref<1x128xf32, #tpu.memory_space<vmem>>, %arg22: memref<32x16xf32, #tpu.memory_space<vmem>>, %arg23: memref<1x16xf32, #tpu.memory_space<vmem>>, %arg24: memref<8x8xf32, #tpu.memory_space<vmem>>, %arg25: memref<1x8xf32, #tpu.memory_space<vmem>>, %arg26: memref<1x16xf32, #tpu.memory_space<vmem>>, %arg27: memref<1x16xf32, #tpu.memory_space<vmem>>, %arg28: memref<16x4xf32, #tpu.memory_space<vmem>>, %arg29: memref<1x4xf32, #tpu.memory_space<vmem>>, %arg30: memref<2x4xf32, #tpu.memory_space<vmem>>) attributes {dimension_semantics = [], scalar_prefetch = 0 : i64, scratch_operands = 0 : i64, tpu.core_type = #tpu.core_type<tc>} {
    %c0 = arith.constant 0 : index
    %c0_0 = arith.constant 0 : index
    %0 = vector.load %arg0[%c0, %c0_0] : memref<56x8xf32, #tpu.memory_space<vmem>>, vector<56x8xf32>
    %c0_1 = arith.constant 0 : index
    %c0_2 = arith.constant 0 : index
    %1 = vector.load %arg2[%c0_1, %c0_2] : memref<56x8xf32, #tpu.memory_space<vmem>>, vector<56x8xf32>
    %c0_3 = arith.constant 0 : index
    %c0_4 = arith.constant 0 : index
    %2 = vector.load %arg3[%c0_3, %c0_4] : memref<8x32xf32, #tpu.memory_space<vmem>>, vector<8x32xf32>
    %cst = arith.constant dense<0.000000e+00> : vector<56x32xf32>
    %3 = tpu.matmul %0, %2, %cst {dimension_numbers = #tpu.dot_dimension_numbers<[1], [0], [0], [1], [0, 0, 1, 1], [], []>} : vector<56x8xf32>, vector<8x32xf32>, vector<56x32xf32> -> vector<56x32xf32>
    %c0_5 = arith.constant 0 : index
    %c0_6 = arith.constant 0 : index
    %4 = vector.load %arg4[%c0_5, %c0_6] : memref<1x32xf32, #tpu.memory_space<vmem>>, vector<1x32xf32>
    %5 = vector.broadcast %4 : vector<1x32xf32> to vector<56x32xf32>
    %6 = arith.addf %3, %5 : vector<56x32xf32>
    %cst_7 = arith.constant 0.000000e+00 : f32
    %7 = vector.broadcast %cst_7 : f32 to vector<56x32xf32>
    %8 = arith.maximumf %6, %7 : vector<56x32xf32>
    %c0_8 = arith.constant 0 : index
    %c0_9 = arith.constant 0 : index
    %9 = vector.load %arg5[%c0_8, %c0_9] : memref<32x128xf32, #tpu.memory_space<vmem>>, vector<32x128xf32>
    %cst_10 = arith.constant dense<0.000000e+00> : vector<56x128xf32>
    %10 = tpu.matmul %8, %9, %cst_10 {dimension_numbers = #tpu.dot_dimension_numbers<[1], [0], [0], [1], [0, 0, 1, 1], [], []>} : vector<56x32xf32>, vector<32x128xf32>, vector<56x128xf32> -> vector<56x128xf32>
    %c0_11 = arith.constant 0 : index
    %c0_12 = arith.constant 0 : index
    %11 = vector.load %arg7[%c0_11, %c0_12] : memref<1x128xf32, #tpu.memory_space<vmem>>, vector<1x128xf32>
    %12 = vector.broadcast %11 : vector<1x128xf32> to vector<56x128xf32>
    %13 = arith.addf %10, %12 : vector<56x128xf32>
    %c0_13 = arith.constant 0 : index
    %c0_14 = arith.constant 0 : index
    %14 = vector.load %arg13[%c0_13, %c0_14] : memref<8x32xf32, #tpu.memory_space<vmem>>, vector<8x32xf32>
    %cst_15 = arith.constant dense<0.000000e+00> : vector<56x32xf32>
    %15 = tpu.matmul %1, %14, %cst_15 {dimension_numbers = #tpu.dot_dimension_numbers<[1], [0], [0], [1], [0, 0, 1, 1], [], []>} : vector<56x8xf32>, vector<8x32xf32>, vector<56x32xf32> -> vector<56x32xf32>
    %c0_16 = arith.constant 0 : index
    %c0_17 = arith.constant 0 : index
    %16 = vector.load %arg14[%c0_16, %c0_17] : memref<1x32xf32, #tpu.memory_space<vmem>>, vector<1x32xf32>
    %17 = vector.broadcast %16 : vector<1x32xf32> to vector<56x32xf32>
    %18 = arith.addf %15, %17 : vector<56x32xf32>
    %cst_18 = arith.constant 0.000000e+00 : f32
    %19 = vector.broadcast %cst_18 : f32 to vector<56x32xf32>
    %20 = arith.maximumf %18, %19 : vector<56x32xf32>
    %c0_19 = arith.constant 0 : index
    %c0_20 = arith.constant 0 : index
    %21 = vector.load %arg18[%c0_19, %c0_20] : memref<32x128xf32, #tpu.memory_space<vmem>>, vector<32x128xf32>
    %cst_21 = arith.constant dense<0.000000e+00> : vector<56x128xf32>
    %22 = tpu.matmul %20, %21, %cst_21 {dimension_numbers = #tpu.dot_dimension_numbers<[1], [0], [0], [1], [0, 0, 1, 1], [], []>} : vector<56x32xf32>, vector<32x128xf32>, vector<56x128xf32> -> vector<56x128xf32>
    %c0_22 = arith.constant 0 : index
    %c0_23 = arith.constant 0 : index
    %23 = vector.load %arg21[%c0_22, %c0_23] : memref<1x128xf32, #tpu.memory_space<vmem>>, vector<1x128xf32>
    %24 = vector.broadcast %23 : vector<1x128xf32> to vector<56x128xf32>
    %25 = arith.addf %22, %24 : vector<56x128xf32>
    %c0_24 = arith.constant 0 : index
    %c0_25 = arith.constant 0 : index
    %26 = vector.load %arg24[%c0_24, %c0_25] : memref<8x8xf32, #tpu.memory_space<vmem>>, vector<8x8xf32>
    %cst_26 = arith.constant dense<0.000000e+00> : vector<56x8xf32>
    %27 = tpu.matmul %0, %26, %cst_26 {dimension_numbers = #tpu.dot_dimension_numbers<[1], [0], [0], [1], [0, 0, 1, 1], [], []>} : vector<56x8xf32>, vector<8x8xf32>, vector<56x8xf32> -> vector<56x8xf32>
    %c0_27 = arith.constant 0 : index
    %c0_28 = arith.constant 0 : index
    %28 = vector.load %arg25[%c0_27, %c0_28] : memref<1x8xf32, #tpu.memory_space<vmem>>, vector<1x8xf32>
    %29 = vector.broadcast %28 : vector<1x8xf32> to vector<56x8xf32>
    %30 = arith.addf %27, %29 : vector<56x8xf32>
    %c0_29 = arith.constant 0 : index
    %c0_30 = arith.constant 0 : index
    %c0_31 = arith.constant 0 : index
    %31 = vector.load %arg1[%c0_29, %c0_30, %c0_31] : memref<2x56x8xf32, #tpu.memory_space<vmem>>, vector<1x56x8xf32>
    %32 = vector.shape_cast %31 : vector<1x56x8xf32> to vector<56x8xf32>
    %c0_32 = arith.constant 0 : index
    %c0_33 = arith.constant 0 : index
    %33 = vector.load %arg24[%c0_32, %c0_33] : memref<8x8xf32, #tpu.memory_space<vmem>>, vector<8x8xf32>
    %cst_34 = arith.constant dense<0.000000e+00> : vector<56x8xf32>
    %34 = tpu.matmul %32, %33, %cst_34 {dimension_numbers = #tpu.dot_dimension_numbers<[1], [0], [0], [1], [0, 0, 1, 1], [], []>} : vector<56x8xf32>, vector<8x8xf32>, vector<56x8xf32> -> vector<56x8xf32>
    %c0_35 = arith.constant 0 : index
    %c0_36 = arith.constant 0 : index
    %35 = vector.load %arg25[%c0_35, %c0_36] : memref<1x8xf32, #tpu.memory_space<vmem>>, vector<1x8xf32>
    %36 = vector.broadcast %35 : vector<1x8xf32> to vector<56x8xf32>
    %37 = arith.addf %34, %36 : vector<56x8xf32>
    %38 = arith.mulf %30, %37 : vector<56x8xf32>
    %cst_37 = arith.constant dense<0.000000e+00> : vector<56xf32>
    %39 = vector.multi_reduction <add>, %38, %cst_37 [1] : vector<56x8xf32> to vector<56xf32>
    %40 = vector.shape_cast %39 : vector<56xf32> to vector<56x1xf32>
    %c1 = arith.constant 1 : index
    %c0_38 = arith.constant 0 : index
    %c0_39 = arith.constant 0 : index
    %41 = vector.load %arg1[%c1, %c0_38, %c0_39] : memref<2x56x8xf32, #tpu.memory_space<vmem>>, vector<1x56x8xf32>
    %42 = vector.shape_cast %41 : vector<1x56x8xf32> to vector<56x8xf32>
    %c0_40 = arith.constant 0 : index
    %c0_41 = arith.constant 0 : index
    %43 = vector.load %arg24[%c0_40, %c0_41] : memref<8x8xf32, #tpu.memory_space<vmem>>, vector<8x8xf32>
    %cst_42 = arith.constant dense<0.000000e+00> : vector<56x8xf32>
    %44 = tpu.matmul %42, %43, %cst_42 {dimension_numbers = #tpu.dot_dimension_numbers<[1], [0], [0], [1], [0, 0, 1, 1], [], []>} : vector<56x8xf32>, vector<8x8xf32>, vector<56x8xf32> -> vector<56x8xf32>
    %c0_43 = arith.constant 0 : index
    %c0_44 = arith.constant 0 : index
    %45 = vector.load %arg25[%c0_43, %c0_44] : memref<1x8xf32, #tpu.memory_space<vmem>>, vector<1x8xf32>
    %46 = vector.broadcast %45 : vector<1x8xf32> to vector<56x8xf32>
    %47 = arith.addf %44, %46 : vector<56x8xf32>
    %48 = arith.mulf %30, %47 : vector<56x8xf32>
    %cst_45 = arith.constant dense<0.000000e+00> : vector<56xf32>
    %49 = vector.multi_reduction <add>, %48, %cst_45 [1] : vector<56x8xf32> to vector<56xf32>
    %50 = vector.shape_cast %49 : vector<56xf32> to vector<56x1xf32>
    %51 = arith.addf %40, %50 : vector<56x1xf32>
    %cst_46 = arith.constant 1.000000e+00 : f32
    %52 = vector.broadcast %cst_46 : f32 to vector<56x1xf32>
    %53 = arith.divf %52, %51 : vector<56x1xf32>
    %54 = arith.mulf %40, %53 : vector<56x1xf32>
    %c0_47 = arith.constant 0 : index
    %c0_48 = arith.constant 0 : index
    %c0_49 = arith.constant 0 : index
    %55 = vector.load %arg1[%c0_47, %c0_48, %c0_49] : memref<2x56x8xf32, #tpu.memory_space<vmem>>, vector<1x56x8xf32>
    %56 = vector.shape_cast %55 : vector<1x56x8xf32> to vector<56x8xf32>
    %57 = vector.broadcast %54 : vector<56x1xf32> to vector<56x8xf32>
    %58 = arith.mulf %57, %56 : vector<56x8xf32>
    %59 = arith.mulf %50, %53 : vector<56x1xf32>
    %c1_50 = arith.constant 1 : index
    %c0_51 = arith.constant 0 : index
    %c0_52 = arith.constant 0 : index
    %60 = vector.load %arg1[%c1_50, %c0_51, %c0_52] : memref<2x56x8xf32, #tpu.memory_space<vmem>>, vector<1x56x8xf32>
    %61 = vector.shape_cast %60 : vector<1x56x8xf32> to vector<56x8xf32>
    %62 = vector.broadcast %59 : vector<56x1xf32> to vector<56x8xf32>
    %63 = arith.mulf %62, %61 : vector<56x8xf32>
    %64 = arith.addf %58, %63 : vector<56x8xf32>
    %c0_53 = arith.constant 0 : index
    %c0_54 = arith.constant 0 : index
    %65 = vector.load %arg8[%c0_53, %c0_54] : memref<8x32xf32, #tpu.memory_space<vmem>>, vector<8x32xf32>
    %cst_55 = arith.constant dense<0.000000e+00> : vector<56x32xf32>
    %66 = tpu.matmul %64, %65, %cst_55 {dimension_numbers = #tpu.dot_dimension_numbers<[1], [0], [0], [1], [0, 0, 1, 1], [], []>} : vector<56x8xf32>, vector<8x32xf32>, vector<56x32xf32> -> vector<56x32xf32>
    %c0_56 = arith.constant 0 : index
    %c0_57 = arith.constant 0 : index
    %67 = vector.load %arg9[%c0_56, %c0_57] : memref<1x32xf32, #tpu.memory_space<vmem>>, vector<1x32xf32>
    %68 = vector.broadcast %67 : vector<1x32xf32> to vector<56x32xf32>
    %69 = arith.addf %66, %68 : vector<56x32xf32>
    %cst_58 = arith.constant 0.000000e+00 : f32
    %70 = vector.broadcast %cst_58 : f32 to vector<56x32xf32>
    %71 = arith.maximumf %69, %70 : vector<56x32xf32>
    %c0_59 = arith.constant 0 : index
    %c0_60 = arith.constant 0 : index
    %72 = vector.load %arg10[%c0_59, %c0_60] : memref<32x128xf32, #tpu.memory_space<vmem>>, vector<32x128xf32>
    %cst_61 = arith.constant dense<0.000000e+00> : vector<56x128xf32>
    %73 = tpu.matmul %71, %72, %cst_61 {dimension_numbers = #tpu.dot_dimension_numbers<[1], [0], [0], [1], [0, 0, 1, 1], [], []>} : vector<56x32xf32>, vector<32x128xf32>, vector<56x128xf32> -> vector<56x128xf32>
    %c0_62 = arith.constant 0 : index
    %c0_63 = arith.constant 0 : index
    %74 = vector.load %arg12[%c0_62, %c0_63] : memref<1x128xf32, #tpu.memory_space<vmem>>, vector<1x128xf32>
    %75 = vector.broadcast %74 : vector<1x128xf32> to vector<56x128xf32>
    %76 = arith.addf %73, %75 : vector<56x128xf32>
    %cst_64 = arith.constant 0.000000e+00 : f32
    %77 = vector.broadcast %cst_64 : f32 to vector<8x32xf32>
    %cst_65 = arith.constant 0.000000e+00 : f32
    %78 = vector.broadcast %cst_65 : f32 to vector<8x32xf32>
    %cst_66 = arith.constant 0.000000e+00 : f32
    %79 = vector.broadcast %cst_66 : f32 to vector<8x32xf32>
    %cst_67 = arith.constant 0.000000e+00 : f32
    %80 = vector.broadcast %cst_67 : f32 to vector<8x32xf32>
    %cst_68 = arith.constant 0.000000e+00 : f32
    %81 = vector.broadcast %cst_68 : f32 to vector<8x32xf32>
    %cst_69 = arith.constant 0.000000e+00 : f32
    %82 = vector.broadcast %cst_69 : f32 to vector<8x32xf32>
    %83 = vector.extract_strided_slice %13 {offsets = [0, 0], sizes = [8, 128], strides = [1, 1]} : vector<56x128xf32> to vector<8x128xf32>
    %c0_70 = arith.constant 0 : index
    %c0_71 = arith.constant 0 : index
    %84 = vector.load %arg6[%c0_70, %c0_71] : memref<32x128xf32, #tpu.memory_space<vmem>>, vector<32x128xf32>
    %cst_72 = arith.constant dense<0.000000e+00> : vector<8x128xf32>
    %85 = tpu.matmul %77, %84, %cst_72 {dimension_numbers = #tpu.dot_dimension_numbers<[1], [0], [0], [1], [0, 0, 1, 1], [], []>} : vector<8x32xf32>, vector<32x128xf32>, vector<8x128xf32> -> vector<8x128xf32>
    %86 = arith.addf %83, %85 : vector<8x128xf32>
    %87 = vector.extract_strided_slice %86 {offsets = [0, 0], sizes = [8, 32], strides = [1, 1]} : vector<8x128xf32> to vector<8x32xf32>
    %88 = arith.negf %87 : vector<8x32xf32>
    %89 = math.exp %88 : vector<8x32xf32>
    %cst_73 = arith.constant 1.000000e+00 : f32
    %90 = vector.broadcast %cst_73 : f32 to vector<8x32xf32>
    %91 = arith.addf %90, %89 : vector<8x32xf32>
    %92 = arith.divf %90, %91 : vector<8x32xf32>
    %93 = vector.extract_strided_slice %86 {offsets = [0, 32], sizes = [8, 32], strides = [1, 1]} : vector<8x128xf32> to vector<8x32xf32>
    %94 = arith.negf %93 : vector<8x32xf32>
    %95 = math.exp %94 : vector<8x32xf32>
    %cst_74 = arith.constant 1.000000e+00 : f32
    %96 = vector.broadcast %cst_74 : f32 to vector<8x32xf32>
    %97 = arith.addf %96, %95 : vector<8x32xf32>
    %98 = arith.divf %96, %97 : vector<8x32xf32>
    %99 = vector.extract_strided_slice %86 {offsets = [0, 64], sizes = [8, 32], strides = [1, 1]} : vector<8x128xf32> to vector<8x32xf32>
    %100 = math.tanh %99 : vector<8x32xf32>
    %101 = vector.extract_strided_slice %86 {offsets = [0, 96], sizes = [8, 32], strides = [1, 1]} : vector<8x128xf32> to vector<8x32xf32>
    %102 = arith.negf %101 : vector<8x32xf32>
    %103 = math.exp %102 : vector<8x32xf32>
    %cst_75 = arith.constant 1.000000e+00 : f32
    %104 = vector.broadcast %cst_75 : f32 to vector<8x32xf32>
    %105 = arith.addf %104, %103 : vector<8x32xf32>
    %106 = arith.divf %104, %105 : vector<8x32xf32>
    %107 = arith.mulf %98, %78 : vector<8x32xf32>
    %108 = arith.mulf %92, %100 : vector<8x32xf32>
    %109 = arith.addf %107, %108 : vector<8x32xf32>
    %110 = math.tanh %109 : vector<8x32xf32>
    %111 = arith.mulf %106, %110 : vector<8x32xf32>
    %112 = vector.extract_strided_slice %76 {offsets = [0, 0], sizes = [8, 128], strides = [1, 1]} : vector<56x128xf32> to vector<8x128xf32>
    %c0_76 = arith.constant 0 : index
    %c0_77 = arith.constant 0 : index
    %113 = vector.load %arg11[%c0_76, %c0_77] : memref<32x128xf32, #tpu.memory_space<vmem>>, vector<32x128xf32>
    %cst_78 = arith.constant dense<0.000000e+00> : vector<8x128xf32>
    %114 = tpu.matmul %79, %113, %cst_78 {dimension_numbers = #tpu.dot_dimension_numbers<[1], [0], [0], [1], [0, 0, 1, 1], [], []>} : vector<8x32xf32>, vector<32x128xf32>, vector<8x128xf32> -> vector<8x128xf32>
    %115 = arith.addf %112, %114 : vector<8x128xf32>
    %116 = vector.extract_strided_slice %115 {offsets = [0, 0], sizes = [8, 32], strides = [1, 1]} : vector<8x128xf32> to vector<8x32xf32>
    %117 = arith.negf %116 : vector<8x32xf32>
    %118 = math.exp %117 : vector<8x32xf32>
    %cst_79 = arith.constant 1.000000e+00 : f32
    %119 = vector.broadcast %cst_79 : f32 to vector<8x32xf32>
    %120 = arith.addf %119, %118 : vector<8x32xf32>
    %121 = arith.divf %119, %120 : vector<8x32xf32>
    %122 = vector.extract_strided_slice %115 {offsets = [0, 32], sizes = [8, 32], strides = [1, 1]} : vector<8x128xf32> to vector<8x32xf32>
    %123 = arith.negf %122 : vector<8x32xf32>
    %124 = math.exp %123 : vector<8x32xf32>
    %cst_80 = arith.constant 1.000000e+00 : f32
    %125 = vector.broadcast %cst_80 : f32 to vector<8x32xf32>
    %126 = arith.addf %125, %124 : vector<8x32xf32>
    %127 = arith.divf %125, %126 : vector<8x32xf32>
    %128 = vector.extract_strided_slice %115 {offsets = [0, 64], sizes = [8, 32], strides = [1, 1]} : vector<8x128xf32> to vector<8x32xf32>
    %129 = math.tanh %128 : vector<8x32xf32>
    %130 = vector.extract_strided_slice %115 {offsets = [0, 96], sizes = [8, 32], strides = [1, 1]} : vector<8x128xf32> to vector<8x32xf32>
    %131 = arith.negf %130 : vector<8x32xf32>
    %132 = math.exp %131 : vector<8x32xf32>
    %cst_81 = arith.constant 1.000000e+00 : f32
    %133 = vector.broadcast %cst_81 : f32 to vector<8x32xf32>
    %134 = arith.addf %133, %132 : vector<8x32xf32>
    %135 = arith.divf %133, %134 : vector<8x32xf32>
    %136 = arith.mulf %127, %80 : vector<8x32xf32>
    %137 = arith.mulf %121, %129 : vector<8x32xf32>
    %138 = arith.addf %136, %137 : vector<8x32xf32>
    %139 = math.tanh %138 : vector<8x32xf32>
    %140 = arith.mulf %135, %139 : vector<8x32xf32>
    %c0_82 = arith.constant 0 : index
    %c0_83 = arith.constant 0 : index
    %141 = vector.load %arg15[%c0_82, %c0_83] : memref<32x32xf32, #tpu.memory_space<vmem>>, vector<32x32xf32>
    %cst_84 = arith.constant dense<0.000000e+00> : vector<8x32xf32>
    %142 = tpu.matmul %111, %141, %cst_84 {dimension_numbers = #tpu.dot_dimension_numbers<[1], [0], [0], [1], [0, 0, 1, 1], [], []>} : vector<8x32xf32>, vector<32x32xf32>, vector<8x32xf32> -> vector<8x32xf32>
    %c0_85 = arith.constant 0 : index
    %c0_86 = arith.constant 0 : index
    %143 = vector.load %arg16[%c0_85, %c0_86] : memref<32x32xf32, #tpu.memory_space<vmem>>, vector<32x32xf32>
    %cst_87 = arith.constant dense<0.000000e+00> : vector<8x32xf32>
    %144 = tpu.matmul %140, %143, %cst_87 {dimension_numbers = #tpu.dot_dimension_numbers<[1], [0], [0], [1], [0, 0, 1, 1], [], []>} : vector<8x32xf32>, vector<32x32xf32>, vector<8x32xf32> -> vector<8x32xf32>
    %145 = arith.addf %142, %144 : vector<8x32xf32>
    %c0_88 = arith.constant 0 : index
    %c0_89 = arith.constant 0 : index
    %146 = vector.load %arg17[%c0_88, %c0_89] : memref<1x32xf32, #tpu.memory_space<vmem>>, vector<1x32xf32>
    %147 = vector.broadcast %146 : vector<1x32xf32> to vector<8x32xf32>
    %148 = arith.addf %145, %147 : vector<8x32xf32>
    %cst_90 = arith.constant 0.000000e+00 : f32
    %149 = vector.broadcast %cst_90 : f32 to vector<8x32xf32>
    %150 = arith.maximumf %148, %149 : vector<8x32xf32>
    %151 = vector.extract_strided_slice %25 {offsets = [0, 0], sizes = [8, 128], strides = [1, 1]} : vector<56x128xf32> to vector<8x128xf32>
    %c0_91 = arith.constant 0 : index
    %c0_92 = arith.constant 0 : index
    %152 = vector.load %arg19[%c0_91, %c0_92] : memref<32x128xf32, #tpu.memory_space<vmem>>, vector<32x128xf32>
    %cst_93 = arith.constant dense<0.000000e+00> : vector<8x128xf32>
    %153 = tpu.matmul %150, %152, %cst_93 {dimension_numbers = #tpu.dot_dimension_numbers<[1], [0], [0], [1], [0, 0, 1, 1], [], []>} : vector<8x32xf32>, vector<32x128xf32>, vector<8x128xf32> -> vector<8x128xf32>
    %154 = arith.addf %151, %153 : vector<8x128xf32>
    %c0_94 = arith.constant 0 : index
    %c0_95 = arith.constant 0 : index
    %155 = vector.load %arg20[%c0_94, %c0_95] : memref<32x128xf32, #tpu.memory_space<vmem>>, vector<32x128xf32>
    %cst_96 = arith.constant dense<0.000000e+00> : vector<8x128xf32>
    %156 = tpu.matmul %81, %155, %cst_96 {dimension_numbers = #tpu.dot_dimension_numbers<[1], [0], [0], [1], [0, 0, 1, 1], [], []>} : vector<8x32xf32>, vector<32x128xf32>, vector<8x128xf32> -> vector<8x128xf32>
    %157 = arith.addf %154, %156 : vector<8x128xf32>
    %158 = vector.extract_strided_slice %157 {offsets = [0, 0], sizes = [8, 32], strides = [1, 1]} : vector<8x128xf32> to vector<8x32xf32>
    %159 = arith.negf %158 : vector<8x32xf32>
    %160 = math.exp %159 : vector<8x32xf32>
    %cst_97 = arith.constant 1.000000e+00 : f32
    %161 = vector.broadcast %cst_97 : f32 to vector<8x32xf32>
    %162 = arith.addf %161, %160 : vector<8x32xf32>
    %163 = arith.divf %161, %162 : vector<8x32xf32>
    %164 = vector.extract_strided_slice %157 {offsets = [0, 32], sizes = [8, 32], strides = [1, 1]} : vector<8x128xf32> to vector<8x32xf32>
    %165 = arith.negf %164 : vector<8x32xf32>
    %166 = math.exp %165 : vector<8x32xf32>
    %cst_98 = arith.constant 1.000000e+00 : f32
    %167 = vector.broadcast %cst_98 : f32 to vector<8x32xf32>
    %168 = arith.addf %167, %166 : vector<8x32xf32>
    %169 = arith.divf %167, %168 : vector<8x32xf32>
    %170 = vector.extract_strided_slice %157 {offsets = [0, 64], sizes = [8, 32], strides = [1, 1]} : vector<8x128xf32> to vector<8x32xf32>
    %171 = math.tanh %170 : vector<8x32xf32>
    %172 = vector.extract_strided_slice %157 {offsets = [0, 96], sizes = [8, 32], strides = [1, 1]} : vector<8x128xf32> to vector<8x32xf32>
    %173 = arith.negf %172 : vector<8x32xf32>
    %174 = math.exp %173 : vector<8x32xf32>
    %cst_99 = arith.constant 1.000000e+00 : f32
    %175 = vector.broadcast %cst_99 : f32 to vector<8x32xf32>
    %176 = arith.addf %175, %174 : vector<8x32xf32>
    %177 = arith.divf %175, %176 : vector<8x32xf32>
    %178 = arith.mulf %169, %82 : vector<8x32xf32>
    %179 = arith.mulf %163, %171 : vector<8x32xf32>
    %180 = arith.addf %178, %179 : vector<8x32xf32>
    %181 = math.tanh %180 : vector<8x32xf32>
    %182 = arith.mulf %177, %181 : vector<8x32xf32>
    %183 = vector.extract_strided_slice %13 {offsets = [8, 0], sizes = [8, 128], strides = [1, 1]} : vector<56x128xf32> to vector<8x128xf32>
    %c0_100 = arith.constant 0 : index
    %c0_101 = arith.constant 0 : index
    %184 = vector.load %arg6[%c0_100, %c0_101] : memref<32x128xf32, #tpu.memory_space<vmem>>, vector<32x128xf32>
    %cst_102 = arith.constant dense<0.000000e+00> : vector<8x128xf32>
    %185 = tpu.matmul %111, %184, %cst_102 {dimension_numbers = #tpu.dot_dimension_numbers<[1], [0], [0], [1], [0, 0, 1, 1], [], []>} : vector<8x32xf32>, vector<32x128xf32>, vector<8x128xf32> -> vector<8x128xf32>
    %186 = arith.addf %183, %185 : vector<8x128xf32>
    %187 = vector.extract_strided_slice %186 {offsets = [0, 0], sizes = [8, 32], strides = [1, 1]} : vector<8x128xf32> to vector<8x32xf32>
    %188 = arith.negf %187 : vector<8x32xf32>
    %189 = math.exp %188 : vector<8x32xf32>
    %cst_103 = arith.constant 1.000000e+00 : f32
    %190 = vector.broadcast %cst_103 : f32 to vector<8x32xf32>
    %191 = arith.addf %190, %189 : vector<8x32xf32>
    %192 = arith.divf %190, %191 : vector<8x32xf32>
    %193 = vector.extract_strided_slice %186 {offsets = [0, 32], sizes = [8, 32], strides = [1, 1]} : vector<8x128xf32> to vector<8x32xf32>
    %194 = arith.negf %193 : vector<8x32xf32>
    %195 = math.exp %194 : vector<8x32xf32>
    %cst_104 = arith.constant 1.000000e+00 : f32
    %196 = vector.broadcast %cst_104 : f32 to vector<8x32xf32>
    %197 = arith.addf %196, %195 : vector<8x32xf32>
    %198 = arith.divf %196, %197 : vector<8x32xf32>
    %199 = vector.extract_strided_slice %186 {offsets = [0, 64], sizes = [8, 32], strides = [1, 1]} : vector<8x128xf32> to vector<8x32xf32>
    %200 = math.tanh %199 : vector<8x32xf32>
    %201 = vector.extract_strided_slice %186 {offsets = [0, 96], sizes = [8, 32], strides = [1, 1]} : vector<8x128xf32> to vector<8x32xf32>
    %202 = arith.negf %201 : vector<8x32xf32>
    %203 = math.exp %202 : vector<8x32xf32>
    %cst_105 = arith.constant 1.000000e+00 : f32
    %204 = vector.broadcast %cst_105 : f32 to vector<8x32xf32>
    %205 = arith.addf %204, %203 : vector<8x32xf32>
    %206 = arith.divf %204, %205 : vector<8x32xf32>
    %207 = arith.mulf %198, %109 : vector<8x32xf32>
    %208 = arith.mulf %192, %200 : vector<8x32xf32>
    %209 = arith.addf %207, %208 : vector<8x32xf32>
    %210 = math.tanh %209 : vector<8x32xf32>
    %211 = arith.mulf %206, %210 : vector<8x32xf32>
    %212 = vector.extract_strided_slice %76 {offsets = [8, 0], sizes = [8, 128], strides = [1, 1]} : vector<56x128xf32> to vector<8x128xf32>
    %c0_106 = arith.constant 0 : index
    %c0_107 = arith.constant 0 : index
    %213 = vector.load %arg11[%c0_106, %c0_107] : memref<32x128xf32, #tpu.memory_space<vmem>>, vector<32x128xf32>
    %cst_108 = arith.constant dense<0.000000e+00> : vector<8x128xf32>
    %214 = tpu.matmul %140, %213, %cst_108 {dimension_numbers = #tpu.dot_dimension_numbers<[1], [0], [0], [1], [0, 0, 1, 1], [], []>} : vector<8x32xf32>, vector<32x128xf32>, vector<8x128xf32> -> vector<8x128xf32>
    %215 = arith.addf %212, %214 : vector<8x128xf32>
    %216 = vector.extract_strided_slice %215 {offsets = [0, 0], sizes = [8, 32], strides = [1, 1]} : vector<8x128xf32> to vector<8x32xf32>
    %217 = arith.negf %216 : vector<8x32xf32>
    %218 = math.exp %217 : vector<8x32xf32>
    %cst_109 = arith.constant 1.000000e+00 : f32
    %219 = vector.broadcast %cst_109 : f32 to vector<8x32xf32>
    %220 = arith.addf %219, %218 : vector<8x32xf32>
    %221 = arith.divf %219, %220 : vector<8x32xf32>
    %222 = vector.extract_strided_slice %215 {offsets = [0, 32], sizes = [8, 32], strides = [1, 1]} : vector<8x128xf32> to vector<8x32xf32>
    %223 = arith.negf %222 : vector<8x32xf32>
    %224 = math.exp %223 : vector<8x32xf32>
    %cst_110 = arith.constant 1.000000e+00 : f32
    %225 = vector.broadcast %cst_110 : f32 to vector<8x32xf32>
    %226 = arith.addf %225, %224 : vector<8x32xf32>
    %227 = arith.divf %225, %226 : vector<8x32xf32>
    %228 = vector.extract_strided_slice %215 {offsets = [0, 64], sizes = [8, 32], strides = [1, 1]} : vector<8x128xf32> to vector<8x32xf32>
    %229 = math.tanh %228 : vector<8x32xf32>
    %230 = vector.extract_strided_slice %215 {offsets = [0, 96], sizes = [8, 32], strides = [1, 1]} : vector<8x128xf32> to vector<8x32xf32>
    %231 = arith.negf %230 : vector<8x32xf32>
    %232 = math.exp %231 : vector<8x32xf32>
    %cst_111 = arith.constant 1.000000e+00 : f32
    %233 = vector.broadcast %cst_111 : f32 to vector<8x32xf32>
    %234 = arith.addf %233, %232 : vector<8x32xf32>
    %235 = arith.divf %233, %234 : vector<8x32xf32>
    %236 = arith.mulf %227, %138 : vector<8x32xf32>
    %237 = arith.mulf %221, %229 : vector<8x32xf32>
    %238 = arith.addf %236, %237 : vector<8x32xf32>
    %239 = math.tanh %238 : vector<8x32xf32>
    %240 = arith.mulf %235, %239 : vector<8x32xf32>
    %c0_112 = arith.constant 0 : index
    %c0_113 = arith.constant 0 : index
    %241 = vector.load %arg15[%c0_112, %c0_113] : memref<32x32xf32, #tpu.memory_space<vmem>>, vector<32x32xf32>
    %cst_114 = arith.constant dense<0.000000e+00> : vector<8x32xf32>
    %242 = tpu.matmul %211, %241, %cst_114 {dimension_numbers = #tpu.dot_dimension_numbers<[1], [0], [0], [1], [0, 0, 1, 1], [], []>} : vector<8x32xf32>, vector<32x32xf32>, vector<8x32xf32> -> vector<8x32xf32>
    %c0_115 = arith.constant 0 : index
    %c0_116 = arith.constant 0 : index
    %243 = vector.load %arg16[%c0_115, %c0_116] : memref<32x32xf32, #tpu.memory_space<vmem>>, vector<32x32xf32>
    %cst_117 = arith.constant dense<0.000000e+00> : vector<8x32xf32>
    %244 = tpu.matmul %240, %243, %cst_117 {dimension_numbers = #tpu.dot_dimension_numbers<[1], [0], [0], [1], [0, 0, 1, 1], [], []>} : vector<8x32xf32>, vector<32x32xf32>, vector<8x32xf32> -> vector<8x32xf32>
    %245 = arith.addf %242, %244 : vector<8x32xf32>
    %c0_118 = arith.constant 0 : index
    %c0_119 = arith.constant 0 : index
    %246 = vector.load %arg17[%c0_118, %c0_119] : memref<1x32xf32, #tpu.memory_space<vmem>>, vector<1x32xf32>
    %247 = vector.broadcast %246 : vector<1x32xf32> to vector<8x32xf32>
    %248 = arith.addf %245, %247 : vector<8x32xf32>
    %cst_120 = arith.constant 0.000000e+00 : f32
    %249 = vector.broadcast %cst_120 : f32 to vector<8x32xf32>
    %250 = arith.maximumf %248, %249 : vector<8x32xf32>
    %251 = vector.extract_strided_slice %25 {offsets = [8, 0], sizes = [8, 128], strides = [1, 1]} : vector<56x128xf32> to vector<8x128xf32>
    %c0_121 = arith.constant 0 : index
    %c0_122 = arith.constant 0 : index
    %252 = vector.load %arg19[%c0_121, %c0_122] : memref<32x128xf32, #tpu.memory_space<vmem>>, vector<32x128xf32>
    %cst_123 = arith.constant dense<0.000000e+00> : vector<8x128xf32>
    %253 = tpu.matmul %250, %252, %cst_123 {dimension_numbers = #tpu.dot_dimension_numbers<[1], [0], [0], [1], [0, 0, 1, 1], [], []>} : vector<8x32xf32>, vector<32x128xf32>, vector<8x128xf32> -> vector<8x128xf32>
    %254 = arith.addf %251, %253 : vector<8x128xf32>
    %c0_124 = arith.constant 0 : index
    %c0_125 = arith.constant 0 : index
    %255 = vector.load %arg20[%c0_124, %c0_125] : memref<32x128xf32, #tpu.memory_space<vmem>>, vector<32x128xf32>
    %cst_126 = arith.constant dense<0.000000e+00> : vector<8x128xf32>
    %256 = tpu.matmul %182, %255, %cst_126 {dimension_numbers = #tpu.dot_dimension_numbers<[1], [0], [0], [1], [0, 0, 1, 1], [], []>} : vector<8x32xf32>, vector<32x128xf32>, vector<8x128xf32> -> vector<8x128xf32>
    %257 = arith.addf %254, %256 : vector<8x128xf32>
    %258 = vector.extract_strided_slice %257 {offsets = [0, 0], sizes = [8, 32], strides = [1, 1]} : vector<8x128xf32> to vector<8x32xf32>
    %259 = arith.negf %258 : vector<8x32xf32>
    %260 = math.exp %259 : vector<8x32xf32>
    %cst_127 = arith.constant 1.000000e+00 : f32
    %261 = vector.broadcast %cst_127 : f32 to vector<8x32xf32>
    %262 = arith.addf %261, %260 : vector<8x32xf32>
    %263 = arith.divf %261, %262 : vector<8x32xf32>
    %264 = vector.extract_strided_slice %257 {offsets = [0, 32], sizes = [8, 32], strides = [1, 1]} : vector<8x128xf32> to vector<8x32xf32>
    %265 = arith.negf %264 : vector<8x32xf32>
    %266 = math.exp %265 : vector<8x32xf32>
    %cst_128 = arith.constant 1.000000e+00 : f32
    %267 = vector.broadcast %cst_128 : f32 to vector<8x32xf32>
    %268 = arith.addf %267, %266 : vector<8x32xf32>
    %269 = arith.divf %267, %268 : vector<8x32xf32>
    %270 = vector.extract_strided_slice %257 {offsets = [0, 64], sizes = [8, 32], strides = [1, 1]} : vector<8x128xf32> to vector<8x32xf32>
    %271 = math.tanh %270 : vector<8x32xf32>
    %272 = vector.extract_strided_slice %257 {offsets = [0, 96], sizes = [8, 32], strides = [1, 1]} : vector<8x128xf32> to vector<8x32xf32>
    %273 = arith.negf %272 : vector<8x32xf32>
    %274 = math.exp %273 : vector<8x32xf32>
    %cst_129 = arith.constant 1.000000e+00 : f32
    %275 = vector.broadcast %cst_129 : f32 to vector<8x32xf32>
    %276 = arith.addf %275, %274 : vector<8x32xf32>
    %277 = arith.divf %275, %276 : vector<8x32xf32>
    %278 = arith.mulf %269, %180 : vector<8x32xf32>
    %279 = arith.mulf %263, %271 : vector<8x32xf32>
    %280 = arith.addf %278, %279 : vector<8x32xf32>
    %281 = math.tanh %280 : vector<8x32xf32>
    %282 = arith.mulf %277, %281 : vector<8x32xf32>
    %283 = vector.extract_strided_slice %13 {offsets = [16, 0], sizes = [8, 128], strides = [1, 1]} : vector<56x128xf32> to vector<8x128xf32>
    %c0_130 = arith.constant 0 : index
    %c0_131 = arith.constant 0 : index
    %284 = vector.load %arg6[%c0_130, %c0_131] : memref<32x128xf32, #tpu.memory_space<vmem>>, vector<32x128xf32>
    %cst_132 = arith.constant dense<0.000000e+00> : vector<8x128xf32>
    %285 = tpu.matmul %211, %284, %cst_132 {dimension_numbers = #tpu.dot_dimension_numbers<[1], [0], [0], [1], [0, 0, 1, 1], [], []>} : vector<8x32xf32>, vector<32x128xf32>, vector<8x128xf32> -> vector<8x128xf32>
    %286 = arith.addf %283, %285 : vector<8x128xf32>
    %287 = vector.extract_strided_slice %286 {offsets = [0, 0], sizes = [8, 32], strides = [1, 1]} : vector<8x128xf32> to vector<8x32xf32>
    %288 = arith.negf %287 : vector<8x32xf32>
    %289 = math.exp %288 : vector<8x32xf32>
    %cst_133 = arith.constant 1.000000e+00 : f32
    %290 = vector.broadcast %cst_133 : f32 to vector<8x32xf32>
    %291 = arith.addf %290, %289 : vector<8x32xf32>
    %292 = arith.divf %290, %291 : vector<8x32xf32>
    %293 = vector.extract_strided_slice %286 {offsets = [0, 32], sizes = [8, 32], strides = [1, 1]} : vector<8x128xf32> to vector<8x32xf32>
    %294 = arith.negf %293 : vector<8x32xf32>
    %295 = math.exp %294 : vector<8x32xf32>
    %cst_134 = arith.constant 1.000000e+00 : f32
    %296 = vector.broadcast %cst_134 : f32 to vector<8x32xf32>
    %297 = arith.addf %296, %295 : vector<8x32xf32>
    %298 = arith.divf %296, %297 : vector<8x32xf32>
    %299 = vector.extract_strided_slice %286 {offsets = [0, 64], sizes = [8, 32], strides = [1, 1]} : vector<8x128xf32> to vector<8x32xf32>
    %300 = math.tanh %299 : vector<8x32xf32>
    %301 = vector.extract_strided_slice %286 {offsets = [0, 96], sizes = [8, 32], strides = [1, 1]} : vector<8x128xf32> to vector<8x32xf32>
    %302 = arith.negf %301 : vector<8x32xf32>
    %303 = math.exp %302 : vector<8x32xf32>
    %cst_135 = arith.constant 1.000000e+00 : f32
    %304 = vector.broadcast %cst_135 : f32 to vector<8x32xf32>
    %305 = arith.addf %304, %303 : vector<8x32xf32>
    %306 = arith.divf %304, %305 : vector<8x32xf32>
    %307 = arith.mulf %298, %209 : vector<8x32xf32>
    %308 = arith.mulf %292, %300 : vector<8x32xf32>
    %309 = arith.addf %307, %308 : vector<8x32xf32>
    %310 = math.tanh %309 : vector<8x32xf32>
    %311 = arith.mulf %306, %310 : vector<8x32xf32>
    %312 = vector.extract_strided_slice %76 {offsets = [16, 0], sizes = [8, 128], strides = [1, 1]} : vector<56x128xf32> to vector<8x128xf32>
    %c0_136 = arith.constant 0 : index
    %c0_137 = arith.constant 0 : index
    %313 = vector.load %arg11[%c0_136, %c0_137] : memref<32x128xf32, #tpu.memory_space<vmem>>, vector<32x128xf32>
    %cst_138 = arith.constant dense<0.000000e+00> : vector<8x128xf32>
    %314 = tpu.matmul %240, %313, %cst_138 {dimension_numbers = #tpu.dot_dimension_numbers<[1], [0], [0], [1], [0, 0, 1, 1], [], []>} : vector<8x32xf32>, vector<32x128xf32>, vector<8x128xf32> -> vector<8x128xf32>
    %315 = arith.addf %312, %314 : vector<8x128xf32>
    %316 = vector.extract_strided_slice %315 {offsets = [0, 0], sizes = [8, 32], strides = [1, 1]} : vector<8x128xf32> to vector<8x32xf32>
    %317 = arith.negf %316 : vector<8x32xf32>
    %318 = math.exp %317 : vector<8x32xf32>
    %cst_139 = arith.constant 1.000000e+00 : f32
    %319 = vector.broadcast %cst_139 : f32 to vector<8x32xf32>
    %320 = arith.addf %319, %318 : vector<8x32xf32>
    %321 = arith.divf %319, %320 : vector<8x32xf32>
    %322 = vector.extract_strided_slice %315 {offsets = [0, 32], sizes = [8, 32], strides = [1, 1]} : vector<8x128xf32> to vector<8x32xf32>
    %323 = arith.negf %322 : vector<8x32xf32>
    %324 = math.exp %323 : vector<8x32xf32>
    %cst_140 = arith.constant 1.000000e+00 : f32
    %325 = vector.broadcast %cst_140 : f32 to vector<8x32xf32>
    %326 = arith.addf %325, %324 : vector<8x32xf32>
    %327 = arith.divf %325, %326 : vector<8x32xf32>
    %328 = vector.extract_strided_slice %315 {offsets = [0, 64], sizes = [8, 32], strides = [1, 1]} : vector<8x128xf32> to vector<8x32xf32>
    %329 = math.tanh %328 : vector<8x32xf32>
    %330 = vector.extract_strided_slice %315 {offsets = [0, 96], sizes = [8, 32], strides = [1, 1]} : vector<8x128xf32> to vector<8x32xf32>
    %331 = arith.negf %330 : vector<8x32xf32>
    %332 = math.exp %331 : vector<8x32xf32>
    %cst_141 = arith.constant 1.000000e+00 : f32
    %333 = vector.broadcast %cst_141 : f32 to vector<8x32xf32>
    %334 = arith.addf %333, %332 : vector<8x32xf32>
    %335 = arith.divf %333, %334 : vector<8x32xf32>
    %336 = arith.mulf %327, %238 : vector<8x32xf32>
    %337 = arith.mulf %321, %329 : vector<8x32xf32>
    %338 = arith.addf %336, %337 : vector<8x32xf32>
    %339 = math.tanh %338 : vector<8x32xf32>
    %340 = arith.mulf %335, %339 : vector<8x32xf32>
    %c0_142 = arith.constant 0 : index
    %c0_143 = arith.constant 0 : index
    %341 = vector.load %arg15[%c0_142, %c0_143] : memref<32x32xf32, #tpu.memory_space<vmem>>, vector<32x32xf32>
    %cst_144 = arith.constant dense<0.000000e+00> : vector<8x32xf32>
    %342 = tpu.matmul %311, %341, %cst_144 {dimension_numbers = #tpu.dot_dimension_numbers<[1], [0], [0], [1], [0, 0, 1, 1], [], []>} : vector<8x32xf32>, vector<32x32xf32>, vector<8x32xf32> -> vector<8x32xf32>
    %c0_145 = arith.constant 0 : index
    %c0_146 = arith.constant 0 : index
    %343 = vector.load %arg16[%c0_145, %c0_146] : memref<32x32xf32, #tpu.memory_space<vmem>>, vector<32x32xf32>
    %cst_147 = arith.constant dense<0.000000e+00> : vector<8x32xf32>
    %344 = tpu.matmul %340, %343, %cst_147 {dimension_numbers = #tpu.dot_dimension_numbers<[1], [0], [0], [1], [0, 0, 1, 1], [], []>} : vector<8x32xf32>, vector<32x32xf32>, vector<8x32xf32> -> vector<8x32xf32>
    %345 = arith.addf %342, %344 : vector<8x32xf32>
    %c0_148 = arith.constant 0 : index
    %c0_149 = arith.constant 0 : index
    %346 = vector.load %arg17[%c0_148, %c0_149] : memref<1x32xf32, #tpu.memory_space<vmem>>, vector<1x32xf32>
    %347 = vector.broadcast %346 : vector<1x32xf32> to vector<8x32xf32>
    %348 = arith.addf %345, %347 : vector<8x32xf32>
    %cst_150 = arith.constant 0.000000e+00 : f32
    %349 = vector.broadcast %cst_150 : f32 to vector<8x32xf32>
    %350 = arith.maximumf %348, %349 : vector<8x32xf32>
    %351 = vector.extract_strided_slice %25 {offsets = [16, 0], sizes = [8, 128], strides = [1, 1]} : vector<56x128xf32> to vector<8x128xf32>
    %c0_151 = arith.constant 0 : index
    %c0_152 = arith.constant 0 : index
    %352 = vector.load %arg19[%c0_151, %c0_152] : memref<32x128xf32, #tpu.memory_space<vmem>>, vector<32x128xf32>
    %cst_153 = arith.constant dense<0.000000e+00> : vector<8x128xf32>
    %353 = tpu.matmul %350, %352, %cst_153 {dimension_numbers = #tpu.dot_dimension_numbers<[1], [0], [0], [1], [0, 0, 1, 1], [], []>} : vector<8x32xf32>, vector<32x128xf32>, vector<8x128xf32> -> vector<8x128xf32>
    %354 = arith.addf %351, %353 : vector<8x128xf32>
    %c0_154 = arith.constant 0 : index
    %c0_155 = arith.constant 0 : index
    %355 = vector.load %arg20[%c0_154, %c0_155] : memref<32x128xf32, #tpu.memory_space<vmem>>, vector<32x128xf32>
    %cst_156 = arith.constant dense<0.000000e+00> : vector<8x128xf32>
    %356 = tpu.matmul %282, %355, %cst_156 {dimension_numbers = #tpu.dot_dimension_numbers<[1], [0], [0], [1], [0, 0, 1, 1], [], []>} : vector<8x32xf32>, vector<32x128xf32>, vector<8x128xf32> -> vector<8x128xf32>
    %357 = arith.addf %354, %356 : vector<8x128xf32>
    %358 = vector.extract_strided_slice %357 {offsets = [0, 0], sizes = [8, 32], strides = [1, 1]} : vector<8x128xf32> to vector<8x32xf32>
    %359 = arith.negf %358 : vector<8x32xf32>
    %360 = math.exp %359 : vector<8x32xf32>
    %cst_157 = arith.constant 1.000000e+00 : f32
    %361 = vector.broadcast %cst_157 : f32 to vector<8x32xf32>
    %362 = arith.addf %361, %360 : vector<8x32xf32>
    %363 = arith.divf %361, %362 : vector<8x32xf32>
    %364 = vector.extract_strided_slice %357 {offsets = [0, 32], sizes = [8, 32], strides = [1, 1]} : vector<8x128xf32> to vector<8x32xf32>
    %365 = arith.negf %364 : vector<8x32xf32>
    %366 = math.exp %365 : vector<8x32xf32>
    %cst_158 = arith.constant 1.000000e+00 : f32
    %367 = vector.broadcast %cst_158 : f32 to vector<8x32xf32>
    %368 = arith.addf %367, %366 : vector<8x32xf32>
    %369 = arith.divf %367, %368 : vector<8x32xf32>
    %370 = vector.extract_strided_slice %357 {offsets = [0, 64], sizes = [8, 32], strides = [1, 1]} : vector<8x128xf32> to vector<8x32xf32>
    %371 = math.tanh %370 : vector<8x32xf32>
    %372 = vector.extract_strided_slice %357 {offsets = [0, 96], sizes = [8, 32], strides = [1, 1]} : vector<8x128xf32> to vector<8x32xf32>
    %373 = arith.negf %372 : vector<8x32xf32>
    %374 = math.exp %373 : vector<8x32xf32>
    %cst_159 = arith.constant 1.000000e+00 : f32
    %375 = vector.broadcast %cst_159 : f32 to vector<8x32xf32>
    %376 = arith.addf %375, %374 : vector<8x32xf32>
    %377 = arith.divf %375, %376 : vector<8x32xf32>
    %378 = arith.mulf %369, %280 : vector<8x32xf32>
    %379 = arith.mulf %363, %371 : vector<8x32xf32>
    %380 = arith.addf %378, %379 : vector<8x32xf32>
    %381 = math.tanh %380 : vector<8x32xf32>
    %382 = arith.mulf %377, %381 : vector<8x32xf32>
    %383 = vector.extract_strided_slice %13 {offsets = [24, 0], sizes = [8, 128], strides = [1, 1]} : vector<56x128xf32> to vector<8x128xf32>
    %c0_160 = arith.constant 0 : index
    %c0_161 = arith.constant 0 : index
    %384 = vector.load %arg6[%c0_160, %c0_161] : memref<32x128xf32, #tpu.memory_space<vmem>>, vector<32x128xf32>
    %cst_162 = arith.constant dense<0.000000e+00> : vector<8x128xf32>
    %385 = tpu.matmul %311, %384, %cst_162 {dimension_numbers = #tpu.dot_dimension_numbers<[1], [0], [0], [1], [0, 0, 1, 1], [], []>} : vector<8x32xf32>, vector<32x128xf32>, vector<8x128xf32> -> vector<8x128xf32>
    %386 = arith.addf %383, %385 : vector<8x128xf32>
    %387 = vector.extract_strided_slice %386 {offsets = [0, 0], sizes = [8, 32], strides = [1, 1]} : vector<8x128xf32> to vector<8x32xf32>
    %388 = arith.negf %387 : vector<8x32xf32>
    %389 = math.exp %388 : vector<8x32xf32>
    %cst_163 = arith.constant 1.000000e+00 : f32
    %390 = vector.broadcast %cst_163 : f32 to vector<8x32xf32>
    %391 = arith.addf %390, %389 : vector<8x32xf32>
    %392 = arith.divf %390, %391 : vector<8x32xf32>
    %393 = vector.extract_strided_slice %386 {offsets = [0, 32], sizes = [8, 32], strides = [1, 1]} : vector<8x128xf32> to vector<8x32xf32>
    %394 = arith.negf %393 : vector<8x32xf32>
    %395 = math.exp %394 : vector<8x32xf32>
    %cst_164 = arith.constant 1.000000e+00 : f32
    %396 = vector.broadcast %cst_164 : f32 to vector<8x32xf32>
    %397 = arith.addf %396, %395 : vector<8x32xf32>
    %398 = arith.divf %396, %397 : vector<8x32xf32>
    %399 = vector.extract_strided_slice %386 {offsets = [0, 64], sizes = [8, 32], strides = [1, 1]} : vector<8x128xf32> to vector<8x32xf32>
    %400 = math.tanh %399 : vector<8x32xf32>
    %401 = vector.extract_strided_slice %386 {offsets = [0, 96], sizes = [8, 32], strides = [1, 1]} : vector<8x128xf32> to vector<8x32xf32>
    %402 = arith.negf %401 : vector<8x32xf32>
    %403 = math.exp %402 : vector<8x32xf32>
    %cst_165 = arith.constant 1.000000e+00 : f32
    %404 = vector.broadcast %cst_165 : f32 to vector<8x32xf32>
    %405 = arith.addf %404, %403 : vector<8x32xf32>
    %406 = arith.divf %404, %405 : vector<8x32xf32>
    %407 = arith.mulf %398, %309 : vector<8x32xf32>
    %408 = arith.mulf %392, %400 : vector<8x32xf32>
    %409 = arith.addf %407, %408 : vector<8x32xf32>
    %410 = math.tanh %409 : vector<8x32xf32>
    %411 = arith.mulf %406, %410 : vector<8x32xf32>
    %412 = vector.extract_strided_slice %76 {offsets = [24, 0], sizes = [8, 128], strides = [1, 1]} : vector<56x128xf32> to vector<8x128xf32>
    %c0_166 = arith.constant 0 : index
    %c0_167 = arith.constant 0 : index
    %413 = vector.load %arg11[%c0_166, %c0_167] : memref<32x128xf32, #tpu.memory_space<vmem>>, vector<32x128xf32>
    %cst_168 = arith.constant dense<0.000000e+00> : vector<8x128xf32>
    %414 = tpu.matmul %340, %413, %cst_168 {dimension_numbers = #tpu.dot_dimension_numbers<[1], [0], [0], [1], [0, 0, 1, 1], [], []>} : vector<8x32xf32>, vector<32x128xf32>, vector<8x128xf32> -> vector<8x128xf32>
    %415 = arith.addf %412, %414 : vector<8x128xf32>
    %416 = vector.extract_strided_slice %415 {offsets = [0, 0], sizes = [8, 32], strides = [1, 1]} : vector<8x128xf32> to vector<8x32xf32>
    %417 = arith.negf %416 : vector<8x32xf32>
    %418 = math.exp %417 : vector<8x32xf32>
    %cst_169 = arith.constant 1.000000e+00 : f32
    %419 = vector.broadcast %cst_169 : f32 to vector<8x32xf32>
    %420 = arith.addf %419, %418 : vector<8x32xf32>
    %421 = arith.divf %419, %420 : vector<8x32xf32>
    %422 = vector.extract_strided_slice %415 {offsets = [0, 32], sizes = [8, 32], strides = [1, 1]} : vector<8x128xf32> to vector<8x32xf32>
    %423 = arith.negf %422 : vector<8x32xf32>
    %424 = math.exp %423 : vector<8x32xf32>
    %cst_170 = arith.constant 1.000000e+00 : f32
    %425 = vector.broadcast %cst_170 : f32 to vector<8x32xf32>
    %426 = arith.addf %425, %424 : vector<8x32xf32>
    %427 = arith.divf %425, %426 : vector<8x32xf32>
    %428 = vector.extract_strided_slice %415 {offsets = [0, 64], sizes = [8, 32], strides = [1, 1]} : vector<8x128xf32> to vector<8x32xf32>
    %429 = math.tanh %428 : vector<8x32xf32>
    %430 = vector.extract_strided_slice %415 {offsets = [0, 96], sizes = [8, 32], strides = [1, 1]} : vector<8x128xf32> to vector<8x32xf32>
    %431 = arith.negf %430 : vector<8x32xf32>
    %432 = math.exp %431 : vector<8x32xf32>
    %cst_171 = arith.constant 1.000000e+00 : f32
    %433 = vector.broadcast %cst_171 : f32 to vector<8x32xf32>
    %434 = arith.addf %433, %432 : vector<8x32xf32>
    %435 = arith.divf %433, %434 : vector<8x32xf32>
    %436 = arith.mulf %427, %338 : vector<8x32xf32>
    %437 = arith.mulf %421, %429 : vector<8x32xf32>
    %438 = arith.addf %436, %437 : vector<8x32xf32>
    %439 = math.tanh %438 : vector<8x32xf32>
    %440 = arith.mulf %435, %439 : vector<8x32xf32>
    %c0_172 = arith.constant 0 : index
    %c0_173 = arith.constant 0 : index
    %441 = vector.load %arg15[%c0_172, %c0_173] : memref<32x32xf32, #tpu.memory_space<vmem>>, vector<32x32xf32>
    %cst_174 = arith.constant dense<0.000000e+00> : vector<8x32xf32>
    %442 = tpu.matmul %411, %441, %cst_174 {dimension_numbers = #tpu.dot_dimension_numbers<[1], [0], [0], [1], [0, 0, 1, 1], [], []>} : vector<8x32xf32>, vector<32x32xf32>, vector<8x32xf32> -> vector<8x32xf32>
    %c0_175 = arith.constant 0 : index
    %c0_176 = arith.constant 0 : index
    %443 = vector.load %arg16[%c0_175, %c0_176] : memref<32x32xf32, #tpu.memory_space<vmem>>, vector<32x32xf32>
    %cst_177 = arith.constant dense<0.000000e+00> : vector<8x32xf32>
    %444 = tpu.matmul %440, %443, %cst_177 {dimension_numbers = #tpu.dot_dimension_numbers<[1], [0], [0], [1], [0, 0, 1, 1], [], []>} : vector<8x32xf32>, vector<32x32xf32>, vector<8x32xf32> -> vector<8x32xf32>
    %445 = arith.addf %442, %444 : vector<8x32xf32>
    %c0_178 = arith.constant 0 : index
    %c0_179 = arith.constant 0 : index
    %446 = vector.load %arg17[%c0_178, %c0_179] : memref<1x32xf32, #tpu.memory_space<vmem>>, vector<1x32xf32>
    %447 = vector.broadcast %446 : vector<1x32xf32> to vector<8x32xf32>
    %448 = arith.addf %445, %447 : vector<8x32xf32>
    %cst_180 = arith.constant 0.000000e+00 : f32
    %449 = vector.broadcast %cst_180 : f32 to vector<8x32xf32>
    %450 = arith.maximumf %448, %449 : vector<8x32xf32>
    %451 = vector.extract_strided_slice %25 {offsets = [24, 0], sizes = [8, 128], strides = [1, 1]} : vector<56x128xf32> to vector<8x128xf32>
    %c0_181 = arith.constant 0 : index
    %c0_182 = arith.constant 0 : index
    %452 = vector.load %arg19[%c0_181, %c0_182] : memref<32x128xf32, #tpu.memory_space<vmem>>, vector<32x128xf32>
    %cst_183 = arith.constant dense<0.000000e+00> : vector<8x128xf32>
    %453 = tpu.matmul %450, %452, %cst_183 {dimension_numbers = #tpu.dot_dimension_numbers<[1], [0], [0], [1], [0, 0, 1, 1], [], []>} : vector<8x32xf32>, vector<32x128xf32>, vector<8x128xf32> -> vector<8x128xf32>
    %454 = arith.addf %451, %453 : vector<8x128xf32>
    %c0_184 = arith.constant 0 : index
    %c0_185 = arith.constant 0 : index
    %455 = vector.load %arg20[%c0_184, %c0_185] : memref<32x128xf32, #tpu.memory_space<vmem>>, vector<32x128xf32>
    %cst_186 = arith.constant dense<0.000000e+00> : vector<8x128xf32>
    %456 = tpu.matmul %382, %455, %cst_186 {dimension_numbers = #tpu.dot_dimension_numbers<[1], [0], [0], [1], [0, 0, 1, 1], [], []>} : vector<8x32xf32>, vector<32x128xf32>, vector<8x128xf32> -> vector<8x128xf32>
    %457 = arith.addf %454, %456 : vector<8x128xf32>
    %458 = vector.extract_strided_slice %457 {offsets = [0, 0], sizes = [8, 32], strides = [1, 1]} : vector<8x128xf32> to vector<8x32xf32>
    %459 = arith.negf %458 : vector<8x32xf32>
    %460 = math.exp %459 : vector<8x32xf32>
    %cst_187 = arith.constant 1.000000e+00 : f32
    %461 = vector.broadcast %cst_187 : f32 to vector<8x32xf32>
    %462 = arith.addf %461, %460 : vector<8x32xf32>
    %463 = arith.divf %461, %462 : vector<8x32xf32>
    %464 = vector.extract_strided_slice %457 {offsets = [0, 32], sizes = [8, 32], strides = [1, 1]} : vector<8x128xf32> to vector<8x32xf32>
    %465 = arith.negf %464 : vector<8x32xf32>
    %466 = math.exp %465 : vector<8x32xf32>
    %cst_188 = arith.constant 1.000000e+00 : f32
    %467 = vector.broadcast %cst_188 : f32 to vector<8x32xf32>
    %468 = arith.addf %467, %466 : vector<8x32xf32>
    %469 = arith.divf %467, %468 : vector<8x32xf32>
    %470 = vector.extract_strided_slice %457 {offsets = [0, 64], sizes = [8, 32], strides = [1, 1]} : vector<8x128xf32> to vector<8x32xf32>
    %471 = math.tanh %470 : vector<8x32xf32>
    %472 = vector.extract_strided_slice %457 {offsets = [0, 96], sizes = [8, 32], strides = [1, 1]} : vector<8x128xf32> to vector<8x32xf32>
    %473 = arith.negf %472 : vector<8x32xf32>
    %474 = math.exp %473 : vector<8x32xf32>
    %cst_189 = arith.constant 1.000000e+00 : f32
    %475 = vector.broadcast %cst_189 : f32 to vector<8x32xf32>
    %476 = arith.addf %475, %474 : vector<8x32xf32>
    %477 = arith.divf %475, %476 : vector<8x32xf32>
    %478 = arith.mulf %469, %380 : vector<8x32xf32>
    %479 = arith.mulf %463, %471 : vector<8x32xf32>
    %480 = arith.addf %478, %479 : vector<8x32xf32>
    %481 = math.tanh %480 : vector<8x32xf32>
    %482 = arith.mulf %477, %481 : vector<8x32xf32>
    %483 = vector.extract_strided_slice %13 {offsets = [32, 0], sizes = [8, 128], strides = [1, 1]} : vector<56x128xf32> to vector<8x128xf32>
    %c0_190 = arith.constant 0 : index
    %c0_191 = arith.constant 0 : index
    %484 = vector.load %arg6[%c0_190, %c0_191] : memref<32x128xf32, #tpu.memory_space<vmem>>, vector<32x128xf32>
    %cst_192 = arith.constant dense<0.000000e+00> : vector<8x128xf32>
    %485 = tpu.matmul %411, %484, %cst_192 {dimension_numbers = #tpu.dot_dimension_numbers<[1], [0], [0], [1], [0, 0, 1, 1], [], []>} : vector<8x32xf32>, vector<32x128xf32>, vector<8x128xf32> -> vector<8x128xf32>
    %486 = arith.addf %483, %485 : vector<8x128xf32>
    %487 = vector.extract_strided_slice %486 {offsets = [0, 0], sizes = [8, 32], strides = [1, 1]} : vector<8x128xf32> to vector<8x32xf32>
    %488 = arith.negf %487 : vector<8x32xf32>
    %489 = math.exp %488 : vector<8x32xf32>
    %cst_193 = arith.constant 1.000000e+00 : f32
    %490 = vector.broadcast %cst_193 : f32 to vector<8x32xf32>
    %491 = arith.addf %490, %489 : vector<8x32xf32>
    %492 = arith.divf %490, %491 : vector<8x32xf32>
    %493 = vector.extract_strided_slice %486 {offsets = [0, 32], sizes = [8, 32], strides = [1, 1]} : vector<8x128xf32> to vector<8x32xf32>
    %494 = arith.negf %493 : vector<8x32xf32>
    %495 = math.exp %494 : vector<8x32xf32>
    %cst_194 = arith.constant 1.000000e+00 : f32
    %496 = vector.broadcast %cst_194 : f32 to vector<8x32xf32>
    %497 = arith.addf %496, %495 : vector<8x32xf32>
    %498 = arith.divf %496, %497 : vector<8x32xf32>
    %499 = vector.extract_strided_slice %486 {offsets = [0, 64], sizes = [8, 32], strides = [1, 1]} : vector<8x128xf32> to vector<8x32xf32>
    %500 = math.tanh %499 : vector<8x32xf32>
    %501 = vector.extract_strided_slice %486 {offsets = [0, 96], sizes = [8, 32], strides = [1, 1]} : vector<8x128xf32> to vector<8x32xf32>
    %502 = arith.negf %501 : vector<8x32xf32>
    %503 = math.exp %502 : vector<8x32xf32>
    %cst_195 = arith.constant 1.000000e+00 : f32
    %504 = vector.broadcast %cst_195 : f32 to vector<8x32xf32>
    %505 = arith.addf %504, %503 : vector<8x32xf32>
    %506 = arith.divf %504, %505 : vector<8x32xf32>
    %507 = arith.mulf %498, %409 : vector<8x32xf32>
    %508 = arith.mulf %492, %500 : vector<8x32xf32>
    %509 = arith.addf %507, %508 : vector<8x32xf32>
    %510 = math.tanh %509 : vector<8x32xf32>
    %511 = arith.mulf %506, %510 : vector<8x32xf32>
    %512 = vector.extract_strided_slice %76 {offsets = [32, 0], sizes = [8, 128], strides = [1, 1]} : vector<56x128xf32> to vector<8x128xf32>
    %c0_196 = arith.constant 0 : index
    %c0_197 = arith.constant 0 : index
    %513 = vector.load %arg11[%c0_196, %c0_197] : memref<32x128xf32, #tpu.memory_space<vmem>>, vector<32x128xf32>
    %cst_198 = arith.constant dense<0.000000e+00> : vector<8x128xf32>
    %514 = tpu.matmul %440, %513, %cst_198 {dimension_numbers = #tpu.dot_dimension_numbers<[1], [0], [0], [1], [0, 0, 1, 1], [], []>} : vector<8x32xf32>, vector<32x128xf32>, vector<8x128xf32> -> vector<8x128xf32>
    %515 = arith.addf %512, %514 : vector<8x128xf32>
    %516 = vector.extract_strided_slice %515 {offsets = [0, 0], sizes = [8, 32], strides = [1, 1]} : vector<8x128xf32> to vector<8x32xf32>
    %517 = arith.negf %516 : vector<8x32xf32>
    %518 = math.exp %517 : vector<8x32xf32>
    %cst_199 = arith.constant 1.000000e+00 : f32
    %519 = vector.broadcast %cst_199 : f32 to vector<8x32xf32>
    %520 = arith.addf %519, %518 : vector<8x32xf32>
    %521 = arith.divf %519, %520 : vector<8x32xf32>
    %522 = vector.extract_strided_slice %515 {offsets = [0, 32], sizes = [8, 32], strides = [1, 1]} : vector<8x128xf32> to vector<8x32xf32>
    %523 = arith.negf %522 : vector<8x32xf32>
    %524 = math.exp %523 : vector<8x32xf32>
    %cst_200 = arith.constant 1.000000e+00 : f32
    %525 = vector.broadcast %cst_200 : f32 to vector<8x32xf32>
    %526 = arith.addf %525, %524 : vector<8x32xf32>
    %527 = arith.divf %525, %526 : vector<8x32xf32>
    %528 = vector.extract_strided_slice %515 {offsets = [0, 64], sizes = [8, 32], strides = [1, 1]} : vector<8x128xf32> to vector<8x32xf32>
    %529 = math.tanh %528 : vector<8x32xf32>
    %530 = vector.extract_strided_slice %515 {offsets = [0, 96], sizes = [8, 32], strides = [1, 1]} : vector<8x128xf32> to vector<8x32xf32>
    %531 = arith.negf %530 : vector<8x32xf32>
    %532 = math.exp %531 : vector<8x32xf32>
    %cst_201 = arith.constant 1.000000e+00 : f32
    %533 = vector.broadcast %cst_201 : f32 to vector<8x32xf32>
    %534 = arith.addf %533, %532 : vector<8x32xf32>
    %535 = arith.divf %533, %534 : vector<8x32xf32>
    %536 = arith.mulf %527, %438 : vector<8x32xf32>
    %537 = arith.mulf %521, %529 : vector<8x32xf32>
    %538 = arith.addf %536, %537 : vector<8x32xf32>
    %539 = math.tanh %538 : vector<8x32xf32>
    %540 = arith.mulf %535, %539 : vector<8x32xf32>
    %c0_202 = arith.constant 0 : index
    %c0_203 = arith.constant 0 : index
    %541 = vector.load %arg15[%c0_202, %c0_203] : memref<32x32xf32, #tpu.memory_space<vmem>>, vector<32x32xf32>
    %cst_204 = arith.constant dense<0.000000e+00> : vector<8x32xf32>
    %542 = tpu.matmul %511, %541, %cst_204 {dimension_numbers = #tpu.dot_dimension_numbers<[1], [0], [0], [1], [0, 0, 1, 1], [], []>} : vector<8x32xf32>, vector<32x32xf32>, vector<8x32xf32> -> vector<8x32xf32>
    %c0_205 = arith.constant 0 : index
    %c0_206 = arith.constant 0 : index
    %543 = vector.load %arg16[%c0_205, %c0_206] : memref<32x32xf32, #tpu.memory_space<vmem>>, vector<32x32xf32>
    %cst_207 = arith.constant dense<0.000000e+00> : vector<8x32xf32>
    %544 = tpu.matmul %540, %543, %cst_207 {dimension_numbers = #tpu.dot_dimension_numbers<[1], [0], [0], [1], [0, 0, 1, 1], [], []>} : vector<8x32xf32>, vector<32x32xf32>, vector<8x32xf32> -> vector<8x32xf32>
    %545 = arith.addf %542, %544 : vector<8x32xf32>
    %c0_208 = arith.constant 0 : index
    %c0_209 = arith.constant 0 : index
    %546 = vector.load %arg17[%c0_208, %c0_209] : memref<1x32xf32, #tpu.memory_space<vmem>>, vector<1x32xf32>
    %547 = vector.broadcast %546 : vector<1x32xf32> to vector<8x32xf32>
    %548 = arith.addf %545, %547 : vector<8x32xf32>
    %cst_210 = arith.constant 0.000000e+00 : f32
    %549 = vector.broadcast %cst_210 : f32 to vector<8x32xf32>
    %550 = arith.maximumf %548, %549 : vector<8x32xf32>
    %551 = vector.extract_strided_slice %25 {offsets = [32, 0], sizes = [8, 128], strides = [1, 1]} : vector<56x128xf32> to vector<8x128xf32>
    %c0_211 = arith.constant 0 : index
    %c0_212 = arith.constant 0 : index
    %552 = vector.load %arg19[%c0_211, %c0_212] : memref<32x128xf32, #tpu.memory_space<vmem>>, vector<32x128xf32>
    %cst_213 = arith.constant dense<0.000000e+00> : vector<8x128xf32>
    %553 = tpu.matmul %550, %552, %cst_213 {dimension_numbers = #tpu.dot_dimension_numbers<[1], [0], [0], [1], [0, 0, 1, 1], [], []>} : vector<8x32xf32>, vector<32x128xf32>, vector<8x128xf32> -> vector<8x128xf32>
    %554 = arith.addf %551, %553 : vector<8x128xf32>
    %c0_214 = arith.constant 0 : index
    %c0_215 = arith.constant 0 : index
    %555 = vector.load %arg20[%c0_214, %c0_215] : memref<32x128xf32, #tpu.memory_space<vmem>>, vector<32x128xf32>
    %cst_216 = arith.constant dense<0.000000e+00> : vector<8x128xf32>
    %556 = tpu.matmul %482, %555, %cst_216 {dimension_numbers = #tpu.dot_dimension_numbers<[1], [0], [0], [1], [0, 0, 1, 1], [], []>} : vector<8x32xf32>, vector<32x128xf32>, vector<8x128xf32> -> vector<8x128xf32>
    %557 = arith.addf %554, %556 : vector<8x128xf32>
    %558 = vector.extract_strided_slice %557 {offsets = [0, 0], sizes = [8, 32], strides = [1, 1]} : vector<8x128xf32> to vector<8x32xf32>
    %559 = arith.negf %558 : vector<8x32xf32>
    %560 = math.exp %559 : vector<8x32xf32>
    %cst_217 = arith.constant 1.000000e+00 : f32
    %561 = vector.broadcast %cst_217 : f32 to vector<8x32xf32>
    %562 = arith.addf %561, %560 : vector<8x32xf32>
    %563 = arith.divf %561, %562 : vector<8x32xf32>
    %564 = vector.extract_strided_slice %557 {offsets = [0, 32], sizes = [8, 32], strides = [1, 1]} : vector<8x128xf32> to vector<8x32xf32>
    %565 = arith.negf %564 : vector<8x32xf32>
    %566 = math.exp %565 : vector<8x32xf32>
    %cst_218 = arith.constant 1.000000e+00 : f32
    %567 = vector.broadcast %cst_218 : f32 to vector<8x32xf32>
    %568 = arith.addf %567, %566 : vector<8x32xf32>
    %569 = arith.divf %567, %568 : vector<8x32xf32>
    %570 = vector.extract_strided_slice %557 {offsets = [0, 64], sizes = [8, 32], strides = [1, 1]} : vector<8x128xf32> to vector<8x32xf32>
    %571 = math.tanh %570 : vector<8x32xf32>
    %572 = vector.extract_strided_slice %557 {offsets = [0, 96], sizes = [8, 32], strides = [1, 1]} : vector<8x128xf32> to vector<8x32xf32>
    %573 = arith.negf %572 : vector<8x32xf32>
    %574 = math.exp %573 : vector<8x32xf32>
    %cst_219 = arith.constant 1.000000e+00 : f32
    %575 = vector.broadcast %cst_219 : f32 to vector<8x32xf32>
    %576 = arith.addf %575, %574 : vector<8x32xf32>
    %577 = arith.divf %575, %576 : vector<8x32xf32>
    %578 = arith.mulf %569, %480 : vector<8x32xf32>
    %579 = arith.mulf %563, %571 : vector<8x32xf32>
    %580 = arith.addf %578, %579 : vector<8x32xf32>
    %581 = math.tanh %580 : vector<8x32xf32>
    %582 = arith.mulf %577, %581 : vector<8x32xf32>
    %583 = vector.extract_strided_slice %13 {offsets = [40, 0], sizes = [8, 128], strides = [1, 1]} : vector<56x128xf32> to vector<8x128xf32>
    %c0_220 = arith.constant 0 : index
    %c0_221 = arith.constant 0 : index
    %584 = vector.load %arg6[%c0_220, %c0_221] : memref<32x128xf32, #tpu.memory_space<vmem>>, vector<32x128xf32>
    %cst_222 = arith.constant dense<0.000000e+00> : vector<8x128xf32>
    %585 = tpu.matmul %511, %584, %cst_222 {dimension_numbers = #tpu.dot_dimension_numbers<[1], [0], [0], [1], [0, 0, 1, 1], [], []>} : vector<8x32xf32>, vector<32x128xf32>, vector<8x128xf32> -> vector<8x128xf32>
    %586 = arith.addf %583, %585 : vector<8x128xf32>
    %587 = vector.extract_strided_slice %586 {offsets = [0, 0], sizes = [8, 32], strides = [1, 1]} : vector<8x128xf32> to vector<8x32xf32>
    %588 = arith.negf %587 : vector<8x32xf32>
    %589 = math.exp %588 : vector<8x32xf32>
    %cst_223 = arith.constant 1.000000e+00 : f32
    %590 = vector.broadcast %cst_223 : f32 to vector<8x32xf32>
    %591 = arith.addf %590, %589 : vector<8x32xf32>
    %592 = arith.divf %590, %591 : vector<8x32xf32>
    %593 = vector.extract_strided_slice %586 {offsets = [0, 32], sizes = [8, 32], strides = [1, 1]} : vector<8x128xf32> to vector<8x32xf32>
    %594 = arith.negf %593 : vector<8x32xf32>
    %595 = math.exp %594 : vector<8x32xf32>
    %cst_224 = arith.constant 1.000000e+00 : f32
    %596 = vector.broadcast %cst_224 : f32 to vector<8x32xf32>
    %597 = arith.addf %596, %595 : vector<8x32xf32>
    %598 = arith.divf %596, %597 : vector<8x32xf32>
    %599 = vector.extract_strided_slice %586 {offsets = [0, 64], sizes = [8, 32], strides = [1, 1]} : vector<8x128xf32> to vector<8x32xf32>
    %600 = math.tanh %599 : vector<8x32xf32>
    %601 = vector.extract_strided_slice %586 {offsets = [0, 96], sizes = [8, 32], strides = [1, 1]} : vector<8x128xf32> to vector<8x32xf32>
    %602 = arith.negf %601 : vector<8x32xf32>
    %603 = math.exp %602 : vector<8x32xf32>
    %cst_225 = arith.constant 1.000000e+00 : f32
    %604 = vector.broadcast %cst_225 : f32 to vector<8x32xf32>
    %605 = arith.addf %604, %603 : vector<8x32xf32>
    %606 = arith.divf %604, %605 : vector<8x32xf32>
    %607 = arith.mulf %598, %509 : vector<8x32xf32>
    %608 = arith.mulf %592, %600 : vector<8x32xf32>
    %609 = arith.addf %607, %608 : vector<8x32xf32>
    %610 = math.tanh %609 : vector<8x32xf32>
    %611 = arith.mulf %606, %610 : vector<8x32xf32>
    %612 = vector.extract_strided_slice %76 {offsets = [40, 0], sizes = [8, 128], strides = [1, 1]} : vector<56x128xf32> to vector<8x128xf32>
    %c0_226 = arith.constant 0 : index
    %c0_227 = arith.constant 0 : index
    %613 = vector.load %arg11[%c0_226, %c0_227] : memref<32x128xf32, #tpu.memory_space<vmem>>, vector<32x128xf32>
    %cst_228 = arith.constant dense<0.000000e+00> : vector<8x128xf32>
    %614 = tpu.matmul %540, %613, %cst_228 {dimension_numbers = #tpu.dot_dimension_numbers<[1], [0], [0], [1], [0, 0, 1, 1], [], []>} : vector<8x32xf32>, vector<32x128xf32>, vector<8x128xf32> -> vector<8x128xf32>
    %615 = arith.addf %612, %614 : vector<8x128xf32>
    %616 = vector.extract_strided_slice %615 {offsets = [0, 0], sizes = [8, 32], strides = [1, 1]} : vector<8x128xf32> to vector<8x32xf32>
    %617 = arith.negf %616 : vector<8x32xf32>
    %618 = math.exp %617 : vector<8x32xf32>
    %cst_229 = arith.constant 1.000000e+00 : f32
    %619 = vector.broadcast %cst_229 : f32 to vector<8x32xf32>
    %620 = arith.addf %619, %618 : vector<8x32xf32>
    %621 = arith.divf %619, %620 : vector<8x32xf32>
    %622 = vector.extract_strided_slice %615 {offsets = [0, 32], sizes = [8, 32], strides = [1, 1]} : vector<8x128xf32> to vector<8x32xf32>
    %623 = arith.negf %622 : vector<8x32xf32>
    %624 = math.exp %623 : vector<8x32xf32>
    %cst_230 = arith.constant 1.000000e+00 : f32
    %625 = vector.broadcast %cst_230 : f32 to vector<8x32xf32>
    %626 = arith.addf %625, %624 : vector<8x32xf32>
    %627 = arith.divf %625, %626 : vector<8x32xf32>
    %628 = vector.extract_strided_slice %615 {offsets = [0, 64], sizes = [8, 32], strides = [1, 1]} : vector<8x128xf32> to vector<8x32xf32>
    %629 = math.tanh %628 : vector<8x32xf32>
    %630 = vector.extract_strided_slice %615 {offsets = [0, 96], sizes = [8, 32], strides = [1, 1]} : vector<8x128xf32> to vector<8x32xf32>
    %631 = arith.negf %630 : vector<8x32xf32>
    %632 = math.exp %631 : vector<8x32xf32>
    %cst_231 = arith.constant 1.000000e+00 : f32
    %633 = vector.broadcast %cst_231 : f32 to vector<8x32xf32>
    %634 = arith.addf %633, %632 : vector<8x32xf32>
    %635 = arith.divf %633, %634 : vector<8x32xf32>
    %636 = arith.mulf %627, %538 : vector<8x32xf32>
    %637 = arith.mulf %621, %629 : vector<8x32xf32>
    %638 = arith.addf %636, %637 : vector<8x32xf32>
    %639 = math.tanh %638 : vector<8x32xf32>
    %640 = arith.mulf %635, %639 : vector<8x32xf32>
    %c0_232 = arith.constant 0 : index
    %c0_233 = arith.constant 0 : index
    %641 = vector.load %arg15[%c0_232, %c0_233] : memref<32x32xf32, #tpu.memory_space<vmem>>, vector<32x32xf32>
    %cst_234 = arith.constant dense<0.000000e+00> : vector<8x32xf32>
    %642 = tpu.matmul %611, %641, %cst_234 {dimension_numbers = #tpu.dot_dimension_numbers<[1], [0], [0], [1], [0, 0, 1, 1], [], []>} : vector<8x32xf32>, vector<32x32xf32>, vector<8x32xf32> -> vector<8x32xf32>
    %c0_235 = arith.constant 0 : index
    %c0_236 = arith.constant 0 : index
    %643 = vector.load %arg16[%c0_235, %c0_236] : memref<32x32xf32, #tpu.memory_space<vmem>>, vector<32x32xf32>
    %cst_237 = arith.constant dense<0.000000e+00> : vector<8x32xf32>
    %644 = tpu.matmul %640, %643, %cst_237 {dimension_numbers = #tpu.dot_dimension_numbers<[1], [0], [0], [1], [0, 0, 1, 1], [], []>} : vector<8x32xf32>, vector<32x32xf32>, vector<8x32xf32> -> vector<8x32xf32>
    %645 = arith.addf %642, %644 : vector<8x32xf32>
    %c0_238 = arith.constant 0 : index
    %c0_239 = arith.constant 0 : index
    %646 = vector.load %arg17[%c0_238, %c0_239] : memref<1x32xf32, #tpu.memory_space<vmem>>, vector<1x32xf32>
    %647 = vector.broadcast %646 : vector<1x32xf32> to vector<8x32xf32>
    %648 = arith.addf %645, %647 : vector<8x32xf32>
    %cst_240 = arith.constant 0.000000e+00 : f32
    %649 = vector.broadcast %cst_240 : f32 to vector<8x32xf32>
    %650 = arith.maximumf %648, %649 : vector<8x32xf32>
    %651 = vector.extract_strided_slice %25 {offsets = [40, 0], sizes = [8, 128], strides = [1, 1]} : vector<56x128xf32> to vector<8x128xf32>
    %c0_241 = arith.constant 0 : index
    %c0_242 = arith.constant 0 : index
    %652 = vector.load %arg19[%c0_241, %c0_242] : memref<32x128xf32, #tpu.memory_space<vmem>>, vector<32x128xf32>
    %cst_243 = arith.constant dense<0.000000e+00> : vector<8x128xf32>
    %653 = tpu.matmul %650, %652, %cst_243 {dimension_numbers = #tpu.dot_dimension_numbers<[1], [0], [0], [1], [0, 0, 1, 1], [], []>} : vector<8x32xf32>, vector<32x128xf32>, vector<8x128xf32> -> vector<8x128xf32>
    %654 = arith.addf %651, %653 : vector<8x128xf32>
    %c0_244 = arith.constant 0 : index
    %c0_245 = arith.constant 0 : index
    %655 = vector.load %arg20[%c0_244, %c0_245] : memref<32x128xf32, #tpu.memory_space<vmem>>, vector<32x128xf32>
    %cst_246 = arith.constant dense<0.000000e+00> : vector<8x128xf32>
    %656 = tpu.matmul %582, %655, %cst_246 {dimension_numbers = #tpu.dot_dimension_numbers<[1], [0], [0], [1], [0, 0, 1, 1], [], []>} : vector<8x32xf32>, vector<32x128xf32>, vector<8x128xf32> -> vector<8x128xf32>
    %657 = arith.addf %654, %656 : vector<8x128xf32>
    %658 = vector.extract_strided_slice %657 {offsets = [0, 0], sizes = [8, 32], strides = [1, 1]} : vector<8x128xf32> to vector<8x32xf32>
    %659 = arith.negf %658 : vector<8x32xf32>
    %660 = math.exp %659 : vector<8x32xf32>
    %cst_247 = arith.constant 1.000000e+00 : f32
    %661 = vector.broadcast %cst_247 : f32 to vector<8x32xf32>
    %662 = arith.addf %661, %660 : vector<8x32xf32>
    %663 = arith.divf %661, %662 : vector<8x32xf32>
    %664 = vector.extract_strided_slice %657 {offsets = [0, 32], sizes = [8, 32], strides = [1, 1]} : vector<8x128xf32> to vector<8x32xf32>
    %665 = arith.negf %664 : vector<8x32xf32>
    %666 = math.exp %665 : vector<8x32xf32>
    %cst_248 = arith.constant 1.000000e+00 : f32
    %667 = vector.broadcast %cst_248 : f32 to vector<8x32xf32>
    %668 = arith.addf %667, %666 : vector<8x32xf32>
    %669 = arith.divf %667, %668 : vector<8x32xf32>
    %670 = vector.extract_strided_slice %657 {offsets = [0, 64], sizes = [8, 32], strides = [1, 1]} : vector<8x128xf32> to vector<8x32xf32>
    %671 = math.tanh %670 : vector<8x32xf32>
    %672 = vector.extract_strided_slice %657 {offsets = [0, 96], sizes = [8, 32], strides = [1, 1]} : vector<8x128xf32> to vector<8x32xf32>
    %673 = arith.negf %672 : vector<8x32xf32>
    %674 = math.exp %673 : vector<8x32xf32>
    %cst_249 = arith.constant 1.000000e+00 : f32
    %675 = vector.broadcast %cst_249 : f32 to vector<8x32xf32>
    %676 = arith.addf %675, %674 : vector<8x32xf32>
    %677 = arith.divf %675, %676 : vector<8x32xf32>
    %678 = arith.mulf %669, %580 : vector<8x32xf32>
    %679 = arith.mulf %663, %671 : vector<8x32xf32>
    %680 = arith.addf %678, %679 : vector<8x32xf32>
    %681 = math.tanh %680 : vector<8x32xf32>
    %682 = arith.mulf %677, %681 : vector<8x32xf32>
    %683 = vector.extract_strided_slice %13 {offsets = [48, 0], sizes = [8, 128], strides = [1, 1]} : vector<56x128xf32> to vector<8x128xf32>
    %c0_250 = arith.constant 0 : index
    %c0_251 = arith.constant 0 : index
    %684 = vector.load %arg6[%c0_250, %c0_251] : memref<32x128xf32, #tpu.memory_space<vmem>>, vector<32x128xf32>
    %cst_252 = arith.constant dense<0.000000e+00> : vector<8x128xf32>
    %685 = tpu.matmul %611, %684, %cst_252 {dimension_numbers = #tpu.dot_dimension_numbers<[1], [0], [0], [1], [0, 0, 1, 1], [], []>} : vector<8x32xf32>, vector<32x128xf32>, vector<8x128xf32> -> vector<8x128xf32>
    %686 = arith.addf %683, %685 : vector<8x128xf32>
    %687 = vector.extract_strided_slice %686 {offsets = [0, 0], sizes = [8, 32], strides = [1, 1]} : vector<8x128xf32> to vector<8x32xf32>
    %688 = arith.negf %687 : vector<8x32xf32>
    %689 = math.exp %688 : vector<8x32xf32>
    %cst_253 = arith.constant 1.000000e+00 : f32
    %690 = vector.broadcast %cst_253 : f32 to vector<8x32xf32>
    %691 = arith.addf %690, %689 : vector<8x32xf32>
    %692 = arith.divf %690, %691 : vector<8x32xf32>
    %693 = vector.extract_strided_slice %686 {offsets = [0, 32], sizes = [8, 32], strides = [1, 1]} : vector<8x128xf32> to vector<8x32xf32>
    %694 = arith.negf %693 : vector<8x32xf32>
    %695 = math.exp %694 : vector<8x32xf32>
    %cst_254 = arith.constant 1.000000e+00 : f32
    %696 = vector.broadcast %cst_254 : f32 to vector<8x32xf32>
    %697 = arith.addf %696, %695 : vector<8x32xf32>
    %698 = arith.divf %696, %697 : vector<8x32xf32>
    %699 = vector.extract_strided_slice %686 {offsets = [0, 64], sizes = [8, 32], strides = [1, 1]} : vector<8x128xf32> to vector<8x32xf32>
    %700 = math.tanh %699 : vector<8x32xf32>
    %701 = vector.extract_strided_slice %686 {offsets = [0, 96], sizes = [8, 32], strides = [1, 1]} : vector<8x128xf32> to vector<8x32xf32>
    %702 = arith.negf %701 : vector<8x32xf32>
    %703 = math.exp %702 : vector<8x32xf32>
    %cst_255 = arith.constant 1.000000e+00 : f32
    %704 = vector.broadcast %cst_255 : f32 to vector<8x32xf32>
    %705 = arith.addf %704, %703 : vector<8x32xf32>
    %706 = arith.divf %704, %705 : vector<8x32xf32>
    %707 = arith.mulf %698, %609 : vector<8x32xf32>
    %708 = arith.mulf %692, %700 : vector<8x32xf32>
    %709 = arith.addf %707, %708 : vector<8x32xf32>
    %710 = math.tanh %709 : vector<8x32xf32>
    %711 = arith.mulf %706, %710 : vector<8x32xf32>
    %712 = vector.extract_strided_slice %76 {offsets = [48, 0], sizes = [8, 128], strides = [1, 1]} : vector<56x128xf32> to vector<8x128xf32>
    %c0_256 = arith.constant 0 : index
    %c0_257 = arith.constant 0 : index
    %713 = vector.load %arg11[%c0_256, %c0_257] : memref<32x128xf32, #tpu.memory_space<vmem>>, vector<32x128xf32>
    %cst_258 = arith.constant dense<0.000000e+00> : vector<8x128xf32>
    %714 = tpu.matmul %640, %713, %cst_258 {dimension_numbers = #tpu.dot_dimension_numbers<[1], [0], [0], [1], [0, 0, 1, 1], [], []>} : vector<8x32xf32>, vector<32x128xf32>, vector<8x128xf32> -> vector<8x128xf32>
    %715 = arith.addf %712, %714 : vector<8x128xf32>
    %716 = vector.extract_strided_slice %715 {offsets = [0, 0], sizes = [8, 32], strides = [1, 1]} : vector<8x128xf32> to vector<8x32xf32>
    %717 = arith.negf %716 : vector<8x32xf32>
    %718 = math.exp %717 : vector<8x32xf32>
    %cst_259 = arith.constant 1.000000e+00 : f32
    %719 = vector.broadcast %cst_259 : f32 to vector<8x32xf32>
    %720 = arith.addf %719, %718 : vector<8x32xf32>
    %721 = arith.divf %719, %720 : vector<8x32xf32>
    %722 = vector.extract_strided_slice %715 {offsets = [0, 32], sizes = [8, 32], strides = [1, 1]} : vector<8x128xf32> to vector<8x32xf32>
    %723 = arith.negf %722 : vector<8x32xf32>
    %724 = math.exp %723 : vector<8x32xf32>
    %cst_260 = arith.constant 1.000000e+00 : f32
    %725 = vector.broadcast %cst_260 : f32 to vector<8x32xf32>
    %726 = arith.addf %725, %724 : vector<8x32xf32>
    %727 = arith.divf %725, %726 : vector<8x32xf32>
    %728 = vector.extract_strided_slice %715 {offsets = [0, 64], sizes = [8, 32], strides = [1, 1]} : vector<8x128xf32> to vector<8x32xf32>
    %729 = math.tanh %728 : vector<8x32xf32>
    %730 = vector.extract_strided_slice %715 {offsets = [0, 96], sizes = [8, 32], strides = [1, 1]} : vector<8x128xf32> to vector<8x32xf32>
    %731 = arith.negf %730 : vector<8x32xf32>
    %732 = math.exp %731 : vector<8x32xf32>
    %cst_261 = arith.constant 1.000000e+00 : f32
    %733 = vector.broadcast %cst_261 : f32 to vector<8x32xf32>
    %734 = arith.addf %733, %732 : vector<8x32xf32>
    %735 = arith.divf %733, %734 : vector<8x32xf32>
    %736 = arith.mulf %727, %638 : vector<8x32xf32>
    %737 = arith.mulf %721, %729 : vector<8x32xf32>
    %738 = arith.addf %736, %737 : vector<8x32xf32>
    %739 = math.tanh %738 : vector<8x32xf32>
    %740 = arith.mulf %735, %739 : vector<8x32xf32>
    %c0_262 = arith.constant 0 : index
    %c0_263 = arith.constant 0 : index
    %741 = vector.load %arg15[%c0_262, %c0_263] : memref<32x32xf32, #tpu.memory_space<vmem>>, vector<32x32xf32>
    %cst_264 = arith.constant dense<0.000000e+00> : vector<8x32xf32>
    %742 = tpu.matmul %711, %741, %cst_264 {dimension_numbers = #tpu.dot_dimension_numbers<[1], [0], [0], [1], [0, 0, 1, 1], [], []>} : vector<8x32xf32>, vector<32x32xf32>, vector<8x32xf32> -> vector<8x32xf32>
    %c0_265 = arith.constant 0 : index
    %c0_266 = arith.constant 0 : index
    %743 = vector.load %arg16[%c0_265, %c0_266] : memref<32x32xf32, #tpu.memory_space<vmem>>, vector<32x32xf32>
    %cst_267 = arith.constant dense<0.000000e+00> : vector<8x32xf32>
    %744 = tpu.matmul %740, %743, %cst_267 {dimension_numbers = #tpu.dot_dimension_numbers<[1], [0], [0], [1], [0, 0, 1, 1], [], []>} : vector<8x32xf32>, vector<32x32xf32>, vector<8x32xf32> -> vector<8x32xf32>
    %745 = arith.addf %742, %744 : vector<8x32xf32>
    %c0_268 = arith.constant 0 : index
    %c0_269 = arith.constant 0 : index
    %746 = vector.load %arg17[%c0_268, %c0_269] : memref<1x32xf32, #tpu.memory_space<vmem>>, vector<1x32xf32>
    %747 = vector.broadcast %746 : vector<1x32xf32> to vector<8x32xf32>
    %748 = arith.addf %745, %747 : vector<8x32xf32>
    %cst_270 = arith.constant 0.000000e+00 : f32
    %749 = vector.broadcast %cst_270 : f32 to vector<8x32xf32>
    %750 = arith.maximumf %748, %749 : vector<8x32xf32>
    %751 = vector.extract_strided_slice %25 {offsets = [48, 0], sizes = [8, 128], strides = [1, 1]} : vector<56x128xf32> to vector<8x128xf32>
    %c0_271 = arith.constant 0 : index
    %c0_272 = arith.constant 0 : index
    %752 = vector.load %arg19[%c0_271, %c0_272] : memref<32x128xf32, #tpu.memory_space<vmem>>, vector<32x128xf32>
    %cst_273 = arith.constant dense<0.000000e+00> : vector<8x128xf32>
    %753 = tpu.matmul %750, %752, %cst_273 {dimension_numbers = #tpu.dot_dimension_numbers<[1], [0], [0], [1], [0, 0, 1, 1], [], []>} : vector<8x32xf32>, vector<32x128xf32>, vector<8x128xf32> -> vector<8x128xf32>
    %754 = arith.addf %751, %753 : vector<8x128xf32>
    %c0_274 = arith.constant 0 : index
    %c0_275 = arith.constant 0 : index
    %755 = vector.load %arg20[%c0_274, %c0_275] : memref<32x128xf32, #tpu.memory_space<vmem>>, vector<32x128xf32>
    %cst_276 = arith.constant dense<0.000000e+00> : vector<8x128xf32>
    %756 = tpu.matmul %682, %755, %cst_276 {dimension_numbers = #tpu.dot_dimension_numbers<[1], [0], [0], [1], [0, 0, 1, 1], [], []>} : vector<8x32xf32>, vector<32x128xf32>, vector<8x128xf32> -> vector<8x128xf32>
    %757 = arith.addf %754, %756 : vector<8x128xf32>
    %758 = vector.extract_strided_slice %757 {offsets = [0, 0], sizes = [8, 32], strides = [1, 1]} : vector<8x128xf32> to vector<8x32xf32>
    %759 = arith.negf %758 : vector<8x32xf32>
    %760 = math.exp %759 : vector<8x32xf32>
    %cst_277 = arith.constant 1.000000e+00 : f32
    %761 = vector.broadcast %cst_277 : f32 to vector<8x32xf32>
    %762 = arith.addf %761, %760 : vector<8x32xf32>
    %763 = arith.divf %761, %762 : vector<8x32xf32>
    %764 = vector.extract_strided_slice %757 {offsets = [0, 32], sizes = [8, 32], strides = [1, 1]} : vector<8x128xf32> to vector<8x32xf32>
    %765 = arith.negf %764 : vector<8x32xf32>
    %766 = math.exp %765 : vector<8x32xf32>
    %cst_278 = arith.constant 1.000000e+00 : f32
    %767 = vector.broadcast %cst_278 : f32 to vector<8x32xf32>
    %768 = arith.addf %767, %766 : vector<8x32xf32>
    %769 = arith.divf %767, %768 : vector<8x32xf32>
    %770 = vector.extract_strided_slice %757 {offsets = [0, 64], sizes = [8, 32], strides = [1, 1]} : vector<8x128xf32> to vector<8x32xf32>
    %771 = math.tanh %770 : vector<8x32xf32>
    %772 = vector.extract_strided_slice %757 {offsets = [0, 96], sizes = [8, 32], strides = [1, 1]} : vector<8x128xf32> to vector<8x32xf32>
    %773 = arith.negf %772 : vector<8x32xf32>
    %774 = math.exp %773 : vector<8x32xf32>
    %cst_279 = arith.constant 1.000000e+00 : f32
    %775 = vector.broadcast %cst_279 : f32 to vector<8x32xf32>
    %776 = arith.addf %775, %774 : vector<8x32xf32>
    %777 = arith.divf %775, %776 : vector<8x32xf32>
    %778 = arith.mulf %769, %680 : vector<8x32xf32>
    %779 = arith.mulf %763, %771 : vector<8x32xf32>
    %780 = arith.addf %778, %779 : vector<8x32xf32>
    %781 = math.tanh %780 : vector<8x32xf32>
    %782 = arith.mulf %777, %781 : vector<8x32xf32>
    %c0_280 = arith.constant 0 : index
    %c0_281 = arith.constant 0 : index
    %783 = vector.load %arg22[%c0_280, %c0_281] : memref<32x16xf32, #tpu.memory_space<vmem>>, vector<32x16xf32>
    %cst_282 = arith.constant dense<0.000000e+00> : vector<8x16xf32>
    %784 = tpu.matmul %782, %783, %cst_282 {dimension_numbers = #tpu.dot_dimension_numbers<[1], [0], [0], [1], [0, 0, 1, 1], [], []>} : vector<8x32xf32>, vector<32x16xf32>, vector<8x16xf32> -> vector<8x16xf32>
    %c0_283 = arith.constant 0 : index
    %c0_284 = arith.constant 0 : index
    %785 = vector.load %arg23[%c0_283, %c0_284] : memref<1x16xf32, #tpu.memory_space<vmem>>, vector<1x16xf32>
    %786 = vector.broadcast %785 : vector<1x16xf32> to vector<8x16xf32>
    %787 = arith.addf %784, %786 : vector<8x16xf32>
    %788 = vector.extract_strided_slice %787 {offsets = [0, 0], sizes = [2, 16], strides = [1, 1]} : vector<8x16xf32> to vector<2x16xf32>
    %789 = vector.extract_strided_slice %787 {offsets = [2, 0], sizes = [2, 16], strides = [1, 1]} : vector<8x16xf32> to vector<2x16xf32>
    %790 = arith.addf %788, %789 : vector<2x16xf32>
    %791 = vector.extract_strided_slice %787 {offsets = [4, 0], sizes = [2, 16], strides = [1, 1]} : vector<8x16xf32> to vector<2x16xf32>
    %792 = arith.addf %790, %791 : vector<2x16xf32>
    %cst_285 = arith.constant dense<0.000000e+00> : vector<16xf32>
    %793 = vector.multi_reduction <add>, %792, %cst_285 [0] : vector<2x16xf32> to vector<16xf32>
    %794 = vector.shape_cast %793 : vector<16xf32> to vector<1x16xf32>
    %cst_286 = arith.constant 2.000000e+00 : f32
    %795 = vector.broadcast %cst_286 : f32 to vector<1x16xf32>
    %796 = arith.divf %794, %795 : vector<1x16xf32>
    %797 = vector.broadcast %796 : vector<1x16xf32> to vector<2x16xf32>
    %798 = arith.subf %792, %797 : vector<2x16xf32>
    %799 = arith.mulf %798, %798 : vector<2x16xf32>
    %cst_287 = arith.constant dense<0.000000e+00> : vector<16xf32>
    %800 = vector.multi_reduction <add>, %799, %cst_287 [0] : vector<2x16xf32> to vector<16xf32>
    %801 = vector.shape_cast %800 : vector<16xf32> to vector<1x16xf32>
    %cst_288 = arith.constant 2.000000e+00 : f32
    %802 = vector.broadcast %cst_288 : f32 to vector<1x16xf32>
    %803 = arith.divf %801, %802 : vector<1x16xf32>
    %804 = vector.broadcast %796 : vector<1x16xf32> to vector<2x16xf32>
    %805 = arith.subf %792, %804 : vector<2x16xf32>
    %cst_289 = arith.constant 9.99999974E-6 : f32
    %806 = vector.broadcast %cst_289 : f32 to vector<1x16xf32>
    %807 = arith.addf %803, %806 : vector<1x16xf32>
    %808 = math.rsqrt %807 : vector<1x16xf32>
    %809 = vector.broadcast %808 : vector<1x16xf32> to vector<2x16xf32>
    %810 = arith.mulf %805, %809 : vector<2x16xf32>
    %c0_290 = arith.constant 0 : index
    %c0_291 = arith.constant 0 : index
    %811 = vector.load %arg26[%c0_290, %c0_291] : memref<1x16xf32, #tpu.memory_space<vmem>>, vector<1x16xf32>
    %812 = vector.broadcast %811 : vector<1x16xf32> to vector<2x16xf32>
    %813 = arith.mulf %810, %812 : vector<2x16xf32>
    %c0_292 = arith.constant 0 : index
    %c0_293 = arith.constant 0 : index
    %814 = vector.load %arg27[%c0_292, %c0_293] : memref<1x16xf32, #tpu.memory_space<vmem>>, vector<1x16xf32>
    %815 = vector.broadcast %814 : vector<1x16xf32> to vector<2x16xf32>
    %816 = arith.addf %813, %815 : vector<2x16xf32>
    %c0_294 = arith.constant 0 : index
    %c0_295 = arith.constant 0 : index
    %817 = vector.load %arg28[%c0_294, %c0_295] : memref<16x4xf32, #tpu.memory_space<vmem>>, vector<16x4xf32>
    %cst_296 = arith.constant dense<0.000000e+00> : vector<2x4xf32>
    %818 = tpu.matmul %816, %817, %cst_296 {dimension_numbers = #tpu.dot_dimension_numbers<[1], [0], [0], [1], [0, 0, 1, 1], [], []>} : vector<2x16xf32>, vector<16x4xf32>, vector<2x4xf32> -> vector<2x4xf32>
    %c0_297 = arith.constant 0 : index
    %c0_298 = arith.constant 0 : index
    %819 = vector.load %arg29[%c0_297, %c0_298] : memref<1x4xf32, #tpu.memory_space<vmem>>, vector<1x4xf32>
    %820 = vector.broadcast %819 : vector<1x4xf32> to vector<2x4xf32>
    %821 = arith.addf %818, %820 : vector<2x4xf32>
    %cst_299 = arith.constant dense<0xFF800000> : vector<2xf32>
    %822 = vector.multi_reduction <maximumf>, %821, %cst_299 [1] : vector<2x4xf32> to vector<2xf32>
    %823 = vector.shape_cast %822 : vector<2xf32> to vector<2x1xf32>
    %824 = vector.broadcast %823 : vector<2x1xf32> to vector<2x4xf32>
    %825 = arith.subf %821, %824 : vector<2x4xf32>
    %826 = math.exp %825 : vector<2x4xf32>
    %cst_300 = arith.constant dense<0.000000e+00> : vector<2xf32>
    %827 = vector.multi_reduction <add>, %826, %cst_300 [1] : vector<2x4xf32> to vector<2xf32>
    %828 = vector.shape_cast %827 : vector<2xf32> to vector<2x1xf32>
    %829 = vector.broadcast %828 : vector<2x1xf32> to vector<2x4xf32>
    %830 = arith.divf %826, %829 : vector<2x4xf32>
    %c0_301 = arith.constant 0 : index
    %c0_302 = arith.constant 0 : index
    %831 = vector.load %arg30[%c0_301, %c0_302] : memref<2x4xf32, #tpu.memory_space<vmem>>, vector<2x4xf32>
    tpu.vector_store %arg30[%c0_301, %c0_302], %830 {strides = array<i32>} : memref<2x4xf32, #tpu.memory_space<vmem>>, vector<2x4xf32>,
    return
  }
}

</mosaic_0001>

<llo_original>
// kernel: _lambda_.1
$region0: #{_lambda_.1}
  #allocation0 [shape = 'u32[]', space=smem, size = 0x4, offset = 0x4, fixed_abs, tag = 'smem constant byte address 0x4 - core index']
  #allocation1 [shape = 'u32[144,128]{1,0:T(1,128)}', space=vmem, size = 0x12000, scoped, tag = 'internal scratch']
  %s0 = inlined_call_operand.smem [shape: u32[31], index: -1, kind: input, shape index: {}]
  %s1 = sld [smem:[%s0]]
  %s2 = scalar_lea.smem %s0, 1
  %s3 = sld [smem:[%s2]]
  %s4 = scalar_lea.smem %s0, 2
  %s5 = sld [smem:[%s4]]
  %s6 = scalar_lea.smem %s0, 3
  %s7 = sld [smem:[%s6]]
  %s8 = scalar_lea.smem %s0, 4
  %s9 = sld [smem:[%s8]]
  %s10 = scalar_lea.smem %s0, 5
  %s11 = sld [smem:[%s10]]
  %s12 = scalar_lea.smem %s0, 6
  %s13 = sld [smem:[%s12]]
  %s14 = scalar_lea.smem %s0, 7
  %s15 = sld [smem:[%s14]]
  %s16 = scalar_lea.smem %s0, 8
  %s17 = sld [smem:[%s16]]
  %s18 = scalar_lea.smem %s0, 9
  %s19 = sld [smem:[%s18]]
  %s20 = scalar_lea.smem %s0, 10
  %s21 = sld [smem:[%s20]]
  %s22 = scalar_lea.smem %s0, 11
  %s23 = sld [smem:[%s22]]
  %s24 = scalar_lea.smem %s0, 12
  %s25 = sld [smem:[%s24]]
  %s26 = scalar_lea.smem %s0, 13
  %s27 = sld [smem:[%s26]]
  %s28 = scalar_lea.smem %s0, 14
  %s29 = sld [smem:[%s28]]
  %s30 = scalar_lea.smem %s0, 15
  %s31 = sld [smem:[%s30]]
  %s32 = scalar_lea.smem %s0, 16
  %s33 = sld [smem:[%s32]]
  %s34 = scalar_lea.smem %s0, 17
  %s35 = sld [smem:[%s34]]
  %s36 = scalar_lea.smem %s0, 18
  %s37 = sld [smem:[%s36]]
  %s38 = scalar_lea.smem %s0, 19
  %s39 = sld [smem:[%s38]]
  %s40 = scalar_lea.smem %s0, 20
  %s41 = sld [smem:[%s40]]
  %s42 = scalar_lea.smem %s0, 21
  %s43 = sld [smem:[%s42]]
  %s44 = scalar_lea.smem %s0, 22
  %s45 = sld [smem:[%s44]]
  %s46 = scalar_lea.smem %s0, 23
  %s47 = sld [smem:[%s46]]
  %s48 = scalar_lea.smem %s0, 24
  %s49 = sld [smem:[%s48]]
  %s50 = scalar_lea.smem %s0, 25
  %s51 = sld [smem:[%s50]]
  %s52 = scalar_lea.smem %s0, 26
  %s53 = sld [smem:[%s52]]
  %s54 = scalar_lea.smem %s0, 27
  %s55 = sld [smem:[%s54]]
  %s56 = scalar_lea.smem %s0, 28
  %s57 = sld [smem:[%s56]]
  %s58 = scalar_lea.smem %s0, 29
  %s59 = sld [smem:[%s58]]
  %s60 = scalar_lea.smem %s0, 30
  %s61 = sld [smem:[%s60]]
  %s62 = sld [smem:[#allocation0]]
  $region130: #{_lambda_.1} parent=0
    _
  %s64 = ssub.s32 1, %s62
  %s65 = scalar_select 0, %s64, %s62
  $region1: #{_lambda_.1} parent=0
    #allocation2 [shape = 'u8[1024]{0}', space=vmem, size = 0x400, scoped, tag = 'output window, operand 0, single buffered']
    #allocation3 [shape = 's32[1]{0}', space=sflag, size = 0x4, scoped, tag = 'scoped memory for _lambda_.1']
    %66 = vsyncpa [#allocation3], 0
    // Predicated region
    $region2: #{_lambda_.1} parent=1 // pred_check
      _
    $region3: #{_lambda_.1} parent=1 // pred_check_branch
      %68 = sbr.rel (0) target = $region5
    $region4: #{_lambda_.1} parent=1 // pred_region
      _
    $region5: #{_lambda_.1} parent=1 // pred_fallthru
      _
    // Predicated region
    $region6: #{_lambda_.1} parent=1 // pred_check
      _
    $region7: #{_lambda_.1} parent=1 // pred_check_branch
      %70 = sbr.rel (0) target = $region9
    $region8: #{_lambda_.1} parent=1 // pred_region
      _
    $region9: #{_lambda_.1} parent=1 // pred_fallthru
      _
    // Predicated region
    $region10: #{_lambda_.1} parent=1 // pred_check
      _
    $region11: #{_lambda_.1} parent=1 // pred_check_branch
      %72 = sbr.rel (0) target = $region13
    $region12: #{_lambda_.1} parent=1 // pred_region
      _
    $region13: #{_lambda_.1} parent=1 // pred_fallthru
      _
    // Predicated region
    $region14: #{_lambda_.1} parent=1 // pred_check
      _
    $region15: #{_lambda_.1} parent=1 // pred_check_branch
      %74 = sbr.rel (0) target = $region17
    $region16: #{_lambda_.1} parent=1 // pred_region
      _
    $region17: #{_lambda_.1} parent=1 // pred_fallthru
      _
    // Predicated region
    $region18: #{_lambda_.1} parent=1 // pred_check
      _
    $region19: #{_lambda_.1} parent=1 // pred_check_branch
      %76 = sbr.rel (0) target = $region21
    $region20: #{_lambda_.1} parent=1 // pred_region
      _
    $region21: #{_lambda_.1} parent=1 // pred_fallthru
      _
    // Predicated region
    $region22: #{_lambda_.1} parent=1 // pred_check
      _
    $region23: #{_lambda_.1} parent=1 // pred_check_branch
      %78 = sbr.rel (0) target = $region25
    $region24: #{_lambda_.1} parent=1 // pred_region
      _
    $region25: #{_lambda_.1} parent=1 // pred_fallthru
      _
    // Predicated region
    $region26: #{_lambda_.1} parent=1 // pred_check
      _
    $region27: #{_lambda_.1} parent=1 // pred_check_branch
      %80 = sbr.rel (0) target = $region29
    $region28: #{_lambda_.1} parent=1 // pred_region
      _
    $region29: #{_lambda_.1} parent=1 // pred_fallthru
      _
    // Predicated region
    $region30: #{_lambda_.1} parent=1 // pred_check
      _
    $region31: #{_lambda_.1} parent=1 // pred_check_branch
      %82 = sbr.rel (0) target = $region33
    $region32: #{_lambda_.1} parent=1 // pred_region
      _
    $region33: #{_lambda_.1} parent=1 // pred_fallthru
      _
    // Predicated region
    $region34: #{_lambda_.1} parent=1 // pred_check
      _
    $region35: #{_lambda_.1} parent=1 // pred_check_branch
      %84 = sbr.rel (0) target = $region37
    $region36: #{_lambda_.1} parent=1 // pred_region
      _
    $region37: #{_lambda_.1} parent=1 // pred_fallthru
      _
    // Predicated region
    $region38: #{_lambda_.1} parent=1 // pred_check
      _
    $region39: #{_lambda_.1} parent=1 // pred_check_branch
      %86 = sbr.rel (0) target = $region41
    $region40: #{_lambda_.1} parent=1 // pred_region
      _
    $region41: #{_lambda_.1} parent=1 // pred_fallthru
      _
    // Predicated region
    $region42: #{_lambda_.1} parent=1 // pred_check
      _
    $region43: #{_lambda_.1} parent=1 // pred_check_branch
      %88 = sbr.rel (0) target = $region45
    $region44: #{_lambda_.1} parent=1 // pred_region
      _
    $region45: #{_lambda_.1} parent=1 // pred_fallthru
      _
    // Predicated region
    $region46: #{_lambda_.1} parent=1 // pred_check
      _
    $region47: #{_lambda_.1} parent=1 // pred_check_branch
      %90 = sbr.rel (0) target = $region49
    $region48: #{_lambda_.1} parent=1 // pred_region
      _
    $region49: #{_lambda_.1} parent=1 // pred_fallthru
      _
    // Predicated region
    $region50: #{_lambda_.1} parent=1 // pred_check
      _
    $region51: #{_lambda_.1} parent=1 // pred_check_branch
      %92 = sbr.rel (0) target = $region53
    $region52: #{_lambda_.1} parent=1 // pred_region
      _
    $region53: #{_lambda_.1} parent=1 // pred_fallthru
      _
    // Predicated region
    $region54: #{_lambda_.1} parent=1 // pred_check
      _
    $region55: #{_lambda_.1} parent=1 // pred_check_branch
      %94 = sbr.rel (0) target = $region57
    $region56: #{_lambda_.1} parent=1 // pred_region
      _
    $region57: #{_lambda_.1} parent=1 // pred_fallthru
      _
    // Predicated region
    $region58: #{_lambda_.1} parent=1 // pred_check
      _
    $region59: #{_lambda_.1} parent=1 // pred_check_branch
      %96 = sbr.rel (0) target = $region61
    $region60: #{_lambda_.1} parent=1 // pred_region
      _
    $region61: #{_lambda_.1} parent=1 // pred_fallthru
      _
    // Predicated region
    $region62: #{_lambda_.1} parent=1 // pred_check
      _
    $region63: #{_lambda_.1} parent=1 // pred_check_branch
      %98 = sbr.rel (0) target = $region65
    $region64: #{_lambda_.1} parent=1 // pred_region
      _
    $region65: #{_lambda_.1} parent=1 // pred_fallthru
      _
    // Predicated region
    $region66: #{_lambda_.1} parent=1 // pred_check
      _
    $region67: #{_lambda_.1} parent=1 // pred_check_branch
      %100 = sbr.rel (0) target = $region69
    $region68: #{_lambda_.1} parent=1 // pred_region
      _
    $region69: #{_lambda_.1} parent=1 // pred_fallthru
      _
    // Predicated region
    $region70: #{_lambda_.1} parent=1 // pred_check
      _
    $region71: #{_lambda_.1} parent=1 // pred_check_branch
      %102 = sbr.rel (0) target = $region73
    $region72: #{_lambda_.1} parent=1 // pred_region
      _
    $region73: #{_lambda_.1} parent=1 // pred_fallthru
      _
    // Predicated region
    $region74: #{_lambda_.1} parent=1 // pred_check
      _
    $region75: #{_lambda_.1} parent=1 // pred_check_branch
      %104 = sbr.rel (0) target = $region77
    $region76: #{_lambda_.1} parent=1 // pred_region
      _
    $region77: #{_lambda_.1} parent=1 // pred_fallthru
      _
    // Predicated region
    $region78: #{_lambda_.1} parent=1 // pred_check
      _
    $region79: #{_lambda_.1} parent=1 // pred_check_branch
      %106 = sbr.rel (0) target = $region81
    $region80: #{_lambda_.1} parent=1 // pred_region
      _
    $region81: #{_lambda_.1} parent=1 // pred_fallthru
      _
    // Predicated region
    $region82: #{_lambda_.1} parent=1 // pred_check
      _
    $region83: #{_lambda_.1} parent=1 // pred_check_branch
      %108 = sbr.rel (0) target = $region85
    $region84: #{_lambda_.1} parent=1 // pred_region
      _
    $region85: #{_lambda_.1} parent=1 // pred_fallthru
      _
    // Predicated region
    $region86: #{_lambda_.1} parent=1 // pred_check
      _
    $region87: #{_lambda_.1} parent=1 // pred_check_branch
      %110 = sbr.rel (0) target = $region89
    $region88: #{_lambda_.1} parent=1 // pred_region
      _
    $region89: #{_lambda_.1} parent=1 // pred_fallthru
      _
    // Predicated region
    $region90: #{_lambda_.1} parent=1 // pred_check
      _
    $region91: #{_lambda_.1} parent=1 // pred_check_branch
      %112 = sbr.rel (0) target = $region93
    $region92: #{_lambda_.1} parent=1 // pred_region
      _
    $region93: #{_lambda_.1} parent=1 // pred_fallthru
      _
    // Predicated region
    $region94: #{_lambda_.1} parent=1 // pred_check
      _
    $region95: #{_lambda_.1} parent=1 // pred_check_branch
      %114 = sbr.rel (0) target = $region97
    $region96: #{_lambda_.1} parent=1 // pred_region
      _
    $region97: #{_lambda_.1} parent=1 // pred_fallthru
      _
    // Predicated region
    $region98: #{_lambda_.1} parent=1 // pred_check
      _
    $region99: #{_lambda_.1} parent=1 // pred_check_branch
      %116 = sbr.rel (0) target = $region101
    $region100: #{_lambda_.1} parent=1 // pred_region
      _
    $region101: #{_lambda_.1} parent=1 // pred_fallthru
      _
    // Predicated region
    $region102: #{_lambda_.1} parent=1 // pred_check
      _
    $region103: #{_lambda_.1} parent=1 // pred_check_branch
      %118 = sbr.rel (0) target = $region105
    $region104: #{_lambda_.1} parent=1 // pred_region
      _
    $region105: #{_lambda_.1} parent=1 // pred_fallthru
      _
    // Predicated region
    $region106: #{_lambda_.1} parent=1 // pred_check
      _
    $region107: #{_lambda_.1} parent=1 // pred_check_branch
      %120 = sbr.rel (0) target = $region109
    $region108: #{_lambda_.1} parent=1 // pred_region
      _
    $region109: #{_lambda_.1} parent=1 // pred_fallthru
      _
    // Predicated region
    $region110: #{_lambda_.1} parent=1 // pred_check
      _
    $region111: #{_lambda_.1} parent=1 // pred_check_branch
      %122 = sbr.rel (0) target = $region113
    $region112: #{_lambda_.1} parent=1 // pred_region
      _
    $region113: #{_lambda_.1} parent=1 // pred_fallthru
      _
    // Predicated region
    $region114: #{_lambda_.1} parent=1 // pred_check
      _
    $region115: #{_lambda_.1} parent=1 // pred_check_branch
      %124 = sbr.rel (0) target = $region117
    $region116: #{_lambda_.1} parent=1 // pred_region
      _
    $region117: #{_lambda_.1} parent=1 // pred_fallthru
      _
    // Predicated region
    $region118: #{_lambda_.1} parent=1 // pred_check
      _
    $region119: #{_lambda_.1} parent=1 // pred_check_branch
      %126 = sbr.rel (0) target = $region121
    $region120: #{_lambda_.1} parent=1 // pred_region
      _
    $region121: #{_lambda_.1} parent=1 // pred_fallthru
      _
    %v127 = vld [vmem:[%s1] sm:$0xff]
    %v128 = vld [vmem:[%s1 + $0x8] sm:$0xff]
    %v129 = vld [vmem:[%s1 + $0x10] sm:$0xff]
    %v130 = vld [vmem:[%s1 + $0x18] sm:$0xff]
    %v131 = vld [vmem:[%s1 + $0x20] sm:$0xff]
    %v132 = vld [vmem:[%s1 + $0x28] sm:$0xff]
    %v133 = vld [vmem:[%s1 + $0x30] sm:$0xff]
    %v134 = vld [vmem:[%s5] sm:$0xff]
    %v135 = vld [vmem:[%s5 + $0x8] sm:$0xff]
    %v136 = vld [vmem:[%s5 + $0x10] sm:$0xff]
    %v137 = vld [vmem:[%s5 + $0x18] sm:$0xff]
    %v138 = vld [vmem:[%s5 + $0x20] sm:$0xff]
    %v139 = vld [vmem:[%s5 + $0x28] sm:$0xff]
    %v140 = vld [vmem:[%s5 + $0x30] sm:$0xff]
    %v141 = vld [vmem:[%s7] sm:$0xff]
    %v142 = vld [vmem:[%s9] sm:$0x1]
    %v144 = vlaneseq
    %v145 = vshrl.u32 %v144, 7
    %v146 = vsub.s32 0, %v145
    %v147 = vrot.slane %v142, %v146
    %vm149 = vcmask 64512
    %v151 = vsel %vm149, %v127, 0
    %v154 = vsel %vm149, %v128, 0
    %v157 = vsel %vm149, %v129, 0
    %v160 = vsel %vm149, %v130, 0
    %v163 = vsel %vm149, %v131, 0
    %v166 = vsel %vm149, %v132, 0
    %v169 = vsel %vm149, %v133, 0
    %171 = vmatprep.subr.mxu0 0.0
    %172 = vmatpush1.msra.mxu0 %v141
    %173 = vmatprep.subr.mxu0 0.0
    %174 = vmatpush1.msra.mxu0 0.0
    %175 = vmatprep.subr.mxu0 0.0
    %176 = vmatpush1.msra.mxu0 0.0
    %177 = vmatprep.subr.mxu0 0.0
    %178 = vmatpush1.msra.mxu0 0.0
    %179 = vmatprep.subr.mxu0 0.0
    %180 = vmatpush1.msra.mxu0 0.0
    %181 = vmatprep.subr.mxu0 0.0
    %182 = vmatpush1.msra.mxu0 0.0
    %183 = vmatprep.subr.mxu0 0.0
    %184 = vmatpush1.msra.mxu0 0.0
    %185 = vmatprep.subr.mxu0 0.0
    %186 = vmatpush1.msra.mxu0 0.0
    %187 = vmatprep.subr.mxu0 0.0
    %188 = vmatpush1.msra.mxu0 0.0
    %189 = vmatprep.subr.mxu0 0.0
    %190 = vmatpush1.msra.mxu0 0.0
    %191 = vmatprep.subr.mxu0 0.0
    %192 = vmatpush1.msra.mxu0 0.0
    %193 = vmatprep.subr.mxu0 0.0
    %194 = vmatpush1.msra.mxu0 0.0
    %195 = vmatprep.subr.mxu0 0.0
    %196 = vmatpush1.msra.mxu0 0.0
    %197 = vmatprep.subr.mxu0 0.0
    %198 = vmatpush1.msra.mxu0 0.0
    %199 = vmatprep.subr.mxu0 0.0
    %200 = vmatpush1.msra.mxu0 0.0
    %201 = vmatprep.subr.mxu0 0.0
    %202 = vmatpush1.msra.mxu0 0.0
    %203 = vmatprep.subr.mxu0 0.0
    %204 = vmatpush1.msra.mxu0 0.0
    %205 = vmatprep.subr.mxu0 0.0
    %206 = vmatpush1.msra.mxu0 0.0
    %207 = vmatprep.subr.mxu0 0.0
    %208 = vmatpush1.msra.mxu0 0.0
    %209 = vmatprep.subr.mxu0 0.0
    %210 = vmatpush1.msra.mxu0 0.0
    %211 = vmatprep.subr.mxu0 0.0
    %212 = vmatpush1.msra.mxu0 0.0
    %213 = vmatprep.subr.mxu0 0.0
    %214 = vmatpush1.msra.mxu0 0.0
    %215 = vmatprep.subr.mxu0 0.0
    %216 = vmatpush1.msra.mxu0 0.0
    %217 = vmatprep.subr.mxu0 0.0
    %218 = vmatpush1.msra.mxu0 0.0
    %219 = vmatprep.subr.mxu0 0.0
    %220 = vmatpush1.msra.mxu0 0.0
    %221 = vmatprep.subr.mxu0 0.0
    %222 = vmatpush1.msra.mxu0 0.0
    %223 = vmatprep.subr.mxu0 0.0
    %224 = vmatpush1.msra.mxu0 0.0
    %225 = vmatprep.subr.mxu0 0.0
    %226 = vmatpush1.msra.mxu0 0.0
    %227 = vmatprep.subr.mxu0 0.0
    %228 = vmatpush1.msra.mxu0 0.0
    %229 = vmatprep.subr.mxu0 0.0
    %230 = vmatpush1.msra.mxu0 0.0
    %231 = vmatprep.subr.mxu0 0.0
    %232 = vmatpush1.msra.mxu0 0.0
    %233 = vmatprep.subr.mxu0 0.0
    %234 = vmatpush1.msra.mxu0 0.0
    %235 = vmatprep.mubr.f32.mxu0 0.0
    %236 = vmatmul.mubr.f32.gmra.mrb[0].mxu0 %v151
    %v237 = vpop.f32.mrb[0].mxu0
    %v238 = vadd.f32 %v147, %v237
    %v239 = vpop.f32.mrb[0].mxu0
    %240 = vmatprep.mubr.f32.mxu0 0.0
    %241 = vmatmul.mubr.f32.gmra.mrb[0].mxu0 %v154
    %v242 = vpop.f32.mrb[0].mxu0
    %v243 = vadd.f32 %v147, %v242
    %v244 = vpop.f32.mrb[0].mxu0
    %245 = vmatprep.mubr.f32.mxu0 0.0
    %246 = vmatmul.mubr.f32.gmra.mrb[0].mxu0 %v157
    %v247 = vpop.f32.mrb[0].mxu0
    %v248 = vadd.f32 %v147, %v247
    %v249 = vpop.f32.mrb[0].mxu0
    %250 = vmatprep.mubr.f32.mxu0 0.0
    %251 = vmatmul.mubr.f32.gmra.mrb[0].mxu0 %v160
    %v252 = vpop.f32.mrb[0].mxu0
    %v253 = vadd.f32 %v147, %v252
    %v254 = vpop.f32.mrb[0].mxu0
    %255 = vmatprep.mubr.f32.mxu0 0.0
    %256 = vmatmul.mubr.f32.gmra.mrb[0].mxu0 %v163
    %v257 = vpop.f32.mrb[0].mxu0
    %v258 = vadd.f32 %v147, %v257
    %v259 = vpop.f32.mrb[0].mxu0
    %260 = vmatprep.mubr.f32.mxu0 0.0
    %261 = vmatmul.mubr.f32.gmra.mrb[0].mxu0 %v166
    %v262 = vpop.f32.mrb[0].mxu0
    %v263 = vadd.f32 %v147, %v262
    %v264 = vpop.f32.mrb[0].mxu0
    %265 = vmatprep.mubr.f32.mxu0 0.0
    %266 = vmatmul.mubr.f32.gmra.mrb[0].mxu0 %v169
    %v267 = vpop.f32.mrb[0].mxu0
    %v268 = vadd.f32 %v147, %v267
    %v269 = vpop.f32.mrb[0].mxu0
    %270 = vdwg.mxu0
    %v271 = vmax.f32 %v238, 0.0
    %v272 = vmax.f32 %v243, 0.0
    %v273 = vmax.f32 %v248, 0.0
    %v274 = vmax.f32 %v253, 0.0
    %v275 = vmax.f32 %v258, 0.0
    %v276 = vmax.f32 %v263, 0.0
    %v277 = vmax.f32 %v268, 0.0
    %v278 = vld [vmem:[%s11] sm:$0xff]
    %v279 = vld [vmem:[%s11 + $0x8] sm:$0xff]
    %v280 = vld [vmem:[%s11 + $0x10] sm:$0xff]
    %v281 = vld [vmem:[%s11 + $0x18] sm:$0xff]
    %v282 = vld [vmem:[%s15] sm:$0x1]
    %v284 = vlaneseq
    %v285 = vshrl.u32 %v284, 7
    %v286 = vsub.s32 0, %v285
    %v287 = vrot.slane %v282, %v286
    %vm289 = vcmask 261120
    %v291 = vsel %vm289, %v271, 0
    %v294 = vsel %vm289, %v272, 0
    %v297 = vsel %vm289, %v273, 0
    %v300 = vsel %vm289, %v274, 0
    %v303 = vsel %vm289, %v275, 0
    %v306 = vsel %vm289, %v276, 0
    %v309 = vsel %vm289, %v277, 0
    %311 = vmatprep.subr.mxu0 0.0
    %312 = vmatpush1.msra.mxu0 %v278
    %313 = vmatprep.subr.mxu0 0.0
    %314 = vmatpush1.msra.mxu0 %v279
    %315 = vmatprep.subr.mxu0 0.0
    %316 = vmatpush1.msra.mxu0 %v280
    %317 = vmatprep.subr.mxu0 0.0
    %318 = vmatpush1.msra.mxu0 %v281
    %319 = vmatprep.subr.mxu0 0.0
    %320 = vmatpush1.msra.mxu0 0.0
    %321 = vmatprep.subr.mxu0 0.0
    %322 = vmatpush1.msra.mxu0 0.0
    %323 = vmatprep.subr.mxu0 0.0
    %324 = vmatpush1.msra.mxu0 0.0
    %325 = vmatprep.subr.mxu0 0.0
    %326 = vmatpush1.msra.mxu0 0.0
    %327 = vmatprep.subr.mxu0 0.0
    %328 = vmatpush1.msra.mxu0 0.0
    %329 = vmatprep.subr.mxu0 0.0
    %330 = vmatpush1.msra.mxu0 0.0
    %331 = vmatprep.subr.mxu0 0.0
    %332 = vmatpush1.msra.mxu0 0.0
    %333 = vmatprep.subr.mxu0 0.0
    %334 = vmatpush1.msra.mxu0 0.0
    %335 = vmatprep.subr.mxu0 0.0
    %336 = vmatpush1.msra.mxu0 0.0
    %337 = vmatprep.subr.mxu0 0.0
    %338 = vmatpush1.msra.mxu0 0.0
    %339 = vmatprep.subr.mxu0 0.0
    %340 = vmatpush1.msra.mxu0 0.0
    %341 = vmatprep.subr.mxu0 0.0
    %342 = vmatpush1.msra.mxu0 0.0
    %343 = vmatprep.subr.mxu0 0.0
    %344 = vmatpush1.msra.mxu0 0.0
    %345 = vmatprep.subr.mxu0 0.0
    %346 = vmatpush1.msra.mxu0 0.0
    %347 = vmatprep.subr.mxu0 0.0
    %348 = vmatpush1.msra.mxu0 0.0
    %349 = vmatprep.subr.mxu0 0.0
    %350 = vmatpush1.msra.mxu0 0.0
    %351 = vmatprep.subr.mxu0 0.0
    %352 = vmatpush1.msra.mxu0 0.0
    %353 = vmatprep.subr.mxu0 0.0
    %354 = vmatpush1.msra.mxu0 0.0
    %355 = vmatprep.subr.mxu0 0.0
    %356 = vmatpush1.msra.mxu0 0.0
    %357 = vmatprep.subr.mxu0 0.0
    %358 = vmatpush1.msra.mxu0 0.0
    %359 = vmatprep.subr.mxu0 0.0
    %360 = vmatpush1.msra.mxu0 0.0
    %361 = vmatprep.subr.mxu0 0.0
    %362 = vmatpush1.msra.mxu0 0.0
    %363 = vmatprep.subr.mxu0 0.0
    %364 = vmatpush1.msra.mxu0 0.0
    %365 = vmatprep.subr.mxu0 0.0
    %366 = vmatpush1.msra.mxu0 0.0
    %367 = vmatprep.subr.mxu0 0.0
    %368 = vmatpush1.msra.mxu0 0.0
    %369 = vmatprep.subr.mxu0 0.0
    %370 = vmatpush1.msra.mxu0 0.0
    %371 = vmatprep.subr.mxu0 0.0
    %372 = vmatpush1.msra.mxu0 0.0
    %373 = vmatprep.subr.mxu0 0.0
    %374 = vmatpush1.msra.mxu0 0.0
    %375 = vmatprep.mubr.f32.mxu0 0.0
    %376 = vmatmul.mubr.f32.gmra.mrb[0].mxu0 %v291
    %v377 = vpop.f32.mrb[0].mxu0
    %v378 = vadd.f32 %v287, %v377
    %v379 = vpop.f32.mrb[0].mxu0
    %380 = vmatprep.mubr.f32.mxu0 0.0
    %381 = vmatmul.mubr.f32.gmra.mrb[0].mxu0 %v294
    %v382 = vpop.f32.mrb[0].mxu0
    %v383 = vadd.f32 %v287, %v382
    %v384 = vpop.f32.mrb[0].mxu0
    %385 = vmatprep.mubr.f32.mxu0 0.0
    %386 = vmatmul.mubr.f32.gmra.mrb[0].mxu0 %v297
    %v387 = vpop.f32.mrb[0].mxu0
    %v388 = vadd.f32 %v287, %v387
    %v389 = vpop.f32.mrb[0].mxu0
    %390 = vmatprep.mubr.f32.mxu0 0.0
    %391 = vmatmul.mubr.f32.gmra.mrb[0].mxu0 %v300
    %v392 = vpop.f32.mrb[0].mxu0
    %v393 = vadd.f32 %v287, %v392
    %v394 = vpop.f32.mrb[0].mxu0
    %395 = vmatprep.mubr.f32.mxu0 0.0
    %396 = vmatmul.mubr.f32.gmra.mrb[0].mxu0 %v303
    %v397 = vpop.f32.mrb[0].mxu0
    %v398 = vadd.f32 %v287, %v397
    %v399 = vpop.f32.mrb[0].mxu0
    %400 = vmatprep.mubr.f32.mxu0 0.0
    %401 = vmatmul.mubr.f32.gmra.mrb[0].mxu0 %v306
    %v402 = vpop.f32.mrb[0].mxu0
    %v403 = vadd.f32 %v287, %v402
    %v404 = vpop.f32.mrb[0].mxu0
    %405 = vmatprep.mubr.f32.mxu0 0.0
    %406 = vmatmul.mubr.f32.gmra.mrb[0].mxu0 %v309
    %v407 = vpop.f32.mrb[0].mxu0
    %v408 = vadd.f32 %v287, %v407
    %v409 = vpop.f32.mrb[0].mxu0
    %410 = vdwg.mxu0
    %v411 = vld [vmem:[%s27] sm:$0xff]
    %v412 = vld [vmem:[%s29] sm:$0x1]
    %v414 = vlaneseq
    %v415 = vshrl.u32 %v414, 7
    %v416 = vsub.s32 0, %v415
    %v417 = vrot.slane %v412, %v416
    %v420 = vsel %vm149, %v134, 0
    %v423 = vsel %vm149, %v135, 0
    %v426 = vsel %vm149, %v136, 0
    %v429 = vsel %vm149, %v137, 0
    %v432 = vsel %vm149, %v138, 0
    %v435 = vsel %vm149, %v139, 0
    %v438 = vsel %vm149, %v140, 0
    %440 = vmatprep.subr.mxu0 0.0
    %441 = vmatpush1.msra.mxu0 %v411
    %442 = vmatprep.subr.mxu0 0.0
    %443 = vmatpush1.msra.mxu0 0.0
    %444 = vmatprep.subr.mxu0 0.0
    %445 = vmatpush1.msra.mxu0 0.0
    %446 = vmatprep.subr.mxu0 0.0
    %447 = vmatpush1.msra.mxu0 0.0
    %448 = vmatprep.subr.mxu0 0.0
    %449 = vmatpush1.msra.mxu0 0.0
    %450 = vmatprep.subr.mxu0 0.0
    %451 = vmatpush1.msra.mxu0 0.0
    %452 = vmatprep.subr.mxu0 0.0
    %453 = vmatpush1.msra.mxu0 0.0
    %454 = vmatprep.subr.mxu0 0.0
    %455 = vmatpush1.msra.mxu0 0.0
    %456 = vmatprep.subr.mxu0 0.0
    %457 = vmatpush1.msra.mxu0 0.0
    %458 = vmatprep.subr.mxu0 0.0
    %459 = vmatpush1.msra.mxu0 0.0
    %460 = vmatprep.subr.mxu0 0.0
    %461 = vmatpush1.msra.mxu0 0.0
    %462 = vmatprep.subr.mxu0 0.0
    %463 = vmatpush1.msra.mxu0 0.0
    %464 = vmatprep.subr.mxu0 0.0
    %465 = vmatpush1.msra.mxu0 0.0
    %466 = vmatprep.subr.mxu0 0.0
    %467 = vmatpush1.msra.mxu0 0.0
    %468 = vmatprep.subr.mxu0 0.0
    %469 = vmatpush1.msra.mxu0 0.0
    %470 = vmatprep.subr.mxu0 0.0
    %471 = vmatpush1.msra.mxu0 0.0
    %472 = vmatprep.subr.mxu0 0.0
    %473 = vmatpush1.msra.mxu0 0.0
    %474 = vmatprep.subr.mxu0 0.0
    %475 = vmatpush1.msra.mxu0 0.0
    %476 = vmatprep.subr.mxu0 0.0
    %477 = vmatpush1.msra.mxu0 0.0
    %478 = vmatprep.subr.mxu0 0.0
    %479 = vmatpush1.msra.mxu0 0.0
    %480 = vmatprep.subr.mxu0 0.0
    %481 = vmatpush1.msra.mxu0 0.0
    %482 = vmatprep.subr.mxu0 0.0
    %483 = vmatpush1.msra.mxu0 0.0
    %484 = vmatprep.subr.mxu0 0.0
    %485 = vmatpush1.msra.mxu0 0.0
    %486 = vmatprep.subr.mxu0 0.0
    %487 = vmatpush1.msra.mxu0 0.0
    %488 = vmatprep.subr.mxu0 0.0
    %489 = vmatpush1.msra.mxu0 0.0
    %490 = vmatprep.subr.mxu0 0.0
    %491 = vmatpush1.msra.mxu0 0.0
    %492 = vmatprep.subr.mxu0 0.0
    %493 = vmatpush1.msra.mxu0 0.0
    %494 = vmatprep.subr.mxu0 0.0
    %495 = vmatpush1.msra.mxu0 0.0
    %496 = vmatprep.subr.mxu0 0.0
    %497 = vmatpush1.msra.mxu0 0.0
    %498 = vmatprep.subr.mxu0 0.0
    %499 = vmatpush1.msra.mxu0 0.0
    %500 = vmatprep.subr.mxu0 0.0
    %501 = vmatpush1.msra.mxu0 0.0
    %502 = vmatprep.subr.mxu0 0.0
    %503 = vmatpush1.msra.mxu0 0.0
    %504 = vmatprep.mubr.f32.mxu0 0.0
    %505 = vmatmul.mubr.f32.gmra.mrb[0].mxu0 %v420
    %v506 = vpop.f32.mrb[0].mxu0
    %v507 = vadd.f32 %v417, %v506
    %v508 = vpop.f32.mrb[0].mxu0
    %509 = vmatprep.mubr.f32.mxu0 0.0
    %510 = vmatmul.mubr.f32.gmra.mrb[0].mxu0 %v423
    %v511 = vpop.f32.mrb[0].mxu0
    %v512 = vadd.f32 %v417, %v511
    %v513 = vpop.f32.mrb[0].mxu0
    %514 = vmatprep.mubr.f32.mxu0 0.0
    %515 = vmatmul.mubr.f32.gmra.mrb[0].mxu0 %v426
    %v516 = vpop.f32.mrb[0].mxu0
    %v517 = vadd.f32 %v417, %v516
    %v518 = vpop.f32.mrb[0].mxu0
    %519 = vmatprep.mubr.f32.mxu0 0.0
    %520 = vmatmul.mubr.f32.gmra.mrb[0].mxu0 %v429
    %v521 = vpop.f32.mrb[0].mxu0
    %v522 = vadd.f32 %v417, %v521
    %v523 = vpop.f32.mrb[0].mxu0
    %524 = vmatprep.mubr.f32.mxu0 0.0
    %525 = vmatmul.mubr.f32.gmra.mrb[0].mxu0 %v432
    %v526 = vpop.f32.mrb[0].mxu0
    %v527 = vadd.f32 %v417, %v526
    %v528 = vpop.f32.mrb[0].mxu0
    %529 = vmatprep.mubr.f32.mxu0 0.0
    %530 = vmatmul.mubr.f32.gmra.mrb[0].mxu0 %v435
    %v531 = vpop.f32.mrb[0].mxu0
    %v532 = vadd.f32 %v417, %v531
    %v533 = vpop.f32.mrb[0].mxu0
    %534 = vmatprep.mubr.f32.mxu0 0.0
    %535 = vmatmul.mubr.f32.gmra.mrb[0].mxu0 %v438
    %v536 = vpop.f32.mrb[0].mxu0
    %v537 = vadd.f32 %v417, %v536
    %v538 = vpop.f32.mrb[0].mxu0
    %539 = vdwg.mxu0
    %v540 = vmax.f32 %v507, 0.0
    %v541 = vmax.f32 %v512, 0.0
    %v542 = vmax.f32 %v517, 0.0
    %v543 = vmax.f32 %v522, 0.0
    %v544 = vmax.f32 %v527, 0.0
    %v545 = vmax.f32 %v532, 0.0
    %v546 = vmax.f32 %v537, 0.0
    %v547 = vld [vmem:[%s37] sm:$0xff]
    %v548 = vld [vmem:[%s37 + $0x8] sm:$0xff]
    %v549 = vld [vmem:[%s37 + $0x10] sm:$0xff]
    %v550 = vld [vmem:[%s37 + $0x18] sm:$0xff]
    %v551 = vld [vmem:[%s43] sm:$0x1]
    %v553 = vlaneseq
    %v554 = vshrl.u32 %v553, 7
    %v555 = vsub.s32 0, %v554
    %v556 = vrot.slane %v551, %v555
    %v559 = vsel %vm289, %v540, 0
    %v562 = vsel %vm289, %v541, 0
    %v565 = vsel %vm289, %v542, 0
    %v568 = vsel %vm289, %v543, 0
    %v571 = vsel %vm289, %v544, 0
    %v574 = vsel %vm289, %v545, 0
    %v577 = vsel %vm289, %v546, 0
    %579 = vmatprep.subr.mxu0 0.0
    %580 = vmatpush1.msra.mxu0 %v547
    %581 = vmatprep.subr.mxu0 0.0
    %582 = vmatpush1.msra.mxu0 %v548
    %583 = vmatprep.subr.mxu0 0.0
    %584 = vmatpush1.msra.mxu0 %v549
    %585 = vmatprep.subr.mxu0 0.0
    %586 = vmatpush1.msra.mxu0 %v550
    %587 = vmatprep.subr.mxu0 0.0
    %588 = vmatpush1.msra.mxu0 0.0
    %589 = vmatprep.subr.mxu0 0.0
    %590 = vmatpush1.msra.mxu0 0.0
    %591 = vmatprep.subr.mxu0 0.0
    %592 = vmatpush1.msra.mxu0 0.0
    %593 = vmatprep.subr.mxu0 0.0
    %594 = vmatpush1.msra.mxu0 0.0
    %595 = vmatprep.subr.mxu0 0.0
    %596 = vmatpush1.msra.mxu0 0.0
    %597 = vmatprep.subr.mxu0 0.0
    %598 = vmatpush1.msra.mxu0 0.0
    %599 = vmatprep.subr.mxu0 0.0
    %600 = vmatpush1.msra.mxu0 0.0
    %601 = vmatprep.subr.mxu0 0.0
    %602 = vmatpush1.msra.mxu0 0.0
    %603 = vmatprep.subr.mxu0 0.0
    %604 = vmatpush1.msra.mxu0 0.0
    %605 = vmatprep.subr.mxu0 0.0
    %606 = vmatpush1.msra.mxu0 0.0
    %607 = vmatprep.subr.mxu0 0.0
    %608 = vmatpush1.msra.mxu0 0.0
    %609 = vmatprep.subr.mxu0 0.0
    %610 = vmatpush1.msra.mxu0 0.0
    %611 = vmatprep.subr.mxu0 0.0
    %612 = vmatpush1.msra.mxu0 0.0
    %613 = vmatprep.subr.mxu0 0.0
    %614 = vmatpush1.msra.mxu0 0.0
    %615 = vmatprep.subr.mxu0 0.0
    %616 = vmatpush1.msra.mxu0 0.0
    %617 = vmatprep.subr.mxu0 0.0
    %618 = vmatpush1.msra.mxu0 0.0
    %619 = vmatprep.subr.mxu0 0.0
    %620 = vmatpush1.msra.mxu0 0.0
    %621 = vmatprep.subr.mxu0 0.0
    %622 = vmatpush1.msra.mxu0 0.0
    %623 = vmatprep.subr.mxu0 0.0
    %624 = vmatpush1.msra.mxu0 0.0
    %625 = vmatprep.subr.mxu0 0.0
    %626 = vmatpush1.msra.mxu0 0.0
    %627 = vmatprep.subr.mxu0 0.0
    %628 = vmatpush1.msra.mxu0 0.0
    %629 = vmatprep.subr.mxu0 0.0
    %630 = vmatpush1.msra.mxu0 0.0
    %631 = vmatprep.subr.mxu0 0.0
    %632 = vmatpush1.msra.mxu0 0.0
    %633 = vmatprep.subr.mxu0 0.0
    %634 = vmatpush1.msra.mxu0 0.0
    %635 = vmatprep.subr.mxu0 0.0
    %636 = vmatpush1.msra.mxu0 0.0
    %637 = vmatprep.subr.mxu0 0.0
    %638 = vmatpush1.msra.mxu0 0.0
    %639 = vmatprep.subr.mxu0 0.0
    %640 = vmatpush1.msra.mxu0 0.0
    %641 = vmatprep.subr.mxu0 0.0
    %642 = vmatpush1.msra.mxu0 0.0
    %643 = vmatprep.mubr.f32.mxu0 0.0
    %644 = vmatmul.mubr.f32.gmra.mrb[0].mxu0 %v559
    %v645 = vpop.f32.mrb[0].mxu0
    %v646 = vadd.f32 %v556, %v645
    %v647 = vpop.f32.mrb[0].mxu0
    %648 = vmatprep.mubr.f32.mxu0 0.0
    %649 = vmatmul.mubr.f32.gmra.mrb[0].mxu0 %v562
    %v650 = vpop.f32.mrb[0].mxu0
    %v651 = vadd.f32 %v556, %v650
    %v652 = vpop.f32.mrb[0].mxu0
    %653 = vmatprep.mubr.f32.mxu0 0.0
    %654 = vmatmul.mubr.f32.gmra.mrb[0].mxu0 %v565
    %v655 = vpop.f32.mrb[0].mxu0
    %v656 = vadd.f32 %v556, %v655
    %v657 = vpop.f32.mrb[0].mxu0
    %658 = vmatprep.mubr.f32.mxu0 0.0
    %659 = vmatmul.mubr.f32.gmra.mrb[0].mxu0 %v568
    %v660 = vpop.f32.mrb[0].mxu0
    %v661 = vadd.f32 %v556, %v660
    %v662 = vpop.f32.mrb[0].mxu0
    %663 = vmatprep.mubr.f32.mxu0 0.0
    %664 = vmatmul.mubr.f32.gmra.mrb[0].mxu0 %v571
    %v665 = vpop.f32.mrb[0].mxu0
    %v666 = vadd.f32 %v556, %v665
    %v667 = vpop.f32.mrb[0].mxu0
    %668 = vmatprep.mubr.f32.mxu0 0.0
    %669 = vmatmul.mubr.f32.gmra.mrb[0].mxu0 %v574
    %v670 = vpop.f32.mrb[0].mxu0
    %v671 = vadd.f32 %v556, %v670
    %v672 = vpop.f32.mrb[0].mxu0
    %673 = vmatprep.mubr.f32.mxu0 0.0
    %674 = vmatmul.mubr.f32.gmra.mrb[0].mxu0 %v577
    %v675 = vpop.f32.mrb[0].mxu0
    %v676 = vadd.f32 %v556, %v675
    %v677 = vpop.f32.mrb[0].mxu0
    %678 = vdwg.mxu0
    %v679 = vld [vmem:[%s49] sm:$0xff]
    %v680 = vld [vmem:[%s51] sm:$0x1]
    %v682 = vlaneseq
    %v683 = vshrl.u32 %v682, 7
    %v684 = vsub.s32 0, %v683
    %v685 = vrot.slane %v680, %v684
    %687 = vmatprep.subr.mxu0 0.0
    %688 = vmatpush1.msra.mxu0 %v679
    %689 = vmatprep.subr.mxu0 0.0
    %690 = vmatpush1.msra.mxu0 0.0
    %691 = vmatprep.subr.mxu0 0.0
    %692 = vmatpush1.msra.mxu0 0.0
    %693 = vmatprep.subr.mxu0 0.0
    %694 = vmatpush1.msra.mxu0 0.0
    %695 = vmatprep.subr.mxu0 0.0
    %696 = vmatpush1.msra.mxu0 0.0
    %697 = vmatprep.subr.mxu0 0.0
    %698 = vmatpush1.msra.mxu0 0.0
    %699 = vmatprep.subr.mxu0 0.0
    %700 = vmatpush1.msra.mxu0 0.0
    %701 = vmatprep.subr.mxu0 0.0
    %702 = vmatpush1.msra.mxu0 0.0
    %703 = vmatprep.subr.mxu0 0.0
    %704 = vmatpush1.msra.mxu0 0.0
    %705 = vmatprep.subr.mxu0 0.0
    %706 = vmatpush1.msra.mxu0 0.0
    %707 = vmatprep.subr.mxu0 0.0
    %708 = vmatpush1.msra.mxu0 0.0
    %709 = vmatprep.subr.mxu0 0.0
    %710 = vmatpush1.msra.mxu0 0.0
    %711 = vmatprep.subr.mxu0 0.0
    %712 = vmatpush1.msra.mxu0 0.0
    %713 = vmatprep.subr.mxu0 0.0
    %714 = vmatpush1.msra.mxu0 0.0
    %715 = vmatprep.subr.mxu0 0.0
    %716 = vmatpush1.msra.mxu0 0.0
    %717 = vmatprep.subr.mxu0 0.0
    %718 = vmatpush1.msra.mxu0 0.0
    %719 = vmatprep.subr.mxu0 0.0
    %720 = vmatpush1.msra.mxu0 0.0
    %721 = vmatprep.subr.mxu0 0.0
    %722 = vmatpush1.msra.mxu0 0.0
    %723 = vmatprep.subr.mxu0 0.0
    %724 = vmatpush1.msra.mxu0 0.0
    %725 = vmatprep.subr.mxu0 0.0
    %726 = vmatpush1.msra.mxu0 0.0
    %727 = vmatprep.subr.mxu0 0.0
    %728 = vmatpush1.msra.mxu0 0.0
    %729 = vmatprep.subr.mxu0 0.0
    %730 = vmatpush1.msra.mxu0 0.0
    %731 = vmatprep.subr.mxu0 0.0
    %732 = vmatpush1.msra.mxu0 0.0
    %733 = vmatprep.subr.mxu0 0.0
    %734 = vmatpush1.msra.mxu0 0.0
    %735 = vmatprep.subr.mxu0 0.0
    %736 = vmatpush1.msra.mxu0 0.0
    %737 = vmatprep.subr.mxu0 0.0
    %738 = vmatpush1.msra.mxu0 0.0
    %739 = vmatprep.subr.mxu0 0.0
    %740 = vmatpush1.msra.mxu0 0.0
    %741 = vmatprep.subr.mxu0 0.0
    %742 = vmatpush1.msra.mxu0 0.0
    %743 = vmatprep.subr.mxu0 0.0
    %744 = vmatpush1.msra.mxu0 0.0
    %745 = vmatprep.subr.mxu0 0.0
    %746 = vmatpush1.msra.mxu0 0.0
    %747 = vmatprep.subr.mxu0 0.0
    %748 = vmatpush1.msra.mxu0 0.0
    %749 = vmatprep.subr.mxu0 0.0
    %750 = vmatpush1.msra.mxu0 0.0
    %751 = vmatprep.mubr.f32.mxu0 0.0
    %752 = vmatmul.mubr.f32.gmra.mrb[0].mxu0 %v151
    %v753 = vpop.f32.mrb[0].mxu0
    %v754 = vadd.f32 %v685, %v753
    %v755 = vpop.f32.mrb[0].mxu0
    %756 = vmatprep.mubr.f32.mxu0 0.0
    %757 = vmatmul.mubr.f32.gmra.mrb[0].mxu0 %v154
    %v758 = vpop.f32.mrb[0].mxu0
    %v759 = vadd.f32 %v685, %v758
    %v760 = vpop.f32.mrb[0].mxu0
    %761 = vmatprep.mubr.f32.mxu0 0.0
    %762 = vmatmul.mubr.f32.gmra.mrb[0].mxu0 %v157
    %v763 = vpop.f32.mrb[0].mxu0
    %v764 = vadd.f32 %v685, %v763
    %v765 = vpop.f32.mrb[0].mxu0
    %766 = vmatprep.mubr.f32.mxu0 0.0
    %767 = vmatmul.mubr.f32.gmra.mrb[0].mxu0 %v160
    %v768 = vpop.f32.mrb[0].mxu0
    %v769 = vadd.f32 %v685, %v768
    %v770 = vpop.f32.mrb[0].mxu0
    %771 = vmatprep.mubr.f32.mxu0 0.0
    %772 = vmatmul.mubr.f32.gmra.mrb[0].mxu0 %v163
    %v773 = vpop.f32.mrb[0].mxu0
    %v774 = vadd.f32 %v685, %v773
    %v775 = vpop.f32.mrb[0].mxu0
    %776 = vmatprep.mubr.f32.mxu0 0.0
    %777 = vmatmul.mubr.f32.gmra.mrb[0].mxu0 %v166
    %v778 = vpop.f32.mrb[0].mxu0
    %v779 = vadd.f32 %v685, %v778
    %v780 = vpop.f32.mrb[0].mxu0
    %781 = vmatprep.mubr.f32.mxu0 0.0
    %782 = vmatmul.mubr.f32.gmra.mrb[0].mxu0 %v169
    %v783 = vpop.f32.mrb[0].mxu0
    %v784 = vadd.f32 %v685, %v783
    %v785 = vpop.f32.mrb[0].mxu0
    %786 = vdwg.mxu0
    %v787 = vld [vmem:[%s3] sm:$0xff]
    %v788 = vld [vmem:[%s3 + $0x8] sm:$0xff]
    %v789 = vld [vmem:[%s3 + $0x10] sm:$0xff]
    %v790 = vld [vmem:[%s3 + $0x18] sm:$0xff]
    %v791 = vld [vmem:[%s3 + $0x20] sm:$0xff]
    %v792 = vld [vmem:[%s3 + $0x28] sm:$0xff]
    %v793 = vld [vmem:[%s3 + $0x30] sm:$0xff]
    %v795 = vsel %vm149, %v787, 0
    %v798 = vsel %vm149, %v788, 0
    %v801 = vsel %vm149, %v789, 0
    %v804 = vsel %vm149, %v790, 0
    %v807 = vsel %vm149, %v791, 0
    %v810 = vsel %vm149, %v792, 0
    %v813 = vsel %vm149, %v793, 0
    %815 = vmatprep.subr.mxu0 0.0
    %816 = vmatpush1.msra.mxu0 %v679
    %817 = vmatprep.subr.mxu0 0.0
    %818 = vmatpush1.msra.mxu0 0.0
    %819 = vmatprep.subr.mxu0 0.0
    %820 = vmatpush1.msra.mxu0 0.0
    %821 = vmatprep.subr.mxu0 0.0
    %822 = vmatpush1.msra.mxu0 0.0
    %823 = vmatprep.subr.mxu0 0.0
    %824 = vmatpush1.msra.mxu0 0.0
    %825 = vmatprep.subr.mxu0 0.0
    %826 = vmatpush1.msra.mxu0 0.0
    %827 = vmatprep.subr.mxu0 0.0
    %828 = vmatpush1.msra.mxu0 0.0
    %829 = vmatprep.subr.mxu0 0.0
    %830 = vmatpush1.msra.mxu0 0.0
    %831 = vmatprep.subr.mxu0 0.0
    %832 = vmatpush1.msra.mxu0 0.0
    %833 = vmatprep.subr.mxu0 0.0
    %834 = vmatpush1.msra.mxu0 0.0
    %835 = vmatprep.subr.mxu0 0.0
    %836 = vmatpush1.msra.mxu0 0.0
    %837 = vmatprep.subr.mxu0 0.0
    %838 = vmatpush1.msra.mxu0 0.0
    %839 = vmatprep.subr.mxu0 0.0
    %840 = vmatpush1.msra.mxu0 0.0
    %841 = vmatprep.subr.mxu0 0.0
    %842 = vmatpush1.msra.mxu0 0.0
    %843 = vmatprep.subr.mxu0 0.0
    %844 = vmatpush1.msra.mxu0 0.0
    %845 = vmatprep.subr.mxu0 0.0
    %846 = vmatpush1.msra.mxu0 0.0
    %847 = vmatprep.subr.mxu0 0.0
    %848 = vmatpush1.msra.mxu0 0.0
    %849 = vmatprep.subr.mxu0 0.0
    %850 = vmatpush1.msra.mxu0 0.0
    %851 = vmatprep.subr.mxu0 0.0
    %852 = vmatpush1.msra.mxu0 0.0
    %853 = vmatprep.subr.mxu0 0.0
    %854 = vmatpush1.msra.mxu0 0.0
    %855 = vmatprep.subr.mxu0 0.0
    %856 = vmatpush1.msra.mxu0 0.0
    %857 = vmatprep.subr.mxu0 0.0
    %858 = vmatpush1.msra.mxu0 0.0
    %859 = vmatprep.subr.mxu0 0.0
    %860 = vmatpush1.msra.mxu0 0.0
    %861 = vmatprep.subr.mxu0 0.0
    %862 = vmatpush1.msra.mxu0 0.0
    %863 = vmatprep.subr.mxu0 0.0
    %864 = vmatpush1.msra.mxu0 0.0
    %865 = vmatprep.subr.mxu0 0.0
    %866 = vmatpush1.msra.mxu0 0.0
    %867 = vmatprep.subr.mxu0 0.0
    %868 = vmatpush1.msra.mxu0 0.0
    %869 = vmatprep.subr.mxu0 0.0
    %870 = vmatpush1.msra.mxu0 0.0
    %871 = vmatprep.subr.mxu0 0.0
    %872 = vmatpush1.msra.mxu0 0.0
    %873 = vmatprep.subr.mxu0 0.0
    %874 = vmatpush1.msra.mxu0 0.0
    %875 = vmatprep.subr.mxu0 0.0
    %876 = vmatpush1.msra.mxu0 0.0
    %877 = vmatprep.subr.mxu0 0.0
    %878 = vmatpush1.msra.mxu0 0.0
    %879 = vmatprep.mubr.f32.mxu0 0.0
    %880 = vmatmul.mubr.f32.gmra.mrb[0].mxu0 %v795
    %v881 = vpop.f32.mrb[0].mxu0
    %v882 = vadd.f32 %v685, %v881
    %v883 = vpop.f32.mrb[0].mxu0
    %884 = vmatprep.mubr.f32.mxu0 0.0
    %885 = vmatmul.mubr.f32.gmra.mrb[0].mxu0 %v798
    %v886 = vpop.f32.mrb[0].mxu0
    %v887 = vadd.f32 %v685, %v886
    %v888 = vpop.f32.mrb[0].mxu0
    %889 = vmatprep.mubr.f32.mxu0 0.0
    %890 = vmatmul.mubr.f32.gmra.mrb[0].mxu0 %v801
    %v891 = vpop.f32.mrb[0].mxu0
    %v892 = vadd.f32 %v685, %v891
    %v893 = vpop.f32.mrb[0].mxu0
    %894 = vmatprep.mubr.f32.mxu0 0.0
    %895 = vmatmul.mubr.f32.gmra.mrb[0].mxu0 %v804
    %v896 = vpop.f32.mrb[0].mxu0
    %v897 = vadd.f32 %v685, %v896
    %v898 = vpop.f32.mrb[0].mxu0
    %899 = vmatprep.mubr.f32.mxu0 0.0
    %900 = vmatmul.mubr.f32.gmra.mrb[0].mxu0 %v807
    %v901 = vpop.f32.mrb[0].mxu0
    %v902 = vadd.f32 %v685, %v901
    %v903 = vpop.f32.mrb[0].mxu0
    %904 = vmatprep.mubr.f32.mxu0 0.0
    %905 = vmatmul.mubr.f32.gmra.mrb[0].mxu0 %v810
    %v906 = vpop.f32.mrb[0].mxu0
    %v907 = vadd.f32 %v685, %v906
    %v908 = vpop.f32.mrb[0].mxu0
    %909 = vmatprep.mubr.f32.mxu0 0.0
    %910 = vmatmul.mubr.f32.gmra.mrb[0].mxu0 %v813
    %v911 = vpop.f32.mrb[0].mxu0
    %v912 = vadd.f32 %v685, %v911
    %v913 = vpop.f32.mrb[0].mxu0
    %914 = vdwg.mxu0
    %v915 = vmul.f32 %v754, %v882
    %v916 = vmul.f32 %v759, %v887
    %v917 = vmul.f32 %v764, %v892
    %v918 = vmul.f32 %v769, %v897
    %v919 = vmul.f32 %v774, %v902
    %v920 = vmul.f32 %v779, %v907
    %v921 = vmul.f32 %v784, %v912
    %v922 = vsel %vm149, %v915, 0.0
    %923 = vadd.xlane.f32.xlu0 %v922
    %v924 = vpop.xlane.xlu0 %923
    %v925 = vsel %vm149, %v916, 0.0
    %926 = vadd.xlane.f32.xlu0 %v925
    %v927 = vpop.xlane.xlu0 %926
    %v928 = vsel %vm149, %v917, 0.0
    %929 = vadd.xlane.f32.xlu0 %v928
    %v930 = vpop.xlane.xlu0 %929
    %v931 = vsel %vm149, %v918, 0.0
    %932 = vadd.xlane.f32.xlu0 %v931
    %v933 = vpop.xlane.xlu0 %932
    %v934 = vsel %vm149, %v919, 0.0
    %935 = vadd.xlane.f32.xlu0 %v934
    %v936 = vpop.xlane.xlu0 %935
    %v937 = vsel %vm149, %v920, 0.0
    %938 = vadd.xlane.f32.xlu0 %v937
    %v939 = vpop.xlane.xlu0 %938
    %v940 = vsel %vm149, %v921, 0.0
    %941 = vadd.xlane.f32.xlu0 %v940
    %v942 = vpop.xlane.xlu0 %941
    %s943 = scalar_lea.vmem %s3, 56
    %v944 = vld [vmem:[%s943] sm:$0xff]
    %v945 = vld [vmem:[%s943 + $0x8] sm:$0xff]
    %v946 = vld [vmem:[%s943 + $0x10] sm:$0xff]
    %v947 = vld [vmem:[%s943 + $0x18] sm:$0xff]
    %v948 = vld [vmem:[%s943 + $0x20] sm:$0xff]
    %v949 = vld [vmem:[%s943 + $0x28] sm:$0xff]
    %v950 = vld [vmem:[%s943 + $0x30] sm:$0xff]
    %v952 = vsel %vm149, %v944, 0
    %v955 = vsel %vm149, %v945, 0
    %v958 = vsel %vm149, %v946, 0
    %v961 = vsel %vm149, %v947, 0
    %v964 = vsel %vm149, %v948, 0
    %v967 = vsel %vm149, %v949, 0
    %v970 = vsel %vm149, %v950, 0
    %972 = vmatprep.subr.mxu0 0.0
    %973 = vmatpush1.msra.mxu0 %v679
    %974 = vmatprep.subr.mxu0 0.0
    %975 = vmatpush1.msra.mxu0 0.0
    %976 = vmatprep.subr.mxu0 0.0
    %977 = vmatpush1.msra.mxu0 0.0
    %978 = vmatprep.subr.mxu0 0.0
    %979 = vmatpush1.msra.mxu0 0.0
    %980 = vmatprep.subr.mxu0 0.0
    %981 = vmatpush1.msra.mxu0 0.0
    %982 = vmatprep.subr.mxu0 0.0
    %983 = vmatpush1.msra.mxu0 0.0
    %984 = vmatprep.subr.mxu0 0.0
    %985 = vmatpush1.msra.mxu0 0.0
    %986 = vmatprep.subr.mxu0 0.0
    %987 = vmatpush1.msra.mxu0 0.0
    %988 = vmatprep.subr.mxu0 0.0
    %989 = vmatpush1.msra.mxu0 0.0
    %990 = vmatprep.subr.mxu0 0.0
    %991 = vmatpush1.msra.mxu0 0.0
    %992 = vmatprep.subr.mxu0 0.0
    %993 = vmatpush1.msra.mxu0 0.0
    %994 = vmatprep.subr.mxu0 0.0
    %995 = vmatpush1.msra.mxu0 0.0
    %996 = vmatprep.subr.mxu0 0.0
    %997 = vmatpush1.msra.mxu0 0.0
    %998 = vmatprep.subr.mxu0 0.0
    %999 = vmatpush1.msra.mxu0 0.0
    %1000 = vmatprep.subr.mxu0 0.0
    %1001 = vmatpush1.msra.mxu0 0.0
    %1002 = vmatprep.subr.mxu0 0.0
    %1003 = vmatpush1.msra.mxu0 0.0
    %1004 = vmatprep.subr.mxu0 0.0
    %1005 = vmatpush1.msra.mxu0 0.0
    %1006 = vmatprep.subr.mxu0 0.0
    %1007 = vmatpush1.msra.mxu0 0.0
    %1008 = vmatprep.subr.mxu0 0.0
    %1009 = vmatpush1.msra.mxu0 0.0
    %1010 = vmatprep.subr.mxu0 0.0
    %1011 = vmatpush1.msra.mxu0 0.0
    %1012 = vmatprep.subr.mxu0 0.0
    %1013 = vmatpush1.msra.mxu0 0.0
    %1014 = vmatprep.subr.mxu0 0.0
    %1015 = vmatpush1.msra.mxu0 0.0
    %1016 = vmatprep.subr.mxu0 0.0
    %1017 = vmatpush1.msra.mxu0 0.0
    %1018 = vmatprep.subr.mxu0 0.0
    %1019 = vmatpush1.msra.mxu0 0.0
    %1020 = vmatprep.subr.mxu0 0.0
    %1021 = vmatpush1.msra.mxu0 0.0
    %1022 = vmatprep.subr.mxu0 0.0
    %1023 = vmatpush1.msra.mxu0 0.0
    %1024 = vmatprep.subr.mxu0 0.0
    %1025 = vmatpush1.msra.mxu0 0.0
    %1026 = vmatprep.subr.mxu0 0.0
    %1027 = vmatpush1.msra.mxu0 0.0
    %1028 = vmatprep.subr.mxu0 0.0
    %1029 = vmatpush1.msra.mxu0 0.0
    %1030 = vmatprep.subr.mxu0 0.0
    %1031 = vmatpush1.msra.mxu0 0.0
    %1032 = vmatprep.subr.mxu0 0.0
    %1033 = vmatpush1.msra.mxu0 0.0
    %1034 = vmatprep.subr.mxu0 0.0
    %1035 = vmatpush1.msra.mxu0 0.0
    %1036 = vmatprep.mubr.f32.mxu0 0.0
    %1037 = vmatmul.mubr.f32.gmra.mrb[0].mxu0 %v952
    %v1038 = vpop.f32.mrb[0].mxu0
    %v1039 = vadd.f32 %v685, %v1038
    %v1040 = vpop.f32.mrb[0].mxu0
    %1041 = vmatprep.mubr.f32.mxu0 0.0
    %1042 = vmatmul.mubr.f32.gmra.mrb[0].mxu0 %v955
    %v1043 = vpop.f32.mrb[0].mxu0
    %v1044 = vadd.f32 %v685, %v1043
    %v1045 = vpop.f32.mrb[0].mxu0
    %1046 = vmatprep.mubr.f32.mxu0 0.0
    %1047 = vmatmul.mubr.f32.gmra.mrb[0].mxu0 %v958
    %v1048 = vpop.f32.mrb[0].mxu0
    %v1049 = vadd.f32 %v685, %v1048
    %v1050 = vpop.f32.mrb[0].mxu0
    %1051 = vmatprep.mubr.f32.mxu0 0.0
    %1052 = vmatmul.mubr.f32.gmra.mrb[0].mxu0 %v961
    %v1053 = vpop.f32.mrb[0].mxu0
    %v1054 = vadd.f32 %v685, %v1053
    %v1055 = vpop.f32.mrb[0].mxu0
    %1056 = vmatprep.mubr.f32.mxu0 0.0
    %1057 = vmatmul.mubr.f32.gmra.mrb[0].mxu0 %v964
    %v1058 = vpop.f32.mrb[0].mxu0
    %v1059 = vadd.f32 %v685, %v1058
    %v1060 = vpop.f32.mrb[0].mxu0
    %1061 = vmatprep.mubr.f32.mxu0 0.0
    %1062 = vmatmul.mubr.f32.gmra.mrb[0].mxu0 %v967
    %v1063 = vpop.f32.mrb[0].mxu0
    %v1064 = vadd.f32 %v685, %v1063
    %v1065 = vpop.f32.mrb[0].mxu0
    %1066 = vmatprep.mubr.f32.mxu0 0.0
    %1067 = vmatmul.mubr.f32.gmra.mrb[0].mxu0 %v970
    %v1068 = vpop.f32.mrb[0].mxu0
    %v1069 = vadd.f32 %v685, %v1068
    %v1070 = vpop.f32.mrb[0].mxu0
    %1071 = vdwg.mxu0
    %v1072 = vmul.f32 %v754, %v1039
    %v1073 = vmul.f32 %v759, %v1044
    %v1074 = vmul.f32 %v764, %v1049
    %v1075 = vmul.f32 %v769, %v1054
    %v1076 = vmul.f32 %v774, %v1059
    %v1077 = vmul.f32 %v779, %v1064
    %v1078 = vmul.f32 %v784, %v1069
    %v1079 = vsel %vm149, %v1072, 0.0
    %1080 = vadd.xlane.f32.xlu0 %v1079
    %v1081 = vpop.xlane.xlu0 %1080
    %v1082 = vsel %vm149, %v1073, 0.0
    %1083 = vadd.xlane.f32.xlu0 %v1082
    %v1084 = vpop.xlane.xlu0 %1083
    %v1085 = vsel %vm149, %v1074, 0.0
    %1086 = vadd.xlane.f32.xlu0 %v1085
    %v1087 = vpop.xlane.xlu0 %1086
    %v1088 = vsel %vm149, %v1075, 0.0
    %1089 = vadd.xlane.f32.xlu0 %v1088
    %v1090 = vpop.xlane.xlu0 %1089
    %v1091 = vsel %vm149, %v1076, 0.0
    %1092 = vadd.xlane.f32.xlu0 %v1091
    %v1093 = vpop.xlane.xlu0 %1092
    %v1094 = vsel %vm149, %v1077, 0.0
    %1095 = vadd.xlane.f32.xlu0 %v1094
    %v1096 = vpop.xlane.xlu0 %1095
    %v1097 = vsel %vm149, %v1078, 0.0
    %1098 = vadd.xlane.f32.xlu0 %v1097
    %v1099 = vpop.xlane.xlu0 %1098
    %v1100 = vadd.f32 %v924, %v1081
    %v1101 = vadd.f32 %v927, %v1084
    %v1102 = vadd.f32 %v930, %v1087
    %v1103 = vadd.f32 %v933, %v1090
    %v1104 = vadd.f32 %v936, %v1093
    %v1105 = vadd.f32 %v939, %v1096
    %v1106 = vadd.f32 %v942, %v1099
    %v1107 = vrcp.pop %v1100
    %v1108 = vmul.f32 1.0, %v1107
    %v1109 = vrcp.pop %v1101
    %v1110 = vmul.f32 1.0, %v1109
    %v1111 = vrcp.pop %v1102
    %v1112 = vmul.f32 1.0, %v1111
    %v1113 = vrcp.pop %v1103
    %v1114 = vmul.f32 1.0, %v1113
    %v1115 = vrcp.pop %v1104
    %v1116 = vmul.f32 1.0, %v1115
    %v1117 = vrcp.pop %v1105
    %v1118 = vmul.f32 1.0, %v1117
    %v1119 = vrcp.pop %v1106
    %v1120 = vmul.f32 1.0, %v1119
    %v1121 = vmul.f32 %v924, %v1108
    %v1122 = vmul.f32 %v927, %v1110
    %v1123 = vmul.f32 %v930, %v1112
    %v1124 = vmul.f32 %v933, %v1114
    %v1125 = vmul.f32 %v936, %v1116
    %v1126 = vmul.f32 %v939, %v1118
    %v1127 = vmul.f32 %v942, %v1120
    %v1128 = vmul.f32 %v1121, %v787
    %v1129 = vmul.f32 %v1122, %v788
    %v1130 = vmul.f32 %v1123, %v789
    %v1131 = vmul.f32 %v1124, %v790
    %v1132 = vmul.f32 %v1125, %v791
    %v1133 = vmul.f32 %v1126, %v792
    %v1134 = vmul.f32 %v1127, %v793
    %v1135 = vmul.f32 %v1081, %v1108
    %v1136 = vmul.f32 %v1084, %v1110
    %v1137 = vmul.f32 %v1087, %v1112
    %v1138 = vmul.f32 %v1090, %v1114
    %v1139 = vmul.f32 %v1093, %v1116
    %v1140 = vmul.f32 %v1096, %v1118
    %v1141 = vmul.f32 %v1099, %v1120
    %v1142 = vmul.f32 %v1135, %v944
    %v1143 = vmul.f32 %v1136, %v945
    %v1144 = vmul.f32 %v1137, %v946
    %v1145 = vmul.f32 %v1138, %v947
    %v1146 = vmul.f32 %v1139, %v948
    %v1147 = vmul.f32 %v1140, %v949
    %v1148 = vmul.f32 %v1141, %v950
    %v1149 = vadd.f32 %v1128, %v1142
    %v1150 = vadd.f32 %v1129, %v1143
    %v1151 = vadd.f32 %v1130, %v1144
    %v1152 = vadd.f32 %v1131, %v1145
    %v1153 = vadd.f32 %v1132, %v1146
    %v1154 = vadd.f32 %v1133, %v1147
    %v1155 = vadd.f32 %v1134, %v1148
    %v1156 = vld [vmem:[%s17] sm:$0xff]
    %v1157 = vld [vmem:[%s19] sm:$0x1]
    %v1159 = vlaneseq
    %v1160 = vshrl.u32 %v1159, 7
    %v1161 = vsub.s32 0, %v1160
    %v1162 = vrot.slane %v1157, %v1161
    %v1165 = vsel %vm149, %v1149, 0
    %v1168 = vsel %vm149, %v1150, 0
    %v1171 = vsel %vm149, %v1151, 0
    %v1174 = vsel %vm149, %v1152, 0
    %v1177 = vsel %vm149, %v1153, 0
    %v1180 = vsel %vm149, %v1154, 0
    %v1183 = vsel %vm149, %v1155, 0
    %1185 = vmatprep.subr.mxu0 0.0
    %1186 = vmatpush1.msra.mxu0 %v1156
    %1187 = vmatprep.subr.mxu0 0.0
    %1188 = vmatpush1.msra.mxu0 0.0
    %1189 = vmatprep.subr.mxu0 0.0
    %1190 = vmatpush1.msra.mxu0 0.0
    %1191 = vmatprep.subr.mxu0 0.0
    %1192 = vmatpush1.msra.mxu0 0.0
    %1193 = vmatprep.subr.mxu0 0.0
    %1194 = vmatpush1.msra.mxu0 0.0
    %1195 = vmatprep.subr.mxu0 0.0
    %1196 = vmatpush1.msra.mxu0 0.0
    %1197 = vmatprep.subr.mxu0 0.0
    %1198 = vmatpush1.msra.mxu0 0.0
    %1199 = vmatprep.subr.mxu0 0.0
    %1200 = vmatpush1.msra.mxu0 0.0
    %1201 = vmatprep.subr.mxu0 0.0
    %1202 = vmatpush1.msra.mxu0 0.0
    %1203 = vmatprep.subr.mxu0 0.0
    %1204 = vmatpush1.msra.mxu0 0.0
    %1205 = vmatprep.subr.mxu0 0.0
    %1206 = vmatpush1.msra.mxu0 0.0
    %1207 = vmatprep.subr.mxu0 0.0
    %1208 = vmatpush1.msra.mxu0 0.0
    %1209 = vmatprep.subr.mxu0 0.0
    %1210 = vmatpush1.msra.mxu0 0.0
    %1211 = vmatprep.subr.mxu0 0.0
    %1212 = vmatpush1.msra.mxu0 0.0
    %1213 = vmatprep.subr.mxu0 0.0
    %1214 = vmatpush1.msra.mxu0 0.0
    %1215 = vmatprep.subr.mxu0 0.0
    %1216 = vmatpush1.msra.mxu0 0.0
    %1217 = vmatprep.subr.mxu0 0.0
    %1218 = vmatpush1.msra.mxu0 0.0
    %1219 = vmatprep.subr.mxu0 0.0
    %1220 = vmatpush1.msra.mxu0 0.0
    %1221 = vmatprep.subr.mxu0 0.0
    %1222 = vmatpush1.msra.mxu0 0.0
    %1223 = vmatprep.subr.mxu0 0.0
    %1224 = vmatpush1.msra.mxu0 0.0
    %1225 = vmatprep.subr.mxu0 0.0
    %1226 = vmatpush1.msra.mxu0 0.0
    %1227 = vmatprep.subr.mxu0 0.0
    %1228 = vmatpush1.msra.mxu0 0.0
    %1229 = vmatprep.subr.mxu0 0.0
    %1230 = vmatpush1.msra.mxu0 0.0
    %1231 = vmatprep.subr.mxu0 0.0
    %1232 = vmatpush1.msra.mxu0 0.0
    %1233 = vmatprep.subr.mxu0 0.0
    %1234 = vmatpush1.msra.mxu0 0.0
    %1235 = vmatprep.subr.mxu0 0.0
    %1236 = vmatpush1.msra.mxu0 0.0
    %1237 = vmatprep.subr.mxu0 0.0
    %1238 = vmatpush1.msra.mxu0 0.0
    %1239 = vmatprep.subr.mxu0 0.0
    %1240 = vmatpush1.msra.mxu0 0.0
    %1241 = vmatprep.subr.mxu0 0.0
    %1242 = vmatpush1.msra.mxu0 0.0
    %1243 = vmatprep.subr.mxu0 0.0
    %1244 = vmatpush1.msra.mxu0 0.0
    %1245 = vmatprep.subr.mxu0 0.0
    %1246 = vmatpush1.msra.mxu0 0.0
    %1247 = vmatprep.subr.mxu0 0.0
    %1248 = vmatpush1.msra.mxu0 0.0
    %1249 = vmatprep.mubr.f32.mxu0 0.0
    %1250 = vmatmul.mubr.f32.gmra.mrb[0].mxu0 %v1165
    %v1251 = vpop.f32.mrb[0].mxu0
    %v1252 = vadd.f32 %v1162, %v1251
    %v1253 = vpop.f32.mrb[0].mxu0
    %1254 = vmatprep.mubr.f32.mxu0 0.0
    %1255 = vmatmul.mubr.f32.gmra.mrb[0].mxu0 %v1168
    %v1256 = vpop.f32.mrb[0].mxu0
    %v1257 = vadd.f32 %v1162, %v1256
    %v1258 = vpop.f32.mrb[0].mxu0
    %1259 = vmatprep.mubr.f32.mxu0 0.0
    %1260 = vmatmul.mubr.f32.gmra.mrb[0].mxu0 %v1171
    %v1261 = vpop.f32.mrb[0].mxu0
    %v1262 = vadd.f32 %v1162, %v1261
    %v1263 = vpop.f32.mrb[0].mxu0
    %1264 = vmatprep.mubr.f32.mxu0 0.0
    %1265 = vmatmul.mubr.f32.gmra.mrb[0].mxu0 %v1174
    %v1266 = vpop.f32.mrb[0].mxu0
    %v1267 = vadd.f32 %v1162, %v1266
    %v1268 = vpop.f32.mrb[0].mxu0
    %1269 = vmatprep.mubr.f32.mxu0 0.0
    %1270 = vmatmul.mubr.f32.gmra.mrb[0].mxu0 %v1177
    %v1271 = vpop.f32.mrb[0].mxu0
    %v1272 = vadd.f32 %v1162, %v1271
    %v1273 = vpop.f32.mrb[0].mxu0
    %1274 = vmatprep.mubr.f32.mxu0 0.0
    %1275 = vmatmul.mubr.f32.gmra.mrb[0].mxu0 %v1180
    %v1276 = vpop.f32.mrb[0].mxu0
    %v1277 = vadd.f32 %v1162, %v1276
    %v1278 = vpop.f32.mrb[0].mxu0
    %1279 = vmatprep.mubr.f32.mxu0 0.0
    %1280 = vmatmul.mubr.f32.gmra.mrb[0].mxu0 %v1183
    %v1281 = vpop.f32.mrb[0].mxu0
    %v1282 = vadd.f32 %v1162, %v1281
    %v1283 = vpop.f32.mrb[0].mxu0
    %1284 = vdwg.mxu0
    %v1285 = vmax.f32 %v1252, 0.0
    %v1286 = vmax.f32 %v1257, 0.0
    %v1287 = vmax.f32 %v1262, 0.0
    %v1288 = vmax.f32 %v1267, 0.0
    %v1289 = vmax.f32 %v1272, 0.0
    %v1290 = vmax.f32 %v1277, 0.0
    %v1291 = vmax.f32 %v1282, 0.0
    %v1292 = vld [vmem:[%s21] sm:$0xff]
    %v1293 = vld [vmem:[%s21 + $0x8] sm:$0xff]
    %v1294 = vld [vmem:[%s21 + $0x10] sm:$0xff]
    %v1295 = vld [vmem:[%s21 + $0x18] sm:$0xff]
    %v1296 = vld [vmem:[%s25] sm:$0x1]
    %v1298 = vlaneseq
    %v1299 = vshrl.u32 %v1298, 7
    %v1300 = vsub.s32 0, %v1299
    %v1301 = vrot.slane %v1296, %v1300
    %v1304 = vsel %vm289, %v1285, 0
    %v1307 = vsel %vm289, %v1286, 0
    %v1310 = vsel %vm289, %v1287, 0
    %v1313 = vsel %vm289, %v1288, 0
    %v1316 = vsel %vm289, %v1289, 0
    %v1319 = vsel %vm289, %v1290, 0
    %v1322 = vsel %vm289, %v1291, 0
    %1324 = vmatprep.subr.mxu0 0.0
    %1325 = vmatpush1.msra.mxu0 %v1292
    %1326 = vmatprep.subr.mxu0 0.0
    %1327 = vmatpush1.msra.mxu0 %v1293
    %1328 = vmatprep.subr.mxu0 0.0
    %1329 = vmatpush1.msra.mxu0 %v1294
    %1330 = vmatprep.subr.mxu0 0.0
    %1331 = vmatpush1.msra.mxu0 %v1295
    %1332 = vmatprep.subr.mxu0 0.0
    %1333 = vmatpush1.msra.mxu0 0.0
    %1334 = vmatprep.subr.mxu0 0.0
    %1335 = vmatpush1.msra.mxu0 0.0
    %1336 = vmatprep.subr.mxu0 0.0
    %1337 = vmatpush1.msra.mxu0 0.0
    %1338 = vmatprep.subr.mxu0 0.0
    %1339 = vmatpush1.msra.mxu0 0.0
    %1340 = vmatprep.subr.mxu0 0.0
    %1341 = vmatpush1.msra.mxu0 0.0
    %1342 = vmatprep.subr.mxu0 0.0
    %1343 = vmatpush1.msra.mxu0 0.0
    %1344 = vmatprep.subr.mxu0 0.0
    %1345 = vmatpush1.msra.mxu0 0.0
    %1346 = vmatprep.subr.mxu0 0.0
    %1347 = vmatpush1.msra.mxu0 0.0
    %1348 = vmatprep.subr.mxu0 0.0
    %1349 = vmatpush1.msra.mxu0 0.0
    %1350 = vmatprep.subr.mxu0 0.0
    %1351 = vmatpush1.msra.mxu0 0.0
    %1352 = vmatprep.subr.mxu0 0.0
    %1353 = vmatpush1.msra.mxu0 0.0
    %1354 = vmatprep.subr.mxu0 0.0
    %1355 = vmatpush1.msra.mxu0 0.0
    %1356 = vmatprep.subr.mxu0 0.0
    %1357 = vmatpush1.msra.mxu0 0.0
    %1358 = vmatprep.subr.mxu0 0.0
    %1359 = vmatpush1.msra.mxu0 0.0
    %1360 = vmatprep.subr.mxu0 0.0
    %1361 = vmatpush1.msra.mxu0 0.0
    %1362 = vmatprep.subr.mxu0 0.0
    %1363 = vmatpush1.msra.mxu0 0.0
    %1364 = vmatprep.subr.mxu0 0.0
    %1365 = vmatpush1.msra.mxu0 0.0
    %1366 = vmatprep.subr.mxu0 0.0
    %1367 = vmatpush1.msra.mxu0 0.0
    %1368 = vmatprep.subr.mxu0 0.0
    %1369 = vmatpush1.msra.mxu0 0.0
    %1370 = vmatprep.subr.mxu0 0.0
    %1371 = vmatpush1.msra.mxu0 0.0
    %1372 = vmatprep.subr.mxu0 0.0
    %1373 = vmatpush1.msra.mxu0 0.0
    %1374 = vmatprep.subr.mxu0 0.0
    %1375 = vmatpush1.msra.mxu0 0.0
    %1376 = vmatprep.subr.mxu0 0.0
    %1377 = vmatpush1.msra.mxu0 0.0
    %1378 = vmatprep.subr.mxu0 0.0
    %1379 = vmatpush1.msra.mxu0 0.0
    %1380 = vmatprep.subr.mxu0 0.0
    %1381 = vmatpush1.msra.mxu0 0.0
    %1382 = vmatprep.subr.mxu0 0.0
    %1383 = vmatpush1.msra.mxu0 0.0
    %1384 = vmatprep.subr.mxu0 0.0
    %1385 = vmatpush1.msra.mxu0 0.0
    %1386 = vmatprep.subr.mxu0 0.0
    %1387 = vmatpush1.msra.mxu0 0.0
    %1388 = vmatprep.mubr.f32.mxu0 0.0
    %1389 = vmatmul.mubr.f32.gmra.mrb[0].mxu0 %v1304
    %v1390 = vpop.f32.mrb[0].mxu0
    %v1391 = vadd.f32 %v1301, %v1390
    %v1392 = vpop.f32.mrb[0].mxu0
    %1393 = vmatprep.mubr.f32.mxu0 0.0
    %1394 = vmatmul.mubr.f32.gmra.mrb[0].mxu0 %v1307
    %v1395 = vpop.f32.mrb[0].mxu0
    %v1396 = vadd.f32 %v1301, %v1395
    %v1397 = vpop.f32.mrb[0].mxu0
    %1398 = vmatprep.mubr.f32.mxu0 0.0
    %1399 = vmatmul.mubr.f32.gmra.mrb[0].mxu0 %v1310
    %v1400 = vpop.f32.mrb[0].mxu0
    %v1401 = vadd.f32 %v1301, %v1400
    %v1402 = vpop.f32.mrb[0].mxu0
    %1403 = vmatprep.mubr.f32.mxu0 0.0
    %1404 = vmatmul.mubr.f32.gmra.mrb[0].mxu0 %v1313
    %v1405 = vpop.f32.mrb[0].mxu0
    %v1406 = vadd.f32 %v1301, %v1405
    %v1407 = vpop.f32.mrb[0].mxu0
    %1408 = vmatprep.mubr.f32.mxu0 0.0
    %1409 = vmatmul.mubr.f32.gmra.mrb[0].mxu0 %v1316
    %v1410 = vpop.f32.mrb[0].mxu0
    %v1411 = vadd.f32 %v1301, %v1410
    %v1412 = vpop.f32.mrb[0].mxu0
    %1413 = vmatprep.mubr.f32.mxu0 0.0
    %1414 = vmatmul.mubr.f32.gmra.mrb[0].mxu0 %v1319
    %v1415 = vpop.f32.mrb[0].mxu0
    %v1416 = vadd.f32 %v1301, %v1415
    %v1417 = vpop.f32.mrb[0].mxu0
    %1418 = vmatprep.mubr.f32.mxu0 0.0
    %1419 = vmatmul.mubr.f32.gmra.mrb[0].mxu0 %v1322
    %v1420 = vpop.f32.mrb[0].mxu0
    %v1421 = vadd.f32 %v1301, %v1420
    %v1422 = vpop.f32.mrb[0].mxu0
    %1423 = vdwg.mxu0
    %v1424 = vld [vmem:[%s13] sm:$0xff]
    %v1425 = vld [vmem:[%s13 + $0x8] sm:$0xff]
    %v1426 = vld [vmem:[%s13 + $0x10] sm:$0xff]
    %v1427 = vld [vmem:[%s13 + $0x18] sm:$0xff]
    %v1429 = vsel %vm289, 0.0, 0
    %1431 = vmatprep.subr.mxu0 0.0
    %1432 = vmatpush1.msra.mxu0 %v1424
    %1433 = vmatprep.subr.mxu0 0.0
    %1434 = vmatpush1.msra.mxu0 %v1425
    %1435 = vmatprep.subr.mxu0 0.0
    %1436 = vmatpush1.msra.mxu0 %v1426
    %1437 = vmatprep.subr.mxu0 0.0
    %1438 = vmatpush1.msra.mxu0 %v1427
    %1439 = vmatprep.subr.mxu0 0.0
    %1440 = vmatpush1.msra.mxu0 0.0
    %1441 = vmatprep.subr.mxu0 0.0
    %1442 = vmatpush1.msra.mxu0 0.0
    %1443 = vmatprep.subr.mxu0 0.0
    %1444 = vmatpush1.msra.mxu0 0.0
    %1445 = vmatprep.subr.mxu0 0.0
    %1446 = vmatpush1.msra.mxu0 0.0
    %1447 = vmatprep.subr.mxu0 0.0
    %1448 = vmatpush1.msra.mxu0 0.0
    %1449 = vmatprep.subr.mxu0 0.0
    %1450 = vmatpush1.msra.mxu0 0.0
    %1451 = vmatprep.subr.mxu0 0.0
    %1452 = vmatpush1.msra.mxu0 0.0
    %1453 = vmatprep.subr.mxu0 0.0
    %1454 = vmatpush1.msra.mxu0 0.0
    %1455 = vmatprep.subr.mxu0 0.0
    %1456 = vmatpush1.msra.mxu0 0.0
    %1457 = vmatprep.subr.mxu0 0.0
    %1458 = vmatpush1.msra.mxu0 0.0
    %1459 = vmatprep.subr.mxu0 0.0
    %1460 = vmatpush1.msra.mxu0 0.0
    %1461 = vmatprep.subr.mxu0 0.0
    %1462 = vmatpush1.msra.mxu0 0.0
    %1463 = vmatprep.subr.mxu0 0.0
    %1464 = vmatpush1.msra.mxu0 0.0
    %1465 = vmatprep.subr.mxu0 0.0
    %1466 = vmatpush1.msra.mxu0 0.0
    %1467 = vmatprep.subr.mxu0 0.0
    %1468 = vmatpush1.msra.mxu0 0.0
    %1469 = vmatprep.subr.mxu0 0.0
    %1470 = vmatpush1.msra.mxu0 0.0
    %1471 = vmatprep.subr.mxu0 0.0
    %1472 = vmatpush1.msra.mxu0 0.0
    %1473 = vmatprep.subr.mxu0 0.0
    %1474 = vmatpush1.msra.mxu0 0.0
    %1475 = vmatprep.subr.mxu0 0.0
    %1476 = vmatpush1.msra.mxu0 0.0
    %1477 = vmatprep.subr.mxu0 0.0
    %1478 = vmatpush1.msra.mxu0 0.0
    %1479 = vmatprep.subr.mxu0 0.0
    %1480 = vmatpush1.msra.mxu0 0.0
    %1481 = vmatprep.subr.mxu0 0.0
    %1482 = vmatpush1.msra.mxu0 0.0
    %1483 = vmatprep.subr.mxu0 0.0
    %1484 = vmatpush1.msra.mxu0 0.0
    %1485 = vmatprep.subr.mxu0 0.0
    %1486 = vmatpush1.msra.mxu0 0.0
    %1487 = vmatprep.subr.mxu0 0.0
    %1488 = vmatpush1.msra.mxu0 0.0
    %1489 = vmatprep.subr.mxu0 0.0
    %1490 = vmatpush1.msra.mxu0 0.0
    %1491 = vmatprep.subr.mxu0 0.0
    %1492 = vmatpush1.msra.mxu0 0.0
    %1493 = vmatprep.subr.mxu0 0.0
    %1494 = vmatpush1.msra.mxu0 0.0
    %1495 = vmatprep.mubr.f32.mxu0 0.0
    %1496 = vmatmul.mubr.f32.gmra.mrb[0].mxu0 %v1429
    %v1497 = vpop.f32.mrb[0].mxu0
    %v1498 = vadd.f32 0.0, %v1497
    %v1499 = vpop.f32.mrb[0].mxu0
    %1500 = vdwg.mxu0
    %v1501 = vadd.f32 %v378, %v1498
    %v1502 = vxor.u32 %v1501, 2147483648
    %v1503 = vmul.f32 %v1502, 1.442695
    %v1504 = vpow.pop %v1503
    %v1505 = vadd.f32 %v1504, 1.0
    %v1506 = vrcp.pop %v1505
    %v1507 = vmul.f32 1.0, %v1506
    %v1508 = vtanh.pop %v1501
    %v1509 = vmul.f32 %v1507, 0.0
    %1511 = vrot.lane.b32.xlu0 %v1508, 64
    %v1512 = vpop.permute.xlu0 %1511
    %v1514 = vmul.f32 %v1507, %v1512
    %1516 = vrot.lane.b32.xlu0 %v1514, 32
    %v1517 = vpop.permute.xlu0 %1516
    %v1519 = vadd.f32 %v1509, %v1517
    %v1520 = vtanh.pop %v1519
    %1522 = vrot.lane.b32.xlu0 %v1520, 64
    %v1523 = vpop.permute.xlu0 %1522
    %v1525 = vmul.f32 %v1507, %v1523
    %v1526 = vld [vmem:[%s23] sm:$0xff]
    %v1527 = vld [vmem:[%s23 + $0x8] sm:$0xff]
    %v1528 = vld [vmem:[%s23 + $0x10] sm:$0xff]
    %v1529 = vld [vmem:[%s23 + $0x18] sm:$0xff]
    %1530 = vmatprep.subr.mxu0 0.0
    %1531 = vmatpush1.msra.mxu0 %v1526
    %1532 = vmatprep.subr.mxu0 0.0
    %1533 = vmatpush1.msra.mxu0 %v1527
    %1534 = vmatprep.subr.mxu0 0.0
    %1535 = vmatpush1.msra.mxu0 %v1528
    %1536 = vmatprep.subr.mxu0 0.0
    %1537 = vmatpush1.msra.mxu0 %v1529
    %1538 = vmatprep.subr.mxu0 0.0
    %1539 = vmatpush1.msra.mxu0 0.0
    %1540 = vmatprep.subr.mxu0 0.0
    %1541 = vmatpush1.msra.mxu0 0.0
    %1542 = vmatprep.subr.mxu0 0.0
    %1543 = vmatpush1.msra.mxu0 0.0
    %1544 = vmatprep.subr.mxu0 0.0
    %1545 = vmatpush1.msra.mxu0 0.0
    %1546 = vmatprep.subr.mxu0 0.0
    %1547 = vmatpush1.msra.mxu0 0.0
    %1548 = vmatprep.subr.mxu0 0.0
    %1549 = vmatpush1.msra.mxu0 0.0
    %1550 = vmatprep.subr.mxu0 0.0
    %1551 = vmatpush1.msra.mxu0 0.0
    %1552 = vmatprep.subr.mxu0 0.0
    %1553 = vmatpush1.msra.mxu0 0.0
    %1554 = vmatprep.subr.mxu0 0.0
    %1555 = vmatpush1.msra.mxu0 0.0
    %1556 = vmatprep.subr.mxu0 0.0
    %1557 = vmatpush1.msra.mxu0 0.0
    %1558 = vmatprep.subr.mxu0 0.0
    %1559 = vmatpush1.msra.mxu0 0.0
    %1560 = vmatprep.subr.mxu0 0.0
    %1561 = vmatpush1.msra.mxu0 0.0
    %1562 = vmatprep.subr.mxu0 0.0
    %1563 = vmatpush1.msra.mxu0 0.0
    %1564 = vmatprep.subr.mxu0 0.0
    %1565 = vmatpush1.msra.mxu0 0.0
    %1566 = vmatprep.subr.mxu0 0.0
    %1567 = vmatpush1.msra.mxu0 0.0
    %1568 = vmatprep.subr.mxu0 0.0
    %1569 = vmatpush1.msra.mxu0 0.0
    %1570 = vmatprep.subr.mxu0 0.0
    %1571 = vmatpush1.msra.mxu0 0.0
    %1572 = vmatprep.subr.mxu0 0.0
    %1573 = vmatpush1.msra.mxu0 0.0
    %1574 = vmatprep.subr.mxu0 0.0
    %1575 = vmatpush1.msra.mxu0 0.0
    %1576 = vmatprep.subr.mxu0 0.0
    %1577 = vmatpush1.msra.mxu0 0.0
    %1578 = vmatprep.subr.mxu0 0.0
    %1579 = vmatpush1.msra.mxu0 0.0
    %1580 = vmatprep.subr.mxu0 0.0
    %1581 = vmatpush1.msra.mxu0 0.0
    %1582 = vmatprep.subr.mxu0 0.0
    %1583 = vmatpush1.msra.mxu0 0.0
    %1584 = vmatprep.subr.mxu0 0.0
    %1585 = vmatpush1.msra.mxu0 0.0
    %1586 = vmatprep.subr.mxu0 0.0
    %1587 = vmatpush1.msra.mxu0 0.0
    %1588 = vmatprep.subr.mxu0 0.0
    %1589 = vmatpush1.msra.mxu0 0.0
    %1590 = vmatprep.subr.mxu0 0.0
    %1591 = vmatpush1.msra.mxu0 0.0
    %1592 = vmatprep.subr.mxu0 0.0
    %1593 = vmatpush1.msra.mxu0 0.0
    %1594 = vmatprep.mubr.f32.mxu0 0.0
    %1595 = vmatmul.mubr.f32.gmra.mrb[0].mxu0 %v1429
    %v1596 = vpop.f32.mrb[0].mxu0
    %v1597 = vadd.f32 0.0, %v1596
    %v1598 = vpop.f32.mrb[0].mxu0
    %1599 = vdwg.mxu0
    %v1600 = vadd.f32 %v1391, %v1597
    %v1601 = vxor.u32 %v1600, 2147483648
    %v1602 = vmul.f32 %v1601, 1.442695
    %v1603 = vpow.pop %v1602
    %v1604 = vadd.f32 %v1603, 1.0
    %v1605 = vrcp.pop %v1604
    %v1606 = vmul.f32 1.0, %v1605
    %v1607 = vtanh.pop %v1600
    %v1608 = vmul.f32 %v1606, 0.0
    %1610 = vrot.lane.b32.xlu0 %v1607, 64
    %v1611 = vpop.permute.xlu0 %1610
    %v1613 = vmul.f32 %v1606, %v1611
    %1615 = vrot.lane.b32.xlu0 %v1613, 32
    %v1616 = vpop.permute.xlu0 %1615
    %v1618 = vadd.f32 %v1608, %v1616
    %v1619 = vtanh.pop %v1618
    %1621 = vrot.lane.b32.xlu0 %v1619, 64
    %v1622 = vpop.permute.xlu0 %1621
    %v1624 = vmul.f32 %v1606, %v1622
    %v1625 = vld [vmem:[%s31] sm:$0xff]
    %v1626 = vld [vmem:[%s31 + $0x8] sm:$0xff]
    %v1627 = vld [vmem:[%s31 + $0x10] sm:$0xff]
    %v1628 = vld [vmem:[%s31 + $0x18] sm:$0xff]
    %v1629 = vld [vmem:[%s33] sm:$0xff]
    %v1630 = vld [vmem:[%s33 + $0x8] sm:$0xff]
    %v1631 = vld [vmem:[%s33 + $0x10] sm:$0xff]
    %v1632 = vld [vmem:[%s33 + $0x18] sm:$0xff]
    %1634 = vrot.lane.b32.xlu0 %v1624, 32
    %v1635 = vpop.permute.xlu0 %1634
    %v1636 = vsel %vm289, %v1635, 0
    %1638 = vmatprep.subr.mxu0 0.0
    %1639 = vmatpush1.msra.mxu0 %v1629
    %1640 = vmatprep.subr.mxu0 0.0
    %1641 = vmatpush1.msra.mxu0 %v1630
    %1642 = vmatprep.subr.mxu0 0.0
    %1643 = vmatpush1.msra.mxu0 %v1631
    %1644 = vmatprep.subr.mxu0 0.0
    %1645 = vmatpush1.msra.mxu0 %v1632
    %1646 = vmatprep.subr.mxu0 0.0
    %1647 = vmatpush1.msra.mxu0 0.0
    %1648 = vmatprep.subr.mxu0 0.0
    %1649 = vmatpush1.msra.mxu0 0.0
    %1650 = vmatprep.subr.mxu0 0.0
    %1651 = vmatpush1.msra.mxu0 0.0
    %1652 = vmatprep.subr.mxu0 0.0
    %1653 = vmatpush1.msra.mxu0 0.0
    %1654 = vmatprep.subr.mxu0 0.0
    %1655 = vmatpush1.msra.mxu0 0.0
    %1656 = vmatprep.subr.mxu0 0.0
    %1657 = vmatpush1.msra.mxu0 0.0
    %1658 = vmatprep.subr.mxu0 0.0
    %1659 = vmatpush1.msra.mxu0 0.0
    %1660 = vmatprep.subr.mxu0 0.0
    %1661 = vmatpush1.msra.mxu0 0.0
    %1662 = vmatprep.subr.mxu0 0.0
    %1663 = vmatpush1.msra.mxu0 0.0
    %1664 = vmatprep.subr.mxu0 0.0
    %1665 = vmatpush1.msra.mxu0 0.0
    %1666 = vmatprep.subr.mxu0 0.0
    %1667 = vmatpush1.msra.mxu0 0.0
    %1668 = vmatprep.subr.mxu0 0.0
    %1669 = vmatpush1.msra.mxu0 0.0
    %1670 = vmatprep.subr.mxu0 0.0
    %1671 = vmatpush1.msra.mxu0 0.0
    %1672 = vmatprep.subr.mxu0 0.0
    %1673 = vmatpush1.msra.mxu0 0.0
    %1674 = vmatprep.subr.mxu0 0.0
    %1675 = vmatpush1.msra.mxu0 0.0
    %1676 = vmatprep.subr.mxu0 0.0
    %1677 = vmatpush1.msra.mxu0 0.0
    %1678 = vmatprep.subr.mxu0 0.0
    %1679 = vmatpush1.msra.mxu0 0.0
    %1680 = vmatprep.subr.mxu0 0.0
    %1681 = vmatpush1.msra.mxu0 0.0
    %1682 = vmatprep.subr.mxu0 0.0
    %1683 = vmatpush1.msra.mxu0 0.0
    %1684 = vmatprep.subr.mxu0 0.0
    %1685 = vmatpush1.msra.mxu0 0.0
    %1686 = vmatprep.subr.mxu0 0.0
    %1687 = vmatpush1.msra.mxu0 0.0
    %1688 = vmatprep.subr.mxu0 0.0
    %1689 = vmatpush1.msra.mxu0 0.0
    %1690 = vmatprep.subr.mxu0 0.0
    %1691 = vmatpush1.msra.mxu0 0.0
    %1692 = vmatprep.subr.mxu0 0.0
    %1693 = vmatpush1.msra.mxu0 0.0
    %1694 = vmatprep.subr.mxu0 0.0
    %1695 = vmatpush1.msra.mxu0 0.0
    %1696 = vmatprep.subr.mxu0 0.0
    %1697 = vmatpush1.msra.mxu0 0.0
    %1698 = vmatprep.subr.mxu0 0.0
    %1699 = vmatpush1.msra.mxu0 0.0
    %1700 = vmatprep.subr.mxu0 0.0
    %1701 = vmatpush1.msra.mxu0 0.0
    %1702 = vmatprep.mubr.f32.mxu0 0.0
    %1703 = vmatmul.mubr.f32.gmra.mrb[0].mxu0 %v1636
    %v1704 = vpop.f32.mrb[0].mxu0
    %v1705 = vadd.f32 0.0, %v1704
    %v1706 = vpop.f32.mrb[0].mxu0
    %1707 = vdwg.mxu0
    %1709 = vrot.lane.b32.xlu0 %v1525, 32
    %v1710 = vpop.permute.xlu0 %1709
    %v1711 = vsel %vm289, %v1710, 0
    %1713 = vmatprep.subr.mxu0 0.0
    %1714 = vmatpush1.msra.mxu0 %v1625
    %1715 = vmatprep.subr.mxu0 0.0
    %1716 = vmatpush1.msra.mxu0 %v1626
    %1717 = vmatprep.subr.mxu0 0.0
    %1718 = vmatpush1.msra.mxu0 %v1627
    %1719 = vmatprep.subr.mxu0 0.0
    %1720 = vmatpush1.msra.mxu0 %v1628
    %1721 = vmatprep.subr.mxu0 0.0
    %1722 = vmatpush1.msra.mxu0 0.0
    %1723 = vmatprep.subr.mxu0 0.0
    %1724 = vmatpush1.msra.mxu0 0.0
    %1725 = vmatprep.subr.mxu0 0.0
    %1726 = vmatpush1.msra.mxu0 0.0
    %1727 = vmatprep.subr.mxu0 0.0
    %1728 = vmatpush1.msra.mxu0 0.0
    %1729 = vmatprep.subr.mxu0 0.0
    %1730 = vmatpush1.msra.mxu0 0.0
    %1731 = vmatprep.subr.mxu0 0.0
    %1732 = vmatpush1.msra.mxu0 0.0
    %1733 = vmatprep.subr.mxu0 0.0
    %1734 = vmatpush1.msra.mxu0 0.0
    %1735 = vmatprep.subr.mxu0 0.0
    %1736 = vmatpush1.msra.mxu0 0.0
    %1737 = vmatprep.subr.mxu0 0.0
    %1738 = vmatpush1.msra.mxu0 0.0
    %1739 = vmatprep.subr.mxu0 0.0
    %1740 = vmatpush1.msra.mxu0 0.0
    %1741 = vmatprep.subr.mxu0 0.0
    %1742 = vmatpush1.msra.mxu0 0.0
    %1743 = vmatprep.subr.mxu0 0.0
    %1744 = vmatpush1.msra.mxu0 0.0
    %1745 = vmatprep.subr.mxu0 0.0
    %1746 = vmatpush1.msra.mxu0 0.0
    %1747 = vmatprep.subr.mxu0 0.0
    %1748 = vmatpush1.msra.mxu0 0.0
    %1749 = vmatprep.subr.mxu0 0.0
    %1750 = vmatpush1.msra.mxu0 0.0
    %1751 = vmatprep.subr.mxu0 0.0
    %1752 = vmatpush1.msra.mxu0 0.0
    %1753 = vmatprep.subr.mxu0 0.0
    %1754 = vmatpush1.msra.mxu0 0.0
    %1755 = vmatprep.subr.mxu0 0.0
    %1756 = vmatpush1.msra.mxu0 0.0
    %1757 = vmatprep.subr.mxu0 0.0
    %1758 = vmatpush1.msra.mxu0 0.0
    %1759 = vmatprep.subr.mxu0 0.0
    %1760 = vmatpush1.msra.mxu0 0.0
    %1761 = vmatprep.subr.mxu0 0.0
    %1762 = vmatpush1.msra.mxu0 0.0
    %1763 = vmatprep.subr.mxu0 0.0
    %1764 = vmatpush1.msra.mxu0 0.0
    %1765 = vmatprep.subr.mxu0 0.0
    %1766 = vmatpush1.msra.mxu0 0.0
    %1767 = vmatprep.subr.mxu0 0.0
    %1768 = vmatpush1.msra.mxu0 0.0
    %1769 = vmatprep.subr.mxu0 0.0
    %1770 = vmatpush1.msra.mxu0 0.0
    %1771 = vmatprep.subr.mxu0 0.0
    %1772 = vmatpush1.msra.mxu0 0.0
    %1773 = vmatprep.subr.mxu0 0.0
    %1774 = vmatpush1.msra.mxu0 0.0
    %1775 = vmatprep.subr.mxu0 0.0
    %1776 = vmatpush1.msra.mxu0 0.0
    %1777 = vmatprep.mubr.f32.mxu0 0.0
    %1778 = vmatmul.mubr.f32.gmra.mrb[0].mxu0 %v1711
    %v1779 = vpop.f32.mrb[0].mxu0
    %v1780 = vadd.f32 %v1705, %v1779
    %v1781 = vpop.f32.mrb[0].mxu0
    %1782 = vdwg.mxu0
    %v1783 = vld [vmem:[%s35] sm:$0x1]
    %v1785 = vlaneseq
    %v1786 = vshrl.u32 %v1785, 7
    %v1787 = vsub.s32 0, %v1786
    %v1788 = vrot.slane %v1783, %v1787
    %v1790 = vadd.f32 %v1780, %v1788
    %v1791 = vmax.f32 %v1790, 0.0
    %v1792 = vld [vmem:[%s39] sm:$0xff]
    %v1793 = vld [vmem:[%s39 + $0x8] sm:$0xff]
    %v1794 = vld [vmem:[%s39 + $0x10] sm:$0xff]
    %v1795 = vld [vmem:[%s39 + $0x18] sm:$0xff]
    %v1797 = vsel %vm289, %v1791, 0
    %1799 = vmatprep.subr.mxu0 0.0
    %1800 = vmatpush1.msra.mxu0 %v1792
    %1801 = vmatprep.subr.mxu0 0.0
    %1802 = vmatpush1.msra.mxu0 %v1793
    %1803 = vmatprep.subr.mxu0 0.0
    %1804 = vmatpush1.msra.mxu0 %v1794
    %1805 = vmatprep.subr.mxu0 0.0
    %1806 = vmatpush1.msra.mxu0 %v1795
    %1807 = vmatprep.subr.mxu0 0.0
    %1808 = vmatpush1.msra.mxu0 0.0
    %1809 = vmatprep.subr.mxu0 0.0
    %1810 = vmatpush1.msra.mxu0 0.0
    %1811 = vmatprep.subr.mxu0 0.0
    %1812 = vmatpush1.msra.mxu0 0.0
    %1813 = vmatprep.subr.mxu0 0.0
    %1814 = vmatpush1.msra.mxu0 0.0
    %1815 = vmatprep.subr.mxu0 0.0
    %1816 = vmatpush1.msra.mxu0 0.0
    %1817 = vmatprep.subr.mxu0 0.0
    %1818 = vmatpush1.msra.mxu0 0.0
    %1819 = vmatprep.subr.mxu0 0.0
    %1820 = vmatpush1.msra.mxu0 0.0
    %1821 = vmatprep.subr.mxu0 0.0
    %1822 = vmatpush1.msra.mxu0 0.0
    %1823 = vmatprep.subr.mxu0 0.0
    %1824 = vmatpush1.msra.mxu0 0.0
    %1825 = vmatprep.subr.mxu0 0.0
    %1826 = vmatpush1.msra.mxu0 0.0
    %1827 = vmatprep.subr.mxu0 0.0
    %1828 = vmatpush1.msra.mxu0 0.0
    %1829 = vmatprep.subr.mxu0 0.0
    %1830 = vmatpush1.msra.mxu0 0.0
    %1831 = vmatprep.subr.mxu0 0.0
    %1832 = vmatpush1.msra.mxu0 0.0
    %1833 = vmatprep.subr.mxu0 0.0
    %1834 = vmatpush1.msra.mxu0 0.0
    %1835 = vmatprep.subr.mxu0 0.0
    %1836 = vmatpush1.msra.mxu0 0.0
    %1837 = vmatprep.subr.mxu0 0.0
    %1838 = vmatpush1.msra.mxu0 0.0
    %1839 = vmatprep.subr.mxu0 0.0
    %1840 = vmatpush1.msra.mxu0 0.0
    %1841 = vmatprep.subr.mxu0 0.0
    %1842 = vmatpush1.msra.mxu0 0.0
    %1843 = vmatprep.subr.mxu0 0.0
    %1844 = vmatpush1.msra.mxu0 0.0
    %1845 = vmatprep.subr.mxu0 0.0
    %1846 = vmatpush1.msra.mxu0 0.0
    %1847 = vmatprep.subr.mxu0 0.0
    %1848 = vmatpush1.msra.mxu0 0.0
    %1849 = vmatprep.subr.mxu0 0.0
    %1850 = vmatpush1.msra.mxu0 0.0
    %1851 = vmatprep.subr.mxu0 0.0
    %1852 = vmatpush1.msra.mxu0 0.0
    %1853 = vmatprep.subr.mxu0 0.0
    %1854 = vmatpush1.msra.mxu0 0.0
    %1855 = vmatprep.subr.mxu0 0.0
    %1856 = vmatpush1.msra.mxu0 0.0
    %1857 = vmatprep.subr.mxu0 0.0
    %1858 = vmatpush1.msra.mxu0 0.0
    %1859 = vmatprep.subr.mxu0 0.0
    %1860 = vmatpush1.msra.mxu0 0.0
    %1861 = vmatprep.subr.mxu0 0.0
    %1862 = vmatpush1.msra.mxu0 0.0
    %1863 = vmatprep.mubr.f32.mxu0 0.0
    %1864 = vmatmul.mubr.f32.gmra.mrb[0].mxu0 %v1797
    %v1865 = vpop.f32.mrb[0].mxu0
    %v1866 = vadd.f32 0.0, %v1865
    %v1867 = vpop.f32.mrb[0].mxu0
    %1868 = vdwg.mxu0
    %v1869 = vadd.f32 %v646, %v1866
    %v1870 = vld [vmem:[%s41] sm:$0xff]
    %v1871 = vld [vmem:[%s41 + $0x8] sm:$0xff]
    %v1872 = vld [vmem:[%s41 + $0x10] sm:$0xff]
    %v1873 = vld [vmem:[%s41 + $0x18] sm:$0xff]
    %1874 = vmatprep.subr.mxu0 0.0
    %1875 = vmatpush1.msra.mxu0 %v1870
    %1876 = vmatprep.subr.mxu0 0.0
    %1877 = vmatpush1.msra.mxu0 %v1871
    %1878 = vmatprep.subr.mxu0 0.0
    %1879 = vmatpush1.msra.mxu0 %v1872
    %1880 = vmatprep.subr.mxu0 0.0
    %1881 = vmatpush1.msra.mxu0 %v1873
    %1882 = vmatprep.subr.mxu0 0.0
    %1883 = vmatpush1.msra.mxu0 0.0
    %1884 = vmatprep.subr.mxu0 0.0
    %1885 = vmatpush1.msra.mxu0 0.0
    %1886 = vmatprep.subr.mxu0 0.0
    %1887 = vmatpush1.msra.mxu0 0.0
    %1888 = vmatprep.subr.mxu0 0.0
    %1889 = vmatpush1.msra.mxu0 0.0
    %1890 = vmatprep.subr.mxu0 0.0
    %1891 = vmatpush1.msra.mxu0 0.0
    %1892 = vmatprep.subr.mxu0 0.0
    %1893 = vmatpush1.msra.mxu0 0.0
    %1894 = vmatprep.subr.mxu0 0.0
    %1895 = vmatpush1.msra.mxu0 0.0
    %1896 = vmatprep.subr.mxu0 0.0
    %1897 = vmatpush1.msra.mxu0 0.0
    %1898 = vmatprep.subr.mxu0 0.0
    %1899 = vmatpush1.msra.mxu0 0.0
    %1900 = vmatprep.subr.mxu0 0.0
    %1901 = vmatpush1.msra.mxu0 0.0
    %1902 = vmatprep.subr.mxu0 0.0
    %1903 = vmatpush1.msra.mxu0 0.0
    %1904 = vmatprep.subr.mxu0 0.0
    %1905 = vmatpush1.msra.mxu0 0.0
    %1906 = vmatprep.subr.mxu0 0.0
    %1907 = vmatpush1.msra.mxu0 0.0
    %1908 = vmatprep.subr.mxu0 0.0
    %1909 = vmatpush1.msra.mxu0 0.0
    %1910 = vmatprep.subr.mxu0 0.0
    %1911 = vmatpush1.msra.mxu0 0.0
    %1912 = vmatprep.subr.mxu0 0.0
    %1913 = vmatpush1.msra.mxu0 0.0
    %1914 = vmatprep.subr.mxu0 0.0
    %1915 = vmatpush1.msra.mxu0 0.0
    %1916 = vmatprep.subr.mxu0 0.0
    %1917 = vmatpush1.msra.mxu0 0.0
    %1918 = vmatprep.subr.mxu0 0.0
    %1919 = vmatpush1.msra.mxu0 0.0
    %1920 = vmatprep.subr.mxu0 0.0
    %1921 = vmatpush1.msra.mxu0 0.0
    %1922 = vmatprep.subr.mxu0 0.0
    %1923 = vmatpush1.msra.mxu0 0.0
    %1924 = vmatprep.subr.mxu0 0.0
    %1925 = vmatpush1.msra.mxu0 0.0
    %1926 = vmatprep.subr.mxu0 0.0
    %1927 = vmatpush1.msra.mxu0 0.0
    %1928 = vmatprep.subr.mxu0 0.0
    %1929 = vmatpush1.msra.mxu0 0.0
    %1930 = vmatprep.subr.mxu0 0.0
    %1931 = vmatpush1.msra.mxu0 0.0
    %1932 = vmatprep.subr.mxu0 0.0
    %1933 = vmatpush1.msra.mxu0 0.0
    %1934 = vmatprep.subr.mxu0 0.0
    %1935 = vmatpush1.msra.mxu0 0.0
    %1936 = vmatprep.subr.mxu0 0.0
    %1937 = vmatpush1.msra.mxu0 0.0
    %1938 = vmatprep.mubr.f32.mxu0 0.0
    %1939 = vmatmul.mubr.f32.gmra.mrb[0].mxu0 %v1429
    %v1940 = vpop.f32.mrb[0].mxu0
    %v1941 = vadd.f32 0.0, %v1940
    %v1942 = vpop.f32.mrb[0].mxu0
    %1943 = vdwg.mxu0
    %v1944 = vadd.f32 %v1869, %v1941
    %v1945 = vxor.u32 %v1944, 2147483648
    %v1946 = vmul.f32 %v1945, 1.442695
    %v1947 = vpow.pop %v1946
    %v1948 = vadd.f32 %v1947, 1.0
    %v1949 = vrcp.pop %v1948
    %v1950 = vmul.f32 1.0, %v1949
    %v1951 = vtanh.pop %v1944
    %v1952 = vmul.f32 %v1950, 0.0
    %1954 = vrot.lane.b32.xlu0 %v1951, 64
    %v1955 = vpop.permute.xlu0 %1954
    %v1957 = vmul.f32 %v1950, %v1955
    %1959 = vrot.lane.b32.xlu0 %v1957, 32
    %v1960 = vpop.permute.xlu0 %1959
    %v1962 = vadd.f32 %v1952, %v1960
    %v1963 = vtanh.pop %v1962
    %1965 = vrot.lane.b32.xlu0 %v1963, 64
    %v1966 = vpop.permute.xlu0 %1965
    %v1968 = vmul.f32 %v1950, %v1966
    %1969 = vmatprep.subr.mxu0 0.0
    %1970 = vmatpush1.msra.mxu0 %v1424
    %1971 = vmatprep.subr.mxu0 0.0
    %1972 = vmatpush1.msra.mxu0 %v1425
    %1973 = vmatprep.subr.mxu0 0.0
    %1974 = vmatpush1.msra.mxu0 %v1426
    %1975 = vmatprep.subr.mxu0 0.0
    %1976 = vmatpush1.msra.mxu0 %v1427
    %1977 = vmatprep.subr.mxu0 0.0
    %1978 = vmatpush1.msra.mxu0 0.0
    %1979 = vmatprep.subr.mxu0 0.0
    %1980 = vmatpush1.msra.mxu0 0.0
    %1981 = vmatprep.subr.mxu0 0.0
    %1982 = vmatpush1.msra.mxu0 0.0
    %1983 = vmatprep.subr.mxu0 0.0
    %1984 = vmatpush1.msra.mxu0 0.0
    %1985 = vmatprep.subr.mxu0 0.0
    %1986 = vmatpush1.msra.mxu0 0.0
    %1987 = vmatprep.subr.mxu0 0.0
    %1988 = vmatpush1.msra.mxu0 0.0
    %1989 = vmatprep.subr.mxu0 0.0
    %1990 = vmatpush1.msra.mxu0 0.0
    %1991 = vmatprep.subr.mxu0 0.0
    %1992 = vmatpush1.msra.mxu0 0.0
    %1993 = vmatprep.subr.mxu0 0.0
    %1994 = vmatpush1.msra.mxu0 0.0
    %1995 = vmatprep.subr.mxu0 0.0
    %1996 = vmatpush1.msra.mxu0 0.0
    %1997 = vmatprep.subr.mxu0 0.0
    %1998 = vmatpush1.msra.mxu0 0.0
    %1999 = vmatprep.subr.mxu0 0.0
    %2000 = vmatpush1.msra.mxu0 0.0
    %2001 = vmatprep.subr.mxu0 0.0
    %2002 = vmatpush1.msra.mxu0 0.0
    %2003 = vmatprep.subr.mxu0 0.0
    %2004 = vmatpush1.msra.mxu0 0.0
    %2005 = vmatprep.subr.mxu0 0.0
    %2006 = vmatpush1.msra.mxu0 0.0
    %2007 = vmatprep.subr.mxu0 0.0
    %2008 = vmatpush1.msra.mxu0 0.0
    %2009 = vmatprep.subr.mxu0 0.0
    %2010 = vmatpush1.msra.mxu0 0.0
    %2011 = vmatprep.subr.mxu0 0.0
    %2012 = vmatpush1.msra.mxu0 0.0
    %2013 = vmatprep.subr.mxu0 0.0
    %2014 = vmatpush1.msra.mxu0 0.0
    %2015 = vmatprep.subr.mxu0 0.0
    %2016 = vmatpush1.msra.mxu0 0.0
    %2017 = vmatprep.subr.mxu0 0.0
    %2018 = vmatpush1.msra.mxu0 0.0
    %2019 = vmatprep.subr.mxu0 0.0
    %2020 = vmatpush1.msra.mxu0 0.0
    %2021 = vmatprep.subr.mxu0 0.0
    %2022 = vmatpush1.msra.mxu0 0.0
    %2023 = vmatprep.subr.mxu0 0.0
    %2024 = vmatpush1.msra.mxu0 0.0
    %2025 = vmatprep.subr.mxu0 0.0
    %2026 = vmatpush1.msra.mxu0 0.0
    %2027 = vmatprep.subr.mxu0 0.0
    %2028 = vmatpush1.msra.mxu0 0.0
    %2029 = vmatprep.subr.mxu0 0.0
    %2030 = vmatpush1.msra.mxu0 0.0
    %2031 = vmatprep.subr.mxu0 0.0
    %2032 = vmatpush1.msra.mxu0 0.0
    %2033 = vmatprep.mubr.f32.mxu0 0.0
    %2034 = vmatmul.mubr.f32.gmra.mrb[0].mxu0 %v1711
    %v2035 = vpop.f32.mrb[0].mxu0
    %v2036 = vadd.f32 0.0, %v2035
    %v2037 = vpop.f32.mrb[0].mxu0
    %2038 = vdwg.mxu0
    %v2039 = vadd.f32 %v383, %v2036
    %v2040 = vxor.u32 %v2039, 2147483648
    %v2041 = vmul.f32 %v2040, 1.442695
    %v2042 = vpow.pop %v2041
    %v2043 = vadd.f32 %v2042, 1.0
    %v2044 = vrcp.pop %v2043
    %v2045 = vmul.f32 1.0, %v2044
    %v2046 = vtanh.pop %v2039
    %v2047 = vmul.f32 %v2045, %v1519
    %2049 = vrot.lane.b32.xlu0 %v2046, 64
    %v2050 = vpop.permute.xlu0 %2049
    %v2052 = vmul.f32 %v2045, %v2050
    %2054 = vrot.lane.b32.xlu0 %v2052, 32
    %v2055 = vpop.permute.xlu0 %2054
    %v2057 = vadd.f32 %v2047, %v2055
    %v2058 = vtanh.pop %v2057
    %2060 = vrot.lane.b32.xlu0 %v2058, 64
    %v2061 = vpop.permute.xlu0 %2060
    %v2063 = vmul.f32 %v2045, %v2061
    %2064 = vmatprep.subr.mxu0 0.0
    %2065 = vmatpush1.msra.mxu0 %v1526
    %2066 = vmatprep.subr.mxu0 0.0
    %2067 = vmatpush1.msra.mxu0 %v1527
    %2068 = vmatprep.subr.mxu0 0.0
    %2069 = vmatpush1.msra.mxu0 %v1528
    %2070 = vmatprep.subr.mxu0 0.0
    %2071 = vmatpush1.msra.mxu0 %v1529
    %2072 = vmatprep.subr.mxu0 0.0
    %2073 = vmatpush1.msra.mxu0 0.0
    %2074 = vmatprep.subr.mxu0 0.0
    %2075 = vmatpush1.msra.mxu0 0.0
    %2076 = vmatprep.subr.mxu0 0.0
    %2077 = vmatpush1.msra.mxu0 0.0
    %2078 = vmatprep.subr.mxu0 0.0
    %2079 = vmatpush1.msra.mxu0 0.0
    %2080 = vmatprep.subr.mxu0 0.0
    %2081 = vmatpush1.msra.mxu0 0.0
    %2082 = vmatprep.subr.mxu0 0.0
    %2083 = vmatpush1.msra.mxu0 0.0
    %2084 = vmatprep.subr.mxu0 0.0
    %2085 = vmatpush1.msra.mxu0 0.0
    %2086 = vmatprep.subr.mxu0 0.0
    %2087 = vmatpush1.msra.mxu0 0.0
    %2088 = vmatprep.subr.mxu0 0.0
    %2089 = vmatpush1.msra.mxu0 0.0
    %2090 = vmatprep.subr.mxu0 0.0
    %2091 = vmatpush1.msra.mxu0 0.0
    %2092 = vmatprep.subr.mxu0 0.0
    %2093 = vmatpush1.msra.mxu0 0.0
    %2094 = vmatprep.subr.mxu0 0.0
    %2095 = vmatpush1.msra.mxu0 0.0
    %2096 = vmatprep.subr.mxu0 0.0
    %2097 = vmatpush1.msra.mxu0 0.0
    %2098 = vmatprep.subr.mxu0 0.0
    %2099 = vmatpush1.msra.mxu0 0.0
    %2100 = vmatprep.subr.mxu0 0.0
    %2101 = vmatpush1.msra.mxu0 0.0
    %2102 = vmatprep.subr.mxu0 0.0
    %2103 = vmatpush1.msra.mxu0 0.0
    %2104 = vmatprep.subr.mxu0 0.0
    %2105 = vmatpush1.msra.mxu0 0.0
    %2106 = vmatprep.subr.mxu0 0.0
    %2107 = vmatpush1.msra.mxu0 0.0
    %2108 = vmatprep.subr.mxu0 0.0
    %2109 = vmatpush1.msra.mxu0 0.0
    %2110 = vmatprep.subr.mxu0 0.0
    %2111 = vmatpush1.msra.mxu0 0.0
    %2112 = vmatprep.subr.mxu0 0.0
    %2113 = vmatpush1.msra.mxu0 0.0
    %2114 = vmatprep.subr.mxu0 0.0
    %2115 = vmatpush1.msra.mxu0 0.0
    %2116 = vmatprep.subr.mxu0 0.0
    %2117 = vmatpush1.msra.mxu0 0.0
    %2118 = vmatprep.subr.mxu0 0.0
    %2119 = vmatpush1.msra.mxu0 0.0
    %2120 = vmatprep.subr.mxu0 0.0
    %2121 = vmatpush1.msra.mxu0 0.0
    %2122 = vmatprep.subr.mxu0 0.0
    %2123 = vmatpush1.msra.mxu0 0.0
    %2124 = vmatprep.subr.mxu0 0.0
    %2125 = vmatpush1.msra.mxu0 0.0
    %2126 = vmatprep.subr.mxu0 0.0
    %2127 = vmatpush1.msra.mxu0 0.0
    %2128 = vmatprep.mubr.f32.mxu0 0.0
    %2129 = vmatmul.mubr.f32.gmra.mrb[0].mxu0 %v1636
    %v2130 = vpop.f32.mrb[0].mxu0
    %v2131 = vadd.f32 0.0, %v2130
    %v2132 = vpop.f32.mrb[0].mxu0
    %2133 = vdwg.mxu0
    %v2134 = vadd.f32 %v1396, %v2131
    %v2135 = vxor.u32 %v2134, 2147483648
    %v2136 = vmul.f32 %v2135, 1.442695
    %v2137 = vpow.pop %v2136
    %v2138 = vadd.f32 %v2137, 1.0
    %v2139 = vrcp.pop %v2138
    %v2140 = vmul.f32 1.0, %v2139
    %v2141 = vtanh.pop %v2134
    %v2142 = vmul.f32 %v2140, %v1618
    %2144 = vrot.lane.b32.xlu0 %v2141, 64
    %v2145 = vpop.permute.xlu0 %2144
    %v2147 = vmul.f32 %v2140, %v2145
    %2149 = vrot.lane.b32.xlu0 %v2147, 32
    %v2150 = vpop.permute.xlu0 %2149
    %v2152 = vadd.f32 %v2142, %v2150
    %v2153 = vtanh.pop %v2152
    %2155 = vrot.lane.b32.xlu0 %v2153, 64
    %v2156 = vpop.permute.xlu0 %2155
    %v2158 = vmul.f32 %v2140, %v2156
    %2160 = vrot.lane.b32.xlu0 %v2158, 32
    %v2161 = vpop.permute.xlu0 %2160
    %v2162 = vsel %vm289, %v2161, 0
    %2164 = vmatprep.subr.mxu0 0.0
    %2165 = vmatpush1.msra.mxu0 %v1629
    %2166 = vmatprep.subr.mxu0 0.0
    %2167 = vmatpush1.msra.mxu0 %v1630
    %2168 = vmatprep.subr.mxu0 0.0
    %2169 = vmatpush1.msra.mxu0 %v1631
    %2170 = vmatprep.subr.mxu0 0.0
    %2171 = vmatpush1.msra.mxu0 %v1632
    %2172 = vmatprep.subr.mxu0 0.0
    %2173 = vmatpush1.msra.mxu0 0.0
    %2174 = vmatprep.subr.mxu0 0.0
    %2175 = vmatpush1.msra.mxu0 0.0
    %2176 = vmatprep.subr.mxu0 0.0
    %2177 = vmatpush1.msra.mxu0 0.0
    %2178 = vmatprep.subr.mxu0 0.0
    %2179 = vmatpush1.msra.mxu0 0.0
    %2180 = vmatprep.subr.mxu0 0.0
    %2181 = vmatpush1.msra.mxu0 0.0
    %2182 = vmatprep.subr.mxu0 0.0
    %2183 = vmatpush1.msra.mxu0 0.0
    %2184 = vmatprep.subr.mxu0 0.0
    %2185 = vmatpush1.msra.mxu0 0.0
    %2186 = vmatprep.subr.mxu0 0.0
    %2187 = vmatpush1.msra.mxu0 0.0
    %2188 = vmatprep.subr.mxu0 0.0
    %2189 = vmatpush1.msra.mxu0 0.0
    %2190 = vmatprep.subr.mxu0 0.0
    %2191 = vmatpush1.msra.mxu0 0.0
    %2192 = vmatprep.subr.mxu0 0.0
    %2193 = vmatpush1.msra.mxu0 0.0
    %2194 = vmatprep.subr.mxu0 0.0
    %2195 = vmatpush1.msra.mxu0 0.0
    %2196 = vmatprep.subr.mxu0 0.0
    %2197 = vmatpush1.msra.mxu0 0.0
    %2198 = vmatprep.subr.mxu0 0.0
    %2199 = vmatpush1.msra.mxu0 0.0
    %2200 = vmatprep.subr.mxu0 0.0
    %2201 = vmatpush1.msra.mxu0 0.0
    %2202 = vmatprep.subr.mxu0 0.0
    %2203 = vmatpush1.msra.mxu0 0.0
    %2204 = vmatprep.subr.mxu0 0.0
    %2205 = vmatpush1.msra.mxu0 0.0
    %2206 = vmatprep.subr.mxu0 0.0
    %2207 = vmatpush1.msra.mxu0 0.0
    %2208 = vmatprep.subr.mxu0 0.0
    %2209 = vmatpush1.msra.mxu0 0.0
    %2210 = vmatprep.subr.mxu0 0.0
    %2211 = vmatpush1.msra.mxu0 0.0
    %2212 = vmatprep.subr.mxu0 0.0
    %2213 = vmatpush1.msra.mxu0 0.0
    %2214 = vmatprep.subr.mxu0 0.0
    %2215 = vmatpush1.msra.mxu0 0.0
    %2216 = vmatprep.subr.mxu0 0.0
    %2217 = vmatpush1.msra.mxu0 0.0
    %2218 = vmatprep.subr.mxu0 0.0
    %2219 = vmatpush1.msra.mxu0 0.0
    %2220 = vmatprep.subr.mxu0 0.0
    %2221 = vmatpush1.msra.mxu0 0.0
    %2222 = vmatprep.subr.mxu0 0.0
    %2223 = vmatpush1.msra.mxu0 0.0
    %2224 = vmatprep.subr.mxu0 0.0
    %2225 = vmatpush1.msra.mxu0 0.0
    %2226 = vmatprep.subr.mxu0 0.0
    %2227 = vmatpush1.msra.mxu0 0.0
    %2228 = vmatprep.mubr.f32.mxu0 0.0
    %2229 = vmatmul.mubr.f32.gmra.mrb[0].mxu0 %v2162
    %v2230 = vpop.f32.mrb[0].mxu0
    %v2231 = vadd.f32 0.0, %v2230
    %v2232 = vpop.f32.mrb[0].mxu0
    %2233 = vdwg.mxu0
    %2235 = vrot.lane.b32.xlu0 %v2063, 32
    %v2236 = vpop.permute.xlu0 %2235
    %v2237 = vsel %vm289, %v2236, 0
    %2239 = vmatprep.subr.mxu0 0.0
    %2240 = vmatpush1.msra.mxu0 %v1625
    %2241 = vmatprep.subr.mxu0 0.0
    %2242 = vmatpush1.msra.mxu0 %v1626
    %2243 = vmatprep.subr.mxu0 0.0
    %2244 = vmatpush1.msra.mxu0 %v1627
    %2245 = vmatprep.subr.mxu0 0.0
    %2246 = vmatpush1.msra.mxu0 %v1628
    %2247 = vmatprep.subr.mxu0 0.0
    %2248 = vmatpush1.msra.mxu0 0.0
    %2249 = vmatprep.subr.mxu0 0.0
    %2250 = vmatpush1.msra.mxu0 0.0
    %2251 = vmatprep.subr.mxu0 0.0
    %2252 = vmatpush1.msra.mxu0 0.0
    %2253 = vmatprep.subr.mxu0 0.0
    %2254 = vmatpush1.msra.mxu0 0.0
    %2255 = vmatprep.subr.mxu0 0.0
    %2256 = vmatpush1.msra.mxu0 0.0
    %2257 = vmatprep.subr.mxu0 0.0
    %2258 = vmatpush1.msra.mxu0 0.0
    %2259 = vmatprep.subr.mxu0 0.0
    %2260 = vmatpush1.msra.mxu0 0.0
    %2261 = vmatprep.subr.mxu0 0.0
    %2262 = vmatpush1.msra.mxu0 0.0
    %2263 = vmatprep.subr.mxu0 0.0
    %2264 = vmatpush1.msra.mxu0 0.0
    %2265 = vmatprep.subr.mxu0 0.0
    %2266 = vmatpush1.msra.mxu0 0.0
    %2267 = vmatprep.subr.mxu0 0.0
    %2268 = vmatpush1.msra.mxu0 0.0
    %2269 = vmatprep.subr.mxu0 0.0
    %2270 = vmatpush1.msra.mxu0 0.0
    %2271 = vmatprep.subr.mxu0 0.0
    %2272 = vmatpush1.msra.mxu0 0.0
    %2273 = vmatprep.subr.mxu0 0.0
    %2274 = vmatpush1.msra.mxu0 0.0
    %2275 = vmatprep.subr.mxu0 0.0
    %2276 = vmatpush1.msra.mxu0 0.0
    %2277 = vmatprep.subr.mxu0 0.0
    %2278 = vmatpush1.msra.mxu0 0.0
    %2279 = vmatprep.subr.mxu0 0.0
    %2280 = vmatpush1.msra.mxu0 0.0
    %2281 = vmatprep.subr.mxu0 0.0
    %2282 = vmatpush1.msra.mxu0 0.0
    %2283 = vmatprep.subr.mxu0 0.0
    %2284 = vmatpush1.msra.mxu0 0.0
    %2285 = vmatprep.subr.mxu0 0.0
    %2286 = vmatpush1.msra.mxu0 0.0
    %2287 = vmatprep.subr.mxu0 0.0
    %2288 = vmatpush1.msra.mxu0 0.0
    %2289 = vmatprep.subr.mxu0 0.0
    %2290 = vmatpush1.msra.mxu0 0.0
    %2291 = vmatprep.subr.mxu0 0.0
    %2292 = vmatpush1.msra.mxu0 0.0
    %2293 = vmatprep.subr.mxu0 0.0
    %2294 = vmatpush1.msra.mxu0 0.0
    %2295 = vmatprep.subr.mxu0 0.0
    %2296 = vmatpush1.msra.mxu0 0.0
    %2297 = vmatprep.subr.mxu0 0.0
    %2298 = vmatpush1.msra.mxu0 0.0
    %2299 = vmatprep.subr.mxu0 0.0
    %2300 = vmatpush1.msra.mxu0 0.0
    %2301 = vmatprep.subr.mxu0 0.0
    %2302 = vmatpush1.msra.mxu0 0.0
    %2303 = vmatprep.mubr.f32.mxu0 0.0
    %2304 = vmatmul.mubr.f32.gmra.mrb[0].mxu0 %v2237
    %v2305 = vpop.f32.mrb[0].mxu0
    %v2306 = vadd.f32 %v2231, %v2305
    %v2307 = vpop.f32.mrb[0].mxu0
    %2308 = vdwg.mxu0
    %v2309 = vadd.f32 %v2306, %v1788
    %v2310 = vmax.f32 %v2309, 0.0
    %v2312 = vsel %vm289, %v2310, 0
    %2314 = vmatprep.subr.mxu0 0.0
    %2315 = vmatpush1.msra.mxu0 %v1792
    %2316 = vmatprep.subr.mxu0 0.0
    %2317 = vmatpush1.msra.mxu0 %v1793
    %2318 = vmatprep.subr.mxu0 0.0
    %2319 = vmatpush1.msra.mxu0 %v1794
    %2320 = vmatprep.subr.mxu0 0.0
    %2321 = vmatpush1.msra.mxu0 %v1795
    %2322 = vmatprep.subr.mxu0 0.0
    %2323 = vmatpush1.msra.mxu0 0.0
    %2324 = vmatprep.subr.mxu0 0.0
    %2325 = vmatpush1.msra.mxu0 0.0
    %2326 = vmatprep.subr.mxu0 0.0
    %2327 = vmatpush1.msra.mxu0 0.0
    %2328 = vmatprep.subr.mxu0 0.0
    %2329 = vmatpush1.msra.mxu0 0.0
    %2330 = vmatprep.subr.mxu0 0.0
    %2331 = vmatpush1.msra.mxu0 0.0
    %2332 = vmatprep.subr.mxu0 0.0
    %2333 = vmatpush1.msra.mxu0 0.0
    %2334 = vmatprep.subr.mxu0 0.0
    %2335 = vmatpush1.msra.mxu0 0.0
    %2336 = vmatprep.subr.mxu0 0.0
    %2337 = vmatpush1.msra.mxu0 0.0
    %2338 = vmatprep.subr.mxu0 0.0
    %2339 = vmatpush1.msra.mxu0 0.0
    %2340 = vmatprep.subr.mxu0 0.0
    %2341 = vmatpush1.msra.mxu0 0.0
    %2342 = vmatprep.subr.mxu0 0.0
    %2343 = vmatpush1.msra.mxu0 0.0
    %2344 = vmatprep.subr.mxu0 0.0
    %2345 = vmatpush1.msra.mxu0 0.0
    %2346 = vmatprep.subr.mxu0 0.0
    %2347 = vmatpush1.msra.mxu0 0.0
    %2348 = vmatprep.subr.mxu0 0.0
    %2349 = vmatpush1.msra.mxu0 0.0
    %2350 = vmatprep.subr.mxu0 0.0
    %2351 = vmatpush1.msra.mxu0 0.0
    %2352 = vmatprep.subr.mxu0 0.0
    %2353 = vmatpush1.msra.mxu0 0.0
    %2354 = vmatprep.subr.mxu0 0.0
    %2355 = vmatpush1.msra.mxu0 0.0
    %2356 = vmatprep.subr.mxu0 0.0
    %2357 = vmatpush1.msra.mxu0 0.0
    %2358 = vmatprep.subr.mxu0 0.0
    %2359 = vmatpush1.msra.mxu0 0.0
    %2360 = vmatprep.subr.mxu0 0.0
    %2361 = vmatpush1.msra.mxu0 0.0
    %2362 = vmatprep.subr.mxu0 0.0
    %2363 = vmatpush1.msra.mxu0 0.0
    %2364 = vmatprep.subr.mxu0 0.0
    %2365 = vmatpush1.msra.mxu0 0.0
    %2366 = vmatprep.subr.mxu0 0.0
    %2367 = vmatpush1.msra.mxu0 0.0
    %2368 = vmatprep.subr.mxu0 0.0
    %2369 = vmatpush1.msra.mxu0 0.0
    %2370 = vmatprep.subr.mxu0 0.0
    %2371 = vmatpush1.msra.mxu0 0.0
    %2372 = vmatprep.subr.mxu0 0.0
    %2373 = vmatpush1.msra.mxu0 0.0
    %2374 = vmatprep.subr.mxu0 0.0
    %2375 = vmatpush1.msra.mxu0 0.0
    %2376 = vmatprep.subr.mxu0 0.0
    %2377 = vmatpush1.msra.mxu0 0.0
    %2378 = vmatprep.mubr.f32.mxu0 0.0
    %2379 = vmatmul.mubr.f32.gmra.mrb[0].mxu0 %v2312
    %v2380 = vpop.f32.mrb[0].mxu0
    %v2381 = vadd.f32 0.0, %v2380
    %v2382 = vpop.f32.mrb[0].mxu0
    %2383 = vdwg.mxu0
    %v2384 = vadd.f32 %v651, %v2381
    %2386 = vrot.lane.b32.xlu0 %v1968, 32
    %v2387 = vpop.permute.xlu0 %2386
    %v2388 = vsel %vm289, %v2387, 0
    %2390 = vmatprep.subr.mxu0 0.0
    %2391 = vmatpush1.msra.mxu0 %v1870
    %2392 = vmatprep.subr.mxu0 0.0
    %2393 = vmatpush1.msra.mxu0 %v1871
    %2394 = vmatprep.subr.mxu0 0.0
    %2395 = vmatpush1.msra.mxu0 %v1872
    %2396 = vmatprep.subr.mxu0 0.0
    %2397 = vmatpush1.msra.mxu0 %v1873
    %2398 = vmatprep.subr.mxu0 0.0
    %2399 = vmatpush1.msra.mxu0 0.0
    %2400 = vmatprep.subr.mxu0 0.0
    %2401 = vmatpush1.msra.mxu0 0.0
    %2402 = vmatprep.subr.mxu0 0.0
    %2403 = vmatpush1.msra.mxu0 0.0
    %2404 = vmatprep.subr.mxu0 0.0
    %2405 = vmatpush1.msra.mxu0 0.0
    %2406 = vmatprep.subr.mxu0 0.0
    %2407 = vmatpush1.msra.mxu0 0.0
    %2408 = vmatprep.subr.mxu0 0.0
    %2409 = vmatpush1.msra.mxu0 0.0
    %2410 = vmatprep.subr.mxu0 0.0
    %2411 = vmatpush1.msra.mxu0 0.0
    %2412 = vmatprep.subr.mxu0 0.0
    %2413 = vmatpush1.msra.mxu0 0.0
    %2414 = vmatprep.subr.mxu0 0.0
    %2415 = vmatpush1.msra.mxu0 0.0
    %2416 = vmatprep.subr.mxu0 0.0
    %2417 = vmatpush1.msra.mxu0 0.0
    %2418 = vmatprep.subr.mxu0 0.0
    %2419 = vmatpush1.msra.mxu0 0.0
    %2420 = vmatprep.subr.mxu0 0.0
    %2421 = vmatpush1.msra.mxu0 0.0
    %2422 = vmatprep.subr.mxu0 0.0
    %2423 = vmatpush1.msra.mxu0 0.0
    %2424 = vmatprep.subr.mxu0 0.0
    %2425 = vmatpush1.msra.mxu0 0.0
    %2426 = vmatprep.subr.mxu0 0.0
    %2427 = vmatpush1.msra.mxu0 0.0
    %2428 = vmatprep.subr.mxu0 0.0
    %2429 = vmatpush1.msra.mxu0 0.0
    %2430 = vmatprep.subr.mxu0 0.0
    %2431 = vmatpush1.msra.mxu0 0.0
    %2432 = vmatprep.subr.mxu0 0.0
    %2433 = vmatpush1.msra.mxu0 0.0
    %2434 = vmatprep.subr.mxu0 0.0
    %2435 = vmatpush1.msra.mxu0 0.0
    %2436 = vmatprep.subr.mxu0 0.0
    %2437 = vmatpush1.msra.mxu0 0.0
    %2438 = vmatprep.subr.mxu0 0.0
    %2439 = vmatpush1.msra.mxu0 0.0
    %2440 = vmatprep.subr.mxu0 0.0
    %2441 = vmatpush1.msra.mxu0 0.0
    %2442 = vmatprep.subr.mxu0 0.0
    %2443 = vmatpush1.msra.mxu0 0.0
    %2444 = vmatprep.subr.mxu0 0.0
    %2445 = vmatpush1.msra.mxu0 0.0
    %2446 = vmatprep.subr.mxu0 0.0
    %2447 = vmatpush1.msra.mxu0 0.0
    %2448 = vmatprep.subr.mxu0 0.0
    %2449 = vmatpush1.msra.mxu0 0.0
    %2450 = vmatprep.subr.mxu0 0.0
    %2451 = vmatpush1.msra.mxu0 0.0
    %2452 = vmatprep.subr.mxu0 0.0
    %2453 = vmatpush1.msra.mxu0 0.0
    %2454 = vmatprep.mubr.f32.mxu0 0.0
    %2455 = vmatmul.mubr.f32.gmra.mrb[0].mxu0 %v2388
    %v2456 = vpop.f32.mrb[0].mxu0
    %v2457 = vadd.f32 0.0, %v2456
    %v2458 = vpop.f32.mrb[0].mxu0
    %2459 = vdwg.mxu0
    %v2460 = vadd.f32 %v2384, %v2457
    %v2461 = vxor.u32 %v2460, 2147483648
    %v2462 = vmul.f32 %v2461, 1.442695
    %v2463 = vpow.pop %v2462
    %v2464 = vadd.f32 %v2463, 1.0
    %v2465 = vrcp.pop %v2464
    %v2466 = vmul.f32 1.0, %v2465
    %v2467 = vtanh.pop %v2460
    %v2468 = vmul.f32 %v2466, %v1962
    %2470 = vrot.lane.b32.xlu0 %v2467, 64
    %v2471 = vpop.permute.xlu0 %2470
    %v2473 = vmul.f32 %v2466, %v2471
    %2475 = vrot.lane.b32.xlu0 %v2473, 32
    %v2476 = vpop.permute.xlu0 %2475
    %v2478 = vadd.f32 %v2468, %v2476
    %v2479 = vtanh.pop %v2478
    %2481 = vrot.lane.b32.xlu0 %v2479, 64
    %v2482 = vpop.permute.xlu0 %2481
    %v2484 = vmul.f32 %v2466, %v2482
    %2485 = vmatprep.subr.mxu0 0.0
    %2486 = vmatpush1.msra.mxu0 %v1424
    %2487 = vmatprep.subr.mxu0 0.0
    %2488 = vmatpush1.msra.mxu0 %v1425
    %2489 = vmatprep.subr.mxu0 0.0
    %2490 = vmatpush1.msra.mxu0 %v1426
    %2491 = vmatprep.subr.mxu0 0.0
    %2492 = vmatpush1.msra.mxu0 %v1427
    %2493 = vmatprep.subr.mxu0 0.0
    %2494 = vmatpush1.msra.mxu0 0.0
    %2495 = vmatprep.subr.mxu0 0.0
    %2496 = vmatpush1.msra.mxu0 0.0
    %2497 = vmatprep.subr.mxu0 0.0
    %2498 = vmatpush1.msra.mxu0 0.0
    %2499 = vmatprep.subr.mxu0 0.0
    %2500 = vmatpush1.msra.mxu0 0.0
    %2501 = vmatprep.subr.mxu0 0.0
    %2502 = vmatpush1.msra.mxu0 0.0
    %2503 = vmatprep.subr.mxu0 0.0
    %2504 = vmatpush1.msra.mxu0 0.0
    %2505 = vmatprep.subr.mxu0 0.0
    %2506 = vmatpush1.msra.mxu0 0.0
    %2507 = vmatprep.subr.mxu0 0.0
    %2508 = vmatpush1.msra.mxu0 0.0
    %2509 = vmatprep.subr.mxu0 0.0
    %2510 = vmatpush1.msra.mxu0 0.0
    %2511 = vmatprep.subr.mxu0 0.0
    %2512 = vmatpush1.msra.mxu0 0.0
    %2513 = vmatprep.subr.mxu0 0.0
    %2514 = vmatpush1.msra.mxu0 0.0
    %2515 = vmatprep.subr.mxu0 0.0
    %2516 = vmatpush1.msra.mxu0 0.0
    %2517 = vmatprep.subr.mxu0 0.0
    %2518 = vmatpush1.msra.mxu0 0.0
    %2519 = vmatprep.subr.mxu0 0.0
    %2520 = vmatpush1.msra.mxu0 0.0
    %2521 = vmatprep.subr.mxu0 0.0
    %2522 = vmatpush1.msra.mxu0 0.0
    %2523 = vmatprep.subr.mxu0 0.0
    %2524 = vmatpush1.msra.mxu0 0.0
    %2525 = vmatprep.subr.mxu0 0.0
    %2526 = vmatpush1.msra.mxu0 0.0
    %2527 = vmatprep.subr.mxu0 0.0
    %2528 = vmatpush1.msra.mxu0 0.0
    %2529 = vmatprep.subr.mxu0 0.0
    %2530 = vmatpush1.msra.mxu0 0.0
    %2531 = vmatprep.subr.mxu0 0.0
    %2532 = vmatpush1.msra.mxu0 0.0
    %2533 = vmatprep.subr.mxu0 0.0
    %2534 = vmatpush1.msra.mxu0 0.0
    %2535 = vmatprep.subr.mxu0 0.0
    %2536 = vmatpush1.msra.mxu0 0.0
    %2537 = vmatprep.subr.mxu0 0.0
    %2538 = vmatpush1.msra.mxu0 0.0
    %2539 = vmatprep.subr.mxu0 0.0
    %2540 = vmatpush1.msra.mxu0 0.0
    %2541 = vmatprep.subr.mxu0 0.0
    %2542 = vmatpush1.msra.mxu0 0.0
    %2543 = vmatprep.subr.mxu0 0.0
    %2544 = vmatpush1.msra.mxu0 0.0
    %2545 = vmatprep.subr.mxu0 0.0
    %2546 = vmatpush1.msra.mxu0 0.0
    %2547 = vmatprep.subr.mxu0 0.0
    %2548 = vmatpush1.msra.mxu0 0.0
    %2549 = vmatprep.mubr.f32.mxu0 0.0
    %2550 = vmatmul.mubr.f32.gmra.mrb[0].mxu0 %v2237
    %v2551 = vpop.f32.mrb[0].mxu0
    %v2552 = vadd.f32 0.0, %v2551
    %v2553 = vpop.f32.mrb[0].mxu0
    %2554 = vdwg.mxu0
    %v2555 = vadd.f32 %v388, %v2552
    %v2556 = vxor.u32 %v2555, 2147483648
    %v2557 = vmul.f32 %v2556, 1.442695
    %v2558 = vpow.pop %v2557
    %v2559 = vadd.f32 %v2558, 1.0
    %v2560 = vrcp.pop %v2559
    %v2561 = vmul.f32 1.0, %v2560
    %v2562 = vtanh.pop %v2555
    %v2563 = vmul.f32 %v2561, %v2057
    %2565 = vrot.lane.b32.xlu0 %v2562, 64
    %v2566 = vpop.permute.xlu0 %2565
    %v2568 = vmul.f32 %v2561, %v2566
    %2570 = vrot.lane.b32.xlu0 %v2568, 32
    %v2571 = vpop.permute.xlu0 %2570
    %v2573 = vadd.f32 %v2563, %v2571
    %v2574 = vtanh.pop %v2573
    %2576 = vrot.lane.b32.xlu0 %v2574, 64
    %v2577 = vpop.permute.xlu0 %2576
    %v2579 = vmul.f32 %v2561, %v2577
    %2580 = vmatprep.subr.mxu0 0.0
    %2581 = vmatpush1.msra.mxu0 %v1526
    %2582 = vmatprep.subr.mxu0 0.0
    %2583 = vmatpush1.msra.mxu0 %v1527
    %2584 = vmatprep.subr.mxu0 0.0
    %2585 = vmatpush1.msra.mxu0 %v1528
    %2586 = vmatprep.subr.mxu0 0.0
    %2587 = vmatpush1.msra.mxu0 %v1529
    %2588 = vmatprep.subr.mxu0 0.0
    %2589 = vmatpush1.msra.mxu0 0.0
    %2590 = vmatprep.subr.mxu0 0.0
    %2591 = vmatpush1.msra.mxu0 0.0
    %2592 = vmatprep.subr.mxu0 0.0
    %2593 = vmatpush1.msra.mxu0 0.0
    %2594 = vmatprep.subr.mxu0 0.0
    %2595 = vmatpush1.msra.mxu0 0.0
    %2596 = vmatprep.subr.mxu0 0.0
    %2597 = vmatpush1.msra.mxu0 0.0
    %2598 = vmatprep.subr.mxu0 0.0
    %2599 = vmatpush1.msra.mxu0 0.0
    %2600 = vmatprep.subr.mxu0 0.0
    %2601 = vmatpush1.msra.mxu0 0.0
    %2602 = vmatprep.subr.mxu0 0.0
    %2603 = vmatpush1.msra.mxu0 0.0
    %2604 = vmatprep.subr.mxu0 0.0
    %2605 = vmatpush1.msra.mxu0 0.0
    %2606 = vmatprep.subr.mxu0 0.0
    %2607 = vmatpush1.msra.mxu0 0.0
    %2608 = vmatprep.subr.mxu0 0.0
    %2609 = vmatpush1.msra.mxu0 0.0
    %2610 = vmatprep.subr.mxu0 0.0
    %2611 = vmatpush1.msra.mxu0 0.0
    %2612 = vmatprep.subr.mxu0 0.0
    %2613 = vmatpush1.msra.mxu0 0.0
    %2614 = vmatprep.subr.mxu0 0.0
    %2615 = vmatpush1.msra.mxu0 0.0
    %2616 = vmatprep.subr.mxu0 0.0
    %2617 = vmatpush1.msra.mxu0 0.0
    %2618 = vmatprep.subr.mxu0 0.0
    %2619 = vmatpush1.msra.mxu0 0.0
    %2620 = vmatprep.subr.mxu0 0.0
    %2621 = vmatpush1.msra.mxu0 0.0
    %2622 = vmatprep.subr.mxu0 0.0
    %2623 = vmatpush1.msra.mxu0 0.0
    %2624 = vmatprep.subr.mxu0 0.0
    %2625 = vmatpush1.msra.mxu0 0.0
    %2626 = vmatprep.subr.mxu0 0.0
    %2627 = vmatpush1.msra.mxu0 0.0
    %2628 = vmatprep.subr.mxu0 0.0
    %2629 = vmatpush1.msra.mxu0 0.0
    %2630 = vmatprep.subr.mxu0 0.0
    %2631 = vmatpush1.msra.mxu0 0.0
    %2632 = vmatprep.subr.mxu0 0.0
    %2633 = vmatpush1.msra.mxu0 0.0
    %2634 = vmatprep.subr.mxu0 0.0
    %2635 = vmatpush1.msra.mxu0 0.0
    %2636 = vmatprep.subr.mxu0 0.0
    %2637 = vmatpush1.msra.mxu0 0.0
    %2638 = vmatprep.subr.mxu0 0.0
    %2639 = vmatpush1.msra.mxu0 0.0
    %2640 = vmatprep.subr.mxu0 0.0
    %2641 = vmatpush1.msra.mxu0 0.0
    %2642 = vmatprep.subr.mxu0 0.0
    %2643 = vmatpush1.msra.mxu0 0.0
    %2644 = vmatprep.mubr.f32.mxu0 0.0
    %2645 = vmatmul.mubr.f32.gmra.mrb[0].mxu0 %v2162
    %v2646 = vpop.f32.mrb[0].mxu0
    %v2647 = vadd.f32 0.0, %v2646
    %v2648 = vpop.f32.mrb[0].mxu0
    %2649 = vdwg.mxu0
    %v2650 = vadd.f32 %v1401, %v2647
    %v2651 = vxor.u32 %v2650, 2147483648
    %v2652 = vmul.f32 %v2651, 1.442695
    %v2653 = vpow.pop %v2652
    %v2654 = vadd.f32 %v2653, 1.0
    %v2655 = vrcp.pop %v2654
    %v2656 = vmul.f32 1.0, %v2655
    %v2657 = vtanh.pop %v2650
    %v2658 = vmul.f32 %v2656, %v2152
    %2660 = vrot.lane.b32.xlu0 %v2657, 64
    %v2661 = vpop.permute.xlu0 %2660
    %v2663 = vmul.f32 %v2656, %v2661
    %2665 = vrot.lane.b32.xlu0 %v2663, 32
    %v2666 = vpop.permute.xlu0 %2665
    %v2668 = vadd.f32 %v2658, %v2666
    %v2669 = vtanh.pop %v2668
    %2671 = vrot.lane.b32.xlu0 %v2669, 64
    %v2672 = vpop.permute.xlu0 %2671
    %v2674 = vmul.f32 %v2656, %v2672
    %2676 = vrot.lane.b32.xlu0 %v2674, 32
    %v2677 = vpop.permute.xlu0 %2676
    %v2678 = vsel %vm289, %v2677, 0
    %2680 = vmatprep.subr.mxu0 0.0
    %2681 = vmatpush1.msra.mxu0 %v1629
    %2682 = vmatprep.subr.mxu0 0.0
    %2683 = vmatpush1.msra.mxu0 %v1630
    %2684 = vmatprep.subr.mxu0 0.0
    %2685 = vmatpush1.msra.mxu0 %v1631
    %2686 = vmatprep.subr.mxu0 0.0
    %2687 = vmatpush1.msra.mxu0 %v1632
    %2688 = vmatprep.subr.mxu0 0.0
    %2689 = vmatpush1.msra.mxu0 0.0
    %2690 = vmatprep.subr.mxu0 0.0
    %2691 = vmatpush1.msra.mxu0 0.0
    %2692 = vmatprep.subr.mxu0 0.0
    %2693 = vmatpush1.msra.mxu0 0.0
    %2694 = vmatprep.subr.mxu0 0.0
    %2695 = vmatpush1.msra.mxu0 0.0
    %2696 = vmatprep.subr.mxu0 0.0
    %2697 = vmatpush1.msra.mxu0 0.0
    %2698 = vmatprep.subr.mxu0 0.0
    %2699 = vmatpush1.msra.mxu0 0.0
    %2700 = vmatprep.subr.mxu0 0.0
    %2701 = vmatpush1.msra.mxu0 0.0
    %2702 = vmatprep.subr.mxu0 0.0
    %2703 = vmatpush1.msra.mxu0 0.0
    %2704 = vmatprep.subr.mxu0 0.0
    %2705 = vmatpush1.msra.mxu0 0.0
    %2706 = vmatprep.subr.mxu0 0.0
    %2707 = vmatpush1.msra.mxu0 0.0
    %2708 = vmatprep.subr.mxu0 0.0
    %2709 = vmatpush1.msra.mxu0 0.0
    %2710 = vmatprep.subr.mxu0 0.0
    %2711 = vmatpush1.msra.mxu0 0.0
    %2712 = vmatprep.subr.mxu0 0.0
    %2713 = vmatpush1.msra.mxu0 0.0
    %2714 = vmatprep.subr.mxu0 0.0
    %2715 = vmatpush1.msra.mxu0 0.0
    %2716 = vmatprep.subr.mxu0 0.0
    %2717 = vmatpush1.msra.mxu0 0.0
    %2718 = vmatprep.subr.mxu0 0.0
    %2719 = vmatpush1.msra.mxu0 0.0
    %2720 = vmatprep.subr.mxu0 0.0
    %2721 = vmatpush1.msra.mxu0 0.0
    %2722 = vmatprep.subr.mxu0 0.0
    %2723 = vmatpush1.msra.mxu0 0.0
    %2724 = vmatprep.subr.mxu0 0.0
    %2725 = vmatpush1.msra.mxu0 0.0
    %2726 = vmatprep.subr.mxu0 0.0
    %2727 = vmatpush1.msra.mxu0 0.0
    %2728 = vmatprep.subr.mxu0 0.0
    %2729 = vmatpush1.msra.mxu0 0.0
    %2730 = vmatprep.subr.mxu0 0.0
    %2731 = vmatpush1.msra.mxu0 0.0
    %2732 = vmatprep.subr.mxu0 0.0
    %2733 = vmatpush1.msra.mxu0 0.0
    %2734 = vmatprep.subr.mxu0 0.0
    %2735 = vmatpush1.msra.mxu0 0.0
    %2736 = vmatprep.subr.mxu0 0.0
    %2737 = vmatpush1.msra.mxu0 0.0
    %2738 = vmatprep.subr.mxu0 0.0
    %2739 = vmatpush1.msra.mxu0 0.0
    %2740 = vmatprep.subr.mxu0 0.0
    %2741 = vmatpush1.msra.mxu0 0.0
    %2742 = vmatprep.subr.mxu0 0.0
    %2743 = vmatpush1.msra.mxu0 0.0
    %2744 = vmatprep.mubr.f32.mxu0 0.0
    %2745 = vmatmul.mubr.f32.gmra.mrb[0].mxu0 %v2678
    %v2746 = vpop.f32.mrb[0].mxu0
    %v2747 = vadd.f32 0.0, %v2746
    %v2748 = vpop.f32.mrb[0].mxu0
    %2749 = vdwg.mxu0
    %2751 = vrot.lane.b32.xlu0 %v2579, 32
    %v2752 = vpop.permute.xlu0 %2751
    %v2753 = vsel %vm289, %v2752, 0
    %2755 = vmatprep.subr.mxu0 0.0
    %2756 = vmatpush1.msra.mxu0 %v1625
    %2757 = vmatprep.subr.mxu0 0.0
    %2758 = vmatpush1.msra.mxu0 %v1626
    %2759 = vmatprep.subr.mxu0 0.0
    %2760 = vmatpush1.msra.mxu0 %v1627
    %2761 = vmatprep.subr.mxu0 0.0
    %2762 = vmatpush1.msra.mxu0 %v1628
    %2763 = vmatprep.subr.mxu0 0.0
    %2764 = vmatpush1.msra.mxu0 0.0
    %2765 = vmatprep.subr.mxu0 0.0
    %2766 = vmatpush1.msra.mxu0 0.0
    %2767 = vmatprep.subr.mxu0 0.0
    %2768 = vmatpush1.msra.mxu0 0.0
    %2769 = vmatprep.subr.mxu0 0.0
    %2770 = vmatpush1.msra.mxu0 0.0
    %2771 = vmatprep.subr.mxu0 0.0
    %2772 = vmatpush1.msra.mxu0 0.0
    %2773 = vmatprep.subr.mxu0 0.0
    %2774 = vmatpush1.msra.mxu0 0.0
    %2775 = vmatprep.subr.mxu0 0.0
    %2776 = vmatpush1.msra.mxu0 0.0
    %2777 = vmatprep.subr.mxu0 0.0
    %2778 = vmatpush1.msra.mxu0 0.0
    %2779 = vmatprep.subr.mxu0 0.0
    %2780 = vmatpush1.msra.mxu0 0.0
    %2781 = vmatprep.subr.mxu0 0.0
    %2782 = vmatpush1.msra.mxu0 0.0
    %2783 = vmatprep.subr.mxu0 0.0
    %2784 = vmatpush1.msra.mxu0 0.0
    %2785 = vmatprep.subr.mxu0 0.0
    %2786 = vmatpush1.msra.mxu0 0.0
    %2787 = vmatprep.subr.mxu0 0.0
    %2788 = vmatpush1.msra.mxu0 0.0
    %2789 = vmatprep.subr.mxu0 0.0
    %2790 = vmatpush1.msra.mxu0 0.0
    %2791 = vmatprep.subr.mxu0 0.0
    %2792 = vmatpush1.msra.mxu0 0.0
    %2793 = vmatprep.subr.mxu0 0.0
    %2794 = vmatpush1.msra.mxu0 0.0
    %2795 = vmatprep.subr.mxu0 0.0
    %2796 = vmatpush1.msra.mxu0 0.0
    %2797 = vmatprep.subr.mxu0 0.0
    %2798 = vmatpush1.msra.mxu0 0.0
    %2799 = vmatprep.subr.mxu0 0.0
    %2800 = vmatpush1.msra.mxu0 0.0
    %2801 = vmatprep.subr.mxu0 0.0
    %2802 = vmatpush1.msra.mxu0 0.0
    %2803 = vmatprep.subr.mxu0 0.0
    %2804 = vmatpush1.msra.mxu0 0.0
    %2805 = vmatprep.subr.mxu0 0.0
    %2806 = vmatpush1.msra.mxu0 0.0
    %2807 = vmatprep.subr.mxu0 0.0
    %2808 = vmatpush1.msra.mxu0 0.0
    %2809 = vmatprep.subr.mxu0 0.0
    %2810 = vmatpush1.msra.mxu0 0.0
    %2811 = vmatprep.subr.mxu0 0.0
    %2812 = vmatpush1.msra.mxu0 0.0
    %2813 = vmatprep.subr.mxu0 0.0
    %2814 = vmatpush1.msra.mxu0 0.0
    %2815 = vmatprep.subr.mxu0 0.0
    %2816 = vmatpush1.msra.mxu0 0.0
    %2817 = vmatprep.subr.mxu0 0.0
    %2818 = vmatpush1.msra.mxu0 0.0
    %2819 = vmatprep.mubr.f32.mxu0 0.0
    %2820 = vmatmul.mubr.f32.gmra.mrb[0].mxu0 %v2753
    %v2821 = vpop.f32.mrb[0].mxu0
    %v2822 = vadd.f32 %v2747, %v2821
    %v2823 = vpop.f32.mrb[0].mxu0
    %2824 = vdwg.mxu0
    %v2825 = vadd.f32 %v2822, %v1788
    %v2826 = vmax.f32 %v2825, 0.0
    %v2828 = vsel %vm289, %v2826, 0
    %2830 = vmatprep.subr.mxu0 0.0
    %2831 = vmatpush1.msra.mxu0 %v1792
    %2832 = vmatprep.subr.mxu0 0.0
    %2833 = vmatpush1.msra.mxu0 %v1793
    %2834 = vmatprep.subr.mxu0 0.0
    %2835 = vmatpush1.msra.mxu0 %v1794
    %2836 = vmatprep.subr.mxu0 0.0
    %2837 = vmatpush1.msra.mxu0 %v1795
    %2838 = vmatprep.subr.mxu0 0.0
    %2839 = vmatpush1.msra.mxu0 0.0
    %2840 = vmatprep.subr.mxu0 0.0
    %2841 = vmatpush1.msra.mxu0 0.0
    %2842 = vmatprep.subr.mxu0 0.0
    %2843 = vmatpush1.msra.mxu0 0.0
    %2844 = vmatprep.subr.mxu0 0.0
    %2845 = vmatpush1.msra.mxu0 0.0
    %2846 = vmatprep.subr.mxu0 0.0
    %2847 = vmatpush1.msra.mxu0 0.0
    %2848 = vmatprep.subr.mxu0 0.0
    %2849 = vmatpush1.msra.mxu0 0.0
    %2850 = vmatprep.subr.mxu0 0.0
    %2851 = vmatpush1.msra.mxu0 0.0
    %2852 = vmatprep.subr.mxu0 0.0
    %2853 = vmatpush1.msra.mxu0 0.0
    %2854 = vmatprep.subr.mxu0 0.0
    %2855 = vmatpush1.msra.mxu0 0.0
    %2856 = vmatprep.subr.mxu0 0.0
    %2857 = vmatpush1.msra.mxu0 0.0
    %2858 = vmatprep.subr.mxu0 0.0
    %2859 = vmatpush1.msra.mxu0 0.0
    %2860 = vmatprep.subr.mxu0 0.0
    %2861 = vmatpush1.msra.mxu0 0.0
    %2862 = vmatprep.subr.mxu0 0.0
    %2863 = vmatpush1.msra.mxu0 0.0
    %2864 = vmatprep.subr.mxu0 0.0
    %2865 = vmatpush1.msra.mxu0 0.0
    %2866 = vmatprep.subr.mxu0 0.0
    %2867 = vmatpush1.msra.mxu0 0.0
    %2868 = vmatprep.subr.mxu0 0.0
    %2869 = vmatpush1.msra.mxu0 0.0
    %2870 = vmatprep.subr.mxu0 0.0
    %2871 = vmatpush1.msra.mxu0 0.0
    %2872 = vmatprep.subr.mxu0 0.0
    %2873 = vmatpush1.msra.mxu0 0.0
    %2874 = vmatprep.subr.mxu0 0.0
    %2875 = vmatpush1.msra.mxu0 0.0
    %2876 = vmatprep.subr.mxu0 0.0
    %2877 = vmatpush1.msra.mxu0 0.0
    %2878 = vmatprep.subr.mxu0 0.0
    %2879 = vmatpush1.msra.mxu0 0.0
    %2880 = vmatprep.subr.mxu0 0.0
    %2881 = vmatpush1.msra.mxu0 0.0
    %2882 = vmatprep.subr.mxu0 0.0
    %2883 = vmatpush1.msra.mxu0 0.0
    %2884 = vmatprep.subr.mxu0 0.0
    %2885 = vmatpush1.msra.mxu0 0.0
    %2886 = vmatprep.subr.mxu0 0.0
    %2887 = vmatpush1.msra.mxu0 0.0
    %2888 = vmatprep.subr.mxu0 0.0
    %2889 = vmatpush1.msra.mxu0 0.0
    %2890 = vmatprep.subr.mxu0 0.0
    %2891 = vmatpush1.msra.mxu0 0.0
    %2892 = vmatprep.subr.mxu0 0.0
    %2893 = vmatpush1.msra.mxu0 0.0
    %2894 = vmatprep.mubr.f32.mxu0 0.0
    %2895 = vmatmul.mubr.f32.gmra.mrb[0].mxu0 %v2828
    %v2896 = vpop.f32.mrb[0].mxu0
    %v2897 = vadd.f32 0.0, %v2896
    %v2898 = vpop.f32.mrb[0].mxu0
    %2899 = vdwg.mxu0
    %v2900 = vadd.f32 %v656, %v2897
    %2902 = vrot.lane.b32.xlu0 %v2484, 32
    %v2903 = vpop.permute.xlu0 %2902
    %v2904 = vsel %vm289, %v2903, 0
    %2906 = vmatprep.subr.mxu0 0.0
    %2907 = vmatpush1.msra.mxu0 %v1870
    %2908 = vmatprep.subr.mxu0 0.0
    %2909 = vmatpush1.msra.mxu0 %v1871
    %2910 = vmatprep.subr.mxu0 0.0
    %2911 = vmatpush1.msra.mxu0 %v1872
    %2912 = vmatprep.subr.mxu0 0.0
    %2913 = vmatpush1.msra.mxu0 %v1873
    %2914 = vmatprep.subr.mxu0 0.0
    %2915 = vmatpush1.msra.mxu0 0.0
    %2916 = vmatprep.subr.mxu0 0.0
    %2917 = vmatpush1.msra.mxu0 0.0
    %2918 = vmatprep.subr.mxu0 0.0
    %2919 = vmatpush1.msra.mxu0 0.0
    %2920 = vmatprep.subr.mxu0 0.0
    %2921 = vmatpush1.msra.mxu0 0.0
    %2922 = vmatprep.subr.mxu0 0.0
    %2923 = vmatpush1.msra.mxu0 0.0
    %2924 = vmatprep.subr.mxu0 0.0
    %2925 = vmatpush1.msra.mxu0 0.0
    %2926 = vmatprep.subr.mxu0 0.0
    %2927 = vmatpush1.msra.mxu0 0.0
    %2928 = vmatprep.subr.mxu0 0.0
    %2929 = vmatpush1.msra.mxu0 0.0
    %2930 = vmatprep.subr.mxu0 0.0
    %2931 = vmatpush1.msra.mxu0 0.0
    %2932 = vmatprep.subr.mxu0 0.0
    %2933 = vmatpush1.msra.mxu0 0.0
    %2934 = vmatprep.subr.mxu0 0.0
    %2935 = vmatpush1.msra.mxu0 0.0
    %2936 = vmatprep.subr.mxu0 0.0
    %2937 = vmatpush1.msra.mxu0 0.0
    %2938 = vmatprep.subr.mxu0 0.0
    %2939 = vmatpush1.msra.mxu0 0.0
    %2940 = vmatprep.subr.mxu0 0.0
    %2941 = vmatpush1.msra.mxu0 0.0
    %2942 = vmatprep.subr.mxu0 0.0
    %2943 = vmatpush1.msra.mxu0 0.0
    %2944 = vmatprep.subr.mxu0 0.0
    %2945 = vmatpush1.msra.mxu0 0.0
    %2946 = vmatprep.subr.mxu0 0.0
    %2947 = vmatpush1.msra.mxu0 0.0
    %2948 = vmatprep.subr.mxu0 0.0
    %2949 = vmatpush1.msra.mxu0 0.0
    %2950 = vmatprep.subr.mxu0 0.0
    %2951 = vmatpush1.msra.mxu0 0.0
    %2952 = vmatprep.subr.mxu0 0.0
    %2953 = vmatpush1.msra.mxu0 0.0
    %2954 = vmatprep.subr.mxu0 0.0
    %2955 = vmatpush1.msra.mxu0 0.0
    %2956 = vmatprep.subr.mxu0 0.0
    %2957 = vmatpush1.msra.mxu0 0.0
    %2958 = vmatprep.subr.mxu0 0.0
    %2959 = vmatpush1.msra.mxu0 0.0
    %2960 = vmatprep.subr.mxu0 0.0
    %2961 = vmatpush1.msra.mxu0 0.0
    %2962 = vmatprep.subr.mxu0 0.0
    %2963 = vmatpush1.msra.mxu0 0.0
    %2964 = vmatprep.subr.mxu0 0.0
    %2965 = vmatpush1.msra.mxu0 0.0
    %2966 = vmatprep.subr.mxu0 0.0
    %2967 = vmatpush1.msra.mxu0 0.0
    %2968 = vmatprep.subr.mxu0 0.0
    %2969 = vmatpush1.msra.mxu0 0.0
    %2970 = vmatprep.mubr.f32.mxu0 0.0
    %2971 = vmatmul.mubr.f32.gmra.mrb[0].mxu0 %v2904
    %v2972 = vpop.f32.mrb[0].mxu0
    %v2973 = vadd.f32 0.0, %v2972
    %v2974 = vpop.f32.mrb[0].mxu0
    %2975 = vdwg.mxu0
    %v2976 = vadd.f32 %v2900, %v2973
    %v2977 = vxor.u32 %v2976, 2147483648
    %v2978 = vmul.f32 %v2977, 1.442695
    %v2979 = vpow.pop %v2978
    %v2980 = vadd.f32 %v2979, 1.0
    %v2981 = vrcp.pop %v2980
    %v2982 = vmul.f32 1.0, %v2981
    %v2983 = vtanh.pop %v2976
    %v2984 = vmul.f32 %v2982, %v2478
    %2986 = vrot.lane.b32.xlu0 %v2983, 64
    %v2987 = vpop.permute.xlu0 %2986
    %v2989 = vmul.f32 %v2982, %v2987
    %2991 = vrot.lane.b32.xlu0 %v2989, 32
    %v2992 = vpop.permute.xlu0 %2991
    %v2994 = vadd.f32 %v2984, %v2992
    %v2995 = vtanh.pop %v2994
    %2997 = vrot.lane.b32.xlu0 %v2995, 64
    %v2998 = vpop.permute.xlu0 %2997
    %v3000 = vmul.f32 %v2982, %v2998
    %3001 = vmatprep.subr.mxu0 0.0
    %3002 = vmatpush1.msra.mxu0 %v1424
    %3003 = vmatprep.subr.mxu0 0.0
    %3004 = vmatpush1.msra.mxu0 %v1425
    %3005 = vmatprep.subr.mxu0 0.0
    %3006 = vmatpush1.msra.mxu0 %v1426
    %3007 = vmatprep.subr.mxu0 0.0
    %3008 = vmatpush1.msra.mxu0 %v1427
    %3009 = vmatprep.subr.mxu0 0.0
    %3010 = vmatpush1.msra.mxu0 0.0
    %3011 = vmatprep.subr.mxu0 0.0
    %3012 = vmatpush1.msra.mxu0 0.0
    %3013 = vmatprep.subr.mxu0 0.0
    %3014 = vmatpush1.msra.mxu0 0.0
    %3015 = vmatprep.subr.mxu0 0.0
    %3016 = vmatpush1.msra.mxu0 0.0
    %3017 = vmatprep.subr.mxu0 0.0
    %3018 = vmatpush1.msra.mxu0 0.0
    %3019 = vmatprep.subr.mxu0 0.0
    %3020 = vmatpush1.msra.mxu0 0.0
    %3021 = vmatprep.subr.mxu0 0.0
    %3022 = vmatpush1.msra.mxu0 0.0
    %3023 = vmatprep.subr.mxu0 0.0
    %3024 = vmatpush1.msra.mxu0 0.0
    %3025 = vmatprep.subr.mxu0 0.0
    %3026 = vmatpush1.msra.mxu0 0.0
    %3027 = vmatprep.subr.mxu0 0.0
    %3028 = vmatpush1.msra.mxu0 0.0
    %3029 = vmatprep.subr.mxu0 0.0
    %3030 = vmatpush1.msra.mxu0 0.0
    %3031 = vmatprep.subr.mxu0 0.0
    %3032 = vmatpush1.msra.mxu0 0.0
    %3033 = vmatprep.subr.mxu0 0.0
    %3034 = vmatpush1.msra.mxu0 0.0
    %3035 = vmatprep.subr.mxu0 0.0
    %3036 = vmatpush1.msra.mxu0 0.0
    %3037 = vmatprep.subr.mxu0 0.0
    %3038 = vmatpush1.msra.mxu0 0.0
    %3039 = vmatprep.subr.mxu0 0.0
    %3040 = vmatpush1.msra.mxu0 0.0
    %3041 = vmatprep.subr.mxu0 0.0
    %3042 = vmatpush1.msra.mxu0 0.0
    %3043 = vmatprep.subr.mxu0 0.0
    %3044 = vmatpush1.msra.mxu0 0.0
    %3045 = vmatprep.subr.mxu0 0.0
    %3046 = vmatpush1.msra.mxu0 0.0
    %3047 = vmatprep.subr.mxu0 0.0
    %3048 = vmatpush1.msra.mxu0 0.0
    %3049 = vmatprep.subr.mxu0 0.0
    %3050 = vmatpush1.msra.mxu0 0.0
    %3051 = vmatprep.subr.mxu0 0.0
    %3052 = vmatpush1.msra.mxu0 0.0
    %3053 = vmatprep.subr.mxu0 0.0
    %3054 = vmatpush1.msra.mxu0 0.0
    %3055 = vmatprep.subr.mxu0 0.0
    %3056 = vmatpush1.msra.mxu0 0.0
    %3057 = vmatprep.subr.mxu0 0.0
    %3058 = vmatpush1.msra.mxu0 0.0
    %3059 = vmatprep.subr.mxu0 0.0
    %3060 = vmatpush1.msra.mxu0 0.0
    %3061 = vmatprep.subr.mxu0 0.0
    %3062 = vmatpush1.msra.mxu0 0.0
    %3063 = vmatprep.subr.mxu0 0.0
    %3064 = vmatpush1.msra.mxu0 0.0
    %3065 = vmatprep.mubr.f32.mxu0 0.0
    %3066 = vmatmul.mubr.f32.gmra.mrb[0].mxu0 %v2753
    %v3067 = vpop.f32.mrb[0].mxu0
    %v3068 = vadd.f32 0.0, %v3067
    %v3069 = vpop.f32.mrb[0].mxu0
    %3070 = vdwg.mxu0
    %v3071 = vadd.f32 %v393, %v3068
    %v3072 = vxor.u32 %v3071, 2147483648
    %v3073 = vmul.f32 %v3072, 1.442695
    %v3074 = vpow.pop %v3073
    %v3075 = vadd.f32 %v3074, 1.0
    %v3076 = vrcp.pop %v3075
    %v3077 = vmul.f32 1.0, %v3076
    %v3078 = vtanh.pop %v3071
    %v3079 = vmul.f32 %v3077, %v2573
    %3081 = vrot.lane.b32.xlu0 %v3078, 64
    %v3082 = vpop.permute.xlu0 %3081
    %v3084 = vmul.f32 %v3077, %v3082
    %3086 = vrot.lane.b32.xlu0 %v3084, 32
    %v3087 = vpop.permute.xlu0 %3086
    %v3089 = vadd.f32 %v3079, %v3087
    %v3090 = vtanh.pop %v3089
    %3092 = vrot.lane.b32.xlu0 %v3090, 64
    %v3093 = vpop.permute.xlu0 %3092
    %v3095 = vmul.f32 %v3077, %v3093
    %3096 = vmatprep.subr.mxu0 0.0
    %3097 = vmatpush1.msra.mxu0 %v1526
    %3098 = vmatprep.subr.mxu0 0.0
    %3099 = vmatpush1.msra.mxu0 %v1527
    %3100 = vmatprep.subr.mxu0 0.0
    %3101 = vmatpush1.msra.mxu0 %v1528
    %3102 = vmatprep.subr.mxu0 0.0
    %3103 = vmatpush1.msra.mxu0 %v1529
    %3104 = vmatprep.subr.mxu0 0.0
    %3105 = vmatpush1.msra.mxu0 0.0
    %3106 = vmatprep.subr.mxu0 0.0
    %3107 = vmatpush1.msra.mxu0 0.0
    %3108 = vmatprep.subr.mxu0 0.0
    %3109 = vmatpush1.msra.mxu0 0.0
    %3110 = vmatprep.subr.mxu0 0.0
    %3111 = vmatpush1.msra.mxu0 0.0
    %3112 = vmatprep.subr.mxu0 0.0
    %3113 = vmatpush1.msra.mxu0 0.0
    %3114 = vmatprep.subr.mxu0 0.0
    %3115 = vmatpush1.msra.mxu0 0.0
    %3116 = vmatprep.subr.mxu0 0.0
    %3117 = vmatpush1.msra.mxu0 0.0
    %3118 = vmatprep.subr.mxu0 0.0
    %3119 = vmatpush1.msra.mxu0 0.0
    %3120 = vmatprep.subr.mxu0 0.0
    %3121 = vmatpush1.msra.mxu0 0.0
    %3122 = vmatprep.subr.mxu0 0.0
    %3123 = vmatpush1.msra.mxu0 0.0
    %3124 = vmatprep.subr.mxu0 0.0
    %3125 = vmatpush1.msra.mxu0 0.0
    %3126 = vmatprep.subr.mxu0 0.0
    %3127 = vmatpush1.msra.mxu0 0.0
    %3128 = vmatprep.subr.mxu0 0.0
    %3129 = vmatpush1.msra.mxu0 0.0
    %3130 = vmatprep.subr.mxu0 0.0
    %3131 = vmatpush1.msra.mxu0 0.0
    %3132 = vmatprep.subr.mxu0 0.0
    %3133 = vmatpush1.msra.mxu0 0.0
    %3134 = vmatprep.subr.mxu0 0.0
    %3135 = vmatpush1.msra.mxu0 0.0
    %3136 = vmatprep.subr.mxu0 0.0
    %3137 = vmatpush1.msra.mxu0 0.0
    %3138 = vmatprep.subr.mxu0 0.0
    %3139 = vmatpush1.msra.mxu0 0.0
    %3140 = vmatprep.subr.mxu0 0.0
    %3141 = vmatpush1.msra.mxu0 0.0
    %3142 = vmatprep.subr.mxu0 0.0
    %3143 = vmatpush1.msra.mxu0 0.0
    %3144 = vmatprep.subr.mxu0 0.0
    %3145 = vmatpush1.msra.mxu0 0.0
    %3146 = vmatprep.subr.mxu0 0.0
    %3147 = vmatpush1.msra.mxu0 0.0
    %3148 = vmatprep.subr.mxu0 0.0
    %3149 = vmatpush1.msra.mxu0 0.0
    %3150 = vmatprep.subr.mxu0 0.0
    %3151 = vmatpush1.msra.mxu0 0.0
    %3152 = vmatprep.subr.mxu0 0.0
    %3153 = vmatpush1.msra.mxu0 0.0
    %3154 = vmatprep.subr.mxu0 0.0
    %3155 = vmatpush1.msra.mxu0 0.0
    %3156 = vmatprep.subr.mxu0 0.0
    %3157 = vmatpush1.msra.mxu0 0.0
    %3158 = vmatprep.subr.mxu0 0.0
    %3159 = vmatpush1.msra.mxu0 0.0
    %3160 = vmatprep.mubr.f32.mxu0 0.0
    %3161 = vmatmul.mubr.f32.gmra.mrb[0].mxu0 %v2678
    %v3162 = vpop.f32.mrb[0].mxu0
    %v3163 = vadd.f32 0.0, %v3162
    %v3164 = vpop.f32.mrb[0].mxu0
    %3165 = vdwg.mxu0
    %v3166 = vadd.f32 %v1406, %v3163
    %v3167 = vxor.u32 %v3166, 2147483648
    %v3168 = vmul.f32 %v3167, 1.442695
    %v3169 = vpow.pop %v3168
    %v3170 = vadd.f32 %v3169, 1.0
    %v3171 = vrcp.pop %v3170
    %v3172 = vmul.f32 1.0, %v3171
    %v3173 = vtanh.pop %v3166
    %v3174 = vmul.f32 %v3172, %v2668
    %3176 = vrot.lane.b32.xlu0 %v3173, 64
    %v3177 = vpop.permute.xlu0 %3176
    %v3179 = vmul.f32 %v3172, %v3177
    %3181 = vrot.lane.b32.xlu0 %v3179, 32
    %v3182 = vpop.permute.xlu0 %3181
    %v3184 = vadd.f32 %v3174, %v3182
    %v3185 = vtanh.pop %v3184
    %3187 = vrot.lane.b32.xlu0 %v3185, 64
    %v3188 = vpop.permute.xlu0 %3187
    %v3190 = vmul.f32 %v3172, %v3188
    %3192 = vrot.lane.b32.xlu0 %v3190, 32
    %v3193 = vpop.permute.xlu0 %3192
    %v3194 = vsel %vm289, %v3193, 0
    %3196 = vmatprep.subr.mxu0 0.0
    %3197 = vmatpush1.msra.mxu0 %v1629
    %3198 = vmatprep.subr.mxu0 0.0
    %3199 = vmatpush1.msra.mxu0 %v1630
    %3200 = vmatprep.subr.mxu0 0.0
    %3201 = vmatpush1.msra.mxu0 %v1631
    %3202 = vmatprep.subr.mxu0 0.0
    %3203 = vmatpush1.msra.mxu0 %v1632
    %3204 = vmatprep.subr.mxu0 0.0
    %3205 = vmatpush1.msra.mxu0 0.0
    %3206 = vmatprep.subr.mxu0 0.0
    %3207 = vmatpush1.msra.mxu0 0.0
    %3208 = vmatprep.subr.mxu0 0.0
    %3209 = vmatpush1.msra.mxu0 0.0
    %3210 = vmatprep.subr.mxu0 0.0
    %3211 = vmatpush1.msra.mxu0 0.0
    %3212 = vmatprep.subr.mxu0 0.0
    %3213 = vmatpush1.msra.mxu0 0.0
    %3214 = vmatprep.subr.mxu0 0.0
    %3215 = vmatpush1.msra.mxu0 0.0
    %3216 = vmatprep.subr.mxu0 0.0
    %3217 = vmatpush1.msra.mxu0 0.0
    %3218 = vmatprep.subr.mxu0 0.0
    %3219 = vmatpush1.msra.mxu0 0.0
    %3220 = vmatprep.subr.mxu0 0.0
    %3221 = vmatpush1.msra.mxu0 0.0
    %3222 = vmatprep.subr.mxu0 0.0
    %3223 = vmatpush1.msra.mxu0 0.0
    %3224 = vmatprep.subr.mxu0 0.0
    %3225 = vmatpush1.msra.mxu0 0.0
    %3226 = vmatprep.subr.mxu0 0.0
    %3227 = vmatpush1.msra.mxu0 0.0
    %3228 = vmatprep.subr.mxu0 0.0
    %3229 = vmatpush1.msra.mxu0 0.0
    %3230 = vmatprep.subr.mxu0 0.0
    %3231 = vmatpush1.msra.mxu0 0.0
    %3232 = vmatprep.subr.mxu0 0.0
    %3233 = vmatpush1.msra.mxu0 0.0
    %3234 = vmatprep.subr.mxu0 0.0
    %3235 = vmatpush1.msra.mxu0 0.0
    %3236 = vmatprep.subr.mxu0 0.0
    %3237 = vmatpush1.msra.mxu0 0.0
    %3238 = vmatprep.subr.mxu0 0.0
    %3239 = vmatpush1.msra.mxu0 0.0
    %3240 = vmatprep.subr.mxu0 0.0
    %3241 = vmatpush1.msra.mxu0 0.0
    %3242 = vmatprep.subr.mxu0 0.0
    %3243 = vmatpush1.msra.mxu0 0.0
    %3244 = vmatprep.subr.mxu0 0.0
    %3245 = vmatpush1.msra.mxu0 0.0
    %3246 = vmatprep.subr.mxu0 0.0
    %3247 = vmatpush1.msra.mxu0 0.0
    %3248 = vmatprep.subr.mxu0 0.0
    %3249 = vmatpush1.msra.mxu0 0.0
    %3250 = vmatprep.subr.mxu0 0.0
    %3251 = vmatpush1.msra.mxu0 0.0
    %3252 = vmatprep.subr.mxu0 0.0
    %3253 = vmatpush1.msra.mxu0 0.0
    %3254 = vmatprep.subr.mxu0 0.0
    %3255 = vmatpush1.msra.mxu0 0.0
    %3256 = vmatprep.subr.mxu0 0.0
    %3257 = vmatpush1.msra.mxu0 0.0
    %3258 = vmatprep.subr.mxu0 0.0
    %3259 = vmatpush1.msra.mxu0 0.0
    %3260 = vmatprep.mubr.f32.mxu0 0.0
    %3261 = vmatmul.mubr.f32.gmra.mrb[0].mxu0 %v3194
    %v3262 = vpop.f32.mrb[0].mxu0
    %v3263 = vadd.f32 0.0, %v3262
    %v3264 = vpop.f32.mrb[0].mxu0
    %3265 = vdwg.mxu0
    %3267 = vrot.lane.b32.xlu0 %v3095, 32
    %v3268 = vpop.permute.xlu0 %3267
    %v3269 = vsel %vm289, %v3268, 0
    %3271 = vmatprep.subr.mxu0 0.0
    %3272 = vmatpush1.msra.mxu0 %v1625
    %3273 = vmatprep.subr.mxu0 0.0
    %3274 = vmatpush1.msra.mxu0 %v1626
    %3275 = vmatprep.subr.mxu0 0.0
    %3276 = vmatpush1.msra.mxu0 %v1627
    %3277 = vmatprep.subr.mxu0 0.0
    %3278 = vmatpush1.msra.mxu0 %v1628
    %3279 = vmatprep.subr.mxu0 0.0
    %3280 = vmatpush1.msra.mxu0 0.0
    %3281 = vmatprep.subr.mxu0 0.0
    %3282 = vmatpush1.msra.mxu0 0.0
    %3283 = vmatprep.subr.mxu0 0.0
    %3284 = vmatpush1.msra.mxu0 0.0
    %3285 = vmatprep.subr.mxu0 0.0
    %3286 = vmatpush1.msra.mxu0 0.0
    %3287 = vmatprep.subr.mxu0 0.0
    %3288 = vmatpush1.msra.mxu0 0.0
    %3289 = vmatprep.subr.mxu0 0.0
    %3290 = vmatpush1.msra.mxu0 0.0
    %3291 = vmatprep.subr.mxu0 0.0
    %3292 = vmatpush1.msra.mxu0 0.0
    %3293 = vmatprep.subr.mxu0 0.0
    %3294 = vmatpush1.msra.mxu0 0.0
    %3295 = vmatprep.subr.mxu0 0.0
    %3296 = vmatpush1.msra.mxu0 0.0
    %3297 = vmatprep.subr.mxu0 0.0
    %3298 = vmatpush1.msra.mxu0 0.0
    %3299 = vmatprep.subr.mxu0 0.0
    %3300 = vmatpush1.msra.mxu0 0.0
    %3301 = vmatprep.subr.mxu0 0.0
    %3302 = vmatpush1.msra.mxu0 0.0
    %3303 = vmatprep.subr.mxu0 0.0
    %3304 = vmatpush1.msra.mxu0 0.0
    %3305 = vmatprep.subr.mxu0 0.0
    %3306 = vmatpush1.msra.mxu0 0.0
    %3307 = vmatprep.subr.mxu0 0.0
    %3308 = vmatpush1.msra.mxu0 0.0
    %3309 = vmatprep.subr.mxu0 0.0
    %3310 = vmatpush1.msra.mxu0 0.0
    %3311 = vmatprep.subr.mxu0 0.0
    %3312 = vmatpush1.msra.mxu0 0.0
    %3313 = vmatprep.subr.mxu0 0.0
    %3314 = vmatpush1.msra.mxu0 0.0
    %3315 = vmatprep.subr.mxu0 0.0
    %3316 = vmatpush1.msra.mxu0 0.0
    %3317 = vmatprep.subr.mxu0 0.0
    %3318 = vmatpush1.msra.mxu0 0.0
    %3319 = vmatprep.subr.mxu0 0.0
    %3320 = vmatpush1.msra.mxu0 0.0
    %3321 = vmatprep.subr.mxu0 0.0
    %3322 = vmatpush1.msra.mxu0 0.0
    %3323 = vmatprep.subr.mxu0 0.0
    %3324 = vmatpush1.msra.mxu0 0.0
    %3325 = vmatprep.subr.mxu0 0.0
    %3326 = vmatpush1.msra.mxu0 0.0
    %3327 = vmatprep.subr.mxu0 0.0
    %3328 = vmatpush1.msra.mxu0 0.0
    %3329 = vmatprep.subr.mxu0 0.0
    %3330 = vmatpush1.msra.mxu0 0.0
    %3331 = vmatprep.subr.mxu0 0.0
    %3332 = vmatpush1.msra.mxu0 0.0
    %3333 = vmatprep.subr.mxu0 0.0
    %3334 = vmatpush1.msra.mxu0 0.0
    %3335 = vmatprep.mubr.f32.mxu0 0.0
    %3336 = vmatmul.mubr.f32.gmra.mrb[0].mxu0 %v3269
    %v3337 = vpop.f32.mrb[0].mxu0
    %v3338 = vadd.f32 %v3263, %v3337
    %v3339 = vpop.f32.mrb[0].mxu0
    %3340 = vdwg.mxu0
    %v3341 = vadd.f32 %v3338, %v1788
    %v3342 = vmax.f32 %v3341, 0.0
    %v3344 = vsel %vm289, %v3342, 0
    %3346 = vmatprep.subr.mxu0 0.0
    %3347 = vmatpush1.msra.mxu0 %v1792
    %3348 = vmatprep.subr.mxu0 0.0
    %3349 = vmatpush1.msra.mxu0 %v1793
    %3350 = vmatprep.subr.mxu0 0.0
    %3351 = vmatpush1.msra.mxu0 %v1794
    %3352 = vmatprep.subr.mxu0 0.0
    %3353 = vmatpush1.msra.mxu0 %v1795
    %3354 = vmatprep.subr.mxu0 0.0
    %3355 = vmatpush1.msra.mxu0 0.0
    %3356 = vmatprep.subr.mxu0 0.0
    %3357 = vmatpush1.msra.mxu0 0.0
    %3358 = vmatprep.subr.mxu0 0.0
    %3359 = vmatpush1.msra.mxu0 0.0
    %3360 = vmatprep.subr.mxu0 0.0
    %3361 = vmatpush1.msra.mxu0 0.0
    %3362 = vmatprep.subr.mxu0 0.0
    %3363 = vmatpush1.msra.mxu0 0.0
    %3364 = vmatprep.subr.mxu0 0.0
    %3365 = vmatpush1.msra.mxu0 0.0
    %3366 = vmatprep.subr.mxu0 0.0
    %3367 = vmatpush1.msra.mxu0 0.0
    %3368 = vmatprep.subr.mxu0 0.0
    %3369 = vmatpush1.msra.mxu0 0.0
    %3370 = vmatprep.subr.mxu0 0.0
    %3371 = vmatpush1.msra.mxu0 0.0
    %3372 = vmatprep.subr.mxu0 0.0
    %3373 = vmatpush1.msra.mxu0 0.0
    %3374 = vmatprep.subr.mxu0 0.0
    %3375 = vmatpush1.msra.mxu0 0.0
    %3376 = vmatprep.subr.mxu0 0.0
    %3377 = vmatpush1.msra.mxu0 0.0
    %3378 = vmatprep.subr.mxu0 0.0
    %3379 = vmatpush1.msra.mxu0 0.0
    %3380 = vmatprep.subr.mxu0 0.0
    %3381 = vmatpush1.msra.mxu0 0.0
    %3382 = vmatprep.subr.mxu0 0.0
    %3383 = vmatpush1.msra.mxu0 0.0
    %3384 = vmatprep.subr.mxu0 0.0
    %3385 = vmatpush1.msra.mxu0 0.0
    %3386 = vmatprep.subr.mxu0 0.0
    %3387 = vmatpush1.msra.mxu0 0.0
    %3388 = vmatprep.subr.mxu0 0.0
    %3389 = vmatpush1.msra.mxu0 0.0
    %3390 = vmatprep.subr.mxu0 0.0
    %3391 = vmatpush1.msra.mxu0 0.0
    %3392 = vmatprep.subr.mxu0 0.0
    %3393 = vmatpush1.msra.mxu0 0.0
    %3394 = vmatprep.subr.mxu0 0.0
    %3395 = vmatpush1.msra.mxu0 0.0
    %3396 = vmatprep.subr.mxu0 0.0
    %3397 = vmatpush1.msra.mxu0 0.0
    %3398 = vmatprep.subr.mxu0 0.0
    %3399 = vmatpush1.msra.mxu0 0.0
    %3400 = vmatprep.subr.mxu0 0.0
    %3401 = vmatpush1.msra.mxu0 0.0
    %3402 = vmatprep.subr.mxu0 0.0
    %3403 = vmatpush1.msra.mxu0 0.0
    %3404 = vmatprep.subr.mxu0 0.0
    %3405 = vmatpush1.msra.mxu0 0.0
    %3406 = vmatprep.subr.mxu0 0.0
    %3407 = vmatpush1.msra.mxu0 0.0
    %3408 = vmatprep.subr.mxu0 0.0
    %3409 = vmatpush1.msra.mxu0 0.0
    %3410 = vmatprep.mubr.f32.mxu0 0.0
    %3411 = vmatmul.mubr.f32.gmra.mrb[0].mxu0 %v3344
    %v3412 = vpop.f32.mrb[0].mxu0
    %v3413 = vadd.f32 0.0, %v3412
    %v3414 = vpop.f32.mrb[0].mxu0
    %3415 = vdwg.mxu0
    %v3416 = vadd.f32 %v661, %v3413
    %3418 = vrot.lane.b32.xlu0 %v3000, 32
    %v3419 = vpop.permute.xlu0 %3418
    %v3420 = vsel %vm289, %v3419, 0
    %3422 = vmatprep.subr.mxu0 0.0
    %3423 = vmatpush1.msra.mxu0 %v1870
    %3424 = vmatprep.subr.mxu0 0.0
    %3425 = vmatpush1.msra.mxu0 %v1871
    %3426 = vmatprep.subr.mxu0 0.0
    %3427 = vmatpush1.msra.mxu0 %v1872
    %3428 = vmatprep.subr.mxu0 0.0
    %3429 = vmatpush1.msra.mxu0 %v1873
    %3430 = vmatprep.subr.mxu0 0.0
    %3431 = vmatpush1.msra.mxu0 0.0
    %3432 = vmatprep.subr.mxu0 0.0
    %3433 = vmatpush1.msra.mxu0 0.0
    %3434 = vmatprep.subr.mxu0 0.0
    %3435 = vmatpush1.msra.mxu0 0.0
    %3436 = vmatprep.subr.mxu0 0.0
    %3437 = vmatpush1.msra.mxu0 0.0
    %3438 = vmatprep.subr.mxu0 0.0
    %3439 = vmatpush1.msra.mxu0 0.0
    %3440 = vmatprep.subr.mxu0 0.0
    %3441 = vmatpush1.msra.mxu0 0.0
    %3442 = vmatprep.subr.mxu0 0.0
    %3443 = vmatpush1.msra.mxu0 0.0
    %3444 = vmatprep.subr.mxu0 0.0
    %3445 = vmatpush1.msra.mxu0 0.0
    %3446 = vmatprep.subr.mxu0 0.0
    %3447 = vmatpush1.msra.mxu0 0.0
    %3448 = vmatprep.subr.mxu0 0.0
    %3449 = vmatpush1.msra.mxu0 0.0
    %3450 = vmatprep.subr.mxu0 0.0
    %3451 = vmatpush1.msra.mxu0 0.0
    %3452 = vmatprep.subr.mxu0 0.0
    %3453 = vmatpush1.msra.mxu0 0.0
    %3454 = vmatprep.subr.mxu0 0.0
    %3455 = vmatpush1.msra.mxu0 0.0
    %3456 = vmatprep.subr.mxu0 0.0
    %3457 = vmatpush1.msra.mxu0 0.0
    %3458 = vmatprep.subr.mxu0 0.0
    %3459 = vmatpush1.msra.mxu0 0.0
    %3460 = vmatprep.subr.mxu0 0.0
    %3461 = vmatpush1.msra.mxu0 0.0
    %3462 = vmatprep.subr.mxu0 0.0
    %3463 = vmatpush1.msra.mxu0 0.0
    %3464 = vmatprep.subr.mxu0 0.0
    %3465 = vmatpush1.msra.mxu0 0.0
    %3466 = vmatprep.subr.mxu0 0.0
    %3467 = vmatpush1.msra.mxu0 0.0
    %3468 = vmatprep.subr.mxu0 0.0
    %3469 = vmatpush1.msra.mxu0 0.0
    %3470 = vmatprep.subr.mxu0 0.0
    %3471 = vmatpush1.msra.mxu0 0.0
    %3472 = vmatprep.subr.mxu0 0.0
    %3473 = vmatpush1.msra.mxu0 0.0
    %3474 = vmatprep.subr.mxu0 0.0
    %3475 = vmatpush1.msra.mxu0 0.0
    %3476 = vmatprep.subr.mxu0 0.0
    %3477 = vmatpush1.msra.mxu0 0.0
    %3478 = vmatprep.subr.mxu0 0.0
    %3479 = vmatpush1.msra.mxu0 0.0
    %3480 = vmatprep.subr.mxu0 0.0
    %3481 = vmatpush1.msra.mxu0 0.0
    %3482 = vmatprep.subr.mxu0 0.0
    %3483 = vmatpush1.msra.mxu0 0.0
    %3484 = vmatprep.subr.mxu0 0.0
    %3485 = vmatpush1.msra.mxu0 0.0
    %3486 = vmatprep.mubr.f32.mxu0 0.0
    %3487 = vmatmul.mubr.f32.gmra.mrb[0].mxu0 %v3420
    %v3488 = vpop.f32.mrb[0].mxu0
    %v3489 = vadd.f32 0.0, %v3488
    %v3490 = vpop.f32.mrb[0].mxu0
    %3491 = vdwg.mxu0
    %v3492 = vadd.f32 %v3416, %v3489
    %v3493 = vxor.u32 %v3492, 2147483648
    %v3494 = vmul.f32 %v3493, 1.442695
    %v3495 = vpow.pop %v3494
    %v3496 = vadd.f32 %v3495, 1.0
    %v3497 = vrcp.pop %v3496
    %v3498 = vmul.f32 1.0, %v3497
    %v3499 = vtanh.pop %v3492
    %v3500 = vmul.f32 %v3498, %v2994
    %3502 = vrot.lane.b32.xlu0 %v3499, 64
    %v3503 = vpop.permute.xlu0 %3502
    %v3505 = vmul.f32 %v3498, %v3503
    %3507 = vrot.lane.b32.xlu0 %v3505, 32
    %v3508 = vpop.permute.xlu0 %3507
    %v3510 = vadd.f32 %v3500, %v3508
    %v3511 = vtanh.pop %v3510
    %3513 = vrot.lane.b32.xlu0 %v3511, 64
    %v3514 = vpop.permute.xlu0 %3513
    %v3516 = vmul.f32 %v3498, %v3514
    %3517 = vmatprep.subr.mxu0 0.0
    %3518 = vmatpush1.msra.mxu0 %v1424
    %3519 = vmatprep.subr.mxu0 0.0
    %3520 = vmatpush1.msra.mxu0 %v1425
    %3521 = vmatprep.subr.mxu0 0.0
    %3522 = vmatpush1.msra.mxu0 %v1426
    %3523 = vmatprep.subr.mxu0 0.0
    %3524 = vmatpush1.msra.mxu0 %v1427
    %3525 = vmatprep.subr.mxu0 0.0
    %3526 = vmatpush1.msra.mxu0 0.0
    %3527 = vmatprep.subr.mxu0 0.0
    %3528 = vmatpush1.msra.mxu0 0.0
    %3529 = vmatprep.subr.mxu0 0.0
    %3530 = vmatpush1.msra.mxu0 0.0
    %3531 = vmatprep.subr.mxu0 0.0
    %3532 = vmatpush1.msra.mxu0 0.0
    %3533 = vmatprep.subr.mxu0 0.0
    %3534 = vmatpush1.msra.mxu0 0.0
    %3535 = vmatprep.subr.mxu0 0.0
    %3536 = vmatpush1.msra.mxu0 0.0
    %3537 = vmatprep.subr.mxu0 0.0
    %3538 = vmatpush1.msra.mxu0 0.0
    %3539 = vmatprep.subr.mxu0 0.0
    %3540 = vmatpush1.msra.mxu0 0.0
    %3541 = vmatprep.subr.mxu0 0.0
    %3542 = vmatpush1.msra.mxu0 0.0
    %3543 = vmatprep.subr.mxu0 0.0
    %3544 = vmatpush1.msra.mxu0 0.0
    %3545 = vmatprep.subr.mxu0 0.0
    %3546 = vmatpush1.msra.mxu0 0.0
    %3547 = vmatprep.subr.mxu0 0.0
    %3548 = vmatpush1.msra.mxu0 0.0
    %3549 = vmatprep.subr.mxu0 0.0
    %3550 = vmatpush1.msra.mxu0 0.0
    %3551 = vmatprep.subr.mxu0 0.0
    %3552 = vmatpush1.msra.mxu0 0.0
    %3553 = vmatprep.subr.mxu0 0.0
    %3554 = vmatpush1.msra.mxu0 0.0
    %3555 = vmatprep.subr.mxu0 0.0
    %3556 = vmatpush1.msra.mxu0 0.0
    %3557 = vmatprep.subr.mxu0 0.0
    %3558 = vmatpush1.msra.mxu0 0.0
    %3559 = vmatprep.subr.mxu0 0.0
    %3560 = vmatpush1.msra.mxu0 0.0
    %3561 = vmatprep.subr.mxu0 0.0
    %3562 = vmatpush1.msra.mxu0 0.0
    %3563 = vmatprep.subr.mxu0 0.0
    %3564 = vmatpush1.msra.mxu0 0.0
    %3565 = vmatprep.subr.mxu0 0.0
    %3566 = vmatpush1.msra.mxu0 0.0
    %3567 = vmatprep.subr.mxu0 0.0
    %3568 = vmatpush1.msra.mxu0 0.0
    %3569 = vmatprep.subr.mxu0 0.0
    %3570 = vmatpush1.msra.mxu0 0.0
    %3571 = vmatprep.subr.mxu0 0.0
    %3572 = vmatpush1.msra.mxu0 0.0
    %3573 = vmatprep.subr.mxu0 0.0
    %3574 = vmatpush1.msra.mxu0 0.0
    %3575 = vmatprep.subr.mxu0 0.0
    %3576 = vmatpush1.msra.mxu0 0.0
    %3577 = vmatprep.subr.mxu0 0.0
    %3578 = vmatpush1.msra.mxu0 0.0
    %3579 = vmatprep.subr.mxu0 0.0
    %3580 = vmatpush1.msra.mxu0 0.0
    %3581 = vmatprep.mubr.f32.mxu0 0.0
    %3582 = vmatmul.mubr.f32.gmra.mrb[0].mxu0 %v3269
    %v3583 = vpop.f32.mrb[0].mxu0
    %v3584 = vadd.f32 0.0, %v3583
    %v3585 = vpop.f32.mrb[0].mxu0
    %3586 = vdwg.mxu0
    %v3587 = vadd.f32 %v398, %v3584
    %v3588 = vxor.u32 %v3587, 2147483648
    %v3589 = vmul.f32 %v3588, 1.442695
    %v3590 = vpow.pop %v3589
    %v3591 = vadd.f32 %v3590, 1.0
    %v3592 = vrcp.pop %v3591
    %v3593 = vmul.f32 1.0, %v3592
    %v3594 = vtanh.pop %v3587
    %v3595 = vmul.f32 %v3593, %v3089
    %3597 = vrot.lane.b32.xlu0 %v3594, 64
    %v3598 = vpop.permute.xlu0 %3597
    %v3600 = vmul.f32 %v3593, %v3598
    %3602 = vrot.lane.b32.xlu0 %v3600, 32
    %v3603 = vpop.permute.xlu0 %3602
    %v3605 = vadd.f32 %v3595, %v3603
    %v3606 = vtanh.pop %v3605
    %3608 = vrot.lane.b32.xlu0 %v3606, 64
    %v3609 = vpop.permute.xlu0 %3608
    %v3611 = vmul.f32 %v3593, %v3609
    %3612 = vmatprep.subr.mxu0 0.0
    %3613 = vmatpush1.msra.mxu0 %v1526
    %3614 = vmatprep.subr.mxu0 0.0
    %3615 = vmatpush1.msra.mxu0 %v1527
    %3616 = vmatprep.subr.mxu0 0.0
    %3617 = vmatpush1.msra.mxu0 %v1528
    %3618 = vmatprep.subr.mxu0 0.0
    %3619 = vmatpush1.msra.mxu0 %v1529
    %3620 = vmatprep.subr.mxu0 0.0
    %3621 = vmatpush1.msra.mxu0 0.0
    %3622 = vmatprep.subr.mxu0 0.0
    %3623 = vmatpush1.msra.mxu0 0.0
    %3624 = vmatprep.subr.mxu0 0.0
    %3625 = vmatpush1.msra.mxu0 0.0
    %3626 = vmatprep.subr.mxu0 0.0
    %3627 = vmatpush1.msra.mxu0 0.0
    %3628 = vmatprep.subr.mxu0 0.0
    %3629 = vmatpush1.msra.mxu0 0.0
    %3630 = vmatprep.subr.mxu0 0.0
    %3631 = vmatpush1.msra.mxu0 0.0
    %3632 = vmatprep.subr.mxu0 0.0
    %3633 = vmatpush1.msra.mxu0 0.0
    %3634 = vmatprep.subr.mxu0 0.0
    %3635 = vmatpush1.msra.mxu0 0.0
    %3636 = vmatprep.subr.mxu0 0.0
    %3637 = vmatpush1.msra.mxu0 0.0
    %3638 = vmatprep.subr.mxu0 0.0
    %3639 = vmatpush1.msra.mxu0 0.0
    %3640 = vmatprep.subr.mxu0 0.0
    %3641 = vmatpush1.msra.mxu0 0.0
    %3642 = vmatprep.subr.mxu0 0.0
    %3643 = vmatpush1.msra.mxu0 0.0
    %3644 = vmatprep.subr.mxu0 0.0
    %3645 = vmatpush1.msra.mxu0 0.0
    %3646 = vmatprep.subr.mxu0 0.0
    %3647 = vmatpush1.msra.mxu0 0.0
    %3648 = vmatprep.subr.mxu0 0.0
    %3649 = vmatpush1.msra.mxu0 0.0
    %3650 = vmatprep.subr.mxu0 0.0
    %3651 = vmatpush1.msra.mxu0 0.0
    %3652 = vmatprep.subr.mxu0 0.0
    %3653 = vmatpush1.msra.mxu0 0.0
    %3654 = vmatprep.subr.mxu0 0.0
    %3655 = vmatpush1.msra.mxu0 0.0
    %3656 = vmatprep.subr.mxu0 0.0
    %3657 = vmatpush1.msra.mxu0 0.0
    %3658 = vmatprep.subr.mxu0 0.0
    %3659 = vmatpush1.msra.mxu0 0.0
    %3660 = vmatprep.subr.mxu0 0.0
    %3661 = vmatpush1.msra.mxu0 0.0
    %3662 = vmatprep.subr.mxu0 0.0
    %3663 = vmatpush1.msra.mxu0 0.0
    %3664 = vmatprep.subr.mxu0 0.0
    %3665 = vmatpush1.msra.mxu0 0.0
    %3666 = vmatprep.subr.mxu0 0.0
    %3667 = vmatpush1.msra.mxu0 0.0
    %3668 = vmatprep.subr.mxu0 0.0
    %3669 = vmatpush1.msra.mxu0 0.0
    %3670 = vmatprep.subr.mxu0 0.0
    %3671 = vmatpush1.msra.mxu0 0.0
    %3672 = vmatprep.subr.mxu0 0.0
    %3673 = vmatpush1.msra.mxu0 0.0
    %3674 = vmatprep.subr.mxu0 0.0
    %3675 = vmatpush1.msra.mxu0 0.0
    %3676 = vmatprep.mubr.f32.mxu0 0.0
    %3677 = vmatmul.mubr.f32.gmra.mrb[0].mxu0 %v3194
    %v3678 = vpop.f32.mrb[0].mxu0
    %v3679 = vadd.f32 0.0, %v3678
    %v3680 = vpop.f32.mrb[0].mxu0
    %3681 = vdwg.mxu0
    %v3682 = vadd.f32 %v1411, %v3679
    %v3683 = vxor.u32 %v3682, 2147483648
    %v3684 = vmul.f32 %v3683, 1.442695
    %v3685 = vpow.pop %v3684
    %v3686 = vadd.f32 %v3685, 1.0
    %v3687 = vrcp.pop %v3686
    %v3688 = vmul.f32 1.0, %v3687
    %v3689 = vtanh.pop %v3682
    %v3690 = vmul.f32 %v3688, %v3184
    %3692 = vrot.lane.b32.xlu0 %v3689, 64
    %v3693 = vpop.permute.xlu0 %3692
    %v3695 = vmul.f32 %v3688, %v3693
    %3697 = vrot.lane.b32.xlu0 %v3695, 32
    %v3698 = vpop.permute.xlu0 %3697
    %v3700 = vadd.f32 %v3690, %v3698
    %v3701 = vtanh.pop %v3700
    %3703 = vrot.lane.b32.xlu0 %v3701, 64
    %v3704 = vpop.permute.xlu0 %3703
    %v3706 = vmul.f32 %v3688, %v3704
    %3708 = vrot.lane.b32.xlu0 %v3706, 32
    %v3709 = vpop.permute.xlu0 %3708
    %v3710 = vsel %vm289, %v3709, 0
    %3712 = vmatprep.subr.mxu0 0.0
    %3713 = vmatpush1.msra.mxu0 %v1629
    %3714 = vmatprep.subr.mxu0 0.0
    %3715 = vmatpush1.msra.mxu0 %v1630
    %3716 = vmatprep.subr.mxu0 0.0
    %3717 = vmatpush1.msra.mxu0 %v1631
    %3718 = vmatprep.subr.mxu0 0.0
    %3719 = vmatpush1.msra.mxu0 %v1632
    %3720 = vmatprep.subr.mxu0 0.0
    %3721 = vmatpush1.msra.mxu0 0.0
    %3722 = vmatprep.subr.mxu0 0.0
    %3723 = vmatpush1.msra.mxu0 0.0
    %3724 = vmatprep.subr.mxu0 0.0
    %3725 = vmatpush1.msra.mxu0 0.0
    %3726 = vmatprep.subr.mxu0 0.0
    %3727 = vmatpush1.msra.mxu0 0.0
    %3728 = vmatprep.subr.mxu0 0.0
    %3729 = vmatpush1.msra.mxu0 0.0
    %3730 = vmatprep.subr.mxu0 0.0
    %3731 = vmatpush1.msra.mxu0 0.0
    %3732 = vmatprep.subr.mxu0 0.0
    %3733 = vmatpush1.msra.mxu0 0.0
    %3734 = vmatprep.subr.mxu0 0.0
    %3735 = vmatpush1.msra.mxu0 0.0
    %3736 = vmatprep.subr.mxu0 0.0
    %3737 = vmatpush1.msra.mxu0 0.0
    %3738 = vmatprep.subr.mxu0 0.0
    %3739 = vmatpush1.msra.mxu0 0.0
    %3740 = vmatprep.subr.mxu0 0.0
    %3741 = vmatpush1.msra.mxu0 0.0
    %3742 = vmatprep.subr.mxu0 0.0
    %3743 = vmatpush1.msra.mxu0 0.0
    %3744 = vmatprep.subr.mxu0 0.0
    %3745 = vmatpush1.msra.mxu0 0.0
    %3746 = vmatprep.subr.mxu0 0.0
    %3747 = vmatpush1.msra.mxu0 0.0
    %3748 = vmatprep.subr.mxu0 0.0
    %3749 = vmatpush1.msra.mxu0 0.0
    %3750 = vmatprep.subr.mxu0 0.0
    %3751 = vmatpush1.msra.mxu0 0.0
    %3752 = vmatprep.subr.mxu0 0.0
    %3753 = vmatpush1.msra.mxu0 0.0
    %3754 = vmatprep.subr.mxu0 0.0
    %3755 = vmatpush1.msra.mxu0 0.0
    %3756 = vmatprep.subr.mxu0 0.0
    %3757 = vmatpush1.msra.mxu0 0.0
    %3758 = vmatprep.subr.mxu0 0.0
    %3759 = vmatpush1.msra.mxu0 0.0
    %3760 = vmatprep.subr.mxu0 0.0
    %3761 = vmatpush1.msra.mxu0 0.0
    %3762 = vmatprep.subr.mxu0 0.0
    %3763 = vmatpush1.msra.mxu0 0.0
    %3764 = vmatprep.subr.mxu0 0.0
    %3765 = vmatpush1.msra.mxu0 0.0
    %3766 = vmatprep.subr.mxu0 0.0
    %3767 = vmatpush1.msra.mxu0 0.0
    %3768 = vmatprep.subr.mxu0 0.0
    %3769 = vmatpush1.msra.mxu0 0.0
    %3770 = vmatprep.subr.mxu0 0.0
    %3771 = vmatpush1.msra.mxu0 0.0
    %3772 = vmatprep.subr.mxu0 0.0
    %3773 = vmatpush1.msra.mxu0 0.0
    %3774 = vmatprep.subr.mxu0 0.0
    %3775 = vmatpush1.msra.mxu0 0.0
    %3776 = vmatprep.mubr.f32.mxu0 0.0
    %3777 = vmatmul.mubr.f32.gmra.mrb[0].mxu0 %v3710
    %v3778 = vpop.f32.mrb[0].mxu0
    %v3779 = vadd.f32 0.0, %v3778
    %v3780 = vpop.f32.mrb[0].mxu0
    %3781 = vdwg.mxu0
    %3783 = vrot.lane.b32.xlu0 %v3611, 32
    %v3784 = vpop.permute.xlu0 %3783
    %v3785 = vsel %vm289, %v3784, 0
    %3787 = vmatprep.subr.mxu0 0.0
    %3788 = vmatpush1.msra.mxu0 %v1625
    %3789 = vmatprep.subr.mxu0 0.0
    %3790 = vmatpush1.msra.mxu0 %v1626
    %3791 = vmatprep.subr.mxu0 0.0
    %3792 = vmatpush1.msra.mxu0 %v1627
    %3793 = vmatprep.subr.mxu0 0.0
    %3794 = vmatpush1.msra.mxu0 %v1628
    %3795 = vmatprep.subr.mxu0 0.0
    %3796 = vmatpush1.msra.mxu0 0.0
    %3797 = vmatprep.subr.mxu0 0.0
    %3798 = vmatpush1.msra.mxu0 0.0
    %3799 = vmatprep.subr.mxu0 0.0
    %3800 = vmatpush1.msra.mxu0 0.0
    %3801 = vmatprep.subr.mxu0 0.0
    %3802 = vmatpush1.msra.mxu0 0.0
    %3803 = vmatprep.subr.mxu0 0.0
    %3804 = vmatpush1.msra.mxu0 0.0
    %3805 = vmatprep.subr.mxu0 0.0
    %3806 = vmatpush1.msra.mxu0 0.0
    %3807 = vmatprep.subr.mxu0 0.0
    %3808 = vmatpush1.msra.mxu0 0.0
    %3809 = vmatprep.subr.mxu0 0.0
    %3810 = vmatpush1.msra.mxu0 0.0
    %3811 = vmatprep.subr.mxu0 0.0
    %3812 = vmatpush1.msra.mxu0 0.0
    %3813 = vmatprep.subr.mxu0 0.0
    %3814 = vmatpush1.msra.mxu0 0.0
    %3815 = vmatprep.subr.mxu0 0.0
    %3816 = vmatpush1.msra.mxu0 0.0
    %3817 = vmatprep.subr.mxu0 0.0
    %3818 = vmatpush1.msra.mxu0 0.0
    %3819 = vmatprep.subr.mxu0 0.0
    %3820 = vmatpush1.msra.mxu0 0.0
    %3821 = vmatprep.subr.mxu0 0.0
    %3822 = vmatpush1.msra.mxu0 0.0
    %3823 = vmatprep.subr.mxu0 0.0
    %3824 = vmatpush1.msra.mxu0 0.0
    %3825 = vmatprep.subr.mxu0 0.0
    %3826 = vmatpush1.msra.mxu0 0.0
    %3827 = vmatprep.subr.mxu0 0.0
    %3828 = vmatpush1.msra.mxu0 0.0
    %3829 = vmatprep.subr.mxu0 0.0
    %3830 = vmatpush1.msra.mxu0 0.0
    %3831 = vmatprep.subr.mxu0 0.0
    %3832 = vmatpush1.msra.mxu0 0.0
    %3833 = vmatprep.subr.mxu0 0.0
    %3834 = vmatpush1.msra.mxu0 0.0
    %3835 = vmatprep.subr.mxu0 0.0
    %3836 = vmatpush1.msra.mxu0 0.0
    %3837 = vmatprep.subr.mxu0 0.0
    %3838 = vmatpush1.msra.mxu0 0.0
    %3839 = vmatprep.subr.mxu0 0.0
    %3840 = vmatpush1.msra.mxu0 0.0
    %3841 = vmatprep.subr.mxu0 0.0
    %3842 = vmatpush1.msra.mxu0 0.0
    %3843 = vmatprep.subr.mxu0 0.0
    %3844 = vmatpush1.msra.mxu0 0.0
    %3845 = vmatprep.subr.mxu0 0.0
    %3846 = vmatpush1.msra.mxu0 0.0
    %3847 = vmatprep.subr.mxu0 0.0
    %3848 = vmatpush1.msra.mxu0 0.0
    %3849 = vmatprep.subr.mxu0 0.0
    %3850 = vmatpush1.msra.mxu0 0.0
    %3851 = vmatprep.mubr.f32.mxu0 0.0
    %3852 = vmatmul.mubr.f32.gmra.mrb[0].mxu0 %v3785
    %v3853 = vpop.f32.mrb[0].mxu0
    %v3854 = vadd.f32 %v3779, %v3853
    %v3855 = vpop.f32.mrb[0].mxu0
    %3856 = vdwg.mxu0
    %v3857 = vadd.f32 %v3854, %v1788
    %v3858 = vmax.f32 %v3857, 0.0
    %v3860 = vsel %vm289, %v3858, 0
    %3862 = vmatprep.subr.mxu0 0.0
    %3863 = vmatpush1.msra.mxu0 %v1792
    %3864 = vmatprep.subr.mxu0 0.0
    %3865 = vmatpush1.msra.mxu0 %v1793
    %3866 = vmatprep.subr.mxu0 0.0
    %3867 = vmatpush1.msra.mxu0 %v1794
    %3868 = vmatprep.subr.mxu0 0.0
    %3869 = vmatpush1.msra.mxu0 %v1795
    %3870 = vmatprep.subr.mxu0 0.0
    %3871 = vmatpush1.msra.mxu0 0.0
    %3872 = vmatprep.subr.mxu0 0.0
    %3873 = vmatpush1.msra.mxu0 0.0
    %3874 = vmatprep.subr.mxu0 0.0
    %3875 = vmatpush1.msra.mxu0 0.0
    %3876 = vmatprep.subr.mxu0 0.0
    %3877 = vmatpush1.msra.mxu0 0.0
    %3878 = vmatprep.subr.mxu0 0.0
    %3879 = vmatpush1.msra.mxu0 0.0
    %3880 = vmatprep.subr.mxu0 0.0
    %3881 = vmatpush1.msra.mxu0 0.0
    %3882 = vmatprep.subr.mxu0 0.0
    %3883 = vmatpush1.msra.mxu0 0.0
    %3884 = vmatprep.subr.mxu0 0.0
    %3885 = vmatpush1.msra.mxu0 0.0
    %3886 = vmatprep.subr.mxu0 0.0
    %3887 = vmatpush1.msra.mxu0 0.0
    %3888 = vmatprep.subr.mxu0 0.0
    %3889 = vmatpush1.msra.mxu0 0.0
    %3890 = vmatprep.subr.mxu0 0.0
    %3891 = vmatpush1.msra.mxu0 0.0
    %3892 = vmatprep.subr.mxu0 0.0
    %3893 = vmatpush1.msra.mxu0 0.0
    %3894 = vmatprep.subr.mxu0 0.0
    %3895 = vmatpush1.msra.mxu0 0.0
    %3896 = vmatprep.subr.mxu0 0.0
    %3897 = vmatpush1.msra.mxu0 0.0
    %3898 = vmatprep.subr.mxu0 0.0
    %3899 = vmatpush1.msra.mxu0 0.0
    %3900 = vmatprep.subr.mxu0 0.0
    %3901 = vmatpush1.msra.mxu0 0.0
    %3902 = vmatprep.subr.mxu0 0.0
    %3903 = vmatpush1.msra.mxu0 0.0
    %3904 = vmatprep.subr.mxu0 0.0
    %3905 = vmatpush1.msra.mxu0 0.0
    %3906 = vmatprep.subr.mxu0 0.0
    %3907 = vmatpush1.msra.mxu0 0.0
    %3908 = vmatprep.subr.mxu0 0.0
    %3909 = vmatpush1.msra.mxu0 0.0
    %3910 = vmatprep.subr.mxu0 0.0
    %3911 = vmatpush1.msra.mxu0 0.0
    %3912 = vmatprep.subr.mxu0 0.0
    %3913 = vmatpush1.msra.mxu0 0.0
    %3914 = vmatprep.subr.mxu0 0.0
    %3915 = vmatpush1.msra.mxu0 0.0
    %3916 = vmatprep.subr.mxu0 0.0
    %3917 = vmatpush1.msra.mxu0 0.0
    %3918 = vmatprep.subr.mxu0 0.0
    %3919 = vmatpush1.msra.mxu0 0.0
    %3920 = vmatprep.subr.mxu0 0.0
    %3921 = vmatpush1.msra.mxu0 0.0
    %3922 = vmatprep.subr.mxu0 0.0
    %3923 = vmatpush1.msra.mxu0 0.0
    %3924 = vmatprep.subr.mxu0 0.0
    %3925 = vmatpush1.msra.mxu0 0.0
    %3926 = vmatprep.mubr.f32.mxu0 0.0
    %3927 = vmatmul.mubr.f32.gmra.mrb[0].mxu0 %v3860
    %v3928 = vpop.f32.mrb[0].mxu0
    %v3929 = vadd.f32 0.0, %v3928
    %v3930 = vpop.f32.mrb[0].mxu0
    %3931 = vdwg.mxu0
    %v3932 = vadd.f32 %v666, %v3929
    %3934 = vrot.lane.b32.xlu0 %v3516, 32
    %v3935 = vpop.permute.xlu0 %3934
    %v3936 = vsel %vm289, %v3935, 0
    %3938 = vmatprep.subr.mxu0 0.0
    %3939 = vmatpush1.msra.mxu0 %v1870
    %3940 = vmatprep.subr.mxu0 0.0
    %3941 = vmatpush1.msra.mxu0 %v1871
    %3942 = vmatprep.subr.mxu0 0.0
    %3943 = vmatpush1.msra.mxu0 %v1872
    %3944 = vmatprep.subr.mxu0 0.0
    %3945 = vmatpush1.msra.mxu0 %v1873
    %3946 = vmatprep.subr.mxu0 0.0
    %3947 = vmatpush1.msra.mxu0 0.0
    %3948 = vmatprep.subr.mxu0 0.0
    %3949 = vmatpush1.msra.mxu0 0.0
    %3950 = vmatprep.subr.mxu0 0.0
    %3951 = vmatpush1.msra.mxu0 0.0
    %3952 = vmatprep.subr.mxu0 0.0
    %3953 = vmatpush1.msra.mxu0 0.0
    %3954 = vmatprep.subr.mxu0 0.0
    %3955 = vmatpush1.msra.mxu0 0.0
    %3956 = vmatprep.subr.mxu0 0.0
    %3957 = vmatpush1.msra.mxu0 0.0
    %3958 = vmatprep.subr.mxu0 0.0
    %3959 = vmatpush1.msra.mxu0 0.0
    %3960 = vmatprep.subr.mxu0 0.0
    %3961 = vmatpush1.msra.mxu0 0.0
    %3962 = vmatprep.subr.mxu0 0.0
    %3963 = vmatpush1.msra.mxu0 0.0
    %3964 = vmatprep.subr.mxu0 0.0
    %3965 = vmatpush1.msra.mxu0 0.0
    %3966 = vmatprep.subr.mxu0 0.0
    %3967 = vmatpush1.msra.mxu0 0.0
    %3968 = vmatprep.subr.mxu0 0.0
    %3969 = vmatpush1.msra.mxu0 0.0
    %3970 = vmatprep.subr.mxu0 0.0
    %3971 = vmatpush1.msra.mxu0 0.0
    %3972 = vmatprep.subr.mxu0 0.0
    %3973 = vmatpush1.msra.mxu0 0.0
    %3974 = vmatprep.subr.mxu0 0.0
    %3975 = vmatpush1.msra.mxu0 0.0
    %3976 = vmatprep.subr.mxu0 0.0
    %3977 = vmatpush1.msra.mxu0 0.0
    %3978 = vmatprep.subr.mxu0 0.0
    %3979 = vmatpush1.msra.mxu0 0.0
    %3980 = vmatprep.subr.mxu0 0.0
    %3981 = vmatpush1.msra.mxu0 0.0
    %3982 = vmatprep.subr.mxu0 0.0
    %3983 = vmatpush1.msra.mxu0 0.0
    %3984 = vmatprep.subr.mxu0 0.0
    %3985 = vmatpush1.msra.mxu0 0.0
    %3986 = vmatprep.subr.mxu0 0.0
    %3987 = vmatpush1.msra.mxu0 0.0
    %3988 = vmatprep.subr.mxu0 0.0
    %3989 = vmatpush1.msra.mxu0 0.0
    %3990 = vmatprep.subr.mxu0 0.0
    %3991 = vmatpush1.msra.mxu0 0.0
    %3992 = vmatprep.subr.mxu0 0.0
    %3993 = vmatpush1.msra.mxu0 0.0
    %3994 = vmatprep.subr.mxu0 0.0
    %3995 = vmatpush1.msra.mxu0 0.0
    %3996 = vmatprep.subr.mxu0 0.0
    %3997 = vmatpush1.msra.mxu0 0.0
    %3998 = vmatprep.subr.mxu0 0.0
    %3999 = vmatpush1.msra.mxu0 0.0
    %4000 = vmatprep.subr.mxu0 0.0
    %4001 = vmatpush1.msra.mxu0 0.0
    %4002 = vmatprep.mubr.f32.mxu0 0.0
    %4003 = vmatmul.mubr.f32.gmra.mrb[0].mxu0 %v3936
    %v4004 = vpop.f32.mrb[0].mxu0
    %v4005 = vadd.f32 0.0, %v4004
    %v4006 = vpop.f32.mrb[0].mxu0
    %4007 = vdwg.mxu0
    %v4008 = vadd.f32 %v3932, %v4005
    %v4009 = vxor.u32 %v4008, 2147483648
    %v4010 = vmul.f32 %v4009, 1.442695
    %v4011 = vpow.pop %v4010
    %v4012 = vadd.f32 %v4011, 1.0
    %v4013 = vrcp.pop %v4012
    %v4014 = vmul.f32 1.0, %v4013
    %v4015 = vtanh.pop %v4008
    %v4016 = vmul.f32 %v4014, %v3510
    %4018 = vrot.lane.b32.xlu0 %v4015, 64
    %v4019 = vpop.permute.xlu0 %4018
    %v4021 = vmul.f32 %v4014, %v4019
    %4023 = vrot.lane.b32.xlu0 %v4021, 32
    %v4024 = vpop.permute.xlu0 %4023
    %v4026 = vadd.f32 %v4016, %v4024
    %v4027 = vtanh.pop %v4026
    %4029 = vrot.lane.b32.xlu0 %v4027, 64
    %v4030 = vpop.permute.xlu0 %4029
    %v4032 = vmul.f32 %v4014, %v4030
    %4033 = vmatprep.subr.mxu0 0.0
    %4034 = vmatpush1.msra.mxu0 %v1424
    %4035 = vmatprep.subr.mxu0 0.0
    %4036 = vmatpush1.msra.mxu0 %v1425
    %4037 = vmatprep.subr.mxu0 0.0
    %4038 = vmatpush1.msra.mxu0 %v1426
    %4039 = vmatprep.subr.mxu0 0.0
    %4040 = vmatpush1.msra.mxu0 %v1427
    %4041 = vmatprep.subr.mxu0 0.0
    %4042 = vmatpush1.msra.mxu0 0.0
    %4043 = vmatprep.subr.mxu0 0.0
    %4044 = vmatpush1.msra.mxu0 0.0
    %4045 = vmatprep.subr.mxu0 0.0
    %4046 = vmatpush1.msra.mxu0 0.0
    %4047 = vmatprep.subr.mxu0 0.0
    %4048 = vmatpush1.msra.mxu0 0.0
    %4049 = vmatprep.subr.mxu0 0.0
    %4050 = vmatpush1.msra.mxu0 0.0
    %4051 = vmatprep.subr.mxu0 0.0
    %4052 = vmatpush1.msra.mxu0 0.0
    %4053 = vmatprep.subr.mxu0 0.0
    %4054 = vmatpush1.msra.mxu0 0.0
    %4055 = vmatprep.subr.mxu0 0.0
    %4056 = vmatpush1.msra.mxu0 0.0
    %4057 = vmatprep.subr.mxu0 0.0
    %4058 = vmatpush1.msra.mxu0 0.0
    %4059 = vmatprep.subr.mxu0 0.0
    %4060 = vmatpush1.msra.mxu0 0.0
    %4061 = vmatprep.subr.mxu0 0.0
    %4062 = vmatpush1.msra.mxu0 0.0
    %4063 = vmatprep.subr.mxu0 0.0
    %4064 = vmatpush1.msra.mxu0 0.0
    %4065 = vmatprep.subr.mxu0 0.0
    %4066 = vmatpush1.msra.mxu0 0.0
    %4067 = vmatprep.subr.mxu0 0.0
    %4068 = vmatpush1.msra.mxu0 0.0
    %4069 = vmatprep.subr.mxu0 0.0
    %4070 = vmatpush1.msra.mxu0 0.0
    %4071 = vmatprep.subr.mxu0 0.0
    %4072 = vmatpush1.msra.mxu0 0.0
    %4073 = vmatprep.subr.mxu0 0.0
    %4074 = vmatpush1.msra.mxu0 0.0
    %4075 = vmatprep.subr.mxu0 0.0
    %4076 = vmatpush1.msra.mxu0 0.0
    %4077 = vmatprep.subr.mxu0 0.0
    %4078 = vmatpush1.msra.mxu0 0.0
    %4079 = vmatprep.subr.mxu0 0.0
    %4080 = vmatpush1.msra.mxu0 0.0
    %4081 = vmatprep.subr.mxu0 0.0
    %4082 = vmatpush1.msra.mxu0 0.0
    %4083 = vmatprep.subr.mxu0 0.0
    %4084 = vmatpush1.msra.mxu0 0.0
    %4085 = vmatprep.subr.mxu0 0.0
    %4086 = vmatpush1.msra.mxu0 0.0
    %4087 = vmatprep.subr.mxu0 0.0
    %4088 = vmatpush1.msra.mxu0 0.0
    %4089 = vmatprep.subr.mxu0 0.0
    %4090 = vmatpush1.msra.mxu0 0.0
    %4091 = vmatprep.subr.mxu0 0.0
    %4092 = vmatpush1.msra.mxu0 0.0
    %4093 = vmatprep.subr.mxu0 0.0
    %4094 = vmatpush1.msra.mxu0 0.0
    %4095 = vmatprep.subr.mxu0 0.0
    %4096 = vmatpush1.msra.mxu0 0.0
    %4097 = vmatprep.mubr.f32.mxu0 0.0
    %4098 = vmatmul.mubr.f32.gmra.mrb[0].mxu0 %v3785
    %v4099 = vpop.f32.mrb[0].mxu0
    %v4100 = vadd.f32 0.0, %v4099
    %v4101 = vpop.f32.mrb[0].mxu0
    %4102 = vdwg.mxu0
    %v4103 = vadd.f32 %v403, %v4100
    %v4104 = vxor.u32 %v4103, 2147483648
    %v4105 = vmul.f32 %v4104, 1.442695
    %v4106 = vpow.pop %v4105
    %v4107 = vadd.f32 %v4106, 1.0
    %v4108 = vrcp.pop %v4107
    %v4109 = vmul.f32 1.0, %v4108
    %v4110 = vtanh.pop %v4103
    %v4111 = vmul.f32 %v4109, %v3605
    %4113 = vrot.lane.b32.xlu0 %v4110, 64
    %v4114 = vpop.permute.xlu0 %4113
    %v4116 = vmul.f32 %v4109, %v4114
    %4118 = vrot.lane.b32.xlu0 %v4116, 32
    %v4119 = vpop.permute.xlu0 %4118
    %v4121 = vadd.f32 %v4111, %v4119
    %v4122 = vtanh.pop %v4121
    %4124 = vrot.lane.b32.xlu0 %v4122, 64
    %v4125 = vpop.permute.xlu0 %4124
    %v4127 = vmul.f32 %v4109, %v4125
    %4128 = vmatprep.subr.mxu0 0.0
    %4129 = vmatpush1.msra.mxu0 %v1526
    %4130 = vmatprep.subr.mxu0 0.0
    %4131 = vmatpush1.msra.mxu0 %v1527
    %4132 = vmatprep.subr.mxu0 0.0
    %4133 = vmatpush1.msra.mxu0 %v1528
    %4134 = vmatprep.subr.mxu0 0.0
    %4135 = vmatpush1.msra.mxu0 %v1529
    %4136 = vmatprep.subr.mxu0 0.0
    %4137 = vmatpush1.msra.mxu0 0.0
    %4138 = vmatprep.subr.mxu0 0.0
    %4139 = vmatpush1.msra.mxu0 0.0
    %4140 = vmatprep.subr.mxu0 0.0
    %4141 = vmatpush1.msra.mxu0 0.0
    %4142 = vmatprep.subr.mxu0 0.0
    %4143 = vmatpush1.msra.mxu0 0.0
    %4144 = vmatprep.subr.mxu0 0.0
    %4145 = vmatpush1.msra.mxu0 0.0
    %4146 = vmatprep.subr.mxu0 0.0
    %4147 = vmatpush1.msra.mxu0 0.0
    %4148 = vmatprep.subr.mxu0 0.0
    %4149 = vmatpush1.msra.mxu0 0.0
    %4150 = vmatprep.subr.mxu0 0.0
    %4151 = vmatpush1.msra.mxu0 0.0
    %4152 = vmatprep.subr.mxu0 0.0
    %4153 = vmatpush1.msra.mxu0 0.0
    %4154 = vmatprep.subr.mxu0 0.0
    %4155 = vmatpush1.msra.mxu0 0.0
    %4156 = vmatprep.subr.mxu0 0.0
    %4157 = vmatpush1.msra.mxu0 0.0
    %4158 = vmatprep.subr.mxu0 0.0
    %4159 = vmatpush1.msra.mxu0 0.0
    %4160 = vmatprep.subr.mxu0 0.0
    %4161 = vmatpush1.msra.mxu0 0.0
    %4162 = vmatprep.subr.mxu0 0.0
    %4163 = vmatpush1.msra.mxu0 0.0
    %4164 = vmatprep.subr.mxu0 0.0
    %4165 = vmatpush1.msra.mxu0 0.0
    %4166 = vmatprep.subr.mxu0 0.0
    %4167 = vmatpush1.msra.mxu0 0.0
    %4168 = vmatprep.subr.mxu0 0.0
    %4169 = vmatpush1.msra.mxu0 0.0
    %4170 = vmatprep.subr.mxu0 0.0
    %4171 = vmatpush1.msra.mxu0 0.0
    %4172 = vmatprep.subr.mxu0 0.0
    %4173 = vmatpush1.msra.mxu0 0.0
    %4174 = vmatprep.subr.mxu0 0.0
    %4175 = vmatpush1.msra.mxu0 0.0
    %4176 = vmatprep.subr.mxu0 0.0
    %4177 = vmatpush1.msra.mxu0 0.0
    %4178 = vmatprep.subr.mxu0 0.0
    %4179 = vmatpush1.msra.mxu0 0.0
    %4180 = vmatprep.subr.mxu0 0.0
    %4181 = vmatpush1.msra.mxu0 0.0
    %4182 = vmatprep.subr.mxu0 0.0
    %4183 = vmatpush1.msra.mxu0 0.0
    %4184 = vmatprep.subr.mxu0 0.0
    %4185 = vmatpush1.msra.mxu0 0.0
    %4186 = vmatprep.subr.mxu0 0.0
    %4187 = vmatpush1.msra.mxu0 0.0
    %4188 = vmatprep.subr.mxu0 0.0
    %4189 = vmatpush1.msra.mxu0 0.0
    %4190 = vmatprep.subr.mxu0 0.0
    %4191 = vmatpush1.msra.mxu0 0.0
    %4192 = vmatprep.mubr.f32.mxu0 0.0
    %4193 = vmatmul.mubr.f32.gmra.mrb[0].mxu0 %v3710
    %v4194 = vpop.f32.mrb[0].mxu0
    %v4195 = vadd.f32 0.0, %v4194
    %v4196 = vpop.f32.mrb[0].mxu0
    %4197 = vdwg.mxu0
    %v4198 = vadd.f32 %v1416, %v4195
    %v4199 = vxor.u32 %v4198, 2147483648
    %v4200 = vmul.f32 %v4199, 1.442695
    %v4201 = vpow.pop %v4200
    %v4202 = vadd.f32 %v4201, 1.0
    %v4203 = vrcp.pop %v4202
    %v4204 = vmul.f32 1.0, %v4203
    %v4205 = vtanh.pop %v4198
    %v4206 = vmul.f32 %v4204, %v3700
    %4208 = vrot.lane.b32.xlu0 %v4205, 64
    %v4209 = vpop.permute.xlu0 %4208
    %v4211 = vmul.f32 %v4204, %v4209
    %4213 = vrot.lane.b32.xlu0 %v4211, 32
    %v4214 = vpop.permute.xlu0 %4213
    %v4216 = vadd.f32 %v4206, %v4214
    %v4217 = vtanh.pop %v4216
    %4219 = vrot.lane.b32.xlu0 %v4217, 64
    %v4220 = vpop.permute.xlu0 %4219
    %v4222 = vmul.f32 %v4204, %v4220
    %4224 = vrot.lane.b32.xlu0 %v4222, 32
    %v4225 = vpop.permute.xlu0 %4224
    %v4226 = vsel %vm289, %v4225, 0
    %4228 = vmatprep.subr.mxu0 0.0
    %4229 = vmatpush1.msra.mxu0 %v1629
    %4230 = vmatprep.subr.mxu0 0.0
    %4231 = vmatpush1.msra.mxu0 %v1630
    %4232 = vmatprep.subr.mxu0 0.0
    %4233 = vmatpush1.msra.mxu0 %v1631
    %4234 = vmatprep.subr.mxu0 0.0
    %4235 = vmatpush1.msra.mxu0 %v1632
    %4236 = vmatprep.subr.mxu0 0.0
    %4237 = vmatpush1.msra.mxu0 0.0
    %4238 = vmatprep.subr.mxu0 0.0
    %4239 = vmatpush1.msra.mxu0 0.0
    %4240 = vmatprep.subr.mxu0 0.0
    %4241 = vmatpush1.msra.mxu0 0.0
    %4242 = vmatprep.subr.mxu0 0.0
    %4243 = vmatpush1.msra.mxu0 0.0
    %4244 = vmatprep.subr.mxu0 0.0
    %4245 = vmatpush1.msra.mxu0 0.0
    %4246 = vmatprep.subr.mxu0 0.0
    %4247 = vmatpush1.msra.mxu0 0.0
    %4248 = vmatprep.subr.mxu0 0.0
    %4249 = vmatpush1.msra.mxu0 0.0
    %4250 = vmatprep.subr.mxu0 0.0
    %4251 = vmatpush1.msra.mxu0 0.0
    %4252 = vmatprep.subr.mxu0 0.0
    %4253 = vmatpush1.msra.mxu0 0.0
    %4254 = vmatprep.subr.mxu0 0.0
    %4255 = vmatpush1.msra.mxu0 0.0
    %4256 = vmatprep.subr.mxu0 0.0
    %4257 = vmatpush1.msra.mxu0 0.0
    %4258 = vmatprep.subr.mxu0 0.0
    %4259 = vmatpush1.msra.mxu0 0.0
    %4260 = vmatprep.subr.mxu0 0.0
    %4261 = vmatpush1.msra.mxu0 0.0
    %4262 = vmatprep.subr.mxu0 0.0
    %4263 = vmatpush1.msra.mxu0 0.0
    %4264 = vmatprep.subr.mxu0 0.0
    %4265 = vmatpush1.msra.mxu0 0.0
    %4266 = vmatprep.subr.mxu0 0.0
    %4267 = vmatpush1.msra.mxu0 0.0
    %4268 = vmatprep.subr.mxu0 0.0
    %4269 = vmatpush1.msra.mxu0 0.0
    %4270 = vmatprep.subr.mxu0 0.0
    %4271 = vmatpush1.msra.mxu0 0.0
    %4272 = vmatprep.subr.mxu0 0.0
    %4273 = vmatpush1.msra.mxu0 0.0
    %4274 = vmatprep.subr.mxu0 0.0
    %4275 = vmatpush1.msra.mxu0 0.0
    %4276 = vmatprep.subr.mxu0 0.0
    %4277 = vmatpush1.msra.mxu0 0.0
    %4278 = vmatprep.subr.mxu0 0.0
    %4279 = vmatpush1.msra.mxu0 0.0
    %4280 = vmatprep.subr.mxu0 0.0
    %4281 = vmatpush1.msra.mxu0 0.0
    %4282 = vmatprep.subr.mxu0 0.0
    %4283 = vmatpush1.msra.mxu0 0.0
    %4284 = vmatprep.subr.mxu0 0.0
    %4285 = vmatpush1.msra.mxu0 0.0
    %4286 = vmatprep.subr.mxu0 0.0
    %4287 = vmatpush1.msra.mxu0 0.0
    %4288 = vmatprep.subr.mxu0 0.0
    %4289 = vmatpush1.msra.mxu0 0.0
    %4290 = vmatprep.subr.mxu0 0.0
    %4291 = vmatpush1.msra.mxu0 0.0
    %4292 = vmatprep.mubr.f32.mxu0 0.0
    %4293 = vmatmul.mubr.f32.gmra.mrb[0].mxu0 %v4226
    %v4294 = vpop.f32.mrb[0].mxu0
    %v4295 = vadd.f32 0.0, %v4294
    %v4296 = vpop.f32.mrb[0].mxu0
    %4297 = vdwg.mxu0
    %4299 = vrot.lane.b32.xlu0 %v4127, 32
    %v4300 = vpop.permute.xlu0 %4299
    %v4301 = vsel %vm289, %v4300, 0
    %4303 = vmatprep.subr.mxu0 0.0
    %4304 = vmatpush1.msra.mxu0 %v1625
    %4305 = vmatprep.subr.mxu0 0.0
    %4306 = vmatpush1.msra.mxu0 %v1626
    %4307 = vmatprep.subr.mxu0 0.0
    %4308 = vmatpush1.msra.mxu0 %v1627
    %4309 = vmatprep.subr.mxu0 0.0
    %4310 = vmatpush1.msra.mxu0 %v1628
    %4311 = vmatprep.subr.mxu0 0.0
    %4312 = vmatpush1.msra.mxu0 0.0
    %4313 = vmatprep.subr.mxu0 0.0
    %4314 = vmatpush1.msra.mxu0 0.0
    %4315 = vmatprep.subr.mxu0 0.0
    %4316 = vmatpush1.msra.mxu0 0.0
    %4317 = vmatprep.subr.mxu0 0.0
    %4318 = vmatpush1.msra.mxu0 0.0
    %4319 = vmatprep.subr.mxu0 0.0
    %4320 = vmatpush1.msra.mxu0 0.0
    %4321 = vmatprep.subr.mxu0 0.0
    %4322 = vmatpush1.msra.mxu0 0.0
    %4323 = vmatprep.subr.mxu0 0.0
    %4324 = vmatpush1.msra.mxu0 0.0
    %4325 = vmatprep.subr.mxu0 0.0
    %4326 = vmatpush1.msra.mxu0 0.0
    %4327 = vmatprep.subr.mxu0 0.0
    %4328 = vmatpush1.msra.mxu0 0.0
    %4329 = vmatprep.subr.mxu0 0.0
    %4330 = vmatpush1.msra.mxu0 0.0
    %4331 = vmatprep.subr.mxu0 0.0
    %4332 = vmatpush1.msra.mxu0 0.0
    %4333 = vmatprep.subr.mxu0 0.0
    %4334 = vmatpush1.msra.mxu0 0.0
    %4335 = vmatprep.subr.mxu0 0.0
    %4336 = vmatpush1.msra.mxu0 0.0
    %4337 = vmatprep.subr.mxu0 0.0
    %4338 = vmatpush1.msra.mxu0 0.0
    %4339 = vmatprep.subr.mxu0 0.0
    %4340 = vmatpush1.msra.mxu0 0.0
    %4341 = vmatprep.subr.mxu0 0.0
    %4342 = vmatpush1.msra.mxu0 0.0
    %4343 = vmatprep.subr.mxu0 0.0
    %4344 = vmatpush1.msra.mxu0 0.0
    %4345 = vmatprep.subr.mxu0 0.0
    %4346 = vmatpush1.msra.mxu0 0.0
    %4347 = vmatprep.subr.mxu0 0.0
    %4348 = vmatpush1.msra.mxu0 0.0
    %4349 = vmatprep.subr.mxu0 0.0
    %4350 = vmatpush1.msra.mxu0 0.0
    %4351 = vmatprep.subr.mxu0 0.0
    %4352 = vmatpush1.msra.mxu0 0.0
    %4353 = vmatprep.subr.mxu0 0.0
    %4354 = vmatpush1.msra.mxu0 0.0
    %4355 = vmatprep.subr.mxu0 0.0
    %4356 = vmatpush1.msra.mxu0 0.0
    %4357 = vmatprep.subr.mxu0 0.0
    %4358 = vmatpush1.msra.mxu0 0.0
    %4359 = vmatprep.subr.mxu0 0.0
    %4360 = vmatpush1.msra.mxu0 0.0
    %4361 = vmatprep.subr.mxu0 0.0
    %4362 = vmatpush1.msra.mxu0 0.0
    %4363 = vmatprep.subr.mxu0 0.0
    %4364 = vmatpush1.msra.mxu0 0.0
    %4365 = vmatprep.subr.mxu0 0.0
    %4366 = vmatpush1.msra.mxu0 0.0
    %4367 = vmatprep.mubr.f32.mxu0 0.0
    %4368 = vmatmul.mubr.f32.gmra.mrb[0].mxu0 %v4301
    %v4369 = vpop.f32.mrb[0].mxu0
    %v4370 = vadd.f32 %v4295, %v4369
    %v4371 = vpop.f32.mrb[0].mxu0
    %4372 = vdwg.mxu0
    %v4373 = vadd.f32 %v4370, %v1788
    %v4374 = vmax.f32 %v4373, 0.0
    %v4376 = vsel %vm289, %v4374, 0
    %4378 = vmatprep.subr.mxu0 0.0
    %4379 = vmatpush1.msra.mxu0 %v1792
    %4380 = vmatprep.subr.mxu0 0.0
    %4381 = vmatpush1.msra.mxu0 %v1793
    %4382 = vmatprep.subr.mxu0 0.0
    %4383 = vmatpush1.msra.mxu0 %v1794
    %4384 = vmatprep.subr.mxu0 0.0
    %4385 = vmatpush1.msra.mxu0 %v1795
    %4386 = vmatprep.subr.mxu0 0.0
    %4387 = vmatpush1.msra.mxu0 0.0
    %4388 = vmatprep.subr.mxu0 0.0
    %4389 = vmatpush1.msra.mxu0 0.0
    %4390 = vmatprep.subr.mxu0 0.0
    %4391 = vmatpush1.msra.mxu0 0.0
    %4392 = vmatprep.subr.mxu0 0.0
    %4393 = vmatpush1.msra.mxu0 0.0
    %4394 = vmatprep.subr.mxu0 0.0
    %4395 = vmatpush1.msra.mxu0 0.0
    %4396 = vmatprep.subr.mxu0 0.0
    %4397 = vmatpush1.msra.mxu0 0.0
    %4398 = vmatprep.subr.mxu0 0.0
    %4399 = vmatpush1.msra.mxu0 0.0
    %4400 = vmatprep.subr.mxu0 0.0
    %4401 = vmatpush1.msra.mxu0 0.0
    %4402 = vmatprep.subr.mxu0 0.0
    %4403 = vmatpush1.msra.mxu0 0.0
    %4404 = vmatprep.subr.mxu0 0.0
    %4405 = vmatpush1.msra.mxu0 0.0
    %4406 = vmatprep.subr.mxu0 0.0
    %4407 = vmatpush1.msra.mxu0 0.0
    %4408 = vmatprep.subr.mxu0 0.0
    %4409 = vmatpush1.msra.mxu0 0.0
    %4410 = vmatprep.subr.mxu0 0.0
    %4411 = vmatpush1.msra.mxu0 0.0
    %4412 = vmatprep.subr.mxu0 0.0
    %4413 = vmatpush1.msra.mxu0 0.0
    %4414 = vmatprep.subr.mxu0 0.0
    %4415 = vmatpush1.msra.mxu0 0.0
    %4416 = vmatprep.subr.mxu0 0.0
    %4417 = vmatpush1.msra.mxu0 0.0
    %4418 = vmatprep.subr.mxu0 0.0
    %4419 = vmatpush1.msra.mxu0 0.0
    %4420 = vmatprep.subr.mxu0 0.0
    %4421 = vmatpush1.msra.mxu0 0.0
    %4422 = vmatprep.subr.mxu0 0.0
    %4423 = vmatpush1.msra.mxu0 0.0
    %4424 = vmatprep.subr.mxu0 0.0
    %4425 = vmatpush1.msra.mxu0 0.0
    %4426 = vmatprep.subr.mxu0 0.0
    %4427 = vmatpush1.msra.mxu0 0.0
    %4428 = vmatprep.subr.mxu0 0.0
    %4429 = vmatpush1.msra.mxu0 0.0
    %4430 = vmatprep.subr.mxu0 0.0
    %4431 = vmatpush1.msra.mxu0 0.0
    %4432 = vmatprep.subr.mxu0 0.0
    %4433 = vmatpush1.msra.mxu0 0.0
    %4434 = vmatprep.subr.mxu0 0.0
    %4435 = vmatpush1.msra.mxu0 0.0
    %4436 = vmatprep.subr.mxu0 0.0
    %4437 = vmatpush1.msra.mxu0 0.0
    %4438 = vmatprep.subr.mxu0 0.0
    %4439 = vmatpush1.msra.mxu0 0.0
    %4440 = vmatprep.subr.mxu0 0.0
    %4441 = vmatpush1.msra.mxu0 0.0
    %4442 = vmatprep.mubr.f32.mxu0 0.0
    %4443 = vmatmul.mubr.f32.gmra.mrb[0].mxu0 %v4376
    %v4444 = vpop.f32.mrb[0].mxu0
    %v4445 = vadd.f32 0.0, %v4444
    %v4446 = vpop.f32.mrb[0].mxu0
    %4447 = vdwg.mxu0
    %v4448 = vadd.f32 %v671, %v4445
    %4450 = vrot.lane.b32.xlu0 %v4032, 32
    %v4451 = vpop.permute.xlu0 %4450
    %v4452 = vsel %vm289, %v4451, 0
    %4454 = vmatprep.subr.mxu0 0.0
    %4455 = vmatpush1.msra.mxu0 %v1870
    %4456 = vmatprep.subr.mxu0 0.0
    %4457 = vmatpush1.msra.mxu0 %v1871
    %4458 = vmatprep.subr.mxu0 0.0
    %4459 = vmatpush1.msra.mxu0 %v1872
    %4460 = vmatprep.subr.mxu0 0.0
    %4461 = vmatpush1.msra.mxu0 %v1873
    %4462 = vmatprep.subr.mxu0 0.0
    %4463 = vmatpush1.msra.mxu0 0.0
    %4464 = vmatprep.subr.mxu0 0.0
    %4465 = vmatpush1.msra.mxu0 0.0
    %4466 = vmatprep.subr.mxu0 0.0
    %4467 = vmatpush1.msra.mxu0 0.0
    %4468 = vmatprep.subr.mxu0 0.0
    %4469 = vmatpush1.msra.mxu0 0.0
    %4470 = vmatprep.subr.mxu0 0.0
    %4471 = vmatpush1.msra.mxu0 0.0
    %4472 = vmatprep.subr.mxu0 0.0
    %4473 = vmatpush1.msra.mxu0 0.0
    %4474 = vmatprep.subr.mxu0 0.0
    %4475 = vmatpush1.msra.mxu0 0.0
    %4476 = vmatprep.subr.mxu0 0.0
    %4477 = vmatpush1.msra.mxu0 0.0
    %4478 = vmatprep.subr.mxu0 0.0
    %4479 = vmatpush1.msra.mxu0 0.0
    %4480 = vmatprep.subr.mxu0 0.0
    %4481 = vmatpush1.msra.mxu0 0.0
    %4482 = vmatprep.subr.mxu0 0.0
    %4483 = vmatpush1.msra.mxu0 0.0
    %4484 = vmatprep.subr.mxu0 0.0
    %4485 = vmatpush1.msra.mxu0 0.0
    %4486 = vmatprep.subr.mxu0 0.0
    %4487 = vmatpush1.msra.mxu0 0.0
    %4488 = vmatprep.subr.mxu0 0.0
    %4489 = vmatpush1.msra.mxu0 0.0
    %4490 = vmatprep.subr.mxu0 0.0
    %4491 = vmatpush1.msra.mxu0 0.0
    %4492 = vmatprep.subr.mxu0 0.0
    %4493 = vmatpush1.msra.mxu0 0.0
    %4494 = vmatprep.subr.mxu0 0.0
    %4495 = vmatpush1.msra.mxu0 0.0
    %4496 = vmatprep.subr.mxu0 0.0
    %4497 = vmatpush1.msra.mxu0 0.0
    %4498 = vmatprep.subr.mxu0 0.0
    %4499 = vmatpush1.msra.mxu0 0.0
    %4500 = vmatprep.subr.mxu0 0.0
    %4501 = vmatpush1.msra.mxu0 0.0
    %4502 = vmatprep.subr.mxu0 0.0
    %4503 = vmatpush1.msra.mxu0 0.0
    %4504 = vmatprep.subr.mxu0 0.0
    %4505 = vmatpush1.msra.mxu0 0.0
    %4506 = vmatprep.subr.mxu0 0.0
    %4507 = vmatpush1.msra.mxu0 0.0
    %4508 = vmatprep.subr.mxu0 0.0
    %4509 = vmatpush1.msra.mxu0 0.0
    %4510 = vmatprep.subr.mxu0 0.0
    %4511 = vmatpush1.msra.mxu0 0.0
    %4512 = vmatprep.subr.mxu0 0.0
    %4513 = vmatpush1.msra.mxu0 0.0
    %4514 = vmatprep.subr.mxu0 0.0
    %4515 = vmatpush1.msra.mxu0 0.0
    %4516 = vmatprep.subr.mxu0 0.0
    %4517 = vmatpush1.msra.mxu0 0.0
    %4518 = vmatprep.mubr.f32.mxu0 0.0
    %4519 = vmatmul.mubr.f32.gmra.mrb[0].mxu0 %v4452
    %v4520 = vpop.f32.mrb[0].mxu0
    %v4521 = vadd.f32 0.0, %v4520
    %v4522 = vpop.f32.mrb[0].mxu0
    %4523 = vdwg.mxu0
    %v4524 = vadd.f32 %v4448, %v4521
    %v4525 = vxor.u32 %v4524, 2147483648
    %v4526 = vmul.f32 %v4525, 1.442695
    %v4527 = vpow.pop %v4526
    %v4528 = vadd.f32 %v4527, 1.0
    %v4529 = vrcp.pop %v4528
    %v4530 = vmul.f32 1.0, %v4529
    %v4531 = vtanh.pop %v4524
    %v4532 = vmul.f32 %v4530, %v4026
    %4534 = vrot.lane.b32.xlu0 %v4531, 64
    %v4535 = vpop.permute.xlu0 %4534
    %v4537 = vmul.f32 %v4530, %v4535
    %4539 = vrot.lane.b32.xlu0 %v4537, 32
    %v4540 = vpop.permute.xlu0 %4539
    %v4542 = vadd.f32 %v4532, %v4540
    %v4543 = vtanh.pop %v4542
    %4545 = vrot.lane.b32.xlu0 %v4543, 64
    %v4546 = vpop.permute.xlu0 %4545
    %v4548 = vmul.f32 %v4530, %v4546
    %4549 = vmatprep.subr.mxu0 0.0
    %4550 = vmatpush1.msra.mxu0 %v1424
    %4551 = vmatprep.subr.mxu0 0.0
    %4552 = vmatpush1.msra.mxu0 %v1425
    %4553 = vmatprep.subr.mxu0 0.0
    %4554 = vmatpush1.msra.mxu0 %v1426
    %4555 = vmatprep.subr.mxu0 0.0
    %4556 = vmatpush1.msra.mxu0 %v1427
    %4557 = vmatprep.subr.mxu0 0.0
    %4558 = vmatpush1.msra.mxu0 0.0
    %4559 = vmatprep.subr.mxu0 0.0
    %4560 = vmatpush1.msra.mxu0 0.0
    %4561 = vmatprep.subr.mxu0 0.0
    %4562 = vmatpush1.msra.mxu0 0.0
    %4563 = vmatprep.subr.mxu0 0.0
    %4564 = vmatpush1.msra.mxu0 0.0
    %4565 = vmatprep.subr.mxu0 0.0
    %4566 = vmatpush1.msra.mxu0 0.0
    %4567 = vmatprep.subr.mxu0 0.0
    %4568 = vmatpush1.msra.mxu0 0.0
    %4569 = vmatprep.subr.mxu0 0.0
    %4570 = vmatpush1.msra.mxu0 0.0
    %4571 = vmatprep.subr.mxu0 0.0
    %4572 = vmatpush1.msra.mxu0 0.0
    %4573 = vmatprep.subr.mxu0 0.0
    %4574 = vmatpush1.msra.mxu0 0.0
    %4575 = vmatprep.subr.mxu0 0.0
    %4576 = vmatpush1.msra.mxu0 0.0
    %4577 = vmatprep.subr.mxu0 0.0
    %4578 = vmatpush1.msra.mxu0 0.0
    %4579 = vmatprep.subr.mxu0 0.0
    %4580 = vmatpush1.msra.mxu0 0.0
    %4581 = vmatprep.subr.mxu0 0.0
    %4582 = vmatpush1.msra.mxu0 0.0
    %4583 = vmatprep.subr.mxu0 0.0
    %4584 = vmatpush1.msra.mxu0 0.0
    %4585 = vmatprep.subr.mxu0 0.0
    %4586 = vmatpush1.msra.mxu0 0.0
    %4587 = vmatprep.subr.mxu0 0.0
    %4588 = vmatpush1.msra.mxu0 0.0
    %4589 = vmatprep.subr.mxu0 0.0
    %4590 = vmatpush1.msra.mxu0 0.0
    %4591 = vmatprep.subr.mxu0 0.0
    %4592 = vmatpush1.msra.mxu0 0.0
    %4593 = vmatprep.subr.mxu0 0.0
    %4594 = vmatpush1.msra.mxu0 0.0
    %4595 = vmatprep.subr.mxu0 0.0
    %4596 = vmatpush1.msra.mxu0 0.0
    %4597 = vmatprep.subr.mxu0 0.0
    %4598 = vmatpush1.msra.mxu0 0.0
    %4599 = vmatprep.subr.mxu0 0.0
    %4600 = vmatpush1.msra.mxu0 0.0
    %4601 = vmatprep.subr.mxu0 0.0
    %4602 = vmatpush1.msra.mxu0 0.0
    %4603 = vmatprep.subr.mxu0 0.0
    %4604 = vmatpush1.msra.mxu0 0.0
    %4605 = vmatprep.subr.mxu0 0.0
    %4606 = vmatpush1.msra.mxu0 0.0
    %4607 = vmatprep.subr.mxu0 0.0
    %4608 = vmatpush1.msra.mxu0 0.0
    %4609 = vmatprep.subr.mxu0 0.0
    %4610 = vmatpush1.msra.mxu0 0.0
    %4611 = vmatprep.subr.mxu0 0.0
    %4612 = vmatpush1.msra.mxu0 0.0
    %4613 = vmatprep.mubr.f32.mxu0 0.0
    %4614 = vmatmul.mubr.f32.gmra.mrb[0].mxu0 %v4301
    %v4615 = vpop.f32.mrb[0].mxu0
    %v4616 = vadd.f32 0.0, %v4615
    %v4617 = vpop.f32.mrb[0].mxu0
    %4618 = vdwg.mxu0
    %v4619 = vadd.f32 %v408, %v4616
    %v4620 = vxor.u32 %v4619, 2147483648
    %v4621 = vmul.f32 %v4620, 1.442695
    %v4622 = vpow.pop %v4621
    %v4623 = vadd.f32 %v4622, 1.0
    %v4624 = vrcp.pop %v4623
    %v4625 = vmul.f32 1.0, %v4624
    %v4626 = vtanh.pop %v4619
    %v4627 = vmul.f32 %v4625, %v4121
    %4629 = vrot.lane.b32.xlu0 %v4626, 64
    %v4630 = vpop.permute.xlu0 %4629
    %v4632 = vmul.f32 %v4625, %v4630
    %4634 = vrot.lane.b32.xlu0 %v4632, 32
    %v4635 = vpop.permute.xlu0 %4634
    %v4637 = vadd.f32 %v4627, %v4635
    %v4638 = vtanh.pop %v4637
    %4640 = vrot.lane.b32.xlu0 %v4638, 64
    %v4641 = vpop.permute.xlu0 %4640
    %v4643 = vmul.f32 %v4625, %v4641
    %4644 = vmatprep.subr.mxu0 0.0
    %4645 = vmatpush1.msra.mxu0 %v1526
    %4646 = vmatprep.subr.mxu0 0.0
    %4647 = vmatpush1.msra.mxu0 %v1527
    %4648 = vmatprep.subr.mxu0 0.0
    %4649 = vmatpush1.msra.mxu0 %v1528
    %4650 = vmatprep.subr.mxu0 0.0
    %4651 = vmatpush1.msra.mxu0 %v1529
    %4652 = vmatprep.subr.mxu0 0.0
    %4653 = vmatpush1.msra.mxu0 0.0
    %4654 = vmatprep.subr.mxu0 0.0
    %4655 = vmatpush1.msra.mxu0 0.0
    %4656 = vmatprep.subr.mxu0 0.0
    %4657 = vmatpush1.msra.mxu0 0.0
    %4658 = vmatprep.subr.mxu0 0.0
    %4659 = vmatpush1.msra.mxu0 0.0
    %4660 = vmatprep.subr.mxu0 0.0
    %4661 = vmatpush1.msra.mxu0 0.0
    %4662 = vmatprep.subr.mxu0 0.0
    %4663 = vmatpush1.msra.mxu0 0.0
    %4664 = vmatprep.subr.mxu0 0.0
    %4665 = vmatpush1.msra.mxu0 0.0
    %4666 = vmatprep.subr.mxu0 0.0
    %4667 = vmatpush1.msra.mxu0 0.0
    %4668 = vmatprep.subr.mxu0 0.0
    %4669 = vmatpush1.msra.mxu0 0.0
    %4670 = vmatprep.subr.mxu0 0.0
    %4671 = vmatpush1.msra.mxu0 0.0
    %4672 = vmatprep.subr.mxu0 0.0
    %4673 = vmatpush1.msra.mxu0 0.0
    %4674 = vmatprep.subr.mxu0 0.0
    %4675 = vmatpush1.msra.mxu0 0.0
    %4676 = vmatprep.subr.mxu0 0.0
    %4677 = vmatpush1.msra.mxu0 0.0
    %4678 = vmatprep.subr.mxu0 0.0
    %4679 = vmatpush1.msra.mxu0 0.0
    %4680 = vmatprep.subr.mxu0 0.0
    %4681 = vmatpush1.msra.mxu0 0.0
    %4682 = vmatprep.subr.mxu0 0.0
    %4683 = vmatpush1.msra.mxu0 0.0
    %4684 = vmatprep.subr.mxu0 0.0
    %4685 = vmatpush1.msra.mxu0 0.0
    %4686 = vmatprep.subr.mxu0 0.0
    %4687 = vmatpush1.msra.mxu0 0.0
    %4688 = vmatprep.subr.mxu0 0.0
    %4689 = vmatpush1.msra.mxu0 0.0
    %4690 = vmatprep.subr.mxu0 0.0
    %4691 = vmatpush1.msra.mxu0 0.0
    %4692 = vmatprep.subr.mxu0 0.0
    %4693 = vmatpush1.msra.mxu0 0.0
    %4694 = vmatprep.subr.mxu0 0.0
    %4695 = vmatpush1.msra.mxu0 0.0
    %4696 = vmatprep.subr.mxu0 0.0
    %4697 = vmatpush1.msra.mxu0 0.0
    %4698 = vmatprep.subr.mxu0 0.0
    %4699 = vmatpush1.msra.mxu0 0.0
    %4700 = vmatprep.subr.mxu0 0.0
    %4701 = vmatpush1.msra.mxu0 0.0
    %4702 = vmatprep.subr.mxu0 0.0
    %4703 = vmatpush1.msra.mxu0 0.0
    %4704 = vmatprep.subr.mxu0 0.0
    %4705 = vmatpush1.msra.mxu0 0.0
    %4706 = vmatprep.subr.mxu0 0.0
    %4707 = vmatpush1.msra.mxu0 0.0
    %4708 = vmatprep.mubr.f32.mxu0 0.0
    %4709 = vmatmul.mubr.f32.gmra.mrb[0].mxu0 %v4226
    %v4710 = vpop.f32.mrb[0].mxu0
    %v4711 = vadd.f32 0.0, %v4710
    %v4712 = vpop.f32.mrb[0].mxu0
    %4713 = vdwg.mxu0
    %v4714 = vadd.f32 %v1421, %v4711
    %v4715 = vxor.u32 %v4714, 2147483648
    %v4716 = vmul.f32 %v4715, 1.442695
    %v4717 = vpow.pop %v4716
    %v4718 = vadd.f32 %v4717, 1.0
    %v4719 = vrcp.pop %v4718
    %v4720 = vmul.f32 1.0, %v4719
    %v4721 = vtanh.pop %v4714
    %v4722 = vmul.f32 %v4720, %v4216
    %4724 = vrot.lane.b32.xlu0 %v4721, 64
    %v4725 = vpop.permute.xlu0 %4724
    %v4727 = vmul.f32 %v4720, %v4725
    %4729 = vrot.lane.b32.xlu0 %v4727, 32
    %v4730 = vpop.permute.xlu0 %4729
    %v4732 = vadd.f32 %v4722, %v4730
    %v4733 = vtanh.pop %v4732
    %4735 = vrot.lane.b32.xlu0 %v4733, 64
    %v4736 = vpop.permute.xlu0 %4735
    %v4738 = vmul.f32 %v4720, %v4736
    %4740 = vrot.lane.b32.xlu0 %v4738, 32
    %v4741 = vpop.permute.xlu0 %4740
    %v4742 = vsel %vm289, %v4741, 0
    %4744 = vmatprep.subr.mxu0 0.0
    %4745 = vmatpush1.msra.mxu0 %v1629
    %4746 = vmatprep.subr.mxu0 0.0
    %4747 = vmatpush1.msra.mxu0 %v1630
    %4748 = vmatprep.subr.mxu0 0.0
    %4749 = vmatpush1.msra.mxu0 %v1631
    %4750 = vmatprep.subr.mxu0 0.0
    %4751 = vmatpush1.msra.mxu0 %v1632
    %4752 = vmatprep.subr.mxu0 0.0
    %4753 = vmatpush1.msra.mxu0 0.0
    %4754 = vmatprep.subr.mxu0 0.0
    %4755 = vmatpush1.msra.mxu0 0.0
    %4756 = vmatprep.subr.mxu0 0.0
    %4757 = vmatpush1.msra.mxu0 0.0
    %4758 = vmatprep.subr.mxu0 0.0
    %4759 = vmatpush1.msra.mxu0 0.0
    %4760 = vmatprep.subr.mxu0 0.0
    %4761 = vmatpush1.msra.mxu0 0.0
    %4762 = vmatprep.subr.mxu0 0.0
    %4763 = vmatpush1.msra.mxu0 0.0
    %4764 = vmatprep.subr.mxu0 0.0
    %4765 = vmatpush1.msra.mxu0 0.0
    %4766 = vmatprep.subr.mxu0 0.0
    %4767 = vmatpush1.msra.mxu0 0.0
    %4768 = vmatprep.subr.mxu0 0.0
    %4769 = vmatpush1.msra.mxu0 0.0
    %4770 = vmatprep.subr.mxu0 0.0
    %4771 = vmatpush1.msra.mxu0 0.0
    %4772 = vmatprep.subr.mxu0 0.0
    %4773 = vmatpush1.msra.mxu0 0.0
    %4774 = vmatprep.subr.mxu0 0.0
    %4775 = vmatpush1.msra.mxu0 0.0
    %4776 = vmatprep.subr.mxu0 0.0
    %4777 = vmatpush1.msra.mxu0 0.0
    %4778 = vmatprep.subr.mxu0 0.0
    %4779 = vmatpush1.msra.mxu0 0.0
    %4780 = vmatprep.subr.mxu0 0.0
    %4781 = vmatpush1.msra.mxu0 0.0
    %4782 = vmatprep.subr.mxu0 0.0
    %4783 = vmatpush1.msra.mxu0 0.0
    %4784 = vmatprep.subr.mxu0 0.0
    %4785 = vmatpush1.msra.mxu0 0.0
    %4786 = vmatprep.subr.mxu0 0.0
    %4787 = vmatpush1.msra.mxu0 0.0
    %4788 = vmatprep.subr.mxu0 0.0
    %4789 = vmatpush1.msra.mxu0 0.0
    %4790 = vmatprep.subr.mxu0 0.0
    %4791 = vmatpush1.msra.mxu0 0.0
    %4792 = vmatprep.subr.mxu0 0.0
    %4793 = vmatpush1.msra.mxu0 0.0
    %4794 = vmatprep.subr.mxu0 0.0
    %4795 = vmatpush1.msra.mxu0 0.0
    %4796 = vmatprep.subr.mxu0 0.0
    %4797 = vmatpush1.msra.mxu0 0.0
    %4798 = vmatprep.subr.mxu0 0.0
    %4799 = vmatpush1.msra.mxu0 0.0
    %4800 = vmatprep.subr.mxu0 0.0
    %4801 = vmatpush1.msra.mxu0 0.0
    %4802 = vmatprep.subr.mxu0 0.0
    %4803 = vmatpush1.msra.mxu0 0.0
    %4804 = vmatprep.subr.mxu0 0.0
    %4805 = vmatpush1.msra.mxu0 0.0
    %4806 = vmatprep.subr.mxu0 0.0
    %4807 = vmatpush1.msra.mxu0 0.0
    %4808 = vmatprep.mubr.f32.mxu0 0.0
    %4809 = vmatmul.mubr.f32.gmra.mrb[0].mxu0 %v4742
    %v4810 = vpop.f32.mrb[0].mxu0
    %v4811 = vadd.f32 0.0, %v4810
    %v4812 = vpop.f32.mrb[0].mxu0
    %4813 = vdwg.mxu0
    %4815 = vrot.lane.b32.xlu0 %v4643, 32
    %v4816 = vpop.permute.xlu0 %4815
    %v4817 = vsel %vm289, %v4816, 0
    %4819 = vmatprep.subr.mxu0 0.0
    %4820 = vmatpush1.msra.mxu0 %v1625
    %4821 = vmatprep.subr.mxu0 0.0
    %4822 = vmatpush1.msra.mxu0 %v1626
    %4823 = vmatprep.subr.mxu0 0.0
    %4824 = vmatpush1.msra.mxu0 %v1627
    %4825 = vmatprep.subr.mxu0 0.0
    %4826 = vmatpush1.msra.mxu0 %v1628
    %4827 = vmatprep.subr.mxu0 0.0
    %4828 = vmatpush1.msra.mxu0 0.0
    %4829 = vmatprep.subr.mxu0 0.0
    %4830 = vmatpush1.msra.mxu0 0.0
    %4831 = vmatprep.subr.mxu0 0.0
    %4832 = vmatpush1.msra.mxu0 0.0
    %4833 = vmatprep.subr.mxu0 0.0
    %4834 = vmatpush1.msra.mxu0 0.0
    %4835 = vmatprep.subr.mxu0 0.0
    %4836 = vmatpush1.msra.mxu0 0.0
    %4837 = vmatprep.subr.mxu0 0.0
    %4838 = vmatpush1.msra.mxu0 0.0
    %4839 = vmatprep.subr.mxu0 0.0
    %4840 = vmatpush1.msra.mxu0 0.0
    %4841 = vmatprep.subr.mxu0 0.0
    %4842 = vmatpush1.msra.mxu0 0.0
    %4843 = vmatprep.subr.mxu0 0.0
    %4844 = vmatpush1.msra.mxu0 0.0
    %4845 = vmatprep.subr.mxu0 0.0
    %4846 = vmatpush1.msra.mxu0 0.0
    %4847 = vmatprep.subr.mxu0 0.0
    %4848 = vmatpush1.msra.mxu0 0.0
    %4849 = vmatprep.subr.mxu0 0.0
    %4850 = vmatpush1.msra.mxu0 0.0
    %4851 = vmatprep.subr.mxu0 0.0
    %4852 = vmatpush1.msra.mxu0 0.0
    %4853 = vmatprep.subr.mxu0 0.0
    %4854 = vmatpush1.msra.mxu0 0.0
    %4855 = vmatprep.subr.mxu0 0.0
    %4856 = vmatpush1.msra.mxu0 0.0
    %4857 = vmatprep.subr.mxu0 0.0
    %4858 = vmatpush1.msra.mxu0 0.0
    %4859 = vmatprep.subr.mxu0 0.0
    %4860 = vmatpush1.msra.mxu0 0.0
    %4861 = vmatprep.subr.mxu0 0.0
    %4862 = vmatpush1.msra.mxu0 0.0
    %4863 = vmatprep.subr.mxu0 0.0
    %4864 = vmatpush1.msra.mxu0 0.0
    %4865 = vmatprep.subr.mxu0 0.0
    %4866 = vmatpush1.msra.mxu0 0.0
    %4867 = vmatprep.subr.mxu0 0.0
    %4868 = vmatpush1.msra.mxu0 0.0
    %4869 = vmatprep.subr.mxu0 0.0
    %4870 = vmatpush1.msra.mxu0 0.0
    %4871 = vmatprep.subr.mxu0 0.0
    %4872 = vmatpush1.msra.mxu0 0.0
    %4873 = vmatprep.subr.mxu0 0.0
    %4874 = vmatpush1.msra.mxu0 0.0
    %4875 = vmatprep.subr.mxu0 0.0
    %4876 = vmatpush1.msra.mxu0 0.0
    %4877 = vmatprep.subr.mxu0 0.0
    %4878 = vmatpush1.msra.mxu0 0.0
    %4879 = vmatprep.subr.mxu0 0.0
    %4880 = vmatpush1.msra.mxu0 0.0
    %4881 = vmatprep.subr.mxu0 0.0
    %4882 = vmatpush1.msra.mxu0 0.0
    %4883 = vmatprep.mubr.f32.mxu0 0.0
    %4884 = vmatmul.mubr.f32.gmra.mrb[0].mxu0 %v4817
    %v4885 = vpop.f32.mrb[0].mxu0
    %v4886 = vadd.f32 %v4811, %v4885
    %v4887 = vpop.f32.mrb[0].mxu0
    %4888 = vdwg.mxu0
    %v4889 = vadd.f32 %v4886, %v1788
    %v4890 = vmax.f32 %v4889, 0.0
    %v4892 = vsel %vm289, %v4890, 0
    %4894 = vmatprep.subr.mxu0 0.0
    %4895 = vmatpush1.msra.mxu0 %v1792
    %4896 = vmatprep.subr.mxu0 0.0
    %4897 = vmatpush1.msra.mxu0 %v1793
    %4898 = vmatprep.subr.mxu0 0.0
    %4899 = vmatpush1.msra.mxu0 %v1794
    %4900 = vmatprep.subr.mxu0 0.0
    %4901 = vmatpush1.msra.mxu0 %v1795
    %4902 = vmatprep.subr.mxu0 0.0
    %4903 = vmatpush1.msra.mxu0 0.0
    %4904 = vmatprep.subr.mxu0 0.0
    %4905 = vmatpush1.msra.mxu0 0.0
    %4906 = vmatprep.subr.mxu0 0.0
    %4907 = vmatpush1.msra.mxu0 0.0
    %4908 = vmatprep.subr.mxu0 0.0
    %4909 = vmatpush1.msra.mxu0 0.0
    %4910 = vmatprep.subr.mxu0 0.0
    %4911 = vmatpush1.msra.mxu0 0.0
    %4912 = vmatprep.subr.mxu0 0.0
    %4913 = vmatpush1.msra.mxu0 0.0
    %4914 = vmatprep.subr.mxu0 0.0
    %4915 = vmatpush1.msra.mxu0 0.0
    %4916 = vmatprep.subr.mxu0 0.0
    %4917 = vmatpush1.msra.mxu0 0.0
    %4918 = vmatprep.subr.mxu0 0.0
    %4919 = vmatpush1.msra.mxu0 0.0
    %4920 = vmatprep.subr.mxu0 0.0
    %4921 = vmatpush1.msra.mxu0 0.0
    %4922 = vmatprep.subr.mxu0 0.0
    %4923 = vmatpush1.msra.mxu0 0.0
    %4924 = vmatprep.subr.mxu0 0.0
    %4925 = vmatpush1.msra.mxu0 0.0
    %4926 = vmatprep.subr.mxu0 0.0
    %4927 = vmatpush1.msra.mxu0 0.0
    %4928 = vmatprep.subr.mxu0 0.0
    %4929 = vmatpush1.msra.mxu0 0.0
    %4930 = vmatprep.subr.mxu0 0.0
    %4931 = vmatpush1.msra.mxu0 0.0
    %4932 = vmatprep.subr.mxu0 0.0
    %4933 = vmatpush1.msra.mxu0 0.0
    %4934 = vmatprep.subr.mxu0 0.0
    %4935 = vmatpush1.msra.mxu0 0.0
    %4936 = vmatprep.subr.mxu0 0.0
    %4937 = vmatpush1.msra.mxu0 0.0
    %4938 = vmatprep.subr.mxu0 0.0
    %4939 = vmatpush1.msra.mxu0 0.0
    %4940 = vmatprep.subr.mxu0 0.0
    %4941 = vmatpush1.msra.mxu0 0.0
    %4942 = vmatprep.subr.mxu0 0.0
    %4943 = vmatpush1.msra.mxu0 0.0
    %4944 = vmatprep.subr.mxu0 0.0
    %4945 = vmatpush1.msra.mxu0 0.0
    %4946 = vmatprep.subr.mxu0 0.0
    %4947 = vmatpush1.msra.mxu0 0.0
    %4948 = vmatprep.subr.mxu0 0.0
    %4949 = vmatpush1.msra.mxu0 0.0
    %4950 = vmatprep.subr.mxu0 0.0
    %4951 = vmatpush1.msra.mxu0 0.0
    %4952 = vmatprep.subr.mxu0 0.0
    %4953 = vmatpush1.msra.mxu0 0.0
    %4954 = vmatprep.subr.mxu0 0.0
    %4955 = vmatpush1.msra.mxu0 0.0
    %4956 = vmatprep.subr.mxu0 0.0
    %4957 = vmatpush1.msra.mxu0 0.0
    %4958 = vmatprep.mubr.f32.mxu0 0.0
    %4959 = vmatmul.mubr.f32.gmra.mrb[0].mxu0 %v4892
    %v4960 = vpop.f32.mrb[0].mxu0
    %v4961 = vadd.f32 0.0, %v4960
    %v4962 = vpop.f32.mrb[0].mxu0
    %4963 = vdwg.mxu0
    %v4964 = vadd.f32 %v676, %v4961
    %4966 = vrot.lane.b32.xlu0 %v4548, 32
    %v4967 = vpop.permute.xlu0 %4966
    %v4968 = vsel %vm289, %v4967, 0
    %4970 = vmatprep.subr.mxu0 0.0
    %4971 = vmatpush1.msra.mxu0 %v1870
    %4972 = vmatprep.subr.mxu0 0.0
    %4973 = vmatpush1.msra.mxu0 %v1871
    %4974 = vmatprep.subr.mxu0 0.0
    %4975 = vmatpush1.msra.mxu0 %v1872
    %4976 = vmatprep.subr.mxu0 0.0
    %4977 = vmatpush1.msra.mxu0 %v1873
    %4978 = vmatprep.subr.mxu0 0.0
    %4979 = vmatpush1.msra.mxu0 0.0
    %4980 = vmatprep.subr.mxu0 0.0
    %4981 = vmatpush1.msra.mxu0 0.0
    %4982 = vmatprep.subr.mxu0 0.0
    %4983 = vmatpush1.msra.mxu0 0.0
    %4984 = vmatprep.subr.mxu0 0.0
    %4985 = vmatpush1.msra.mxu0 0.0
    %4986 = vmatprep.subr.mxu0 0.0
    %4987 = vmatpush1.msra.mxu0 0.0
    %4988 = vmatprep.subr.mxu0 0.0
    %4989 = vmatpush1.msra.mxu0 0.0
    %4990 = vmatprep.subr.mxu0 0.0
    %4991 = vmatpush1.msra.mxu0 0.0
    %4992 = vmatprep.subr.mxu0 0.0
    %4993 = vmatpush1.msra.mxu0 0.0
    %4994 = vmatprep.subr.mxu0 0.0
    %4995 = vmatpush1.msra.mxu0 0.0
    %4996 = vmatprep.subr.mxu0 0.0
    %4997 = vmatpush1.msra.mxu0 0.0
    %4998 = vmatprep.subr.mxu0 0.0
    %4999 = vmatpush1.msra.mxu0 0.0
    %5000 = vmatprep.subr.mxu0 0.0
    %5001 = vmatpush1.msra.mxu0 0.0
    %5002 = vmatprep.subr.mxu0 0.0
    %5003 = vmatpush1.msra.mxu0 0.0
    %5004 = vmatprep.subr.mxu0 0.0
    %5005 = vmatpush1.msra.mxu0 0.0
    %5006 = vmatprep.subr.mxu0 0.0
    %5007 = vmatpush1.msra.mxu0 0.0
    %5008 = vmatprep.subr.mxu0 0.0
    %5009 = vmatpush1.msra.mxu0 0.0
    %5010 = vmatprep.subr.mxu0 0.0
    %5011 = vmatpush1.msra.mxu0 0.0
    %5012 = vmatprep.subr.mxu0 0.0
    %5013 = vmatpush1.msra.mxu0 0.0
    %5014 = vmatprep.subr.mxu0 0.0
    %5015 = vmatpush1.msra.mxu0 0.0
    %5016 = vmatprep.subr.mxu0 0.0
    %5017 = vmatpush1.msra.mxu0 0.0
    %5018 = vmatprep.subr.mxu0 0.0
    %5019 = vmatpush1.msra.mxu0 0.0
    %5020 = vmatprep.subr.mxu0 0.0
    %5021 = vmatpush1.msra.mxu0 0.0
    %5022 = vmatprep.subr.mxu0 0.0
    %5023 = vmatpush1.msra.mxu0 0.0
    %5024 = vmatprep.subr.mxu0 0.0
    %5025 = vmatpush1.msra.mxu0 0.0
    %5026 = vmatprep.subr.mxu0 0.0
    %5027 = vmatpush1.msra.mxu0 0.0
    %5028 = vmatprep.subr.mxu0 0.0
    %5029 = vmatpush1.msra.mxu0 0.0
    %5030 = vmatprep.subr.mxu0 0.0
    %5031 = vmatpush1.msra.mxu0 0.0
    %5032 = vmatprep.subr.mxu0 0.0
    %5033 = vmatpush1.msra.mxu0 0.0
    %5034 = vmatprep.mubr.f32.mxu0 0.0
    %5035 = vmatmul.mubr.f32.gmra.mrb[0].mxu0 %v4968
    %v5036 = vpop.f32.mrb[0].mxu0
    %v5037 = vadd.f32 0.0, %v5036
    %v5038 = vpop.f32.mrb[0].mxu0
    %5039 = vdwg.mxu0
    %v5040 = vadd.f32 %v4964, %v5037
    %v5041 = vxor.u32 %v5040, 2147483648
    %v5042 = vmul.f32 %v5041, 1.442695
    %v5043 = vpow.pop %v5042
    %v5044 = vadd.f32 %v5043, 1.0
    %v5045 = vrcp.pop %v5044
    %v5046 = vmul.f32 1.0, %v5045
    %v5047 = vtanh.pop %v5040
    %v5048 = vmul.f32 %v5046, %v4542
    %5050 = vrot.lane.b32.xlu0 %v5047, 64
    %v5051 = vpop.permute.xlu0 %5050
    %v5053 = vmul.f32 %v5046, %v5051
    %5055 = vrot.lane.b32.xlu0 %v5053, 32
    %v5056 = vpop.permute.xlu0 %5055
    %v5058 = vadd.f32 %v5048, %v5056
    %v5059 = vtanh.pop %v5058
    %5061 = vrot.lane.b32.xlu0 %v5059, 64
    %v5062 = vpop.permute.xlu0 %5061
    %v5064 = vmul.f32 %v5046, %v5062
    %v5065 = vld [vmem:[%s45] sm:$0xff]
    %v5066 = vld [vmem:[%s45 + $0x8] sm:$0xff]
    %v5067 = vld [vmem:[%s45 + $0x10] sm:$0xff]
    %v5068 = vld [vmem:[%s45 + $0x18] sm:$0xff]
    %v5069 = vld [vmem:[%s47] sm:$0x1]
    %v5071 = vlaneseq
    %v5072 = vshrl.u32 %v5071, 7
    %v5073 = vsub.s32 0, %v5072
    %v5074 = vrot.slane %v5069, %v5073
    %5077 = vrot.lane.b32.xlu0 %v5064, 32
    %v5078 = vpop.permute.xlu0 %5077
    %v5079 = vsel %vm289, %v5078, 0
    %5081 = vmatprep.subr.mxu0 0.0
    %5082 = vmatpush1.msra.mxu0 %v5065
    %5083 = vmatprep.subr.mxu0 0.0
    %5084 = vmatpush1.msra.mxu0 %v5066
    %5085 = vmatprep.subr.mxu0 0.0
    %5086 = vmatpush1.msra.mxu0 %v5067
    %5087 = vmatprep.subr.mxu0 0.0
    %5088 = vmatpush1.msra.mxu0 %v5068
    %5089 = vmatprep.subr.mxu0 0.0
    %5090 = vmatpush1.msra.mxu0 0.0
    %5091 = vmatprep.subr.mxu0 0.0
    %5092 = vmatpush1.msra.mxu0 0.0
    %5093 = vmatprep.subr.mxu0 0.0
    %5094 = vmatpush1.msra.mxu0 0.0
    %5095 = vmatprep.subr.mxu0 0.0
    %5096 = vmatpush1.msra.mxu0 0.0
    %5097 = vmatprep.subr.mxu0 0.0
    %5098 = vmatpush1.msra.mxu0 0.0
    %5099 = vmatprep.subr.mxu0 0.0
    %5100 = vmatpush1.msra.mxu0 0.0
    %5101 = vmatprep.subr.mxu0 0.0
    %5102 = vmatpush1.msra.mxu0 0.0
    %5103 = vmatprep.subr.mxu0 0.0
    %5104 = vmatpush1.msra.mxu0 0.0
    %5105 = vmatprep.subr.mxu0 0.0
    %5106 = vmatpush1.msra.mxu0 0.0
    %5107 = vmatprep.subr.mxu0 0.0
    %5108 = vmatpush1.msra.mxu0 0.0
    %5109 = vmatprep.subr.mxu0 0.0
    %5110 = vmatpush1.msra.mxu0 0.0
    %5111 = vmatprep.subr.mxu0 0.0
    %5112 = vmatpush1.msra.mxu0 0.0
    %5113 = vmatprep.subr.mxu0 0.0
    %5114 = vmatpush1.msra.mxu0 0.0
    %5115 = vmatprep.subr.mxu0 0.0
    %5116 = vmatpush1.msra.mxu0 0.0
    %5117 = vmatprep.subr.mxu0 0.0
    %5118 = vmatpush1.msra.mxu0 0.0
    %5119 = vmatprep.subr.mxu0 0.0
    %5120 = vmatpush1.msra.mxu0 0.0
    %5121 = vmatprep.subr.mxu0 0.0
    %5122 = vmatpush1.msra.mxu0 0.0
    %5123 = vmatprep.subr.mxu0 0.0
    %5124 = vmatpush1.msra.mxu0 0.0
    %5125 = vmatprep.subr.mxu0 0.0
    %5126 = vmatpush1.msra.mxu0 0.0
    %5127 = vmatprep.subr.mxu0 0.0
    %5128 = vmatpush1.msra.mxu0 0.0
    %5129 = vmatprep.subr.mxu0 0.0
    %5130 = vmatpush1.msra.mxu0 0.0
    %5131 = vmatprep.subr.mxu0 0.0
    %5132 = vmatpush1.msra.mxu0 0.0
    %5133 = vmatprep.subr.mxu0 0.0
    %5134 = vmatpush1.msra.mxu0 0.0
    %5135 = vmatprep.subr.mxu0 0.0
    %5136 = vmatpush1.msra.mxu0 0.0
    %5137 = vmatprep.subr.mxu0 0.0
    %5138 = vmatpush1.msra.mxu0 0.0
    %5139 = vmatprep.subr.mxu0 0.0
    %5140 = vmatpush1.msra.mxu0 0.0
    %5141 = vmatprep.subr.mxu0 0.0
    %5142 = vmatpush1.msra.mxu0 0.0
    %5143 = vmatprep.subr.mxu0 0.0
    %5144 = vmatpush1.msra.mxu0 0.0
    %5145 = vmatprep.mubr.f32.mxu0 0.0
    %5146 = vmatmul.mubr.f32.gmra.mrb[0].mxu0 %v5079
    %v5147 = vpop.f32.mrb[0].mxu0
    %v5148 = vadd.f32 %v5074, %v5147
    %v5149 = vpop.f32.mrb[0].mxu0
    %5150 = vdwg.mxu0
    %v5152 = vrot.slane %v5148, 2
    %v5154 = vadd.f32 %v5148, %v5152
    %v5155 = vrot.slane %v5148, 4
    %v5157 = vadd.f32 %v5154, %v5155
    %vm5158 = vcmask 123904
    %v5159 = vsel %vm5158, %v5157, 0.0
    %v5160 = vrot.slane %v5159, 4
    %v5161 = vadd.f32 %v5159, %v5160
    %v5162 = vrot.slane %v5161, 2
    %v5163 = vadd.f32 %v5161, %v5162
    %v5164 = vrot.slane %v5163, 1
    %v5165 = vadd.f32 %v5163, %v5164
    %v5166 = vrcp.pop 2.0
    %v5167 = vmul.f32 %v5165, %v5166
    %v5168 = vsub.f32 %v5157, %v5167
    %v5169 = vmul.f32 %v5168, %v5168
    %v5170 = vsel %vm5158, %v5169, 0.0
    %v5171 = vrot.slane %v5170, 4
    %v5172 = vadd.f32 %v5170, %v5171
    %v5173 = vrot.slane %v5172, 2
    %v5174 = vadd.f32 %v5172, %v5173
    %v5175 = vrot.slane %v5174, 1
    %v5176 = vadd.f32 %v5174, %v5175
    %v5177 = vmul.f32 %v5176, %v5166
    %v5178 = vadd.f32 %v5177, 1e-05
    %v5179 = vrsqrt.pop %v5178
    %v5180 = vmul.f32 %v5168, %v5179
    %v5181 = vld [vmem:[%s53] sm:$0x1]
    %v5183 = vlaneseq
    %v5184 = vshrl.u32 %v5183, 7
    %v5185 = vsub.s32 0, %v5184
    %v5186 = vrot.slane %v5181, %v5185
    %v5188 = vmul.f32 %v5180, %v5186
    %v5189 = vld [vmem:[%s55] sm:$0x1]
    %v5191 = vlaneseq
    %v5192 = vshrl.u32 %v5191, 7
    %v5193 = vsub.s32 0, %v5192
    %v5194 = vrot.slane %v5189, %v5193
    %v5196 = vadd.f32 %v5188, %v5194
    %v5197 = vld [vmem:[%s57] sm:$0xff]
    %v5198 = vld [vmem:[%s57 + $0x8] sm:$0xff]
    %v5199 = vld [vmem:[%s59] sm:$0x1]
    %v5201 = vlaneseq
    %v5202 = vshrl.u32 %v5201, 7
    %v5203 = vsub.s32 0, %v5202
    %v5204 = vrot.slane %v5199, %v5203
    %vm5206 = vcmask 130048
    %v5208 = vsel %vm5206, %v5196, 0
    %5210 = vmatprep.subr.mxu0 0.0
    %5211 = vmatpush1.msra.mxu0 %v5197
    %5212 = vmatprep.subr.mxu0 0.0
    %5213 = vmatpush1.msra.mxu0 %v5198
    %5214 = vmatprep.subr.mxu0 0.0
    %5215 = vmatpush1.msra.mxu0 0.0
    %5216 = vmatprep.subr.mxu0 0.0
    %5217 = vmatpush1.msra.mxu0 0.0
    %5218 = vmatprep.subr.mxu0 0.0
    %5219 = vmatpush1.msra.mxu0 0.0
    %5220 = vmatprep.subr.mxu0 0.0
    %5221 = vmatpush1.msra.mxu0 0.0
    %5222 = vmatprep.subr.mxu0 0.0
    %5223 = vmatpush1.msra.mxu0 0.0
    %5224 = vmatprep.subr.mxu0 0.0
    %5225 = vmatpush1.msra.mxu0 0.0
    %5226 = vmatprep.subr.mxu0 0.0
    %5227 = vmatpush1.msra.mxu0 0.0
    %5228 = vmatprep.subr.mxu0 0.0
    %5229 = vmatpush1.msra.mxu0 0.0
    %5230 = vmatprep.subr.mxu0 0.0
    %5231 = vmatpush1.msra.mxu0 0.0
    %5232 = vmatprep.subr.mxu0 0.0
    %5233 = vmatpush1.msra.mxu0 0.0
    %5234 = vmatprep.subr.mxu0 0.0
    %5235 = vmatpush1.msra.mxu0 0.0
    %5236 = vmatprep.subr.mxu0 0.0
    %5237 = vmatpush1.msra.mxu0 0.0
    %5238 = vmatprep.subr.mxu0 0.0
    %5239 = vmatpush1.msra.mxu0 0.0
    %5240 = vmatprep.subr.mxu0 0.0
    %5241 = vmatpush1.msra.mxu0 0.0
    %5242 = vmatprep.subr.mxu0 0.0
    %5243 = vmatpush1.msra.mxu0 0.0
    %5244 = vmatprep.subr.mxu0 0.0
    %5245 = vmatpush1.msra.mxu0 0.0
    %5246 = vmatprep.subr.mxu0 0.0
    %5247 = vmatpush1.msra.mxu0 0.0
    %5248 = vmatprep.subr.mxu0 0.0
    %5249 = vmatpush1.msra.mxu0 0.0
    %5250 = vmatprep.subr.mxu0 0.0
    %5251 = vmatpush1.msra.mxu0 0.0
    %5252 = vmatprep.subr.mxu0 0.0
    %5253 = vmatpush1.msra.mxu0 0.0
    %5254 = vmatprep.subr.mxu0 0.0
    %5255 = vmatpush1.msra.mxu0 0.0
    %5256 = vmatprep.subr.mxu0 0.0
    %5257 = vmatpush1.msra.mxu0 0.0
    %5258 = vmatprep.subr.mxu0 0.0
    %5259 = vmatpush1.msra.mxu0 0.0
    %5260 = vmatprep.subr.mxu0 0.0
    %5261 = vmatpush1.msra.mxu0 0.0
    %5262 = vmatprep.subr.mxu0 0.0
    %5263 = vmatpush1.msra.mxu0 0.0
    %5264 = vmatprep.subr.mxu0 0.0
    %5265 = vmatpush1.msra.mxu0 0.0
    %5266 = vmatprep.subr.mxu0 0.0
    %5267 = vmatpush1.msra.mxu0 0.0
    %5268 = vmatprep.subr.mxu0 0.0
    %5269 = vmatpush1.msra.mxu0 0.0
    %5270 = vmatprep.subr.mxu0 0.0
    %5271 = vmatpush1.msra.mxu0 0.0
    %5272 = vmatprep.subr.mxu0 0.0
    %5273 = vmatpush1.msra.mxu0 0.0
    %5274 = vmatprep.mubr.f32.mxu0 0.0
    %5275 = vmatmul.mubr.f32.gmra.mrb[0].mxu0 %v5208
    %v5276 = vpop.f32.mrb[0].mxu0
    %v5277 = vadd.f32 %v5204, %v5276
    %v5278 = vpop.f32.mrb[0].mxu0
    %5279 = vdwg.mxu0
    %vm5280 = vcmask 25600
    %v5281 = vsel %vm5280, %v5277, -inf
    %5282 = vmax.xlane.f32.xlu0 %v5281
    %v5283 = vpop.xlane.xlu0 %5282
    %v5284 = vsub.f32 %v5277, %v5283
    %v5285 = vmul.f32 %v5284, 1.442695
    %v5286 = vpow.pop %v5285
    %v5287 = vsel %vm5280, %v5286, 0.0
    %5288 = vadd.xlane.f32.xlu0 %v5287
    %v5289 = vpop.xlane.xlu0 %5288
    %v5290 = vrcp.pop %v5289
    %v5291 = vmul.f32 %v5286, %v5290
    %5292 = vst.msk [vmem:[#allocation2] sm:$0x3] %vm5280, %v5291
    // Predicated region
    $region122: #{_lambda_.1} parent=1 // pred_check
      _
    $region123: #{_lambda_.1} parent=1 // pred_check_branch
      %5294 = sbr.rel (0) target = $region125
    $region124: #{_lambda_.1} parent=1 // pred_region
      %s5296 = ssub.s32 32, 32
      %5297 = vsyncadd [#allocation3], %s5296
      %s5299 = sshll.u32 [#allocation2], 4
      %s5300 = int_to_ptr.vmem [resolvable:$true] %s5299
      %5302 = dma.vmem_to_hbm [thread:$0]  %s5300, 32, %s61, [#allocation3]
    $region125: #{_lambda_.1} parent=1 // pred_fallthru
      _
    // Predicated region
    $region126: #{_lambda_.1} parent=1 // pred_check
      _
    $region127: #{_lambda_.1} parent=1 // pred_check_branch
      %5304 = sbr.rel (0) target = $region129
    $region128: #{_lambda_.1} parent=1 // pred_region
      %5305 = dma.done [#allocation3], 32
    $region129: #{_lambda_.1} parent=1 // pred_fallthru
      _
    %5306 = vsyncpa [#allocation3], 1

</llo_original>
